<compile_context>
chip_gen: v5e
topology: v5e:2x2
jax: 0.10.0
libtpu: 0.0.40
codegen_flags: <defaults>
</compile_context>

<pallas_src>
import jax
import jax.numpy as jnp
from jax.experimental import pallas as pl
from jax.experimental.pallas import tpu as pltpu

# ----------------------------- hyper-parameters ------------------------------
BATCH = 2
SEQ = 8
BERT_DIM = 768
HIDDEN = 32           # params.hidden_dim
TE = 16               # params.target_embedding_dim
PE = 8                # params.pos_embedding_dim
NUM_TAG = 5           # params.num_tag
POS_TAG_NUM = 10      # params.pos_tag_num
WINDOW = 3            # params.windows
VOCAB = 50
FEAT_DIM = HIDDEN * 3 + TE * 2 + PE * 2          # 144
CONNECT_LABEL_BACKGROUND = True

_ARB = pltpu.CompilerParams(dimension_semantics=("arbitrary",))


def _fs(shape):
    """Full-array BlockSpec with a constant (VMEM-resident) index map."""
    n = len(shape)
    return pl.BlockSpec(tuple(shape), lambda *_: (0,) * n)


def _lstm_cell(gates, c, h_dim):
    """Fused-gate LSTM cell; PyTorch gate order (i|f|g|o) along last dim."""
    i_g = jax.nn.sigmoid(gates[:, 0:h_dim])
    f_g = jax.nn.sigmoid(gates[:, h_dim:2 * h_dim])
    g_g = jnp.tanh(gates[:, 2 * h_dim:3 * h_dim])
    o_g = jax.nn.sigmoid(gates[:, 3 * h_dim:4 * h_dim])
    c_new = f_g * c + i_g * g_g
    h_new = o_g * jnp.tanh(c_new)
    return h_new, c_new


def _run_lstm_dir(xw, whh, T, Bsz, H, reverse=False):
    """One LSTM direction on time-major fused-gate projections xw [T*B, 4H].

    Returns a Python list (length T) of per-timestep hidden states (B, H).
    """
    hs = [None] * T
    h = jnp.zeros((Bsz, H), jnp.float32)
    c = jnp.zeros((Bsz, H), jnp.float32)
    order = range(T - 1, -1, -1) if reverse else range(T)
    first = True
    for t in order:
        g = xw[t * Bsz:(t + 1) * Bsz, :]
        if not first:
            g = g + jnp.dot(h, whh, preferred_element_type=jnp.float32)
        h, c = _lstm_cell(g, c, H)
        hs[t] = h
        first = False
    return hs


def _attn_1q(q, kv):
    """Single-query dot attention: q (B,D), kv (B,K,D) -> (B,D)."""
    s = jnp.sum(q[:, None, :] * kv, axis=-1, keepdims=True)          # (B,K,1)
    s = s - jnp.max(s, axis=1, keepdims=True)
    e = jnp.exp(s)
    w = e * pl.reciprocal(jnp.sum(e, axis=1, keepdims=True), approx=True)
    return jnp.sum(w * kv, axis=1)                                    # (B,D)


# --------------------------- the single fused kernel --------------------------
def alsap_fused(bert_flat_bf16, pos_flat, y_flat, params, Bsz, S):
    """Whole post-embedding forward in one pallas_call.

    bert_flat_bf16 : [B*S, 768] bf16 (batch-major rows b*S + s)
    pos_flat       : [S*B, PE]  f32  (time-major)
    y_flat         : [S*B, TE]  f32  (time-major)
    returns preds_tm [S, B, NUM_TAG]
    """
    wd_w, wd_b = params["word_dim"]
    sub_w, sub_b = params["subsqe"]
    pf_i, pf_h, pf_b = params["pos_lstm_f"]
    pb_i, pb_h, pb_b = params["pos_lstm_r"]
    yf_i, yf_h, yf_b = params["y_lstm_f"]
    yb_i, yb_h, yb_b = params["y_lstm_r"]
    tt_w, tt_b = params["to_target"]
    lo_w, lo_b = params["lstm_out"]
    b2_w, b2_b = params["b2t2"]
    se_w, se_b = params["se"]
    sf_w, sf_b = params["se_first"]
    H = HIDDEN

    def kernel(bert_ref, wd_w_ref, wd_b_ref, sub_w_ref, sub_b_ref,
               pos_ref, pf_i_ref, pf_h_ref, pf_b_ref, pb_i_ref, pb_h_ref, pb_b_ref,
               y_ref, yf_i_ref, yf_h_ref, yf_b_ref, yb_i_ref, yb_h_ref, yb_b_ref,
               tt_w_ref, tt_b_ref, lo_w_ref, lo_b_ref, b2_w_ref, b2_b_ref,
               se_w_ref, se_b_ref, sf_w_ref, sf_b_ref, pred_ref):
        # ---- 1. word_dim linear: bf16 x bf16 -> f32 on the MXU --------------
        out_flat = jnp.dot(bert_ref[...], wd_w_ref[...],
                           preferred_element_type=jnp.float32) + wd_b_ref[...]
        outs = out_flat.reshape(Bsz, S, H)                     # (B, S, H)
        out_t = [outs[:, t, :] for t in range(S)]              # static slices

        # ---- 2. subsqe window (WINDOW == 3) + self-attention -> now_word ----
        # Reference builds [slot0|slot1|slot2] @ W_sub; we split W_sub into the
        # three (H,H) slot blocks so the window concat never materialises.
        sub_w_all = sub_w_ref[...]
        w0 = sub_w_all[0:H, :]
        w1 = sub_w_all[H:2 * H, :]
        w2 = sub_w_all[2 * H:3 * H, :]
        sub_bias = sub_b_ref[...]
        now_word = []
        for t in range(S):
            if t == 0:                     # idx list [0,1] + zero pad
                s0, s1, s2 = out_t[0], out_t[min(1, S - 1)], None
            elif t == S - 1:               # idx list [S-2, S-1] + zero pad
                s0, s1, s2 = out_t[S - 2], out_t[S - 1], None
            else:                          # idx list [t-1, t, t+1]
                s0, s1, s2 = out_t[t - 1], out_t[t], out_t[t + 1]
            ns = (jnp.dot(s0, w0, preferred_element_type=jnp.float32)
                  + jnp.dot(s1, w1, preferred_element_type=jnp.float32)
                  + sub_bias)
            if s2 is not None:
                ns = ns + jnp.dot(s2, w2, preferred_element_type=jnp.float32)
            now_word.append(_attn_1q(ns, outs))                # (B, H)

        # ---- 3. POS bidirectional LSTM (time-major, fused gates) ------------
        posx = pos_ref[...]
        xw_pf = jnp.dot(posx, pf_i_ref[...],
                        preferred_element_type=jnp.float32) + pf_b_ref[...]
        xw_pb = jnp.dot(posx, pb_i_ref[...],
                        preferred_element_type=jnp.float32) + pb_b_ref[...]
        pos_fh = _run_lstm_dir(xw_pf, pf_h_ref[...], S, Bsz, PE, reverse=False)
        pos_bh = _run_lstm_dir(xw_pb, pb_h_ref[...], S, Bsz, PE, reverse=True)

        # ---- 4. y-LSTM shared precompute -------------------------------------
        # Forward direction over any prefix equals the full-sequence forward
        # pass (causal), so it is computed once; the backward input projections
        # are hoisted; only the prefix-dependent backward recurrence remains.
        yx = y_ref[...]
        xw_yf = jnp.dot(yx, yf_i_ref[...],
                        preferred_element_type=jnp.float32) + yf_b_ref[...]
        xw_yb = jnp.dot(yx, yb_i_ref[...],
                        preferred_element_type=jnp.float32) + yb_b_ref[...]
        hf = _run_lstm_dir(xw_yf, yf_h_ref[...], S, Bsz, TE, reverse=False)
        whh_yb = yb_h_ref[...]

        t_iota = jax.lax.broadcasted_iota(jnp.int32, (1, S, 1), 1)
        hf3 = jnp.zeros((Bsz, S, TE), jnp.float32)              # (B, S, TE)
        for t in range(S):
            hf3 = hf3 + jnp.where(t_iota == t, hf[t][:, None, :], 0.0)

        # ---- 5. per-timestep decode (teacher forcing, static unroll) ---------
        for i in range(S):
            nw_i = now_word[i]
            pos_i = jnp.concatenate([pos_fh[i], pos_bh[i]], axis=-1)   # (B,2PE)
            if i == 0:
                cwre = jnp.concatenate(
                    [nw_i, jnp.zeros((Bsz, 2 * TE), jnp.float32)], axis=-1)
                cle = jnp.dot(cwre, tt_w_ref[...],
                              preferred_element_type=jnp.float32) + tt_b_ref[...]
                feat = jnp.concatenate(
                    [out_t[0], out_t[0], nw_i, pos_i, cle, cle], axis=-1)
                pred = jnp.dot(feat, sf_w_ref[...],
                               preferred_element_type=jnp.float32) + sf_b_ref[...]
            else:
                # Fresh backward y-LSTM over the prefix [0 .. i-1] (exactly i cells).
                h = jnp.zeros((Bsz, TE), jnp.float32)
                c = jnp.zeros((Bsz, TE), jnp.float32)
                bwd3 = jnp.zeros((Bsz, S, TE), jnp.float32)
                bwd_last = None
                for t in range(i - 1, -1, -1):
                    g = xw_yb[t * Bsz:(t + 1) * Bsz, :]
                    if t < i - 1:
                        g = g + jnp.dot(h, whh_yb,
                                        preferred_element_type=jnp.float32)
                    h, c = _lstm_cell(g, c, TE)
                    bwd3 = bwd3 + jnp.where(t_iota == t, h[:, None, :], 0.0)
                    if t == i - 1:
                        bwd_last = h
                out_lstm3 = jnp.concatenate([hf3, bwd3], axis=-1)   # (B,S,2TE)
                rel = jnp.concatenate([hf[i - 1], bwd_last], axis=-1)  # (B,2TE)
                label_mem = jnp.dot(rel, lo_w_ref[...],
                                    preferred_element_type=jnp.float32) + lo_b_ref[...]
                label_bg = _attn_1q(label_mem, outs)                # (B, H)
                out_mem = jnp.dot(jnp.concatenate([nw_i, label_bg], axis=-1),
                                  b2_w_ref[...],
                                  preferred_element_type=jnp.float32) + b2_b_ref[...]
                # dot-attention over the prefix keys only (t < i)
                s = jnp.sum(out_mem[:, None, :] * out_lstm3, axis=-1,
                            keepdims=True)                          # (B,S,1)
                s = jnp.where(t_iota < i, s, -1e30)
                s = s - jnp.max(s, axis=1, keepdims=True)
                e = jnp.exp(s)
                w = e * pl.reciprocal(jnp.sum(e, axis=1, keepdims=True),
                                      approx=True)
                label_ctx = jnp.sum(w * out_lstm3, axis=1)          # (B, 2TE)
                feat = jnp.concatenate(
                    [out_t[i], nw_i, pos_i, label_bg, label_ctx], axis=-1)
                pred = jnp.dot(feat, se_w_ref[...],
                               preferred_element_type=jnp.float32) + se_b_ref[...]
            pred_ref[i] = pred                                      # (B, NUM_TAG)

    args = (bert_flat_bf16, wd_w, wd_b, sub_w, sub_b,
            pos_flat, pf_i, pf_h, pf_b, pb_i, pb_h, pb_b,
            y_flat, yf_i, yf_h, yf_b, yb_i, yb_h, yb_b,
            tt_w, tt_b, lo_w, lo_b, b2_w, b2_b,
            se_w, se_b, sf_w, sf_b)

    return pl.pallas_call(
        kernel,
        out_shape=jax.ShapeDtypeStruct((S, Bsz, NUM_TAG), jnp.float32),
        grid=(1,),
        in_specs=[_fs(a.shape) for a in args],
        out_specs=_fs((S, Bsz, NUM_TAG)),
        compiler_params=_ARB,
    )(*args)


# ----------------------------- parameter init --------------------------------
def init_linear(key, in_dim, out_dim):
    k1, k2 = jax.random.split(key)
    w = jax.random.normal(k1, (out_dim, in_dim), jnp.float32) * 0.1
    b = jax.random.normal(k2, (out_dim,), jnp.float32) * 0.1
    return w.T, b.reshape(1, out_dim)        # stored transposed for x @ w_t


def init_lstm_direction(key, in_dim, hid):
    k1, k2, k3, k4 = jax.random.split(key, 4)
    w_ih = jax.random.normal(k1, (4 * hid, in_dim), jnp.float32) * 0.1
    w_hh = jax.random.normal(k2, (4 * hid, hid), jnp.float32) * 0.1
    b_ih = jax.random.normal(k3, (4 * hid,), jnp.float32) * 0.1
    b_hh = jax.random.normal(k4, (4 * hid,), jnp.float32) * 0.1
    # gate-fused layout: x @ Wih -> (.., 4H), PyTorch gate order i|f|g|o
    return w_ih.T, w_hh.T, (b_ih + b_hh).reshape(1, 4 * hid)


def init_params(key):
    ks = jax.random.split(key, 16)
    p = {}
    # TODO(synk): pretrained AutoModelWithLMHead backbone replaced by a
    # synthetic deterministic token-embedding producing the 768-d hidden state.
    p["lm_token_emb"] = jax.random.normal(ks[0], (VOCAB, BERT_DIM), jnp.float32) * 0.1
    w_wd, b_wd = init_linear(ks[1], BERT_DIM, HIDDEN)
    p["word_dim"] = (w_wd.astype(jnp.bfloat16), b_wd)   # bf16 weight feeds the MXU
    p["subsqe"] = init_linear(ks[2], WINDOW * HIDDEN, HIDDEN)
    tgt_emb = jax.random.normal(ks[3], (NUM_TAG + 2, TE), jnp.float32) * 0.1
    p["target_emb"] = tgt_emb.at[0].set(0.0)             # padding_idx=0
    pos_emb = jax.random.normal(ks[4], (POS_TAG_NUM + 2, PE), jnp.float32) * 0.1
    p["pos_emb"] = pos_emb.at[0].set(0.0)                # padding_idx=0
    p["pos_lstm_f"] = init_lstm_direction(ks[5], PE, PE)
    p["pos_lstm_r"] = init_lstm_direction(ks[6], PE, PE)
    p["to_target"] = init_linear(ks[7], HIDDEN + 2 * TE, TE)
    p["y_lstm_f"] = init_lstm_direction(ks[8], TE, TE)
    p["y_lstm_r"] = init_lstm_direction(ks[9], TE, TE)
    p["lstm_out"] = init_linear(ks[10], 2 * TE, HIDDEN)
    p["b2t2"] = init_linear(ks[11], 2 * HIDDEN, 2 * TE)
    p["se"] = init_linear(ks[12], FEAT_DIM, NUM_TAG)
    p["se_first"] = init_linear(ks[13], FEAT_DIM, NUM_TAG)
    return p


# ------------------------------- forward pass --------------------------------
def alsap_forward(params, X, y, pos_data):
    B_, S_ = X.shape
    assert WINDOW == 3 and S_ >= 2, "window specialisation assumes windows==3"

    # synthetic LM last hidden state: [B, S, 768] -> bf16 MXU feed
    bert_out = jnp.take(params["lm_token_emb"], X, axis=0)
    bert_flat = bert_out.reshape(B_ * S_, BERT_DIM).astype(jnp.bfloat16)

    pos_mod = jnp.where(pos_data < -1, POS_TAG_NUM + 1, pos_data)
    pos_emb = jnp.take(params["pos_emb"], pos_mod, axis=0)            # (B,S,PE)
    pos_flat = jnp.transpose(pos_emb, (1, 0, 2)).reshape(S_ * B_, PE)  # time-major

    y_mod = jnp.where(y < -1, NUM_TAG + 1, y)
    y_emb = jnp.take(params["target_emb"], y_mod, axis=0)             # (B,S,TE)
    y_flat = jnp.transpose(y_emb, (1, 0, 2)).reshape(S_ * B_, TE)     # time-major

    preds_tm = alsap_fused(bert_flat, pos_flat, y_flat, params, B_, S_)
    prediction2 = jnp.transpose(preds_tm, (1, 0, 2))                  # (B,S,tag)
    hcl_loss = 0.0   # reference forward returns the constant 0
    return prediction2, hcl_loss


# ------------------------------------ main ------------------------------------
if __name__ == "__main__":
    key = jax.random.PRNGKey(0)
    pkey, xkey, ykey, poskey = jax.random.split(key, 4)
    params = init_params(pkey)

    X = jax.random.randint(xkey, (BATCH, SEQ), 0, VOCAB, dtype=jnp.int32)
    y = jax.random.randint(ykey, (BATCH, SEQ), 1, NUM_TAG + 1, dtype=jnp.int32)
    pos_data = jax.random.randint(poskey, (BATCH, SEQ), 1, POS_TAG_NUM + 1,
                                  dtype=jnp.int32)

    forward = jax.jit(alsap_forward)
    prediction, hcl_loss = forward(params, X, y, pos_data)
    prediction = jax.block_until_ready(prediction)
    assert prediction.shape == (BATCH, SEQ, NUM_TAG)
    assert bool(jnp.all(jnp.isfinite(prediction)))
    print("KERNEL_OK")
</pallas_src>

<mosaic_0001>
module attributes {stable_mosaic.version = 11 : i64} {
  func.func @kernel(%arg0: i32, %arg1: memref<16x768xbf16, #tpu.memory_space<vmem>>, %arg2: memref<768x32xbf16, #tpu.memory_space<vmem>>, %arg3: memref<1x32xf32, #tpu.memory_space<vmem>>, %arg4: memref<96x32xf32, #tpu.memory_space<vmem>>, %arg5: memref<1x32xf32, #tpu.memory_space<vmem>>, %arg6: memref<16x8xf32, #tpu.memory_space<vmem>>, %arg7: memref<8x32xf32, #tpu.memory_space<vmem>>, %arg8: memref<8x32xf32, #tpu.memory_space<vmem>>, %arg9: memref<1x32xf32, #tpu.memory_space<vmem>>, %arg10: memref<8x32xf32, #tpu.memory_space<vmem>>, %arg11: memref<8x32xf32, #tpu.memory_space<vmem>>, %arg12: memref<1x32xf32, #tpu.memory_space<vmem>>, %arg13: memref<16x16xf32, #tpu.memory_space<vmem>>, %arg14: memref<16x64xf32, #tpu.memory_space<vmem>>, %arg15: memref<16x64xf32, #tpu.memory_space<vmem>>, %arg16: memref<1x64xf32, #tpu.memory_space<vmem>>, %arg17: memref<16x64xf32, #tpu.memory_space<vmem>>, %arg18: memref<16x64xf32, #tpu.memory_space<vmem>>, %arg19: memref<1x64xf32, #tpu.memory_space<vmem>>, %arg20: memref<64x16xf32, #tpu.memory_space<vmem>>, %arg21: memref<1x16xf32, #tpu.memory_space<vmem>>, %arg22: memref<32x32xf32, #tpu.memory_space<vmem>>, %arg23: memref<1x32xf32, #tpu.memory_space<vmem>>, %arg24: memref<64x32xf32, #tpu.memory_space<vmem>>, %arg25: memref<1x32xf32, #tpu.memory_space<vmem>>, %arg26: memref<144x5xf32, #tpu.memory_space<vmem>>, %arg27: memref<1x5xf32, #tpu.memory_space<vmem>>, %arg28: memref<144x5xf32, #tpu.memory_space<vmem>>, %arg29: memref<1x5xf32, #tpu.memory_space<vmem>>, %arg30: memref<8x2x5xf32, #tpu.memory_space<vmem>>) attributes {dimension_semantics = [#tpu.dimension_semantics<arbitrary>], iteration_bounds = array<i64: 1>, scalar_prefetch = 0 : i64, scratch_operands = 0 : i64, tpu.core_type = #tpu.core_type<tc>, window_params = [{pipeline_mode = #tpu.pipeline_mode<synchronous>, transform_indices = @transform_0, window_bounds = array<i64: 16, 768>}, {pipeline_mode = #tpu.pipeline_mode<synchronous>, transform_indices = @transform_1, window_bounds = array<i64: 768, 32>}, {pipeline_mode = #tpu.pipeline_mode<synchronous>, transform_indices = @transform_2, window_bounds = array<i64: 1, 32>}, {pipeline_mode = #tpu.pipeline_mode<synchronous>, transform_indices = @transform_3, window_bounds = array<i64: 96, 32>}, {pipeline_mode = #tpu.pipeline_mode<synchronous>, transform_indices = @transform_4, window_bounds = array<i64: 1, 32>}, {pipeline_mode = #tpu.pipeline_mode<synchronous>, transform_indices = @transform_5, window_bounds = array<i64: 16, 8>}, {pipeline_mode = #tpu.pipeline_mode<synchronous>, transform_indices = @transform_6, window_bounds = array<i64: 8, 32>}, {pipeline_mode = #tpu.pipeline_mode<synchronous>, transform_indices = @transform_7, window_bounds = array<i64: 8, 32>}, {pipeline_mode = #tpu.pipeline_mode<synchronous>, transform_indices = @transform_8, window_bounds = array<i64: 1, 32>}, {pipeline_mode = #tpu.pipeline_mode<synchronous>, transform_indices = @transform_9, window_bounds = array<i64: 8, 32>}, {pipeline_mode = #tpu.pipeline_mode<synchronous>, transform_indices = @transform_10, window_bounds = array<i64: 8, 32>}, {pipeline_mode = #tpu.pipeline_mode<synchronous>, transform_indices = @transform_11, window_bounds = array<i64: 1, 32>}, {pipeline_mode = #tpu.pipeline_mode<synchronous>, transform_indices = @transform_12, window_bounds = array<i64: 16, 16>}, {pipeline_mode = #tpu.pipeline_mode<synchronous>, transform_indices = @transform_13, window_bounds = array<i64: 16, 64>}, {pipeline_mode = #tpu.pipeline_mode<synchronous>, transform_indices = @transform_14, window_bounds = array<i64: 16, 64>}, {pipeline_mode = #tpu.pipeline_mode<synchronous>, transform_indices = @transform_15, window_bounds = array<i64: 1, 64>}, {pipeline_mode = #tpu.pipeline_mode<synchronous>, transform_indices = @transform_16, window_bounds = array<i64: 16, 64>}, {pipeline_mode = #tpu.pipeline_mode<synchronous>, transform_indices = @transform_17, window_bounds = array<i64: 16, 64>}, {pipeline_mode = #tpu.pipeline_mode<synchronous>, transform_indices = @transform_18, window_bounds = array<i64: 1, 64>}, {pipeline_mode = #tpu.pipeline_mode<synchronous>, transform_indices = @transform_19, window_bounds = array<i64: 64, 16>}, {pipeline_mode = #tpu.pipeline_mode<synchronous>, transform_indices = @transform_20, window_bounds = array<i64: 1, 16>}, {pipeline_mode = #tpu.pipeline_mode<synchronous>, transform_indices = @transform_21, window_bounds = array<i64: 32, 32>}, {pipeline_mode = #tpu.pipeline_mode<synchronous>, transform_indices = @transform_22, window_bounds = array<i64: 1, 32>}, {pipeline_mode = #tpu.pipeline_mode<synchronous>, transform_indices = @transform_23, window_bounds = array<i64: 64, 32>}, {pipeline_mode = #tpu.pipeline_mode<synchronous>, transform_indices = @transform_24, window_bounds = array<i64: 1, 32>}, {pipeline_mode = #tpu.pipeline_mode<synchronous>, transform_indices = @transform_25, window_bounds = array<i64: 144, 5>}, {pipeline_mode = #tpu.pipeline_mode<synchronous>, transform_indices = @transform_26, window_bounds = array<i64: 1, 5>}, {pipeline_mode = #tpu.pipeline_mode<synchronous>, transform_indices = @transform_27, window_bounds = array<i64: 144, 5>}, {pipeline_mode = #tpu.pipeline_mode<synchronous>, transform_indices = @transform_28, window_bounds = array<i64: 1, 5>}, {pipeline_mode = #tpu.pipeline_mode<synchronous>, transform_indices = @transform_29, window_bounds = array<i64: 8, 2, 5>}]} {
    %c0 = arith.constant 0 : index
    %c0_0 = arith.constant 0 : index
    %0 = vector.load %arg1[%c0, %c0_0] : memref<16x768xbf16, #tpu.memory_space<vmem>>, vector<16x768xbf16>
    %c0_1 = arith.constant 0 : index
    %c0_2 = arith.constant 0 : index
    %1 = vector.load %arg2[%c0_1, %c0_2] : memref<768x32xbf16, #tpu.memory_space<vmem>>, vector<768x32xbf16>
    %cst = arith.constant dense<0.000000e+00> : vector<16x32xf32>
    %2 = tpu.matmul %0, %1, %cst {dimension_numbers = #tpu.dot_dimension_numbers<[1], [0], [0], [1], [0, 0, 1, 1], [], []>} : vector<16x768xbf16>, vector<768x32xbf16>, vector<16x32xf32> -> vector<16x32xf32>
    %c0_3 = arith.constant 0 : index
    %c0_4 = arith.constant 0 : index
    %3 = vector.load %arg3[%c0_3, %c0_4] : memref<1x32xf32, #tpu.memory_space<vmem>>, vector<1x32xf32>
    %4 = vector.broadcast %3 : vector<1x32xf32> to vector<16x32xf32>
    %5 = arith.addf %2, %4 : vector<16x32xf32>
    %6 = vector.shape_cast %5 : vector<16x32xf32> to vector<2x8x32xf32>
    %7 = vector.extract_strided_slice %6 {offsets = [0, 0, 0], sizes = [2, 1, 32], strides = [1, 1, 1]} : vector<2x8x32xf32> to vector<2x1x32xf32>
    %8 = vector.shape_cast %7 : vector<2x1x32xf32> to vector<2x32xf32>
    %9 = vector.extract_strided_slice %6 {offsets = [0, 1, 0], sizes = [2, 1, 32], strides = [1, 1, 1]} : vector<2x8x32xf32> to vector<2x1x32xf32>
    %10 = vector.shape_cast %9 : vector<2x1x32xf32> to vector<2x32xf32>
    %11 = vector.extract_strided_slice %6 {offsets = [0, 2, 0], sizes = [2, 1, 32], strides = [1, 1, 1]} : vector<2x8x32xf32> to vector<2x1x32xf32>
    %12 = vector.shape_cast %11 : vector<2x1x32xf32> to vector<2x32xf32>
    %13 = vector.extract_strided_slice %6 {offsets = [0, 3, 0], sizes = [2, 1, 32], strides = [1, 1, 1]} : vector<2x8x32xf32> to vector<2x1x32xf32>
    %14 = vector.shape_cast %13 : vector<2x1x32xf32> to vector<2x32xf32>
    %15 = vector.extract_strided_slice %6 {offsets = [0, 4, 0], sizes = [2, 1, 32], strides = [1, 1, 1]} : vector<2x8x32xf32> to vector<2x1x32xf32>
    %16 = vector.shape_cast %15 : vector<2x1x32xf32> to vector<2x32xf32>
    %17 = vector.extract_strided_slice %6 {offsets = [0, 5, 0], sizes = [2, 1, 32], strides = [1, 1, 1]} : vector<2x8x32xf32> to vector<2x1x32xf32>
    %18 = vector.shape_cast %17 : vector<2x1x32xf32> to vector<2x32xf32>
    %19 = vector.extract_strided_slice %6 {offsets = [0, 6, 0], sizes = [2, 1, 32], strides = [1, 1, 1]} : vector<2x8x32xf32> to vector<2x1x32xf32>
    %20 = vector.shape_cast %19 : vector<2x1x32xf32> to vector<2x32xf32>
    %21 = vector.extract_strided_slice %6 {offsets = [0, 7, 0], sizes = [2, 1, 32], strides = [1, 1, 1]} : vector<2x8x32xf32> to vector<2x1x32xf32>
    %22 = vector.shape_cast %21 : vector<2x1x32xf32> to vector<2x32xf32>
    %c0_5 = arith.constant 0 : index
    %c0_6 = arith.constant 0 : index
    %23 = vector.load %arg4[%c0_5, %c0_6] : memref<96x32xf32, #tpu.memory_space<vmem>>, vector<96x32xf32>
    %24 = vector.extract_strided_slice %23 {offsets = [0, 0], sizes = [32, 32], strides = [1, 1]} : vector<96x32xf32> to vector<32x32xf32>
    %25 = vector.extract_strided_slice %23 {offsets = [32, 0], sizes = [32, 32], strides = [1, 1]} : vector<96x32xf32> to vector<32x32xf32>
    %26 = vector.extract_strided_slice %23 {offsets = [64, 0], sizes = [32, 32], strides = [1, 1]} : vector<96x32xf32> to vector<32x32xf32>
    %c0_7 = arith.constant 0 : index
    %c0_8 = arith.constant 0 : index
    %27 = vector.load %arg5[%c0_7, %c0_8] : memref<1x32xf32, #tpu.memory_space<vmem>>, vector<1x32xf32>
    %cst_9 = arith.constant dense<0.000000e+00> : vector<2x32xf32>
    %28 = tpu.matmul %8, %24, %cst_9 {dimension_numbers = #tpu.dot_dimension_numbers<[1], [0], [0], [1], [0, 0, 1, 1], [], []>} : vector<2x32xf32>, vector<32x32xf32>, vector<2x32xf32> -> vector<2x32xf32>
    %cst_10 = arith.constant dense<0.000000e+00> : vector<2x32xf32>
    %29 = tpu.matmul %10, %25, %cst_10 {dimension_numbers = #tpu.dot_dimension_numbers<[1], [0], [0], [1], [0, 0, 1, 1], [], []>} : vector<2x32xf32>, vector<32x32xf32>, vector<2x32xf32> -> vector<2x32xf32>
    %30 = arith.addf %28, %29 : vector<2x32xf32>
    %31 = vector.broadcast %27 : vector<1x32xf32> to vector<2x32xf32>
    %32 = arith.addf %30, %31 : vector<2x32xf32>
    %33 = vector.shape_cast %32 : vector<2x32xf32> to vector<2x1x32xf32>
    %34 = vector.broadcast %33 : vector<2x1x32xf32> to vector<2x8x32xf32>
    %35 = arith.mulf %34, %6 : vector<2x8x32xf32>
    %cst_11 = arith.constant dense<0.000000e+00> : vector<2x8xf32>
    %36 = vector.multi_reduction <add>, %35, %cst_11 [2] : vector<2x8x32xf32> to vector<2x8xf32>
    %37 = vector.shape_cast %36 : vector<2x8xf32> to vector<2x8x1xf32>
    %cst_12 = arith.constant dense<0xFF800000> : vector<2x1xf32>
    %38 = vector.multi_reduction <maximumf>, %37, %cst_12 [1] : vector<2x8x1xf32> to vector<2x1xf32>
    %39 = vector.shape_cast %38 : vector<2x1xf32> to vector<2x1x1xf32>
    %40 = vector.broadcast %39 : vector<2x1x1xf32> to vector<2x8x1xf32>
    %41 = arith.subf %37, %40 : vector<2x8x1xf32>
    %42 = math.exp %41 : vector<2x8x1xf32>
    %cst_13 = arith.constant dense<0.000000e+00> : vector<2x1xf32>
    %43 = vector.multi_reduction <add>, %42, %cst_13 [1] : vector<2x8x1xf32> to vector<2x1xf32>
    %44 = vector.shape_cast %43 : vector<2x1xf32> to vector<2x1x1xf32>
    %45 = tpu.reciprocal %44 {approx = true} : vector<2x1x1xf32> -> vector<2x1x1xf32>
    %46 = vector.broadcast %45 : vector<2x1x1xf32> to vector<2x8x1xf32>
    %47 = arith.mulf %42, %46 : vector<2x8x1xf32>
    %48 = vector.broadcast %47 : vector<2x8x1xf32> to vector<2x8x32xf32>
    %49 = arith.mulf %48, %6 : vector<2x8x32xf32>
    %cst_14 = arith.constant dense<0.000000e+00> : vector<2x32xf32>
    %50 = vector.multi_reduction <add>, %49, %cst_14 [1] : vector<2x8x32xf32> to vector<2x32xf32>
    %cst_15 = arith.constant dense<0.000000e+00> : vector<2x32xf32>
    %51 = tpu.matmul %8, %24, %cst_15 {dimension_numbers = #tpu.dot_dimension_numbers<[1], [0], [0], [1], [0, 0, 1, 1], [], []>} : vector<2x32xf32>, vector<32x32xf32>, vector<2x32xf32> -> vector<2x32xf32>
    %cst_16 = arith.constant dense<0.000000e+00> : vector<2x32xf32>
    %52 = tpu.matmul %10, %25, %cst_16 {dimension_numbers = #tpu.dot_dimension_numbers<[1], [0], [0], [1], [0, 0, 1, 1], [], []>} : vector<2x32xf32>, vector<32x32xf32>, vector<2x32xf32> -> vector<2x32xf32>
    %53 = arith.addf %51, %52 : vector<2x32xf32>
    %54 = vector.broadcast %27 : vector<1x32xf32> to vector<2x32xf32>
    %55 = arith.addf %53, %54 : vector<2x32xf32>
    %cst_17 = arith.constant dense<0.000000e+00> : vector<2x32xf32>
    %56 = tpu.matmul %12, %26, %cst_17 {dimension_numbers = #tpu.dot_dimension_numbers<[1], [0], [0], [1], [0, 0, 1, 1], [], []>} : vector<2x32xf32>, vector<32x32xf32>, vector<2x32xf32> -> vector<2x32xf32>
    %57 = arith.addf %55, %56 : vector<2x32xf32>
    %58 = vector.shape_cast %57 : vector<2x32xf32> to vector<2x1x32xf32>
    %59 = vector.broadcast %58 : vector<2x1x32xf32> to vector<2x8x32xf32>
    %60 = arith.mulf %59, %6 : vector<2x8x32xf32>
    %cst_18 = arith.constant dense<0.000000e+00> : vector<2x8xf32>
    %61 = vector.multi_reduction <add>, %60, %cst_18 [2] : vector<2x8x32xf32> to vector<2x8xf32>
    %62 = vector.shape_cast %61 : vector<2x8xf32> to vector<2x8x1xf32>
    %cst_19 = arith.constant dense<0xFF800000> : vector<2x1xf32>
    %63 = vector.multi_reduction <maximumf>, %62, %cst_19 [1] : vector<2x8x1xf32> to vector<2x1xf32>
    %64 = vector.shape_cast %63 : vector<2x1xf32> to vector<2x1x1xf32>
    %65 = vector.broadcast %64 : vector<2x1x1xf32> to vector<2x8x1xf32>
    %66 = arith.subf %62, %65 : vector<2x8x1xf32>
    %67 = math.exp %66 : vector<2x8x1xf32>
    %cst_20 = arith.constant dense<0.000000e+00> : vector<2x1xf32>
    %68 = vector.multi_reduction <add>, %67, %cst_20 [1] : vector<2x8x1xf32> to vector<2x1xf32>
    %69 = vector.shape_cast %68 : vector<2x1xf32> to vector<2x1x1xf32>
    %70 = tpu.reciprocal %69 {approx = true} : vector<2x1x1xf32> -> vector<2x1x1xf32>
    %71 = vector.broadcast %70 : vector<2x1x1xf32> to vector<2x8x1xf32>
    %72 = arith.mulf %67, %71 : vector<2x8x1xf32>
    %73 = vector.broadcast %72 : vector<2x8x1xf32> to vector<2x8x32xf32>
    %74 = arith.mulf %73, %6 : vector<2x8x32xf32>
    %cst_21 = arith.constant dense<0.000000e+00> : vector<2x32xf32>
    %75 = vector.multi_reduction <add>, %74, %cst_21 [1] : vector<2x8x32xf32> to vector<2x32xf32>
    %cst_22 = arith.constant dense<0.000000e+00> : vector<2x32xf32>
    %76 = tpu.matmul %10, %24, %cst_22 {dimension_numbers = #tpu.dot_dimension_numbers<[1], [0], [0], [1], [0, 0, 1, 1], [], []>} : vector<2x32xf32>, vector<32x32xf32>, vector<2x32xf32> -> vector<2x32xf32>
    %cst_23 = arith.constant dense<0.000000e+00> : vector<2x32xf32>
    %77 = tpu.matmul %12, %25, %cst_23 {dimension_numbers = #tpu.dot_dimension_numbers<[1], [0], [0], [1], [0, 0, 1, 1], [], []>} : vector<2x32xf32>, vector<32x32xf32>, vector<2x32xf32> -> vector<2x32xf32>
    %78 = arith.addf %76, %77 : vector<2x32xf32>
    %79 = vector.broadcast %27 : vector<1x32xf32> to vector<2x32xf32>
    %80 = arith.addf %78, %79 : vector<2x32xf32>
    %cst_24 = arith.constant dense<0.000000e+00> : vector<2x32xf32>
    %81 = tpu.matmul %14, %26, %cst_24 {dimension_numbers = #tpu.dot_dimension_numbers<[1], [0], [0], [1], [0, 0, 1, 1], [], []>} : vector<2x32xf32>, vector<32x32xf32>, vector<2x32xf32> -> vector<2x32xf32>
    %82 = arith.addf %80, %81 : vector<2x32xf32>
    %83 = vector.shape_cast %82 : vector<2x32xf32> to vector<2x1x32xf32>
    %84 = vector.broadcast %83 : vector<2x1x32xf32> to vector<2x8x32xf32>
    %85 = arith.mulf %84, %6 : vector<2x8x32xf32>
    %cst_25 = arith.constant dense<0.000000e+00> : vector<2x8xf32>
    %86 = vector.multi_reduction <add>, %85, %cst_25 [2] : vector<2x8x32xf32> to vector<2x8xf32>
    %87 = vector.shape_cast %86 : vector<2x8xf32> to vector<2x8x1xf32>
    %cst_26 = arith.constant dense<0xFF800000> : vector<2x1xf32>
    %88 = vector.multi_reduction <maximumf>, %87, %cst_26 [1] : vector<2x8x1xf32> to vector<2x1xf32>
    %89 = vector.shape_cast %88 : vector<2x1xf32> to vector<2x1x1xf32>
    %90 = vector.broadcast %89 : vector<2x1x1xf32> to vector<2x8x1xf32>
    %91 = arith.subf %87, %90 : vector<2x8x1xf32>
    %92 = math.exp %91 : vector<2x8x1xf32>
    %cst_27 = arith.constant dense<0.000000e+00> : vector<2x1xf32>
    %93 = vector.multi_reduction <add>, %92, %cst_27 [1] : vector<2x8x1xf32> to vector<2x1xf32>
    %94 = vector.shape_cast %93 : vector<2x1xf32> to vector<2x1x1xf32>
    %95 = tpu.reciprocal %94 {approx = true} : vector<2x1x1xf32> -> vector<2x1x1xf32>
    %96 = vector.broadcast %95 : vector<2x1x1xf32> to vector<2x8x1xf32>
    %97 = arith.mulf %92, %96 : vector<2x8x1xf32>
    %98 = vector.broadcast %97 : vector<2x8x1xf32> to vector<2x8x32xf32>
    %99 = arith.mulf %98, %6 : vector<2x8x32xf32>
    %cst_28 = arith.constant dense<0.000000e+00> : vector<2x32xf32>
    %100 = vector.multi_reduction <add>, %99, %cst_28 [1] : vector<2x8x32xf32> to vector<2x32xf32>
    %cst_29 = arith.constant dense<0.000000e+00> : vector<2x32xf32>
    %101 = tpu.matmul %12, %24, %cst_29 {dimension_numbers = #tpu.dot_dimension_numbers<[1], [0], [0], [1], [0, 0, 1, 1], [], []>} : vector<2x32xf32>, vector<32x32xf32>, vector<2x32xf32> -> vector<2x32xf32>
    %cst_30 = arith.constant dense<0.000000e+00> : vector<2x32xf32>
    %102 = tpu.matmul %14, %25, %cst_30 {dimension_numbers = #tpu.dot_dimension_numbers<[1], [0], [0], [1], [0, 0, 1, 1], [], []>} : vector<2x32xf32>, vector<32x32xf32>, vector<2x32xf32> -> vector<2x32xf32>
    %103 = arith.addf %101, %102 : vector<2x32xf32>
    %104 = vector.broadcast %27 : vector<1x32xf32> to vector<2x32xf32>
    %105 = arith.addf %103, %104 : vector<2x32xf32>
    %cst_31 = arith.constant dense<0.000000e+00> : vector<2x32xf32>
    %106 = tpu.matmul %16, %26, %cst_31 {dimension_numbers = #tpu.dot_dimension_numbers<[1], [0], [0], [1], [0, 0, 1, 1], [], []>} : vector<2x32xf32>, vector<32x32xf32>, vector<2x32xf32> -> vector<2x32xf32>
    %107 = arith.addf %105, %106 : vector<2x32xf32>
    %108 = vector.shape_cast %107 : vector<2x32xf32> to vector<2x1x32xf32>
    %109 = vector.broadcast %108 : vector<2x1x32xf32> to vector<2x8x32xf32>
    %110 = arith.mulf %109, %6 : vector<2x8x32xf32>
    %cst_32 = arith.constant dense<0.000000e+00> : vector<2x8xf32>
    %111 = vector.multi_reduction <add>, %110, %cst_32 [2] : vector<2x8x32xf32> to vector<2x8xf32>
    %112 = vector.shape_cast %111 : vector<2x8xf32> to vector<2x8x1xf32>
    %cst_33 = arith.constant dense<0xFF800000> : vector<2x1xf32>
    %113 = vector.multi_reduction <maximumf>, %112, %cst_33 [1] : vector<2x8x1xf32> to vector<2x1xf32>
    %114 = vector.shape_cast %113 : vector<2x1xf32> to vector<2x1x1xf32>
    %115 = vector.broadcast %114 : vector<2x1x1xf32> to vector<2x8x1xf32>
    %116 = arith.subf %112, %115 : vector<2x8x1xf32>
    %117 = math.exp %116 : vector<2x8x1xf32>
    %cst_34 = arith.constant dense<0.000000e+00> : vector<2x1xf32>
    %118 = vector.multi_reduction <add>, %117, %cst_34 [1] : vector<2x8x1xf32> to vector<2x1xf32>
    %119 = vector.shape_cast %118 : vector<2x1xf32> to vector<2x1x1xf32>
    %120 = tpu.reciprocal %119 {approx = true} : vector<2x1x1xf32> -> vector<2x1x1xf32>
    %121 = vector.broadcast %120 : vector<2x1x1xf32> to vector<2x8x1xf32>
    %122 = arith.mulf %117, %121 : vector<2x8x1xf32>
    %123 = vector.broadcast %122 : vector<2x8x1xf32> to vector<2x8x32xf32>
    %124 = arith.mulf %123, %6 : vector<2x8x32xf32>
    %cst_35 = arith.constant dense<0.000000e+00> : vector<2x32xf32>
    %125 = vector.multi_reduction <add>, %124, %cst_35 [1] : vector<2x8x32xf32> to vector<2x32xf32>
    %cst_36 = arith.constant dense<0.000000e+00> : vector<2x32xf32>
    %126 = tpu.matmul %14, %24, %cst_36 {dimension_numbers = #tpu.dot_dimension_numbers<[1], [0], [0], [1], [0, 0, 1, 1], [], []>} : vector<2x32xf32>, vector<32x32xf32>, vector<2x32xf32> -> vector<2x32xf32>
    %cst_37 = arith.constant dense<0.000000e+00> : vector<2x32xf32>
    %127 = tpu.matmul %16, %25, %cst_37 {dimension_numbers = #tpu.dot_dimension_numbers<[1], [0], [0], [1], [0, 0, 1, 1], [], []>} : vector<2x32xf32>, vector<32x32xf32>, vector<2x32xf32> -> vector<2x32xf32>
    %128 = arith.addf %126, %127 : vector<2x32xf32>
    %129 = vector.broadcast %27 : vector<1x32xf32> to vector<2x32xf32>
    %130 = arith.addf %128, %129 : vector<2x32xf32>
    %cst_38 = arith.constant dense<0.000000e+00> : vector<2x32xf32>
    %131 = tpu.matmul %18, %26, %cst_38 {dimension_numbers = #tpu.dot_dimension_numbers<[1], [0], [0], [1], [0, 0, 1, 1], [], []>} : vector<2x32xf32>, vector<32x32xf32>, vector<2x32xf32> -> vector<2x32xf32>
    %132 = arith.addf %130, %131 : vector<2x32xf32>
    %133 = vector.shape_cast %132 : vector<2x32xf32> to vector<2x1x32xf32>
    %134 = vector.broadcast %133 : vector<2x1x32xf32> to vector<2x8x32xf32>
    %135 = arith.mulf %134, %6 : vector<2x8x32xf32>
    %cst_39 = arith.constant dense<0.000000e+00> : vector<2x8xf32>
    %136 = vector.multi_reduction <add>, %135, %cst_39 [2] : vector<2x8x32xf32> to vector<2x8xf32>
    %137 = vector.shape_cast %136 : vector<2x8xf32> to vector<2x8x1xf32>
    %cst_40 = arith.constant dense<0xFF800000> : vector<2x1xf32>
    %138 = vector.multi_reduction <maximumf>, %137, %cst_40 [1] : vector<2x8x1xf32> to vector<2x1xf32>
    %139 = vector.shape_cast %138 : vector<2x1xf32> to vector<2x1x1xf32>
    %140 = vector.broadcast %139 : vector<2x1x1xf32> to vector<2x8x1xf32>
    %141 = arith.subf %137, %140 : vector<2x8x1xf32>
    %142 = math.exp %141 : vector<2x8x1xf32>
    %cst_41 = arith.constant dense<0.000000e+00> : vector<2x1xf32>
    %143 = vector.multi_reduction <add>, %142, %cst_41 [1] : vector<2x8x1xf32> to vector<2x1xf32>
    %144 = vector.shape_cast %143 : vector<2x1xf32> to vector<2x1x1xf32>
    %145 = tpu.reciprocal %144 {approx = true} : vector<2x1x1xf32> -> vector<2x1x1xf32>
    %146 = vector.broadcast %145 : vector<2x1x1xf32> to vector<2x8x1xf32>
    %147 = arith.mulf %142, %146 : vector<2x8x1xf32>
    %148 = vector.broadcast %147 : vector<2x8x1xf32> to vector<2x8x32xf32>
    %149 = arith.mulf %148, %6 : vector<2x8x32xf32>
    %cst_42 = arith.constant dense<0.000000e+00> : vector<2x32xf32>
    %150 = vector.multi_reduction <add>, %149, %cst_42 [1] : vector<2x8x32xf32> to vector<2x32xf32>
    %cst_43 = arith.constant dense<0.000000e+00> : vector<2x32xf32>
    %151 = tpu.matmul %16, %24, %cst_43 {dimension_numbers = #tpu.dot_dimension_numbers<[1], [0], [0], [1], [0, 0, 1, 1], [], []>} : vector<2x32xf32>, vector<32x32xf32>, vector<2x32xf32> -> vector<2x32xf32>
    %cst_44 = arith.constant dense<0.000000e+00> : vector<2x32xf32>
    %152 = tpu.matmul %18, %25, %cst_44 {dimension_numbers = #tpu.dot_dimension_numbers<[1], [0], [0], [1], [0, 0, 1, 1], [], []>} : vector<2x32xf32>, vector<32x32xf32>, vector<2x32xf32> -> vector<2x32xf32>
    %153 = arith.addf %151, %152 : vector<2x32xf32>
    %154 = vector.broadcast %27 : vector<1x32xf32> to vector<2x32xf32>
    %155 = arith.addf %153, %154 : vector<2x32xf32>
    %cst_45 = arith.constant dense<0.000000e+00> : vector<2x32xf32>
    %156 = tpu.matmul %20, %26, %cst_45 {dimension_numbers = #tpu.dot_dimension_numbers<[1], [0], [0], [1], [0, 0, 1, 1], [], []>} : vector<2x32xf32>, vector<32x32xf32>, vector<2x32xf32> -> vector<2x32xf32>
    %157 = arith.addf %155, %156 : vector<2x32xf32>
    %158 = vector.shape_cast %157 : vector<2x32xf32> to vector<2x1x32xf32>
    %159 = vector.broadcast %158 : vector<2x1x32xf32> to vector<2x8x32xf32>
    %160 = arith.mulf %159, %6 : vector<2x8x32xf32>
    %cst_46 = arith.constant dense<0.000000e+00> : vector<2x8xf32>
    %161 = vector.multi_reduction <add>, %160, %cst_46 [2] : vector<2x8x32xf32> to vector<2x8xf32>
    %162 = vector.shape_cast %161 : vector<2x8xf32> to vector<2x8x1xf32>
    %cst_47 = arith.constant dense<0xFF800000> : vector<2x1xf32>
    %163 = vector.multi_reduction <maximumf>, %162, %cst_47 [1] : vector<2x8x1xf32> to vector<2x1xf32>
    %164 = vector.shape_cast %163 : vector<2x1xf32> to vector<2x1x1xf32>
    %165 = vector.broadcast %164 : vector<2x1x1xf32> to vector<2x8x1xf32>
    %166 = arith.subf %162, %165 : vector<2x8x1xf32>
    %167 = math.exp %166 : vector<2x8x1xf32>
    %cst_48 = arith.constant dense<0.000000e+00> : vector<2x1xf32>
    %168 = vector.multi_reduction <add>, %167, %cst_48 [1] : vector<2x8x1xf32> to vector<2x1xf32>
    %169 = vector.shape_cast %168 : vector<2x1xf32> to vector<2x1x1xf32>
    %170 = tpu.reciprocal %169 {approx = true} : vector<2x1x1xf32> -> vector<2x1x1xf32>
    %171 = vector.broadcast %170 : vector<2x1x1xf32> to vector<2x8x1xf32>
    %172 = arith.mulf %167, %171 : vector<2x8x1xf32>
    %173 = vector.broadcast %172 : vector<2x8x1xf32> to vector<2x8x32xf32>
    %174 = arith.mulf %173, %6 : vector<2x8x32xf32>
    %cst_49 = arith.constant dense<0.000000e+00> : vector<2x32xf32>
    %175 = vector.multi_reduction <add>, %174, %cst_49 [1] : vector<2x8x32xf32> to vector<2x32xf32>
    %cst_50 = arith.constant dense<0.000000e+00> : vector<2x32xf32>
    %176 = tpu.matmul %18, %24, %cst_50 {dimension_numbers = #tpu.dot_dimension_numbers<[1], [0], [0], [1], [0, 0, 1, 1], [], []>} : vector<2x32xf32>, vector<32x32xf32>, vector<2x32xf32> -> vector<2x32xf32>
    %cst_51 = arith.constant dense<0.000000e+00> : vector<2x32xf32>
    %177 = tpu.matmul %20, %25, %cst_51 {dimension_numbers = #tpu.dot_dimension_numbers<[1], [0], [0], [1], [0, 0, 1, 1], [], []>} : vector<2x32xf32>, vector<32x32xf32>, vector<2x32xf32> -> vector<2x32xf32>
    %178 = arith.addf %176, %177 : vector<2x32xf32>
    %179 = vector.broadcast %27 : vector<1x32xf32> to vector<2x32xf32>
    %180 = arith.addf %178, %179 : vector<2x32xf32>
    %cst_52 = arith.constant dense<0.000000e+00> : vector<2x32xf32>
    %181 = tpu.matmul %22, %26, %cst_52 {dimension_numbers = #tpu.dot_dimension_numbers<[1], [0], [0], [1], [0, 0, 1, 1], [], []>} : vector<2x32xf32>, vector<32x32xf32>, vector<2x32xf32> -> vector<2x32xf32>
    %182 = arith.addf %180, %181 : vector<2x32xf32>
    %183 = vector.shape_cast %182 : vector<2x32xf32> to vector<2x1x32xf32>
    %184 = vector.broadcast %183 : vector<2x1x32xf32> to vector<2x8x32xf32>
    %185 = arith.mulf %184, %6 : vector<2x8x32xf32>
    %cst_53 = arith.constant dense<0.000000e+00> : vector<2x8xf32>
    %186 = vector.multi_reduction <add>, %185, %cst_53 [2] : vector<2x8x32xf32> to vector<2x8xf32>
    %187 = vector.shape_cast %186 : vector<2x8xf32> to vector<2x8x1xf32>
    %cst_54 = arith.constant dense<0xFF800000> : vector<2x1xf32>
    %188 = vector.multi_reduction <maximumf>, %187, %cst_54 [1] : vector<2x8x1xf32> to vector<2x1xf32>
    %189 = vector.shape_cast %188 : vector<2x1xf32> to vector<2x1x1xf32>
    %190 = vector.broadcast %189 : vector<2x1x1xf32> to vector<2x8x1xf32>
    %191 = arith.subf %187, %190 : vector<2x8x1xf32>
    %192 = math.exp %191 : vector<2x8x1xf32>
    %cst_55 = arith.constant dense<0.000000e+00> : vector<2x1xf32>
    %193 = vector.multi_reduction <add>, %192, %cst_55 [1] : vector<2x8x1xf32> to vector<2x1xf32>
    %194 = vector.shape_cast %193 : vector<2x1xf32> to vector<2x1x1xf32>
    %195 = tpu.reciprocal %194 {approx = true} : vector<2x1x1xf32> -> vector<2x1x1xf32>
    %196 = vector.broadcast %195 : vector<2x1x1xf32> to vector<2x8x1xf32>
    %197 = arith.mulf %192, %196 : vector<2x8x1xf32>
    %198 = vector.broadcast %197 : vector<2x8x1xf32> to vector<2x8x32xf32>
    %199 = arith.mulf %198, %6 : vector<2x8x32xf32>
    %cst_56 = arith.constant dense<0.000000e+00> : vector<2x32xf32>
    %200 = vector.multi_reduction <add>, %199, %cst_56 [1] : vector<2x8x32xf32> to vector<2x32xf32>
    %cst_57 = arith.constant dense<0.000000e+00> : vector<2x32xf32>
    %201 = tpu.matmul %20, %24, %cst_57 {dimension_numbers = #tpu.dot_dimension_numbers<[1], [0], [0], [1], [0, 0, 1, 1], [], []>} : vector<2x32xf32>, vector<32x32xf32>, vector<2x32xf32> -> vector<2x32xf32>
    %cst_58 = arith.constant dense<0.000000e+00> : vector<2x32xf32>
    %202 = tpu.matmul %22, %25, %cst_58 {dimension_numbers = #tpu.dot_dimension_numbers<[1], [0], [0], [1], [0, 0, 1, 1], [], []>} : vector<2x32xf32>, vector<32x32xf32>, vector<2x32xf32> -> vector<2x32xf32>
    %203 = arith.addf %201, %202 : vector<2x32xf32>
    %204 = vector.broadcast %27 : vector<1x32xf32> to vector<2x32xf32>
    %205 = arith.addf %203, %204 : vector<2x32xf32>
    %206 = vector.shape_cast %205 : vector<2x32xf32> to vector<2x1x32xf32>
    %207 = vector.broadcast %206 : vector<2x1x32xf32> to vector<2x8x32xf32>
    %208 = arith.mulf %207, %6 : vector<2x8x32xf32>
    %cst_59 = arith.constant dense<0.000000e+00> : vector<2x8xf32>
    %209 = vector.multi_reduction <add>, %208, %cst_59 [2] : vector<2x8x32xf32> to vector<2x8xf32>
    %210 = vector.shape_cast %209 : vector<2x8xf32> to vector<2x8x1xf32>
    %cst_60 = arith.constant dense<0xFF800000> : vector<2x1xf32>
    %211 = vector.multi_reduction <maximumf>, %210, %cst_60 [1] : vector<2x8x1xf32> to vector<2x1xf32>
    %212 = vector.shape_cast %211 : vector<2x1xf32> to vector<2x1x1xf32>
    %213 = vector.broadcast %212 : vector<2x1x1xf32> to vector<2x8x1xf32>
    %214 = arith.subf %210, %213 : vector<2x8x1xf32>
    %215 = math.exp %214 : vector<2x8x1xf32>
    %cst_61 = arith.constant dense<0.000000e+00> : vector<2x1xf32>
    %216 = vector.multi_reduction <add>, %215, %cst_61 [1] : vector<2x8x1xf32> to vector<2x1xf32>
    %217 = vector.shape_cast %216 : vector<2x1xf32> to vector<2x1x1xf32>
    %218 = tpu.reciprocal %217 {approx = true} : vector<2x1x1xf32> -> vector<2x1x1xf32>
    %219 = vector.broadcast %218 : vector<2x1x1xf32> to vector<2x8x1xf32>
    %220 = arith.mulf %215, %219 : vector<2x8x1xf32>
    %221 = vector.broadcast %220 : vector<2x8x1xf32> to vector<2x8x32xf32>
    %222 = arith.mulf %221, %6 : vector<2x8x32xf32>
    %cst_62 = arith.constant dense<0.000000e+00> : vector<2x32xf32>
    %223 = vector.multi_reduction <add>, %222, %cst_62 [1] : vector<2x8x32xf32> to vector<2x32xf32>
    %c0_63 = arith.constant 0 : index
    %c0_64 = arith.constant 0 : index
    %224 = vector.load %arg6[%c0_63, %c0_64] : memref<16x8xf32, #tpu.memory_space<vmem>>, vector<16x8xf32>
    %c0_65 = arith.constant 0 : index
    %c0_66 = arith.constant 0 : index
    %225 = vector.load %arg7[%c0_65, %c0_66] : memref<8x32xf32, #tpu.memory_space<vmem>>, vector<8x32xf32>
    %cst_67 = arith.constant dense<0.000000e+00> : vector<16x32xf32>
    %226 = tpu.matmul %224, %225, %cst_67 {dimension_numbers = #tpu.dot_dimension_numbers<[1], [0], [0], [1], [0, 0, 1, 1], [], []>} : vector<16x8xf32>, vector<8x32xf32>, vector<16x32xf32> -> vector<16x32xf32>
    %c0_68 = arith.constant 0 : index
    %c0_69 = arith.constant 0 : index
    %227 = vector.load %arg9[%c0_68, %c0_69] : memref<1x32xf32, #tpu.memory_space<vmem>>, vector<1x32xf32>
    %228 = vector.broadcast %227 : vector<1x32xf32> to vector<16x32xf32>
    %229 = arith.addf %226, %228 : vector<16x32xf32>
    %c0_70 = arith.constant 0 : index
    %c0_71 = arith.constant 0 : index
    %230 = vector.load %arg10[%c0_70, %c0_71] : memref<8x32xf32, #tpu.memory_space<vmem>>, vector<8x32xf32>
    %cst_72 = arith.constant dense<0.000000e+00> : vector<16x32xf32>
    %231 = tpu.matmul %224, %230, %cst_72 {dimension_numbers = #tpu.dot_dimension_numbers<[1], [0], [0], [1], [0, 0, 1, 1], [], []>} : vector<16x8xf32>, vector<8x32xf32>, vector<16x32xf32> -> vector<16x32xf32>
    %c0_73 = arith.constant 0 : index
    %c0_74 = arith.constant 0 : index
    %232 = vector.load %arg12[%c0_73, %c0_74] : memref<1x32xf32, #tpu.memory_space<vmem>>, vector<1x32xf32>
    %233 = vector.broadcast %232 : vector<1x32xf32> to vector<16x32xf32>
    %234 = arith.addf %231, %233 : vector<16x32xf32>
    %c0_75 = arith.constant 0 : index
    %c0_76 = arith.constant 0 : index
    %235 = vector.load %arg8[%c0_75, %c0_76] : memref<8x32xf32, #tpu.memory_space<vmem>>, vector<8x32xf32>
    %cst_77 = arith.constant 0.000000e+00 : f32
    %236 = vector.broadcast %cst_77 : f32 to vector<2x8xf32>
    %237 = vector.extract_strided_slice %229 {offsets = [0, 0], sizes = [2, 32], strides = [1, 1]} : vector<16x32xf32> to vector<2x32xf32>
    %238 = vector.extract_strided_slice %237 {offsets = [0, 0], sizes = [2, 8], strides = [1, 1]} : vector<2x32xf32> to vector<2x8xf32>
    %239 = arith.negf %238 : vector<2x8xf32>
    %240 = math.exp %239 : vector<2x8xf32>
    %cst_78 = arith.constant 1.000000e+00 : f32
    %241 = vector.broadcast %cst_78 : f32 to vector<2x8xf32>
    %242 = arith.addf %241, %240 : vector<2x8xf32>
    %243 = arith.divf %241, %242 : vector<2x8xf32>
    %244 = vector.extract_strided_slice %237 {offsets = [0, 8], sizes = [2, 8], strides = [1, 1]} : vector<2x32xf32> to vector<2x8xf32>
    %245 = arith.negf %244 : vector<2x8xf32>
    %246 = math.exp %245 : vector<2x8xf32>
    %cst_79 = arith.constant 1.000000e+00 : f32
    %247 = vector.broadcast %cst_79 : f32 to vector<2x8xf32>
    %248 = arith.addf %247, %246 : vector<2x8xf32>
    %249 = arith.divf %247, %248 : vector<2x8xf32>
    %250 = vector.extract_strided_slice %237 {offsets = [0, 16], sizes = [2, 8], strides = [1, 1]} : vector<2x32xf32> to vector<2x8xf32>
    %251 = math.tanh %250 : vector<2x8xf32>
    %252 = vector.extract_strided_slice %237 {offsets = [0, 24], sizes = [2, 8], strides = [1, 1]} : vector<2x32xf32> to vector<2x8xf32>
    %253 = arith.negf %252 : vector<2x8xf32>
    %254 = math.exp %253 : vector<2x8xf32>
    %cst_80 = arith.constant 1.000000e+00 : f32
    %255 = vector.broadcast %cst_80 : f32 to vector<2x8xf32>
    %256 = arith.addf %255, %254 : vector<2x8xf32>
    %257 = arith.divf %255, %256 : vector<2x8xf32>
    %258 = arith.mulf %249, %236 : vector<2x8xf32>
    %259 = arith.mulf %243, %251 : vector<2x8xf32>
    %260 = arith.addf %258, %259 : vector<2x8xf32>
    %261 = math.tanh %260 : vector<2x8xf32>
    %262 = arith.mulf %257, %261 : vector<2x8xf32>
    %263 = vector.extract_strided_slice %229 {offsets = [2, 0], sizes = [2, 32], strides = [1, 1]} : vector<16x32xf32> to vector<2x32xf32>
    %cst_81 = arith.constant dense<0.000000e+00> : vector<2x32xf32>
    %264 = tpu.matmul %262, %235, %cst_81 {dimension_numbers = #tpu.dot_dimension_numbers<[1], [0], [0], [1], [0, 0, 1, 1], [], []>} : vector<2x8xf32>, vector<8x32xf32>, vector<2x32xf32> -> vector<2x32xf32>
    %265 = arith.addf %263, %264 : vector<2x32xf32>
    %266 = vector.extract_strided_slice %265 {offsets = [0, 0], sizes = [2, 8], strides = [1, 1]} : vector<2x32xf32> to vector<2x8xf32>
    %267 = arith.negf %266 : vector<2x8xf32>
    %268 = math.exp %267 : vector<2x8xf32>
    %cst_82 = arith.constant 1.000000e+00 : f32
    %269 = vector.broadcast %cst_82 : f32 to vector<2x8xf32>
    %270 = arith.addf %269, %268 : vector<2x8xf32>
    %271 = arith.divf %269, %270 : vector<2x8xf32>
    %272 = vector.extract_strided_slice %265 {offsets = [0, 8], sizes = [2, 8], strides = [1, 1]} : vector<2x32xf32> to vector<2x8xf32>
    %273 = arith.negf %272 : vector<2x8xf32>
    %274 = math.exp %273 : vector<2x8xf32>
    %cst_83 = arith.constant 1.000000e+00 : f32
    %275 = vector.broadcast %cst_83 : f32 to vector<2x8xf32>
    %276 = arith.addf %275, %274 : vector<2x8xf32>
    %277 = arith.divf %275, %276 : vector<2x8xf32>
    %278 = vector.extract_strided_slice %265 {offsets = [0, 16], sizes = [2, 8], strides = [1, 1]} : vector<2x32xf32> to vector<2x8xf32>
    %279 = math.tanh %278 : vector<2x8xf32>
    %280 = vector.extract_strided_slice %265 {offsets = [0, 24], sizes = [2, 8], strides = [1, 1]} : vector<2x32xf32> to vector<2x8xf32>
    %281 = arith.negf %280 : vector<2x8xf32>
    %282 = math.exp %281 : vector<2x8xf32>
    %cst_84 = arith.constant 1.000000e+00 : f32
    %283 = vector.broadcast %cst_84 : f32 to vector<2x8xf32>
    %284 = arith.addf %283, %282 : vector<2x8xf32>
    %285 = arith.divf %283, %284 : vector<2x8xf32>
    %286 = arith.mulf %277, %260 : vector<2x8xf32>
    %287 = arith.mulf %271, %279 : vector<2x8xf32>
    %288 = arith.addf %286, %287 : vector<2x8xf32>
    %289 = math.tanh %288 : vector<2x8xf32>
    %290 = arith.mulf %285, %289 : vector<2x8xf32>
    %291 = vector.extract_strided_slice %229 {offsets = [4, 0], sizes = [2, 32], strides = [1, 1]} : vector<16x32xf32> to vector<2x32xf32>
    %cst_85 = arith.constant dense<0.000000e+00> : vector<2x32xf32>
    %292 = tpu.matmul %290, %235, %cst_85 {dimension_numbers = #tpu.dot_dimension_numbers<[1], [0], [0], [1], [0, 0, 1, 1], [], []>} : vector<2x8xf32>, vector<8x32xf32>, vector<2x32xf32> -> vector<2x32xf32>
    %293 = arith.addf %291, %292 : vector<2x32xf32>
    %294 = vector.extract_strided_slice %293 {offsets = [0, 0], sizes = [2, 8], strides = [1, 1]} : vector<2x32xf32> to vector<2x8xf32>
    %295 = arith.negf %294 : vector<2x8xf32>
    %296 = math.exp %295 : vector<2x8xf32>
    %cst_86 = arith.constant 1.000000e+00 : f32
    %297 = vector.broadcast %cst_86 : f32 to vector<2x8xf32>
    %298 = arith.addf %297, %296 : vector<2x8xf32>
    %299 = arith.divf %297, %298 : vector<2x8xf32>
    %300 = vector.extract_strided_slice %293 {offsets = [0, 8], sizes = [2, 8], strides = [1, 1]} : vector<2x32xf32> to vector<2x8xf32>
    %301 = arith.negf %300 : vector<2x8xf32>
    %302 = math.exp %301 : vector<2x8xf32>
    %cst_87 = arith.constant 1.000000e+00 : f32
    %303 = vector.broadcast %cst_87 : f32 to vector<2x8xf32>
    %304 = arith.addf %303, %302 : vector<2x8xf32>
    %305 = arith.divf %303, %304 : vector<2x8xf32>
    %306 = vector.extract_strided_slice %293 {offsets = [0, 16], sizes = [2, 8], strides = [1, 1]} : vector<2x32xf32> to vector<2x8xf32>
    %307 = math.tanh %306 : vector<2x8xf32>
    %308 = vector.extract_strided_slice %293 {offsets = [0, 24], sizes = [2, 8], strides = [1, 1]} : vector<2x32xf32> to vector<2x8xf32>
    %309 = arith.negf %308 : vector<2x8xf32>
    %310 = math.exp %309 : vector<2x8xf32>
    %cst_88 = arith.constant 1.000000e+00 : f32
    %311 = vector.broadcast %cst_88 : f32 to vector<2x8xf32>
    %312 = arith.addf %311, %310 : vector<2x8xf32>
    %313 = arith.divf %311, %312 : vector<2x8xf32>
    %314 = arith.mulf %305, %288 : vector<2x8xf32>
    %315 = arith.mulf %299, %307 : vector<2x8xf32>
    %316 = arith.addf %314, %315 : vector<2x8xf32>
    %317 = math.tanh %316 : vector<2x8xf32>
    %318 = arith.mulf %313, %317 : vector<2x8xf32>
    %319 = vector.extract_strided_slice %229 {offsets = [6, 0], sizes = [2, 32], strides = [1, 1]} : vector<16x32xf32> to vector<2x32xf32>
    %cst_89 = arith.constant dense<0.000000e+00> : vector<2x32xf32>
    %320 = tpu.matmul %318, %235, %cst_89 {dimension_numbers = #tpu.dot_dimension_numbers<[1], [0], [0], [1], [0, 0, 1, 1], [], []>} : vector<2x8xf32>, vector<8x32xf32>, vector<2x32xf32> -> vector<2x32xf32>
    %321 = arith.addf %319, %320 : vector<2x32xf32>
    %322 = vector.extract_strided_slice %321 {offsets = [0, 0], sizes = [2, 8], strides = [1, 1]} : vector<2x32xf32> to vector<2x8xf32>
    %323 = arith.negf %322 : vector<2x8xf32>
    %324 = math.exp %323 : vector<2x8xf32>
    %cst_90 = arith.constant 1.000000e+00 : f32
    %325 = vector.broadcast %cst_90 : f32 to vector<2x8xf32>
    %326 = arith.addf %325, %324 : vector<2x8xf32>
    %327 = arith.divf %325, %326 : vector<2x8xf32>
    %328 = vector.extract_strided_slice %321 {offsets = [0, 8], sizes = [2, 8], strides = [1, 1]} : vector<2x32xf32> to vector<2x8xf32>
    %329 = arith.negf %328 : vector<2x8xf32>
    %330 = math.exp %329 : vector<2x8xf32>
    %cst_91 = arith.constant 1.000000e+00 : f32
    %331 = vector.broadcast %cst_91 : f32 to vector<2x8xf32>
    %332 = arith.addf %331, %330 : vector<2x8xf32>
    %333 = arith.divf %331, %332 : vector<2x8xf32>
    %334 = vector.extract_strided_slice %321 {offsets = [0, 16], sizes = [2, 8], strides = [1, 1]} : vector<2x32xf32> to vector<2x8xf32>
    %335 = math.tanh %334 : vector<2x8xf32>
    %336 = vector.extract_strided_slice %321 {offsets = [0, 24], sizes = [2, 8], strides = [1, 1]} : vector<2x32xf32> to vector<2x8xf32>
    %337 = arith.negf %336 : vector<2x8xf32>
    %338 = math.exp %337 : vector<2x8xf32>
    %cst_92 = arith.constant 1.000000e+00 : f32
    %339 = vector.broadcast %cst_92 : f32 to vector<2x8xf32>
    %340 = arith.addf %339, %338 : vector<2x8xf32>
    %341 = arith.divf %339, %340 : vector<2x8xf32>
    %342 = arith.mulf %333, %316 : vector<2x8xf32>
    %343 = arith.mulf %327, %335 : vector<2x8xf32>
    %344 = arith.addf %342, %343 : vector<2x8xf32>
    %345 = math.tanh %344 : vector<2x8xf32>
    %346 = arith.mulf %341, %345 : vector<2x8xf32>
    %347 = vector.extract_strided_slice %229 {offsets = [8, 0], sizes = [2, 32], strides = [1, 1]} : vector<16x32xf32> to vector<2x32xf32>
    %cst_93 = arith.constant dense<0.000000e+00> : vector<2x32xf32>
    %348 = tpu.matmul %346, %235, %cst_93 {dimension_numbers = #tpu.dot_dimension_numbers<[1], [0], [0], [1], [0, 0, 1, 1], [], []>} : vector<2x8xf32>, vector<8x32xf32>, vector<2x32xf32> -> vector<2x32xf32>
    %349 = arith.addf %347, %348 : vector<2x32xf32>
    %350 = vector.extract_strided_slice %349 {offsets = [0, 0], sizes = [2, 8], strides = [1, 1]} : vector<2x32xf32> to vector<2x8xf32>
    %351 = arith.negf %350 : vector<2x8xf32>
    %352 = math.exp %351 : vector<2x8xf32>
    %cst_94 = arith.constant 1.000000e+00 : f32
    %353 = vector.broadcast %cst_94 : f32 to vector<2x8xf32>
    %354 = arith.addf %353, %352 : vector<2x8xf32>
    %355 = arith.divf %353, %354 : vector<2x8xf32>
    %356 = vector.extract_strided_slice %349 {offsets = [0, 8], sizes = [2, 8], strides = [1, 1]} : vector<2x32xf32> to vector<2x8xf32>
    %357 = arith.negf %356 : vector<2x8xf32>
    %358 = math.exp %357 : vector<2x8xf32>
    %cst_95 = arith.constant 1.000000e+00 : f32
    %359 = vector.broadcast %cst_95 : f32 to vector<2x8xf32>
    %360 = arith.addf %359, %358 : vector<2x8xf32>
    %361 = arith.divf %359, %360 : vector<2x8xf32>
    %362 = vector.extract_strided_slice %349 {offsets = [0, 16], sizes = [2, 8], strides = [1, 1]} : vector<2x32xf32> to vector<2x8xf32>
    %363 = math.tanh %362 : vector<2x8xf32>
    %364 = vector.extract_strided_slice %349 {offsets = [0, 24], sizes = [2, 8], strides = [1, 1]} : vector<2x32xf32> to vector<2x8xf32>
    %365 = arith.negf %364 : vector<2x8xf32>
    %366 = math.exp %365 : vector<2x8xf32>
    %cst_96 = arith.constant 1.000000e+00 : f32
    %367 = vector.broadcast %cst_96 : f32 to vector<2x8xf32>
    %368 = arith.addf %367, %366 : vector<2x8xf32>
    %369 = arith.divf %367, %368 : vector<2x8xf32>
    %370 = arith.mulf %361, %344 : vector<2x8xf32>
    %371 = arith.mulf %355, %363 : vector<2x8xf32>
    %372 = arith.addf %370, %371 : vector<2x8xf32>
    %373 = math.tanh %372 : vector<2x8xf32>
    %374 = arith.mulf %369, %373 : vector<2x8xf32>
    %375 = vector.extract_strided_slice %229 {offsets = [10, 0], sizes = [2, 32], strides = [1, 1]} : vector<16x32xf32> to vector<2x32xf32>
    %cst_97 = arith.constant dense<0.000000e+00> : vector<2x32xf32>
    %376 = tpu.matmul %374, %235, %cst_97 {dimension_numbers = #tpu.dot_dimension_numbers<[1], [0], [0], [1], [0, 0, 1, 1], [], []>} : vector<2x8xf32>, vector<8x32xf32>, vector<2x32xf32> -> vector<2x32xf32>
    %377 = arith.addf %375, %376 : vector<2x32xf32>
    %378 = vector.extract_strided_slice %377 {offsets = [0, 0], sizes = [2, 8], strides = [1, 1]} : vector<2x32xf32> to vector<2x8xf32>
    %379 = arith.negf %378 : vector<2x8xf32>
    %380 = math.exp %379 : vector<2x8xf32>
    %cst_98 = arith.constant 1.000000e+00 : f32
    %381 = vector.broadcast %cst_98 : f32 to vector<2x8xf32>
    %382 = arith.addf %381, %380 : vector<2x8xf32>
    %383 = arith.divf %381, %382 : vector<2x8xf32>
    %384 = vector.extract_strided_slice %377 {offsets = [0, 8], sizes = [2, 8], strides = [1, 1]} : vector<2x32xf32> to vector<2x8xf32>
    %385 = arith.negf %384 : vector<2x8xf32>
    %386 = math.exp %385 : vector<2x8xf32>
    %cst_99 = arith.constant 1.000000e+00 : f32
    %387 = vector.broadcast %cst_99 : f32 to vector<2x8xf32>
    %388 = arith.addf %387, %386 : vector<2x8xf32>
    %389 = arith.divf %387, %388 : vector<2x8xf32>
    %390 = vector.extract_strided_slice %377 {offsets = [0, 16], sizes = [2, 8], strides = [1, 1]} : vector<2x32xf32> to vector<2x8xf32>
    %391 = math.tanh %390 : vector<2x8xf32>
    %392 = vector.extract_strided_slice %377 {offsets = [0, 24], sizes = [2, 8], strides = [1, 1]} : vector<2x32xf32> to vector<2x8xf32>
    %393 = arith.negf %392 : vector<2x8xf32>
    %394 = math.exp %393 : vector<2x8xf32>
    %cst_100 = arith.constant 1.000000e+00 : f32
    %395 = vector.broadcast %cst_100 : f32 to vector<2x8xf32>
    %396 = arith.addf %395, %394 : vector<2x8xf32>
    %397 = arith.divf %395, %396 : vector<2x8xf32>
    %398 = arith.mulf %389, %372 : vector<2x8xf32>
    %399 = arith.mulf %383, %391 : vector<2x8xf32>
    %400 = arith.addf %398, %399 : vector<2x8xf32>
    %401 = math.tanh %400 : vector<2x8xf32>
    %402 = arith.mulf %397, %401 : vector<2x8xf32>
    %403 = vector.extract_strided_slice %229 {offsets = [12, 0], sizes = [2, 32], strides = [1, 1]} : vector<16x32xf32> to vector<2x32xf32>
    %cst_101 = arith.constant dense<0.000000e+00> : vector<2x32xf32>
    %404 = tpu.matmul %402, %235, %cst_101 {dimension_numbers = #tpu.dot_dimension_numbers<[1], [0], [0], [1], [0, 0, 1, 1], [], []>} : vector<2x8xf32>, vector<8x32xf32>, vector<2x32xf32> -> vector<2x32xf32>
    %405 = arith.addf %403, %404 : vector<2x32xf32>
    %406 = vector.extract_strided_slice %405 {offsets = [0, 0], sizes = [2, 8], strides = [1, 1]} : vector<2x32xf32> to vector<2x8xf32>
    %407 = arith.negf %406 : vector<2x8xf32>
    %408 = math.exp %407 : vector<2x8xf32>
    %cst_102 = arith.constant 1.000000e+00 : f32
    %409 = vector.broadcast %cst_102 : f32 to vector<2x8xf32>
    %410 = arith.addf %409, %408 : vector<2x8xf32>
    %411 = arith.divf %409, %410 : vector<2x8xf32>
    %412 = vector.extract_strided_slice %405 {offsets = [0, 8], sizes = [2, 8], strides = [1, 1]} : vector<2x32xf32> to vector<2x8xf32>
    %413 = arith.negf %412 : vector<2x8xf32>
    %414 = math.exp %413 : vector<2x8xf32>
    %cst_103 = arith.constant 1.000000e+00 : f32
    %415 = vector.broadcast %cst_103 : f32 to vector<2x8xf32>
    %416 = arith.addf %415, %414 : vector<2x8xf32>
    %417 = arith.divf %415, %416 : vector<2x8xf32>
    %418 = vector.extract_strided_slice %405 {offsets = [0, 16], sizes = [2, 8], strides = [1, 1]} : vector<2x32xf32> to vector<2x8xf32>
    %419 = math.tanh %418 : vector<2x8xf32>
    %420 = vector.extract_strided_slice %405 {offsets = [0, 24], sizes = [2, 8], strides = [1, 1]} : vector<2x32xf32> to vector<2x8xf32>
    %421 = arith.negf %420 : vector<2x8xf32>
    %422 = math.exp %421 : vector<2x8xf32>
    %cst_104 = arith.constant 1.000000e+00 : f32
    %423 = vector.broadcast %cst_104 : f32 to vector<2x8xf32>
    %424 = arith.addf %423, %422 : vector<2x8xf32>
    %425 = arith.divf %423, %424 : vector<2x8xf32>
    %426 = arith.mulf %417, %400 : vector<2x8xf32>
    %427 = arith.mulf %411, %419 : vector<2x8xf32>
    %428 = arith.addf %426, %427 : vector<2x8xf32>
    %429 = math.tanh %428 : vector<2x8xf32>
    %430 = arith.mulf %425, %429 : vector<2x8xf32>
    %431 = vector.extract_strided_slice %229 {offsets = [14, 0], sizes = [2, 32], strides = [1, 1]} : vector<16x32xf32> to vector<2x32xf32>
    %cst_105 = arith.constant dense<0.000000e+00> : vector<2x32xf32>
    %432 = tpu.matmul %430, %235, %cst_105 {dimension_numbers = #tpu.dot_dimension_numbers<[1], [0], [0], [1], [0, 0, 1, 1], [], []>} : vector<2x8xf32>, vector<8x32xf32>, vector<2x32xf32> -> vector<2x32xf32>
    %433 = arith.addf %431, %432 : vector<2x32xf32>
    %434 = vector.extract_strided_slice %433 {offsets = [0, 0], sizes = [2, 8], strides = [1, 1]} : vector<2x32xf32> to vector<2x8xf32>
    %435 = arith.negf %434 : vector<2x8xf32>
    %436 = math.exp %435 : vector<2x8xf32>
    %cst_106 = arith.constant 1.000000e+00 : f32
    %437 = vector.broadcast %cst_106 : f32 to vector<2x8xf32>
    %438 = arith.addf %437, %436 : vector<2x8xf32>
    %439 = arith.divf %437, %438 : vector<2x8xf32>
    %440 = vector.extract_strided_slice %433 {offsets = [0, 8], sizes = [2, 8], strides = [1, 1]} : vector<2x32xf32> to vector<2x8xf32>
    %441 = arith.negf %440 : vector<2x8xf32>
    %442 = math.exp %441 : vector<2x8xf32>
    %cst_107 = arith.constant 1.000000e+00 : f32
    %443 = vector.broadcast %cst_107 : f32 to vector<2x8xf32>
    %444 = arith.addf %443, %442 : vector<2x8xf32>
    %445 = arith.divf %443, %444 : vector<2x8xf32>
    %446 = vector.extract_strided_slice %433 {offsets = [0, 16], sizes = [2, 8], strides = [1, 1]} : vector<2x32xf32> to vector<2x8xf32>
    %447 = math.tanh %446 : vector<2x8xf32>
    %448 = vector.extract_strided_slice %433 {offsets = [0, 24], sizes = [2, 8], strides = [1, 1]} : vector<2x32xf32> to vector<2x8xf32>
    %449 = arith.negf %448 : vector<2x8xf32>
    %450 = math.exp %449 : vector<2x8xf32>
    %cst_108 = arith.constant 1.000000e+00 : f32
    %451 = vector.broadcast %cst_108 : f32 to vector<2x8xf32>
    %452 = arith.addf %451, %450 : vector<2x8xf32>
    %453 = arith.divf %451, %452 : vector<2x8xf32>
    %454 = arith.mulf %445, %428 : vector<2x8xf32>
    %455 = arith.mulf %439, %447 : vector<2x8xf32>
    %456 = arith.addf %454, %455 : vector<2x8xf32>
    %457 = math.tanh %456 : vector<2x8xf32>
    %458 = arith.mulf %453, %457 : vector<2x8xf32>
    %c0_109 = arith.constant 0 : index
    %c0_110 = arith.constant 0 : index
    %459 = vector.load %arg11[%c0_109, %c0_110] : memref<8x32xf32, #tpu.memory_space<vmem>>, vector<8x32xf32>
    %cst_111 = arith.constant 0.000000e+00 : f32
    %460 = vector.broadcast %cst_111 : f32 to vector<2x8xf32>
    %461 = vector.extract_strided_slice %234 {offsets = [14, 0], sizes = [2, 32], strides = [1, 1]} : vector<16x32xf32> to vector<2x32xf32>
    %462 = vector.extract_strided_slice %461 {offsets = [0, 0], sizes = [2, 8], strides = [1, 1]} : vector<2x32xf32> to vector<2x8xf32>
    %463 = arith.negf %462 : vector<2x8xf32>
    %464 = math.exp %463 : vector<2x8xf32>
    %cst_112 = arith.constant 1.000000e+00 : f32
    %465 = vector.broadcast %cst_112 : f32 to vector<2x8xf32>
    %466 = arith.addf %465, %464 : vector<2x8xf32>
    %467 = arith.divf %465, %466 : vector<2x8xf32>
    %468 = vector.extract_strided_slice %461 {offsets = [0, 8], sizes = [2, 8], strides = [1, 1]} : vector<2x32xf32> to vector<2x8xf32>
    %469 = arith.negf %468 : vector<2x8xf32>
    %470 = math.exp %469 : vector<2x8xf32>
    %cst_113 = arith.constant 1.000000e+00 : f32
    %471 = vector.broadcast %cst_113 : f32 to vector<2x8xf32>
    %472 = arith.addf %471, %470 : vector<2x8xf32>
    %473 = arith.divf %471, %472 : vector<2x8xf32>
    %474 = vector.extract_strided_slice %461 {offsets = [0, 16], sizes = [2, 8], strides = [1, 1]} : vector<2x32xf32> to vector<2x8xf32>
    %475 = math.tanh %474 : vector<2x8xf32>
    %476 = vector.extract_strided_slice %461 {offsets = [0, 24], sizes = [2, 8], strides = [1, 1]} : vector<2x32xf32> to vector<2x8xf32>
    %477 = arith.negf %476 : vector<2x8xf32>
    %478 = math.exp %477 : vector<2x8xf32>
    %cst_114 = arith.constant 1.000000e+00 : f32
    %479 = vector.broadcast %cst_114 : f32 to vector<2x8xf32>
    %480 = arith.addf %479, %478 : vector<2x8xf32>
    %481 = arith.divf %479, %480 : vector<2x8xf32>
    %482 = arith.mulf %473, %460 : vector<2x8xf32>
    %483 = arith.mulf %467, %475 : vector<2x8xf32>
    %484 = arith.addf %482, %483 : vector<2x8xf32>
    %485 = math.tanh %484 : vector<2x8xf32>
    %486 = arith.mulf %481, %485 : vector<2x8xf32>
    %487 = vector.extract_strided_slice %234 {offsets = [12, 0], sizes = [2, 32], strides = [1, 1]} : vector<16x32xf32> to vector<2x32xf32>
    %cst_115 = arith.constant dense<0.000000e+00> : vector<2x32xf32>
    %488 = tpu.matmul %486, %459, %cst_115 {dimension_numbers = #tpu.dot_dimension_numbers<[1], [0], [0], [1], [0, 0, 1, 1], [], []>} : vector<2x8xf32>, vector<8x32xf32>, vector<2x32xf32> -> vector<2x32xf32>
    %489 = arith.addf %487, %488 : vector<2x32xf32>
    %490 = vector.extract_strided_slice %489 {offsets = [0, 0], sizes = [2, 8], strides = [1, 1]} : vector<2x32xf32> to vector<2x8xf32>
    %491 = arith.negf %490 : vector<2x8xf32>
    %492 = math.exp %491 : vector<2x8xf32>
    %cst_116 = arith.constant 1.000000e+00 : f32
    %493 = vector.broadcast %cst_116 : f32 to vector<2x8xf32>
    %494 = arith.addf %493, %492 : vector<2x8xf32>
    %495 = arith.divf %493, %494 : vector<2x8xf32>
    %496 = vector.extract_strided_slice %489 {offsets = [0, 8], sizes = [2, 8], strides = [1, 1]} : vector<2x32xf32> to vector<2x8xf32>
    %497 = arith.negf %496 : vector<2x8xf32>
    %498 = math.exp %497 : vector<2x8xf32>
    %cst_117 = arith.constant 1.000000e+00 : f32
    %499 = vector.broadcast %cst_117 : f32 to vector<2x8xf32>
    %500 = arith.addf %499, %498 : vector<2x8xf32>
    %501 = arith.divf %499, %500 : vector<2x8xf32>
    %502 = vector.extract_strided_slice %489 {offsets = [0, 16], sizes = [2, 8], strides = [1, 1]} : vector<2x32xf32> to vector<2x8xf32>
    %503 = math.tanh %502 : vector<2x8xf32>
    %504 = vector.extract_strided_slice %489 {offsets = [0, 24], sizes = [2, 8], strides = [1, 1]} : vector<2x32xf32> to vector<2x8xf32>
    %505 = arith.negf %504 : vector<2x8xf32>
    %506 = math.exp %505 : vector<2x8xf32>
    %cst_118 = arith.constant 1.000000e+00 : f32
    %507 = vector.broadcast %cst_118 : f32 to vector<2x8xf32>
    %508 = arith.addf %507, %506 : vector<2x8xf32>
    %509 = arith.divf %507, %508 : vector<2x8xf32>
    %510 = arith.mulf %501, %484 : vector<2x8xf32>
    %511 = arith.mulf %495, %503 : vector<2x8xf32>
    %512 = arith.addf %510, %511 : vector<2x8xf32>
    %513 = math.tanh %512 : vector<2x8xf32>
    %514 = arith.mulf %509, %513 : vector<2x8xf32>
    %515 = vector.extract_strided_slice %234 {offsets = [10, 0], sizes = [2, 32], strides = [1, 1]} : vector<16x32xf32> to vector<2x32xf32>
    %cst_119 = arith.constant dense<0.000000e+00> : vector<2x32xf32>
    %516 = tpu.matmul %514, %459, %cst_119 {dimension_numbers = #tpu.dot_dimension_numbers<[1], [0], [0], [1], [0, 0, 1, 1], [], []>} : vector<2x8xf32>, vector<8x32xf32>, vector<2x32xf32> -> vector<2x32xf32>
    %517 = arith.addf %515, %516 : vector<2x32xf32>
    %518 = vector.extract_strided_slice %517 {offsets = [0, 0], sizes = [2, 8], strides = [1, 1]} : vector<2x32xf32> to vector<2x8xf32>
    %519 = arith.negf %518 : vector<2x8xf32>
    %520 = math.exp %519 : vector<2x8xf32>
    %cst_120 = arith.constant 1.000000e+00 : f32
    %521 = vector.broadcast %cst_120 : f32 to vector<2x8xf32>
    %522 = arith.addf %521, %520 : vector<2x8xf32>
    %523 = arith.divf %521, %522 : vector<2x8xf32>
    %524 = vector.extract_strided_slice %517 {offsets = [0, 8], sizes = [2, 8], strides = [1, 1]} : vector<2x32xf32> to vector<2x8xf32>
    %525 = arith.negf %524 : vector<2x8xf32>
    %526 = math.exp %525 : vector<2x8xf32>
    %cst_121 = arith.constant 1.000000e+00 : f32
    %527 = vector.broadcast %cst_121 : f32 to vector<2x8xf32>
    %528 = arith.addf %527, %526 : vector<2x8xf32>
    %529 = arith.divf %527, %528 : vector<2x8xf32>
    %530 = vector.extract_strided_slice %517 {offsets = [0, 16], sizes = [2, 8], strides = [1, 1]} : vector<2x32xf32> to vector<2x8xf32>
    %531 = math.tanh %530 : vector<2x8xf32>
    %532 = vector.extract_strided_slice %517 {offsets = [0, 24], sizes = [2, 8], strides = [1, 1]} : vector<2x32xf32> to vector<2x8xf32>
    %533 = arith.negf %532 : vector<2x8xf32>
    %534 = math.exp %533 : vector<2x8xf32>
    %cst_122 = arith.constant 1.000000e+00 : f32
    %535 = vector.broadcast %cst_122 : f32 to vector<2x8xf32>
    %536 = arith.addf %535, %534 : vector<2x8xf32>
    %537 = arith.divf %535, %536 : vector<2x8xf32>
    %538 = arith.mulf %529, %512 : vector<2x8xf32>
    %539 = arith.mulf %523, %531 : vector<2x8xf32>
    %540 = arith.addf %538, %539 : vector<2x8xf32>
    %541 = math.tanh %540 : vector<2x8xf32>
    %542 = arith.mulf %537, %541 : vector<2x8xf32>
    %543 = vector.extract_strided_slice %234 {offsets = [8, 0], sizes = [2, 32], strides = [1, 1]} : vector<16x32xf32> to vector<2x32xf32>
    %cst_123 = arith.constant dense<0.000000e+00> : vector<2x32xf32>
    %544 = tpu.matmul %542, %459, %cst_123 {dimension_numbers = #tpu.dot_dimension_numbers<[1], [0], [0], [1], [0, 0, 1, 1], [], []>} : vector<2x8xf32>, vector<8x32xf32>, vector<2x32xf32> -> vector<2x32xf32>
    %545 = arith.addf %543, %544 : vector<2x32xf32>
    %546 = vector.extract_strided_slice %545 {offsets = [0, 0], sizes = [2, 8], strides = [1, 1]} : vector<2x32xf32> to vector<2x8xf32>
    %547 = arith.negf %546 : vector<2x8xf32>
    %548 = math.exp %547 : vector<2x8xf32>
    %cst_124 = arith.constant 1.000000e+00 : f32
    %549 = vector.broadcast %cst_124 : f32 to vector<2x8xf32>
    %550 = arith.addf %549, %548 : vector<2x8xf32>
    %551 = arith.divf %549, %550 : vector<2x8xf32>
    %552 = vector.extract_strided_slice %545 {offsets = [0, 8], sizes = [2, 8], strides = [1, 1]} : vector<2x32xf32> to vector<2x8xf32>
    %553 = arith.negf %552 : vector<2x8xf32>
    %554 = math.exp %553 : vector<2x8xf32>
    %cst_125 = arith.constant 1.000000e+00 : f32
    %555 = vector.broadcast %cst_125 : f32 to vector<2x8xf32>
    %556 = arith.addf %555, %554 : vector<2x8xf32>
    %557 = arith.divf %555, %556 : vector<2x8xf32>
    %558 = vector.extract_strided_slice %545 {offsets = [0, 16], sizes = [2, 8], strides = [1, 1]} : vector<2x32xf32> to vector<2x8xf32>
    %559 = math.tanh %558 : vector<2x8xf32>
    %560 = vector.extract_strided_slice %545 {offsets = [0, 24], sizes = [2, 8], strides = [1, 1]} : vector<2x32xf32> to vector<2x8xf32>
    %561 = arith.negf %560 : vector<2x8xf32>
    %562 = math.exp %561 : vector<2x8xf32>
    %cst_126 = arith.constant 1.000000e+00 : f32
    %563 = vector.broadcast %cst_126 : f32 to vector<2x8xf32>
    %564 = arith.addf %563, %562 : vector<2x8xf32>
    %565 = arith.divf %563, %564 : vector<2x8xf32>
    %566 = arith.mulf %557, %540 : vector<2x8xf32>
    %567 = arith.mulf %551, %559 : vector<2x8xf32>
    %568 = arith.addf %566, %567 : vector<2x8xf32>
    %569 = math.tanh %568 : vector<2x8xf32>
    %570 = arith.mulf %565, %569 : vector<2x8xf32>
    %571 = vector.extract_strided_slice %234 {offsets = [6, 0], sizes = [2, 32], strides = [1, 1]} : vector<16x32xf32> to vector<2x32xf32>
    %cst_127 = arith.constant dense<0.000000e+00> : vector<2x32xf32>
    %572 = tpu.matmul %570, %459, %cst_127 {dimension_numbers = #tpu.dot_dimension_numbers<[1], [0], [0], [1], [0, 0, 1, 1], [], []>} : vector<2x8xf32>, vector<8x32xf32>, vector<2x32xf32> -> vector<2x32xf32>
    %573 = arith.addf %571, %572 : vector<2x32xf32>
    %574 = vector.extract_strided_slice %573 {offsets = [0, 0], sizes = [2, 8], strides = [1, 1]} : vector<2x32xf32> to vector<2x8xf32>
    %575 = arith.negf %574 : vector<2x8xf32>
    %576 = math.exp %575 : vector<2x8xf32>
    %cst_128 = arith.constant 1.000000e+00 : f32
    %577 = vector.broadcast %cst_128 : f32 to vector<2x8xf32>
    %578 = arith.addf %577, %576 : vector<2x8xf32>
    %579 = arith.divf %577, %578 : vector<2x8xf32>
    %580 = vector.extract_strided_slice %573 {offsets = [0, 8], sizes = [2, 8], strides = [1, 1]} : vector<2x32xf32> to vector<2x8xf32>
    %581 = arith.negf %580 : vector<2x8xf32>
    %582 = math.exp %581 : vector<2x8xf32>
    %cst_129 = arith.constant 1.000000e+00 : f32
    %583 = vector.broadcast %cst_129 : f32 to vector<2x8xf32>
    %584 = arith.addf %583, %582 : vector<2x8xf32>
    %585 = arith.divf %583, %584 : vector<2x8xf32>
    %586 = vector.extract_strided_slice %573 {offsets = [0, 16], sizes = [2, 8], strides = [1, 1]} : vector<2x32xf32> to vector<2x8xf32>
    %587 = math.tanh %586 : vector<2x8xf32>
    %588 = vector.extract_strided_slice %573 {offsets = [0, 24], sizes = [2, 8], strides = [1, 1]} : vector<2x32xf32> to vector<2x8xf32>
    %589 = arith.negf %588 : vector<2x8xf32>
    %590 = math.exp %589 : vector<2x8xf32>
    %cst_130 = arith.constant 1.000000e+00 : f32
    %591 = vector.broadcast %cst_130 : f32 to vector<2x8xf32>
    %592 = arith.addf %591, %590 : vector<2x8xf32>
    %593 = arith.divf %591, %592 : vector<2x8xf32>
    %594 = arith.mulf %585, %568 : vector<2x8xf32>
    %595 = arith.mulf %579, %587 : vector<2x8xf32>
    %596 = arith.addf %594, %595 : vector<2x8xf32>
    %597 = math.tanh %596 : vector<2x8xf32>
    %598 = arith.mulf %593, %597 : vector<2x8xf32>
    %599 = vector.extract_strided_slice %234 {offsets = [4, 0], sizes = [2, 32], strides = [1, 1]} : vector<16x32xf32> to vector<2x32xf32>
    %cst_131 = arith.constant dense<0.000000e+00> : vector<2x32xf32>
    %600 = tpu.matmul %598, %459, %cst_131 {dimension_numbers = #tpu.dot_dimension_numbers<[1], [0], [0], [1], [0, 0, 1, 1], [], []>} : vector<2x8xf32>, vector<8x32xf32>, vector<2x32xf32> -> vector<2x32xf32>
    %601 = arith.addf %599, %600 : vector<2x32xf32>
    %602 = vector.extract_strided_slice %601 {offsets = [0, 0], sizes = [2, 8], strides = [1, 1]} : vector<2x32xf32> to vector<2x8xf32>
    %603 = arith.negf %602 : vector<2x8xf32>
    %604 = math.exp %603 : vector<2x8xf32>
    %cst_132 = arith.constant 1.000000e+00 : f32
    %605 = vector.broadcast %cst_132 : f32 to vector<2x8xf32>
    %606 = arith.addf %605, %604 : vector<2x8xf32>
    %607 = arith.divf %605, %606 : vector<2x8xf32>
    %608 = vector.extract_strided_slice %601 {offsets = [0, 8], sizes = [2, 8], strides = [1, 1]} : vector<2x32xf32> to vector<2x8xf32>
    %609 = arith.negf %608 : vector<2x8xf32>
    %610 = math.exp %609 : vector<2x8xf32>
    %cst_133 = arith.constant 1.000000e+00 : f32
    %611 = vector.broadcast %cst_133 : f32 to vector<2x8xf32>
    %612 = arith.addf %611, %610 : vector<2x8xf32>
    %613 = arith.divf %611, %612 : vector<2x8xf32>
    %614 = vector.extract_strided_slice %601 {offsets = [0, 16], sizes = [2, 8], strides = [1, 1]} : vector<2x32xf32> to vector<2x8xf32>
    %615 = math.tanh %614 : vector<2x8xf32>
    %616 = vector.extract_strided_slice %601 {offsets = [0, 24], sizes = [2, 8], strides = [1, 1]} : vector<2x32xf32> to vector<2x8xf32>
    %617 = arith.negf %616 : vector<2x8xf32>
    %618 = math.exp %617 : vector<2x8xf32>
    %cst_134 = arith.constant 1.000000e+00 : f32
    %619 = vector.broadcast %cst_134 : f32 to vector<2x8xf32>
    %620 = arith.addf %619, %618 : vector<2x8xf32>
    %621 = arith.divf %619, %620 : vector<2x8xf32>
    %622 = arith.mulf %613, %596 : vector<2x8xf32>
    %623 = arith.mulf %607, %615 : vector<2x8xf32>
    %624 = arith.addf %622, %623 : vector<2x8xf32>
    %625 = math.tanh %624 : vector<2x8xf32>
    %626 = arith.mulf %621, %625 : vector<2x8xf32>
    %627 = vector.extract_strided_slice %234 {offsets = [2, 0], sizes = [2, 32], strides = [1, 1]} : vector<16x32xf32> to vector<2x32xf32>
    %cst_135 = arith.constant dense<0.000000e+00> : vector<2x32xf32>
    %628 = tpu.matmul %626, %459, %cst_135 {dimension_numbers = #tpu.dot_dimension_numbers<[1], [0], [0], [1], [0, 0, 1, 1], [], []>} : vector<2x8xf32>, vector<8x32xf32>, vector<2x32xf32> -> vector<2x32xf32>
    %629 = arith.addf %627, %628 : vector<2x32xf32>
    %630 = vector.extract_strided_slice %629 {offsets = [0, 0], sizes = [2, 8], strides = [1, 1]} : vector<2x32xf32> to vector<2x8xf32>
    %631 = arith.negf %630 : vector<2x8xf32>
    %632 = math.exp %631 : vector<2x8xf32>
    %cst_136 = arith.constant 1.000000e+00 : f32
    %633 = vector.broadcast %cst_136 : f32 to vector<2x8xf32>
    %634 = arith.addf %633, %632 : vector<2x8xf32>
    %635 = arith.divf %633, %634 : vector<2x8xf32>
    %636 = vector.extract_strided_slice %629 {offsets = [0, 8], sizes = [2, 8], strides = [1, 1]} : vector<2x32xf32> to vector<2x8xf32>
    %637 = arith.negf %636 : vector<2x8xf32>
    %638 = math.exp %637 : vector<2x8xf32>
    %cst_137 = arith.constant 1.000000e+00 : f32
    %639 = vector.broadcast %cst_137 : f32 to vector<2x8xf32>
    %640 = arith.addf %639, %638 : vector<2x8xf32>
    %641 = arith.divf %639, %640 : vector<2x8xf32>
    %642 = vector.extract_strided_slice %629 {offsets = [0, 16], sizes = [2, 8], strides = [1, 1]} : vector<2x32xf32> to vector<2x8xf32>
    %643 = math.tanh %642 : vector<2x8xf32>
    %644 = vector.extract_strided_slice %629 {offsets = [0, 24], sizes = [2, 8], strides = [1, 1]} : vector<2x32xf32> to vector<2x8xf32>
    %645 = arith.negf %644 : vector<2x8xf32>
    %646 = math.exp %645 : vector<2x8xf32>
    %cst_138 = arith.constant 1.000000e+00 : f32
    %647 = vector.broadcast %cst_138 : f32 to vector<2x8xf32>
    %648 = arith.addf %647, %646 : vector<2x8xf32>
    %649 = arith.divf %647, %648 : vector<2x8xf32>
    %650 = arith.mulf %641, %624 : vector<2x8xf32>
    %651 = arith.mulf %635, %643 : vector<2x8xf32>
    %652 = arith.addf %650, %651 : vector<2x8xf32>
    %653 = math.tanh %652 : vector<2x8xf32>
    %654 = arith.mulf %649, %653 : vector<2x8xf32>
    %655 = vector.extract_strided_slice %234 {offsets = [0, 0], sizes = [2, 32], strides = [1, 1]} : vector<16x32xf32> to vector<2x32xf32>
    %cst_139 = arith.constant dense<0.000000e+00> : vector<2x32xf32>
    %656 = tpu.matmul %654, %459, %cst_139 {dimension_numbers = #tpu.dot_dimension_numbers<[1], [0], [0], [1], [0, 0, 1, 1], [], []>} : vector<2x8xf32>, vector<8x32xf32>, vector<2x32xf32> -> vector<2x32xf32>
    %657 = arith.addf %655, %656 : vector<2x32xf32>
    %658 = vector.extract_strided_slice %657 {offsets = [0, 0], sizes = [2, 8], strides = [1, 1]} : vector<2x32xf32> to vector<2x8xf32>
    %659 = arith.negf %658 : vector<2x8xf32>
    %660 = math.exp %659 : vector<2x8xf32>
    %cst_140 = arith.constant 1.000000e+00 : f32
    %661 = vector.broadcast %cst_140 : f32 to vector<2x8xf32>
    %662 = arith.addf %661, %660 : vector<2x8xf32>
    %663 = arith.divf %661, %662 : vector<2x8xf32>
    %664 = vector.extract_strided_slice %657 {offsets = [0, 8], sizes = [2, 8], strides = [1, 1]} : vector<2x32xf32> to vector<2x8xf32>
    %665 = arith.negf %664 : vector<2x8xf32>
    %666 = math.exp %665 : vector<2x8xf32>
    %cst_141 = arith.constant 1.000000e+00 : f32
    %667 = vector.broadcast %cst_141 : f32 to vector<2x8xf32>
    %668 = arith.addf %667, %666 : vector<2x8xf32>
    %669 = arith.divf %667, %668 : vector<2x8xf32>
    %670 = vector.extract_strided_slice %657 {offsets = [0, 16], sizes = [2, 8], strides = [1, 1]} : vector<2x32xf32> to vector<2x8xf32>
    %671 = math.tanh %670 : vector<2x8xf32>
    %672 = vector.extract_strided_slice %657 {offsets = [0, 24], sizes = [2, 8], strides = [1, 1]} : vector<2x32xf32> to vector<2x8xf32>
    %673 = arith.negf %672 : vector<2x8xf32>
    %674 = math.exp %673 : vector<2x8xf32>
    %cst_142 = arith.constant 1.000000e+00 : f32
    %675 = vector.broadcast %cst_142 : f32 to vector<2x8xf32>
    %676 = arith.addf %675, %674 : vector<2x8xf32>
    %677 = arith.divf %675, %676 : vector<2x8xf32>
    %678 = arith.mulf %669, %652 : vector<2x8xf32>
    %679 = arith.mulf %663, %671 : vector<2x8xf32>
    %680 = arith.addf %678, %679 : vector<2x8xf32>
    %681 = math.tanh %680 : vector<2x8xf32>
    %682 = arith.mulf %677, %681 : vector<2x8xf32>
    %c0_143 = arith.constant 0 : index
    %c0_144 = arith.constant 0 : index
    %683 = vector.load %arg13[%c0_143, %c0_144] : memref<16x16xf32, #tpu.memory_space<vmem>>, vector<16x16xf32>
    %c0_145 = arith.constant 0 : index
    %c0_146 = arith.constant 0 : index
    %684 = vector.load %arg14[%c0_145, %c0_146] : memref<16x64xf32, #tpu.memory_space<vmem>>, vector<16x64xf32>
    %cst_147 = arith.constant dense<0.000000e+00> : vector<16x64xf32>
    %685 = tpu.matmul %683, %684, %cst_147 {dimension_numbers = #tpu.dot_dimension_numbers<[1], [0], [0], [1], [0, 0, 1, 1], [], []>} : vector<16x16xf32>, vector<16x64xf32>, vector<16x64xf32> -> vector<16x64xf32>
    %c0_148 = arith.constant 0 : index
    %c0_149 = arith.constant 0 : index
    %686 = vector.load %arg16[%c0_148, %c0_149] : memref<1x64xf32, #tpu.memory_space<vmem>>, vector<1x64xf32>
    %687 = vector.broadcast %686 : vector<1x64xf32> to vector<16x64xf32>
    %688 = arith.addf %685, %687 : vector<16x64xf32>
    %c0_150 = arith.constant 0 : index
    %c0_151 = arith.constant 0 : index
    %689 = vector.load %arg17[%c0_150, %c0_151] : memref<16x64xf32, #tpu.memory_space<vmem>>, vector<16x64xf32>
    %cst_152 = arith.constant dense<0.000000e+00> : vector<16x64xf32>
    %690 = tpu.matmul %683, %689, %cst_152 {dimension_numbers = #tpu.dot_dimension_numbers<[1], [0], [0], [1], [0, 0, 1, 1], [], []>} : vector<16x16xf32>, vector<16x64xf32>, vector<16x64xf32> -> vector<16x64xf32>
    %c0_153 = arith.constant 0 : index
    %c0_154 = arith.constant 0 : index
    %691 = vector.load %arg19[%c0_153, %c0_154] : memref<1x64xf32, #tpu.memory_space<vmem>>, vector<1x64xf32>
    %692 = vector.broadcast %691 : vector<1x64xf32> to vector<16x64xf32>
    %693 = arith.addf %690, %692 : vector<16x64xf32>
    %c0_155 = arith.constant 0 : index
    %c0_156 = arith.constant 0 : index
    %694 = vector.load %arg15[%c0_155, %c0_156] : memref<16x64xf32, #tpu.memory_space<vmem>>, vector<16x64xf32>
    %cst_157 = arith.constant 0.000000e+00 : f32
    %695 = vector.broadcast %cst_157 : f32 to vector<2x16xf32>
    %696 = vector.extract_strided_slice %688 {offsets = [0, 0], sizes = [2, 64], strides = [1, 1]} : vector<16x64xf32> to vector<2x64xf32>
    %697 = vector.extract_strided_slice %696 {offsets = [0, 0], sizes = [2, 16], strides = [1, 1]} : vector<2x64xf32> to vector<2x16xf32>
    %698 = arith.negf %697 : vector<2x16xf32>
    %699 = math.exp %698 : vector<2x16xf32>
    %cst_158 = arith.constant 1.000000e+00 : f32
    %700 = vector.broadcast %cst_158 : f32 to vector<2x16xf32>
    %701 = arith.addf %700, %699 : vector<2x16xf32>
    %702 = arith.divf %700, %701 : vector<2x16xf32>
    %703 = vector.extract_strided_slice %696 {offsets = [0, 16], sizes = [2, 16], strides = [1, 1]} : vector<2x64xf32> to vector<2x16xf32>
    %704 = arith.negf %703 : vector<2x16xf32>
    %705 = math.exp %704 : vector<2x16xf32>
    %cst_159 = arith.constant 1.000000e+00 : f32
    %706 = vector.broadcast %cst_159 : f32 to vector<2x16xf32>
    %707 = arith.addf %706, %705 : vector<2x16xf32>
    %708 = arith.divf %706, %707 : vector<2x16xf32>
    %709 = vector.extract_strided_slice %696 {offsets = [0, 32], sizes = [2, 16], strides = [1, 1]} : vector<2x64xf32> to vector<2x16xf32>
    %710 = math.tanh %709 : vector<2x16xf32>
    %711 = vector.extract_strided_slice %696 {offsets = [0, 48], sizes = [2, 16], strides = [1, 1]} : vector<2x64xf32> to vector<2x16xf32>
    %712 = arith.negf %711 : vector<2x16xf32>
    %713 = math.exp %712 : vector<2x16xf32>
    %cst_160 = arith.constant 1.000000e+00 : f32
    %714 = vector.broadcast %cst_160 : f32 to vector<2x16xf32>
    %715 = arith.addf %714, %713 : vector<2x16xf32>
    %716 = arith.divf %714, %715 : vector<2x16xf32>
    %717 = arith.mulf %708, %695 : vector<2x16xf32>
    %718 = arith.mulf %702, %710 : vector<2x16xf32>
    %719 = arith.addf %717, %718 : vector<2x16xf32>
    %720 = math.tanh %719 : vector<2x16xf32>
    %721 = arith.mulf %716, %720 : vector<2x16xf32>
    %722 = vector.extract_strided_slice %688 {offsets = [2, 0], sizes = [2, 64], strides = [1, 1]} : vector<16x64xf32> to vector<2x64xf32>
    %cst_161 = arith.constant dense<0.000000e+00> : vector<2x64xf32>
    %723 = tpu.matmul %721, %694, %cst_161 {dimension_numbers = #tpu.dot_dimension_numbers<[1], [0], [0], [1], [0, 0, 1, 1], [], []>} : vector<2x16xf32>, vector<16x64xf32>, vector<2x64xf32> -> vector<2x64xf32>
    %724 = arith.addf %722, %723 : vector<2x64xf32>
    %725 = vector.extract_strided_slice %724 {offsets = [0, 0], sizes = [2, 16], strides = [1, 1]} : vector<2x64xf32> to vector<2x16xf32>
    %726 = arith.negf %725 : vector<2x16xf32>
    %727 = math.exp %726 : vector<2x16xf32>
    %cst_162 = arith.constant 1.000000e+00 : f32
    %728 = vector.broadcast %cst_162 : f32 to vector<2x16xf32>
    %729 = arith.addf %728, %727 : vector<2x16xf32>
    %730 = arith.divf %728, %729 : vector<2x16xf32>
    %731 = vector.extract_strided_slice %724 {offsets = [0, 16], sizes = [2, 16], strides = [1, 1]} : vector<2x64xf32> to vector<2x16xf32>
    %732 = arith.negf %731 : vector<2x16xf32>
    %733 = math.exp %732 : vector<2x16xf32>
    %cst_163 = arith.constant 1.000000e+00 : f32
    %734 = vector.broadcast %cst_163 : f32 to vector<2x16xf32>
    %735 = arith.addf %734, %733 : vector<2x16xf32>
    %736 = arith.divf %734, %735 : vector<2x16xf32>
    %737 = vector.extract_strided_slice %724 {offsets = [0, 32], sizes = [2, 16], strides = [1, 1]} : vector<2x64xf32> to vector<2x16xf32>
    %738 = math.tanh %737 : vector<2x16xf32>
    %739 = vector.extract_strided_slice %724 {offsets = [0, 48], sizes = [2, 16], strides = [1, 1]} : vector<2x64xf32> to vector<2x16xf32>
    %740 = arith.negf %739 : vector<2x16xf32>
    %741 = math.exp %740 : vector<2x16xf32>
    %cst_164 = arith.constant 1.000000e+00 : f32
    %742 = vector.broadcast %cst_164 : f32 to vector<2x16xf32>
    %743 = arith.addf %742, %741 : vector<2x16xf32>
    %744 = arith.divf %742, %743 : vector<2x16xf32>
    %745 = arith.mulf %736, %719 : vector<2x16xf32>
    %746 = arith.mulf %730, %738 : vector<2x16xf32>
    %747 = arith.addf %745, %746 : vector<2x16xf32>
    %748 = math.tanh %747 : vector<2x16xf32>
    %749 = arith.mulf %744, %748 : vector<2x16xf32>
    %750 = vector.extract_strided_slice %688 {offsets = [4, 0], sizes = [2, 64], strides = [1, 1]} : vector<16x64xf32> to vector<2x64xf32>
    %cst_165 = arith.constant dense<0.000000e+00> : vector<2x64xf32>
    %751 = tpu.matmul %749, %694, %cst_165 {dimension_numbers = #tpu.dot_dimension_numbers<[1], [0], [0], [1], [0, 0, 1, 1], [], []>} : vector<2x16xf32>, vector<16x64xf32>, vector<2x64xf32> -> vector<2x64xf32>
    %752 = arith.addf %750, %751 : vector<2x64xf32>
    %753 = vector.extract_strided_slice %752 {offsets = [0, 0], sizes = [2, 16], strides = [1, 1]} : vector<2x64xf32> to vector<2x16xf32>
    %754 = arith.negf %753 : vector<2x16xf32>
    %755 = math.exp %754 : vector<2x16xf32>
    %cst_166 = arith.constant 1.000000e+00 : f32
    %756 = vector.broadcast %cst_166 : f32 to vector<2x16xf32>
    %757 = arith.addf %756, %755 : vector<2x16xf32>
    %758 = arith.divf %756, %757 : vector<2x16xf32>
    %759 = vector.extract_strided_slice %752 {offsets = [0, 16], sizes = [2, 16], strides = [1, 1]} : vector<2x64xf32> to vector<2x16xf32>
    %760 = arith.negf %759 : vector<2x16xf32>
    %761 = math.exp %760 : vector<2x16xf32>
    %cst_167 = arith.constant 1.000000e+00 : f32
    %762 = vector.broadcast %cst_167 : f32 to vector<2x16xf32>
    %763 = arith.addf %762, %761 : vector<2x16xf32>
    %764 = arith.divf %762, %763 : vector<2x16xf32>
    %765 = vector.extract_strided_slice %752 {offsets = [0, 32], sizes = [2, 16], strides = [1, 1]} : vector<2x64xf32> to vector<2x16xf32>
    %766 = math.tanh %765 : vector<2x16xf32>
    %767 = vector.extract_strided_slice %752 {offsets = [0, 48], sizes = [2, 16], strides = [1, 1]} : vector<2x64xf32> to vector<2x16xf32>
    %768 = arith.negf %767 : vector<2x16xf32>
    %769 = math.exp %768 : vector<2x16xf32>
    %cst_168 = arith.constant 1.000000e+00 : f32
    %770 = vector.broadcast %cst_168 : f32 to vector<2x16xf32>
    %771 = arith.addf %770, %769 : vector<2x16xf32>
    %772 = arith.divf %770, %771 : vector<2x16xf32>
    %773 = arith.mulf %764, %747 : vector<2x16xf32>
    %774 = arith.mulf %758, %766 : vector<2x16xf32>
    %775 = arith.addf %773, %774 : vector<2x16xf32>
    %776 = math.tanh %775 : vector<2x16xf32>
    %777 = arith.mulf %772, %776 : vector<2x16xf32>
    %778 = vector.extract_strided_slice %688 {offsets = [6, 0], sizes = [2, 64], strides = [1, 1]} : vector<16x64xf32> to vector<2x64xf32>
    %cst_169 = arith.constant dense<0.000000e+00> : vector<2x64xf32>
    %779 = tpu.matmul %777, %694, %cst_169 {dimension_numbers = #tpu.dot_dimension_numbers<[1], [0], [0], [1], [0, 0, 1, 1], [], []>} : vector<2x16xf32>, vector<16x64xf32>, vector<2x64xf32> -> vector<2x64xf32>
    %780 = arith.addf %778, %779 : vector<2x64xf32>
    %781 = vector.extract_strided_slice %780 {offsets = [0, 0], sizes = [2, 16], strides = [1, 1]} : vector<2x64xf32> to vector<2x16xf32>
    %782 = arith.negf %781 : vector<2x16xf32>
    %783 = math.exp %782 : vector<2x16xf32>
    %cst_170 = arith.constant 1.000000e+00 : f32
    %784 = vector.broadcast %cst_170 : f32 to vector<2x16xf32>
    %785 = arith.addf %784, %783 : vector<2x16xf32>
    %786 = arith.divf %784, %785 : vector<2x16xf32>
    %787 = vector.extract_strided_slice %780 {offsets = [0, 16], sizes = [2, 16], strides = [1, 1]} : vector<2x64xf32> to vector<2x16xf32>
    %788 = arith.negf %787 : vector<2x16xf32>
    %789 = math.exp %788 : vector<2x16xf32>
    %cst_171 = arith.constant 1.000000e+00 : f32
    %790 = vector.broadcast %cst_171 : f32 to vector<2x16xf32>
    %791 = arith.addf %790, %789 : vector<2x16xf32>
    %792 = arith.divf %790, %791 : vector<2x16xf32>
    %793 = vector.extract_strided_slice %780 {offsets = [0, 32], sizes = [2, 16], strides = [1, 1]} : vector<2x64xf32> to vector<2x16xf32>
    %794 = math.tanh %793 : vector<2x16xf32>
    %795 = vector.extract_strided_slice %780 {offsets = [0, 48], sizes = [2, 16], strides = [1, 1]} : vector<2x64xf32> to vector<2x16xf32>
    %796 = arith.negf %795 : vector<2x16xf32>
    %797 = math.exp %796 : vector<2x16xf32>
    %cst_172 = arith.constant 1.000000e+00 : f32
    %798 = vector.broadcast %cst_172 : f32 to vector<2x16xf32>
    %799 = arith.addf %798, %797 : vector<2x16xf32>
    %800 = arith.divf %798, %799 : vector<2x16xf32>
    %801 = arith.mulf %792, %775 : vector<2x16xf32>
    %802 = arith.mulf %786, %794 : vector<2x16xf32>
    %803 = arith.addf %801, %802 : vector<2x16xf32>
    %804 = math.tanh %803 : vector<2x16xf32>
    %805 = arith.mulf %800, %804 : vector<2x16xf32>
    %806 = vector.extract_strided_slice %688 {offsets = [8, 0], sizes = [2, 64], strides = [1, 1]} : vector<16x64xf32> to vector<2x64xf32>
    %cst_173 = arith.constant dense<0.000000e+00> : vector<2x64xf32>
    %807 = tpu.matmul %805, %694, %cst_173 {dimension_numbers = #tpu.dot_dimension_numbers<[1], [0], [0], [1], [0, 0, 1, 1], [], []>} : vector<2x16xf32>, vector<16x64xf32>, vector<2x64xf32> -> vector<2x64xf32>
    %808 = arith.addf %806, %807 : vector<2x64xf32>
    %809 = vector.extract_strided_slice %808 {offsets = [0, 0], sizes = [2, 16], strides = [1, 1]} : vector<2x64xf32> to vector<2x16xf32>
    %810 = arith.negf %809 : vector<2x16xf32>
    %811 = math.exp %810 : vector<2x16xf32>
    %cst_174 = arith.constant 1.000000e+00 : f32
    %812 = vector.broadcast %cst_174 : f32 to vector<2x16xf32>
    %813 = arith.addf %812, %811 : vector<2x16xf32>
    %814 = arith.divf %812, %813 : vector<2x16xf32>
    %815 = vector.extract_strided_slice %808 {offsets = [0, 16], sizes = [2, 16], strides = [1, 1]} : vector<2x64xf32> to vector<2x16xf32>
    %816 = arith.negf %815 : vector<2x16xf32>
    %817 = math.exp %816 : vector<2x16xf32>
    %cst_175 = arith.constant 1.000000e+00 : f32
    %818 = vector.broadcast %cst_175 : f32 to vector<2x16xf32>
    %819 = arith.addf %818, %817 : vector<2x16xf32>
    %820 = arith.divf %818, %819 : vector<2x16xf32>
    %821 = vector.extract_strided_slice %808 {offsets = [0, 32], sizes = [2, 16], strides = [1, 1]} : vector<2x64xf32> to vector<2x16xf32>
    %822 = math.tanh %821 : vector<2x16xf32>
    %823 = vector.extract_strided_slice %808 {offsets = [0, 48], sizes = [2, 16], strides = [1, 1]} : vector<2x64xf32> to vector<2x16xf32>
    %824 = arith.negf %823 : vector<2x16xf32>
    %825 = math.exp %824 : vector<2x16xf32>
    %cst_176 = arith.constant 1.000000e+00 : f32
    %826 = vector.broadcast %cst_176 : f32 to vector<2x16xf32>
    %827 = arith.addf %826, %825 : vector<2x16xf32>
    %828 = arith.divf %826, %827 : vector<2x16xf32>
    %829 = arith.mulf %820, %803 : vector<2x16xf32>
    %830 = arith.mulf %814, %822 : vector<2x16xf32>
    %831 = arith.addf %829, %830 : vector<2x16xf32>
    %832 = math.tanh %831 : vector<2x16xf32>
    %833 = arith.mulf %828, %832 : vector<2x16xf32>
    %834 = vector.extract_strided_slice %688 {offsets = [10, 0], sizes = [2, 64], strides = [1, 1]} : vector<16x64xf32> to vector<2x64xf32>
    %cst_177 = arith.constant dense<0.000000e+00> : vector<2x64xf32>
    %835 = tpu.matmul %833, %694, %cst_177 {dimension_numbers = #tpu.dot_dimension_numbers<[1], [0], [0], [1], [0, 0, 1, 1], [], []>} : vector<2x16xf32>, vector<16x64xf32>, vector<2x64xf32> -> vector<2x64xf32>
    %836 = arith.addf %834, %835 : vector<2x64xf32>
    %837 = vector.extract_strided_slice %836 {offsets = [0, 0], sizes = [2, 16], strides = [1, 1]} : vector<2x64xf32> to vector<2x16xf32>
    %838 = arith.negf %837 : vector<2x16xf32>
    %839 = math.exp %838 : vector<2x16xf32>
    %cst_178 = arith.constant 1.000000e+00 : f32
    %840 = vector.broadcast %cst_178 : f32 to vector<2x16xf32>
    %841 = arith.addf %840, %839 : vector<2x16xf32>
    %842 = arith.divf %840, %841 : vector<2x16xf32>
    %843 = vector.extract_strided_slice %836 {offsets = [0, 16], sizes = [2, 16], strides = [1, 1]} : vector<2x64xf32> to vector<2x16xf32>
    %844 = arith.negf %843 : vector<2x16xf32>
    %845 = math.exp %844 : vector<2x16xf32>
    %cst_179 = arith.constant 1.000000e+00 : f32
    %846 = vector.broadcast %cst_179 : f32 to vector<2x16xf32>
    %847 = arith.addf %846, %845 : vector<2x16xf32>
    %848 = arith.divf %846, %847 : vector<2x16xf32>
    %849 = vector.extract_strided_slice %836 {offsets = [0, 32], sizes = [2, 16], strides = [1, 1]} : vector<2x64xf32> to vector<2x16xf32>
    %850 = math.tanh %849 : vector<2x16xf32>
    %851 = vector.extract_strided_slice %836 {offsets = [0, 48], sizes = [2, 16], strides = [1, 1]} : vector<2x64xf32> to vector<2x16xf32>
    %852 = arith.negf %851 : vector<2x16xf32>
    %853 = math.exp %852 : vector<2x16xf32>
    %cst_180 = arith.constant 1.000000e+00 : f32
    %854 = vector.broadcast %cst_180 : f32 to vector<2x16xf32>
    %855 = arith.addf %854, %853 : vector<2x16xf32>
    %856 = arith.divf %854, %855 : vector<2x16xf32>
    %857 = arith.mulf %848, %831 : vector<2x16xf32>
    %858 = arith.mulf %842, %850 : vector<2x16xf32>
    %859 = arith.addf %857, %858 : vector<2x16xf32>
    %860 = math.tanh %859 : vector<2x16xf32>
    %861 = arith.mulf %856, %860 : vector<2x16xf32>
    %862 = vector.extract_strided_slice %688 {offsets = [12, 0], sizes = [2, 64], strides = [1, 1]} : vector<16x64xf32> to vector<2x64xf32>
    %cst_181 = arith.constant dense<0.000000e+00> : vector<2x64xf32>
    %863 = tpu.matmul %861, %694, %cst_181 {dimension_numbers = #tpu.dot_dimension_numbers<[1], [0], [0], [1], [0, 0, 1, 1], [], []>} : vector<2x16xf32>, vector<16x64xf32>, vector<2x64xf32> -> vector<2x64xf32>
    %864 = arith.addf %862, %863 : vector<2x64xf32>
    %865 = vector.extract_strided_slice %864 {offsets = [0, 0], sizes = [2, 16], strides = [1, 1]} : vector<2x64xf32> to vector<2x16xf32>
    %866 = arith.negf %865 : vector<2x16xf32>
    %867 = math.exp %866 : vector<2x16xf32>
    %cst_182 = arith.constant 1.000000e+00 : f32
    %868 = vector.broadcast %cst_182 : f32 to vector<2x16xf32>
    %869 = arith.addf %868, %867 : vector<2x16xf32>
    %870 = arith.divf %868, %869 : vector<2x16xf32>
    %871 = vector.extract_strided_slice %864 {offsets = [0, 16], sizes = [2, 16], strides = [1, 1]} : vector<2x64xf32> to vector<2x16xf32>
    %872 = arith.negf %871 : vector<2x16xf32>
    %873 = math.exp %872 : vector<2x16xf32>
    %cst_183 = arith.constant 1.000000e+00 : f32
    %874 = vector.broadcast %cst_183 : f32 to vector<2x16xf32>
    %875 = arith.addf %874, %873 : vector<2x16xf32>
    %876 = arith.divf %874, %875 : vector<2x16xf32>
    %877 = vector.extract_strided_slice %864 {offsets = [0, 32], sizes = [2, 16], strides = [1, 1]} : vector<2x64xf32> to vector<2x16xf32>
    %878 = math.tanh %877 : vector<2x16xf32>
    %879 = vector.extract_strided_slice %864 {offsets = [0, 48], sizes = [2, 16], strides = [1, 1]} : vector<2x64xf32> to vector<2x16xf32>
    %880 = arith.negf %879 : vector<2x16xf32>
    %881 = math.exp %880 : vector<2x16xf32>
    %cst_184 = arith.constant 1.000000e+00 : f32
    %882 = vector.broadcast %cst_184 : f32 to vector<2x16xf32>
    %883 = arith.addf %882, %881 : vector<2x16xf32>
    %884 = arith.divf %882, %883 : vector<2x16xf32>
    %885 = arith.mulf %876, %859 : vector<2x16xf32>
    %886 = arith.mulf %870, %878 : vector<2x16xf32>
    %887 = arith.addf %885, %886 : vector<2x16xf32>
    %888 = math.tanh %887 : vector<2x16xf32>
    %889 = arith.mulf %884, %888 : vector<2x16xf32>
    %890 = vector.extract_strided_slice %688 {offsets = [14, 0], sizes = [2, 64], strides = [1, 1]} : vector<16x64xf32> to vector<2x64xf32>
    %cst_185 = arith.constant dense<0.000000e+00> : vector<2x64xf32>
    %891 = tpu.matmul %889, %694, %cst_185 {dimension_numbers = #tpu.dot_dimension_numbers<[1], [0], [0], [1], [0, 0, 1, 1], [], []>} : vector<2x16xf32>, vector<16x64xf32>, vector<2x64xf32> -> vector<2x64xf32>
    %892 = arith.addf %890, %891 : vector<2x64xf32>
    %893 = vector.extract_strided_slice %892 {offsets = [0, 0], sizes = [2, 16], strides = [1, 1]} : vector<2x64xf32> to vector<2x16xf32>
    %894 = arith.negf %893 : vector<2x16xf32>
    %895 = math.exp %894 : vector<2x16xf32>
    %cst_186 = arith.constant 1.000000e+00 : f32
    %896 = vector.broadcast %cst_186 : f32 to vector<2x16xf32>
    %897 = arith.addf %896, %895 : vector<2x16xf32>
    %898 = arith.divf %896, %897 : vector<2x16xf32>
    %899 = vector.extract_strided_slice %892 {offsets = [0, 16], sizes = [2, 16], strides = [1, 1]} : vector<2x64xf32> to vector<2x16xf32>
    %900 = arith.negf %899 : vector<2x16xf32>
    %901 = math.exp %900 : vector<2x16xf32>
    %cst_187 = arith.constant 1.000000e+00 : f32
    %902 = vector.broadcast %cst_187 : f32 to vector<2x16xf32>
    %903 = arith.addf %902, %901 : vector<2x16xf32>
    %904 = arith.divf %902, %903 : vector<2x16xf32>
    %905 = vector.extract_strided_slice %892 {offsets = [0, 32], sizes = [2, 16], strides = [1, 1]} : vector<2x64xf32> to vector<2x16xf32>
    %906 = math.tanh %905 : vector<2x16xf32>
    %907 = vector.extract_strided_slice %892 {offsets = [0, 48], sizes = [2, 16], strides = [1, 1]} : vector<2x64xf32> to vector<2x16xf32>
    %908 = arith.negf %907 : vector<2x16xf32>
    %909 = math.exp %908 : vector<2x16xf32>
    %cst_188 = arith.constant 1.000000e+00 : f32
    %910 = vector.broadcast %cst_188 : f32 to vector<2x16xf32>
    %911 = arith.addf %910, %909 : vector<2x16xf32>
    %912 = arith.divf %910, %911 : vector<2x16xf32>
    %913 = arith.mulf %904, %887 : vector<2x16xf32>
    %914 = arith.mulf %898, %906 : vector<2x16xf32>
    %915 = arith.addf %913, %914 : vector<2x16xf32>
    %916 = math.tanh %915 : vector<2x16xf32>
    %917 = arith.mulf %912, %916 : vector<2x16xf32>
    %c0_189 = arith.constant 0 : index
    %c0_190 = arith.constant 0 : index
    %918 = vector.load %arg18[%c0_189, %c0_190] : memref<16x64xf32, #tpu.memory_space<vmem>>, vector<16x64xf32>
    %919 = tpu.iota {dimensions = array<i32: 1>} : vector<1x8x1xi32>
    %cst_191 = arith.constant 0.000000e+00 : f32
    %920 = vector.broadcast %cst_191 : f32 to vector<2x8x16xf32>
    %c0_i32 = arith.constant 0 : i32
    %921 = vector.broadcast %c0_i32 : i32 to vector<1x8x1xi32>
    %922 = arith.cmpi eq, %919, %921 : vector<1x8x1xi32>
    %923 = vector.shape_cast %721 : vector<2x16xf32> to vector<2x1x16xf32>
    %cst_192 = arith.constant 0.000000e+00 : f32
    %924 = vector.shape_cast %922 : vector<1x8x1xi1> to vector<1x8x1xi1>
    %925 = vector.broadcast %924 : vector<1x8x1xi1> to vector<2x8x16xi1>
    %926 = vector.shape_cast %923 : vector<2x1x16xf32> to vector<2x1x16xf32>
    %927 = vector.broadcast %926 : vector<2x1x16xf32> to vector<2x8x16xf32>
    %928 = vector.broadcast %cst_192 : f32 to vector<2x8x16xf32>
    %929 = arith.select %925, %927, %928 : vector<2x8x16xi1>, vector<2x8x16xf32>
    %930 = arith.addf %920, %929 : vector<2x8x16xf32>
    %c1_i32 = arith.constant 1 : i32
    %931 = vector.broadcast %c1_i32 : i32 to vector<1x8x1xi32>
    %932 = arith.cmpi eq, %919, %931 : vector<1x8x1xi32>
    %933 = vector.shape_cast %749 : vector<2x16xf32> to vector<2x1x16xf32>
    %cst_193 = arith.constant 0.000000e+00 : f32
    %934 = vector.shape_cast %932 : vector<1x8x1xi1> to vector<1x8x1xi1>
    %935 = vector.broadcast %934 : vector<1x8x1xi1> to vector<2x8x16xi1>
    %936 = vector.shape_cast %933 : vector<2x1x16xf32> to vector<2x1x16xf32>
    %937 = vector.broadcast %936 : vector<2x1x16xf32> to vector<2x8x16xf32>
    %938 = vector.broadcast %cst_193 : f32 to vector<2x8x16xf32>
    %939 = arith.select %935, %937, %938 : vector<2x8x16xi1>, vector<2x8x16xf32>
    %940 = arith.addf %930, %939 : vector<2x8x16xf32>
    %c2_i32 = arith.constant 2 : i32
    %941 = vector.broadcast %c2_i32 : i32 to vector<1x8x1xi32>
    %942 = arith.cmpi eq, %919, %941 : vector<1x8x1xi32>
    %943 = vector.shape_cast %777 : vector<2x16xf32> to vector<2x1x16xf32>
    %cst_194 = arith.constant 0.000000e+00 : f32
    %944 = vector.shape_cast %942 : vector<1x8x1xi1> to vector<1x8x1xi1>
    %945 = vector.broadcast %944 : vector<1x8x1xi1> to vector<2x8x16xi1>
    %946 = vector.shape_cast %943 : vector<2x1x16xf32> to vector<2x1x16xf32>
    %947 = vector.broadcast %946 : vector<2x1x16xf32> to vector<2x8x16xf32>
    %948 = vector.broadcast %cst_194 : f32 to vector<2x8x16xf32>
    %949 = arith.select %945, %947, %948 : vector<2x8x16xi1>, vector<2x8x16xf32>
    %950 = arith.addf %940, %949 : vector<2x8x16xf32>
    %c3_i32 = arith.constant 3 : i32
    %951 = vector.broadcast %c3_i32 : i32 to vector<1x8x1xi32>
    %952 = arith.cmpi eq, %919, %951 : vector<1x8x1xi32>
    %953 = vector.shape_cast %805 : vector<2x16xf32> to vector<2x1x16xf32>
    %cst_195 = arith.constant 0.000000e+00 : f32
    %954 = vector.shape_cast %952 : vector<1x8x1xi1> to vector<1x8x1xi1>
    %955 = vector.broadcast %954 : vector<1x8x1xi1> to vector<2x8x16xi1>
    %956 = vector.shape_cast %953 : vector<2x1x16xf32> to vector<2x1x16xf32>
    %957 = vector.broadcast %956 : vector<2x1x16xf32> to vector<2x8x16xf32>
    %958 = vector.broadcast %cst_195 : f32 to vector<2x8x16xf32>
    %959 = arith.select %955, %957, %958 : vector<2x8x16xi1>, vector<2x8x16xf32>
    %960 = arith.addf %950, %959 : vector<2x8x16xf32>
    %c4_i32 = arith.constant 4 : i32
    %961 = vector.broadcast %c4_i32 : i32 to vector<1x8x1xi32>
    %962 = arith.cmpi eq, %919, %961 : vector<1x8x1xi32>
    %963 = vector.shape_cast %833 : vector<2x16xf32> to vector<2x1x16xf32>
    %cst_196 = arith.constant 0.000000e+00 : f32
    %964 = vector.shape_cast %962 : vector<1x8x1xi1> to vector<1x8x1xi1>
    %965 = vector.broadcast %964 : vector<1x8x1xi1> to vector<2x8x16xi1>
    %966 = vector.shape_cast %963 : vector<2x1x16xf32> to vector<2x1x16xf32>
    %967 = vector.broadcast %966 : vector<2x1x16xf32> to vector<2x8x16xf32>
    %968 = vector.broadcast %cst_196 : f32 to vector<2x8x16xf32>
    %969 = arith.select %965, %967, %968 : vector<2x8x16xi1>, vector<2x8x16xf32>
    %970 = arith.addf %960, %969 : vector<2x8x16xf32>
    %c5_i32 = arith.constant 5 : i32
    %971 = vector.broadcast %c5_i32 : i32 to vector<1x8x1xi32>
    %972 = arith.cmpi eq, %919, %971 : vector<1x8x1xi32>
    %973 = vector.shape_cast %861 : vector<2x16xf32> to vector<2x1x16xf32>
    %cst_197 = arith.constant 0.000000e+00 : f32
    %974 = vector.shape_cast %972 : vector<1x8x1xi1> to vector<1x8x1xi1>
    %975 = vector.broadcast %974 : vector<1x8x1xi1> to vector<2x8x16xi1>
    %976 = vector.shape_cast %973 : vector<2x1x16xf32> to vector<2x1x16xf32>
    %977 = vector.broadcast %976 : vector<2x1x16xf32> to vector<2x8x16xf32>
    %978 = vector.broadcast %cst_197 : f32 to vector<2x8x16xf32>
    %979 = arith.select %975, %977, %978 : vector<2x8x16xi1>, vector<2x8x16xf32>
    %980 = arith.addf %970, %979 : vector<2x8x16xf32>
    %c6_i32 = arith.constant 6 : i32
    %981 = vector.broadcast %c6_i32 : i32 to vector<1x8x1xi32>
    %982 = arith.cmpi eq, %919, %981 : vector<1x8x1xi32>
    %983 = vector.shape_cast %889 : vector<2x16xf32> to vector<2x1x16xf32>
    %cst_198 = arith.constant 0.000000e+00 : f32
    %984 = vector.shape_cast %982 : vector<1x8x1xi1> to vector<1x8x1xi1>
    %985 = vector.broadcast %984 : vector<1x8x1xi1> to vector<2x8x16xi1>
    %986 = vector.shape_cast %983 : vector<2x1x16xf32> to vector<2x1x16xf32>
    %987 = vector.broadcast %986 : vector<2x1x16xf32> to vector<2x8x16xf32>
    %988 = vector.broadcast %cst_198 : f32 to vector<2x8x16xf32>
    %989 = arith.select %985, %987, %988 : vector<2x8x16xi1>, vector<2x8x16xf32>
    %990 = arith.addf %980, %989 : vector<2x8x16xf32>
    %c7_i32 = arith.constant 7 : i32
    %991 = vector.broadcast %c7_i32 : i32 to vector<1x8x1xi32>
    %992 = arith.cmpi eq, %919, %991 : vector<1x8x1xi32>
    %993 = vector.shape_cast %917 : vector<2x16xf32> to vector<2x1x16xf32>
    %cst_199 = arith.constant 0.000000e+00 : f32
    %994 = vector.shape_cast %992 : vector<1x8x1xi1> to vector<1x8x1xi1>
    %995 = vector.broadcast %994 : vector<1x8x1xi1> to vector<2x8x16xi1>
    %996 = vector.shape_cast %993 : vector<2x1x16xf32> to vector<2x1x16xf32>
    %997 = vector.broadcast %996 : vector<2x1x16xf32> to vector<2x8x16xf32>
    %998 = vector.broadcast %cst_199 : f32 to vector<2x8x16xf32>
    %999 = arith.select %995, %997, %998 : vector<2x8x16xi1>, vector<2x8x16xf32>
    %1000 = arith.addf %990, %999 : vector<2x8x16xf32>
    %1001 = tpu.concatenate %262, %682 in 1 : vector<2x8xf32>, vector<2x8xf32> -> vector<2x16xf32>
    %cst_200 = arith.constant 0.000000e+00 : f32
    %1002 = vector.broadcast %cst_200 : f32 to vector<2x32xf32>
    %1003 = tpu.concatenate %50, %1002 in 1 : vector<2x32xf32>, vector<2x32xf32> -> vector<2x64xf32>
    %c0_201 = arith.constant 0 : index
    %c0_202 = arith.constant 0 : index
    %1004 = vector.load %arg20[%c0_201, %c0_202] : memref<64x16xf32, #tpu.memory_space<vmem>>, vector<64x16xf32>
    %cst_203 = arith.constant dense<0.000000e+00> : vector<2x16xf32>
    %1005 = tpu.matmul %1003, %1004, %cst_203 {dimension_numbers = #tpu.dot_dimension_numbers<[1], [0], [0], [1], [0, 0, 1, 1], [], []>} : vector<2x64xf32>, vector<64x16xf32>, vector<2x16xf32> -> vector<2x16xf32>
    %c0_204 = arith.constant 0 : index
    %c0_205 = arith.constant 0 : index
    %1006 = vector.load %arg21[%c0_204, %c0_205] : memref<1x16xf32, #tpu.memory_space<vmem>>, vector<1x16xf32>
    %1007 = vector.broadcast %1006 : vector<1x16xf32> to vector<2x16xf32>
    %1008 = arith.addf %1005, %1007 : vector<2x16xf32>
    %1009 = tpu.concatenate %8, %8, %50, %1001, %1008, %1008 in 1 : vector<2x32xf32>, vector<2x32xf32>, vector<2x32xf32>, vector<2x16xf32>, vector<2x16xf32>, vector<2x16xf32> -> vector<2x144xf32>
    %c0_206 = arith.constant 0 : index
    %c0_207 = arith.constant 0 : index
    %1010 = vector.load %arg28[%c0_206, %c0_207] : memref<144x5xf32, #tpu.memory_space<vmem>>, vector<144x5xf32>
    %cst_208 = arith.constant dense<0.000000e+00> : vector<2x5xf32>
    %1011 = tpu.matmul %1009, %1010, %cst_208 {dimension_numbers = #tpu.dot_dimension_numbers<[1], [0], [0], [1], [0, 0, 1, 1], [], []>} : vector<2x144xf32>, vector<144x5xf32>, vector<2x5xf32> -> vector<2x5xf32>
    %c0_209 = arith.constant 0 : index
    %c0_210 = arith.constant 0 : index
    %1012 = vector.load %arg29[%c0_209, %c0_210] : memref<1x5xf32, #tpu.memory_space<vmem>>, vector<1x5xf32>
    %1013 = vector.broadcast %1012 : vector<1x5xf32> to vector<2x5xf32>
    %1014 = arith.addf %1011, %1013 : vector<2x5xf32>
    %c0_211 = arith.constant 0 : index
    %c0_212 = arith.constant 0 : index
    %c0_213 = arith.constant 0 : index
    %1015 = vector.load %arg30[%c0_211, %c0_212, %c0_213] : memref<8x2x5xf32, #tpu.memory_space<vmem>>, vector<1x2x5xf32>
    %1016 = vector.shape_cast %1015 : vector<1x2x5xf32> to vector<2x5xf32>
    %1017 = vector.shape_cast %1014 : vector<2x5xf32> to vector<1x2x5xf32>
    tpu.vector_store %arg30[%c0_211, %c0_212, %c0_213], %1017 {strides = array<i32>} : memref<8x2x5xf32, #tpu.memory_space<vmem>>, vector<1x2x5xf32>,
    %1018 = tpu.concatenate %290, %654 in 1 : vector<2x8xf32>, vector<2x8xf32> -> vector<2x16xf32>
    %cst_214 = arith.constant 0.000000e+00 : f32
    %1019 = vector.broadcast %cst_214 : f32 to vector<2x16xf32>
    %cst_215 = arith.constant 0.000000e+00 : f32
    %1020 = vector.broadcast %cst_215 : f32 to vector<2x8x16xf32>
    %1021 = vector.extract_strided_slice %693 {offsets = [0, 0], sizes = [2, 64], strides = [1, 1]} : vector<16x64xf32> to vector<2x64xf32>
    %1022 = vector.extract_strided_slice %1021 {offsets = [0, 0], sizes = [2, 16], strides = [1, 1]} : vector<2x64xf32> to vector<2x16xf32>
    %1023 = arith.negf %1022 : vector<2x16xf32>
    %1024 = math.exp %1023 : vector<2x16xf32>
    %cst_216 = arith.constant 1.000000e+00 : f32
    %1025 = vector.broadcast %cst_216 : f32 to vector<2x16xf32>
    %1026 = arith.addf %1025, %1024 : vector<2x16xf32>
    %1027 = arith.divf %1025, %1026 : vector<2x16xf32>
    %1028 = vector.extract_strided_slice %1021 {offsets = [0, 16], sizes = [2, 16], strides = [1, 1]} : vector<2x64xf32> to vector<2x16xf32>
    %1029 = arith.negf %1028 : vector<2x16xf32>
    %1030 = math.exp %1029 : vector<2x16xf32>
    %cst_217 = arith.constant 1.000000e+00 : f32
    %1031 = vector.broadcast %cst_217 : f32 to vector<2x16xf32>
    %1032 = arith.addf %1031, %1030 : vector<2x16xf32>
    %1033 = arith.divf %1031, %1032 : vector<2x16xf32>
    %1034 = vector.extract_strided_slice %1021 {offsets = [0, 32], sizes = [2, 16], strides = [1, 1]} : vector<2x64xf32> to vector<2x16xf32>
    %1035 = math.tanh %1034 : vector<2x16xf32>
    %1036 = vector.extract_strided_slice %1021 {offsets = [0, 48], sizes = [2, 16], strides = [1, 1]} : vector<2x64xf32> to vector<2x16xf32>
    %1037 = arith.negf %1036 : vector<2x16xf32>
    %1038 = math.exp %1037 : vector<2x16xf32>
    %cst_218 = arith.constant 1.000000e+00 : f32
    %1039 = vector.broadcast %cst_218 : f32 to vector<2x16xf32>
    %1040 = arith.addf %1039, %1038 : vector<2x16xf32>
    %1041 = arith.divf %1039, %1040 : vector<2x16xf32>
    %1042 = arith.mulf %1033, %1019 : vector<2x16xf32>
    %1043 = arith.mulf %1027, %1035 : vector<2x16xf32>
    %1044 = arith.addf %1042, %1043 : vector<2x16xf32>
    %1045 = math.tanh %1044 : vector<2x16xf32>
    %1046 = arith.mulf %1041, %1045 : vector<2x16xf32>
    %c0_i32_219 = arith.constant 0 : i32
    %1047 = vector.broadcast %c0_i32_219 : i32 to vector<1x8x1xi32>
    %1048 = arith.cmpi eq, %919, %1047 : vector<1x8x1xi32>
    %1049 = vector.shape_cast %1046 : vector<2x16xf32> to vector<2x1x16xf32>
    %cst_220 = arith.constant 0.000000e+00 : f32
    %1050 = vector.shape_cast %1048 : vector<1x8x1xi1> to vector<1x8x1xi1>
    %1051 = vector.broadcast %1050 : vector<1x8x1xi1> to vector<2x8x16xi1>
    %1052 = vector.shape_cast %1049 : vector<2x1x16xf32> to vector<2x1x16xf32>
    %1053 = vector.broadcast %1052 : vector<2x1x16xf32> to vector<2x8x16xf32>
    %1054 = vector.broadcast %cst_220 : f32 to vector<2x8x16xf32>
    %1055 = arith.select %1051, %1053, %1054 : vector<2x8x16xi1>, vector<2x8x16xf32>
    %1056 = arith.addf %1020, %1055 : vector<2x8x16xf32>
    %1057 = tpu.concatenate %1000, %1056 in 2 : vector<2x8x16xf32>, vector<2x8x16xf32> -> vector<2x8x32xf32>
    %1058 = tpu.concatenate %721, %1046 in 1 : vector<2x16xf32>, vector<2x16xf32> -> vector<2x32xf32>
    %c0_221 = arith.constant 0 : index
    %c0_222 = arith.constant 0 : index
    %1059 = vector.load %arg22[%c0_221, %c0_222] : memref<32x32xf32, #tpu.memory_space<vmem>>, vector<32x32xf32>
    %cst_223 = arith.constant dense<0.000000e+00> : vector<2x32xf32>
    %1060 = tpu.matmul %1058, %1059, %cst_223 {dimension_numbers = #tpu.dot_dimension_numbers<[1], [0], [0], [1], [0, 0, 1, 1], [], []>} : vector<2x32xf32>, vector<32x32xf32>, vector<2x32xf32> -> vector<2x32xf32>
    %c0_224 = arith.constant 0 : index
    %c0_225 = arith.constant 0 : index
    %1061 = vector.load %arg23[%c0_224, %c0_225] : memref<1x32xf32, #tpu.memory_space<vmem>>, vector<1x32xf32>
    %1062 = vector.broadcast %1061 : vector<1x32xf32> to vector<2x32xf32>
    %1063 = arith.addf %1060, %1062 : vector<2x32xf32>
    %1064 = vector.shape_cast %1063 : vector<2x32xf32> to vector<2x1x32xf32>
    %1065 = vector.broadcast %1064 : vector<2x1x32xf32> to vector<2x8x32xf32>
    %1066 = arith.mulf %1065, %6 : vector<2x8x32xf32>
    %cst_226 = arith.constant dense<0.000000e+00> : vector<2x8xf32>
    %1067 = vector.multi_reduction <add>, %1066, %cst_226 [2] : vector<2x8x32xf32> to vector<2x8xf32>
    %1068 = vector.shape_cast %1067 : vector<2x8xf32> to vector<2x8x1xf32>
    %cst_227 = arith.constant dense<0xFF800000> : vector<2x1xf32>
    %1069 = vector.multi_reduction <maximumf>, %1068, %cst_227 [1] : vector<2x8x1xf32> to vector<2x1xf32>
    %1070 = vector.shape_cast %1069 : vector<2x1xf32> to vector<2x1x1xf32>
    %1071 = vector.broadcast %1070 : vector<2x1x1xf32> to vector<2x8x1xf32>
    %1072 = arith.subf %1068, %1071 : vector<2x8x1xf32>
    %1073 = math.exp %1072 : vector<2x8x1xf32>
    %cst_228 = arith.constant dense<0.000000e+00> : vector<2x1xf32>
    %1074 = vector.multi_reduction <add>, %1073, %cst_228 [1] : vector<2x8x1xf32> to vector<2x1xf32>
    %1075 = vector.shape_cast %1074 : vector<2x1xf32> to vector<2x1x1xf32>
    %1076 = tpu.reciprocal %1075 {approx = true} : vector<2x1x1xf32> -> vector<2x1x1xf32>
    %1077 = vector.broadcast %1076 : vector<2x1x1xf32> to vector<2x8x1xf32>
    %1078 = arith.mulf %1073, %1077 : vector<2x8x1xf32>
    %1079 = vector.broadcast %1078 : vector<2x8x1xf32> to vector<2x8x32xf32>
    %1080 = arith.mulf %1079, %6 : vector<2x8x32xf32>
    %cst_229 = arith.constant dense<0.000000e+00> : vector<2x32xf32>
    %1081 = vector.multi_reduction <add>, %1080, %cst_229 [1] : vector<2x8x32xf32> to vector<2x32xf32>
    %1082 = tpu.concatenate %75, %1081 in 1 : vector<2x32xf32>, vector<2x32xf32> -> vector<2x64xf32>
    %c0_230 = arith.constant 0 : index
    %c0_231 = arith.constant 0 : index
    %1083 = vector.load %arg24[%c0_230, %c0_231] : memref<64x32xf32, #tpu.memory_space<vmem>>, vector<64x32xf32>
    %cst_232 = arith.constant dense<0.000000e+00> : vector<2x32xf32>
    %1084 = tpu.matmul %1082, %1083, %cst_232 {dimension_numbers = #tpu.dot_dimension_numbers<[1], [0], [0], [1], [0, 0, 1, 1], [], []>} : vector<2x64xf32>, vector<64x32xf32>, vector<2x32xf32> -> vector<2x32xf32>
    %c0_233 = arith.constant 0 : index
    %c0_234 = arith.constant 0 : index
    %1085 = vector.load %arg25[%c0_233, %c0_234] : memref<1x32xf32, #tpu.memory_space<vmem>>, vector<1x32xf32>
    %1086 = vector.broadcast %1085 : vector<1x32xf32> to vector<2x32xf32>
    %1087 = arith.addf %1084, %1086 : vector<2x32xf32>
    %1088 = vector.shape_cast %1087 : vector<2x32xf32> to vector<2x1x32xf32>
    %1089 = vector.broadcast %1088 : vector<2x1x32xf32> to vector<2x8x32xf32>
    %1090 = arith.mulf %1089, %1057 : vector<2x8x32xf32>
    %cst_235 = arith.constant dense<0.000000e+00> : vector<2x8xf32>
    %1091 = vector.multi_reduction <add>, %1090, %cst_235 [2] : vector<2x8x32xf32> to vector<2x8xf32>
    %1092 = vector.shape_cast %1091 : vector<2x8xf32> to vector<2x8x1xf32>
    %c1_i32_236 = arith.constant 1 : i32
    %1093 = vector.broadcast %c1_i32_236 : i32 to vector<1x8x1xi32>
    %1094 = arith.cmpi slt, %919, %1093 : vector<1x8x1xi32>
    %cst_237 = arith.constant -1.000000e+30 : f32
    %1095 = vector.shape_cast %1094 : vector<1x8x1xi1> to vector<1x8x1xi1>
    %1096 = vector.broadcast %1095 : vector<1x8x1xi1> to vector<2x8x1xi1>
    %1097 = vector.broadcast %cst_237 : f32 to vector<2x8x1xf32>
    %1098 = arith.select %1096, %1092, %1097 : vector<2x8x1xi1>, vector<2x8x1xf32>
    %cst_238 = arith.constant dense<0xFF800000> : vector<2x1xf32>
    %1099 = vector.multi_reduction <maximumf>, %1098, %cst_238 [1] : vector<2x8x1xf32> to vector<2x1xf32>
    %1100 = vector.shape_cast %1099 : vector<2x1xf32> to vector<2x1x1xf32>
    %1101 = vector.broadcast %1100 : vector<2x1x1xf32> to vector<2x8x1xf32>
    %1102 = arith.subf %1098, %1101 : vector<2x8x1xf32>
    %1103 = math.exp %1102 : vector<2x8x1xf32>
    %cst_239 = arith.constant dense<0.000000e+00> : vector<2x1xf32>
    %1104 = vector.multi_reduction <add>, %1103, %cst_239 [1] : vector<2x8x1xf32> to vector<2x1xf32>
    %1105 = vector.shape_cast %1104 : vector<2x1xf32> to vector<2x1x1xf32>
    %1106 = tpu.reciprocal %1105 {approx = true} : vector<2x1x1xf32> -> vector<2x1x1xf32>
    %1107 = vector.broadcast %1106 : vector<2x1x1xf32> to vector<2x8x1xf32>
    %1108 = arith.mulf %1103, %1107 : vector<2x8x1xf32>
    %1109 = vector.broadcast %1108 : vector<2x8x1xf32> to vector<2x8x32xf32>
    %1110 = arith.mulf %1109, %1057 : vector<2x8x32xf32>
    %cst_240 = arith.constant dense<0.000000e+00> : vector<2x32xf32>
    %1111 = vector.multi_reduction <add>, %1110, %cst_240 [1] : vector<2x8x32xf32> to vector<2x32xf32>
    %1112 = tpu.concatenate %10, %75, %1018, %1081, %1111 in 1 : vector<2x32xf32>, vector<2x32xf32>, vector<2x16xf32>, vector<2x32xf32>, vector<2x32xf32> -> vector<2x144xf32>
    %c0_241 = arith.constant 0 : index
    %c0_242 = arith.constant 0 : index
    %1113 = vector.load %arg26[%c0_241, %c0_242] : memref<144x5xf32, #tpu.memory_space<vmem>>, vector<144x5xf32>
    %cst_243 = arith.constant dense<0.000000e+00> : vector<2x5xf32>
    %1114 = tpu.matmul %1112, %1113, %cst_243 {dimension_numbers = #tpu.dot_dimension_numbers<[1], [0], [0], [1], [0, 0, 1, 1], [], []>} : vector<2x144xf32>, vector<144x5xf32>, vector<2x5xf32> -> vector<2x5xf32>
    %c0_244 = arith.constant 0 : index
    %c0_245 = arith.constant 0 : index
    %1115 = vector.load %arg27[%c0_244, %c0_245] : memref<1x5xf32, #tpu.memory_space<vmem>>, vector<1x5xf32>
    %1116 = vector.broadcast %1115 : vector<1x5xf32> to vector<2x5xf32>
    %1117 = arith.addf %1114, %1116 : vector<2x5xf32>
    %c1 = arith.constant 1 : index
    %c0_246 = arith.constant 0 : index
    %c0_247 = arith.constant 0 : index
    %1118 = vector.load %arg30[%c1, %c0_246, %c0_247] : memref<8x2x5xf32, #tpu.memory_space<vmem>>, vector<1x2x5xf32>
    %1119 = vector.shape_cast %1118 : vector<1x2x5xf32> to vector<2x5xf32>
    %1120 = vector.shape_cast %1117 : vector<2x5xf32> to vector<1x2x5xf32>
    tpu.vector_store %arg30[%c1, %c0_246, %c0_247], %1120 {strides = array<i32>} : memref<8x2x5xf32, #tpu.memory_space<vmem>>, vector<1x2x5xf32>,
    %1121 = tpu.concatenate %318, %626 in 1 : vector<2x8xf32>, vector<2x8xf32> -> vector<2x16xf32>
    %cst_248 = arith.constant 0.000000e+00 : f32
    %1122 = vector.broadcast %cst_248 : f32 to vector<2x16xf32>
    %cst_249 = arith.constant 0.000000e+00 : f32
    %1123 = vector.broadcast %cst_249 : f32 to vector<2x8x16xf32>
    %1124 = vector.extract_strided_slice %693 {offsets = [2, 0], sizes = [2, 64], strides = [1, 1]} : vector<16x64xf32> to vector<2x64xf32>
    %1125 = vector.extract_strided_slice %1124 {offsets = [0, 0], sizes = [2, 16], strides = [1, 1]} : vector<2x64xf32> to vector<2x16xf32>
    %1126 = arith.negf %1125 : vector<2x16xf32>
    %1127 = math.exp %1126 : vector<2x16xf32>
    %cst_250 = arith.constant 1.000000e+00 : f32
    %1128 = vector.broadcast %cst_250 : f32 to vector<2x16xf32>
    %1129 = arith.addf %1128, %1127 : vector<2x16xf32>
    %1130 = arith.divf %1128, %1129 : vector<2x16xf32>
    %1131 = vector.extract_strided_slice %1124 {offsets = [0, 16], sizes = [2, 16], strides = [1, 1]} : vector<2x64xf32> to vector<2x16xf32>
    %1132 = arith.negf %1131 : vector<2x16xf32>
    %1133 = math.exp %1132 : vector<2x16xf32>
    %cst_251 = arith.constant 1.000000e+00 : f32
    %1134 = vector.broadcast %cst_251 : f32 to vector<2x16xf32>
    %1135 = arith.addf %1134, %1133 : vector<2x16xf32>
    %1136 = arith.divf %1134, %1135 : vector<2x16xf32>
    %1137 = vector.extract_strided_slice %1124 {offsets = [0, 32], sizes = [2, 16], strides = [1, 1]} : vector<2x64xf32> to vector<2x16xf32>
    %1138 = math.tanh %1137 : vector<2x16xf32>
    %1139 = vector.extract_strided_slice %1124 {offsets = [0, 48], sizes = [2, 16], strides = [1, 1]} : vector<2x64xf32> to vector<2x16xf32>
    %1140 = arith.negf %1139 : vector<2x16xf32>
    %1141 = math.exp %1140 : vector<2x16xf32>
    %cst_252 = arith.constant 1.000000e+00 : f32
    %1142 = vector.broadcast %cst_252 : f32 to vector<2x16xf32>
    %1143 = arith.addf %1142, %1141 : vector<2x16xf32>
    %1144 = arith.divf %1142, %1143 : vector<2x16xf32>
    %1145 = arith.mulf %1136, %1122 : vector<2x16xf32>
    %1146 = arith.mulf %1130, %1138 : vector<2x16xf32>
    %1147 = arith.addf %1145, %1146 : vector<2x16xf32>
    %1148 = math.tanh %1147 : vector<2x16xf32>
    %1149 = arith.mulf %1144, %1148 : vector<2x16xf32>
    %c1_i32_253 = arith.constant 1 : i32
    %1150 = vector.broadcast %c1_i32_253 : i32 to vector<1x8x1xi32>
    %1151 = arith.cmpi eq, %919, %1150 : vector<1x8x1xi32>
    %1152 = vector.shape_cast %1149 : vector<2x16xf32> to vector<2x1x16xf32>
    %cst_254 = arith.constant 0.000000e+00 : f32
    %1153 = vector.shape_cast %1151 : vector<1x8x1xi1> to vector<1x8x1xi1>
    %1154 = vector.broadcast %1153 : vector<1x8x1xi1> to vector<2x8x16xi1>
    %1155 = vector.shape_cast %1152 : vector<2x1x16xf32> to vector<2x1x16xf32>
    %1156 = vector.broadcast %1155 : vector<2x1x16xf32> to vector<2x8x16xf32>
    %1157 = vector.broadcast %cst_254 : f32 to vector<2x8x16xf32>
    %1158 = arith.select %1154, %1156, %1157 : vector<2x8x16xi1>, vector<2x8x16xf32>
    %1159 = arith.addf %1123, %1158 : vector<2x8x16xf32>
    %1160 = vector.extract_strided_slice %693 {offsets = [0, 0], sizes = [2, 64], strides = [1, 1]} : vector<16x64xf32> to vector<2x64xf32>
    %cst_255 = arith.constant dense<0.000000e+00> : vector<2x64xf32>
    %1161 = tpu.matmul %1149, %918, %cst_255 {dimension_numbers = #tpu.dot_dimension_numbers<[1], [0], [0], [1], [0, 0, 1, 1], [], []>} : vector<2x16xf32>, vector<16x64xf32>, vector<2x64xf32> -> vector<2x64xf32>
    %1162 = arith.addf %1160, %1161 : vector<2x64xf32>
    %1163 = vector.extract_strided_slice %1162 {offsets = [0, 0], sizes = [2, 16], strides = [1, 1]} : vector<2x64xf32> to vector<2x16xf32>
    %1164 = arith.negf %1163 : vector<2x16xf32>
    %1165 = math.exp %1164 : vector<2x16xf32>
    %cst_256 = arith.constant 1.000000e+00 : f32
    %1166 = vector.broadcast %cst_256 : f32 to vector<2x16xf32>
    %1167 = arith.addf %1166, %1165 : vector<2x16xf32>
    %1168 = arith.divf %1166, %1167 : vector<2x16xf32>
    %1169 = vector.extract_strided_slice %1162 {offsets = [0, 16], sizes = [2, 16], strides = [1, 1]} : vector<2x64xf32> to vector<2x16xf32>
    %1170 = arith.negf %1169 : vector<2x16xf32>
    %1171 = math.exp %1170 : vector<2x16xf32>
    %cst_257 = arith.constant 1.000000e+00 : f32
    %1172 = vector.broadcast %cst_257 : f32 to vector<2x16xf32>
    %1173 = arith.addf %1172, %1171 : vector<2x16xf32>
    %1174 = arith.divf %1172, %1173 : vector<2x16xf32>
    %1175 = vector.extract_strided_slice %1162 {offsets = [0, 32], sizes = [2, 16], strides = [1, 1]} : vector<2x64xf32> to vector<2x16xf32>
    %1176 = math.tanh %1175 : vector<2x16xf32>
    %1177 = vector.extract_strided_slice %1162 {offsets = [0, 48], sizes = [2, 16], strides = [1, 1]} : vector<2x64xf32> to vector<2x16xf32>
    %1178 = arith.negf %1177 : vector<2x16xf32>
    %1179 = math.exp %1178 : vector<2x16xf32>
    %cst_258 = arith.constant 1.000000e+00 : f32
    %1180 = vector.broadcast %cst_258 : f32 to vector<2x16xf32>
    %1181 = arith.addf %1180, %1179 : vector<2x16xf32>
    %1182 = arith.divf %1180, %1181 : vector<2x16xf32>
    %1183 = arith.mulf %1174, %1147 : vector<2x16xf32>
    %1184 = arith.mulf %1168, %1176 : vector<2x16xf32>
    %1185 = arith.addf %1183, %1184 : vector<2x16xf32>
    %1186 = math.tanh %1185 : vector<2x16xf32>
    %1187 = arith.mulf %1182, %1186 : vector<2x16xf32>
    %c0_i32_259 = arith.constant 0 : i32
    %1188 = vector.broadcast %c0_i32_259 : i32 to vector<1x8x1xi32>
    %1189 = arith.cmpi eq, %919, %1188 : vector<1x8x1xi32>
    %1190 = vector.shape_cast %1187 : vector<2x16xf32> to vector<2x1x16xf32>
    %cst_260 = arith.constant 0.000000e+00 : f32
    %1191 = vector.shape_cast %1189 : vector<1x8x1xi1> to vector<1x8x1xi1>
    %1192 = vector.broadcast %1191 : vector<1x8x1xi1> to vector<2x8x16xi1>
    %1193 = vector.shape_cast %1190 : vector<2x1x16xf32> to vector<2x1x16xf32>
    %1194 = vector.broadcast %1193 : vector<2x1x16xf32> to vector<2x8x16xf32>
    %1195 = vector.broadcast %cst_260 : f32 to vector<2x8x16xf32>
    %1196 = arith.select %1192, %1194, %1195 : vector<2x8x16xi1>, vector<2x8x16xf32>
    %1197 = arith.addf %1159, %1196 : vector<2x8x16xf32>
    %1198 = tpu.concatenate %1000, %1197 in 2 : vector<2x8x16xf32>, vector<2x8x16xf32> -> vector<2x8x32xf32>
    %1199 = tpu.concatenate %749, %1149 in 1 : vector<2x16xf32>, vector<2x16xf32> -> vector<2x32xf32>
    %c0_261 = arith.constant 0 : index
    %c0_262 = arith.constant 0 : index
    %1200 = vector.load %arg22[%c0_261, %c0_262] : memref<32x32xf32, #tpu.memory_space<vmem>>, vector<32x32xf32>
    %cst_263 = arith.constant dense<0.000000e+00> : vector<2x32xf32>
    %1201 = tpu.matmul %1199, %1200, %cst_263 {dimension_numbers = #tpu.dot_dimension_numbers<[1], [0], [0], [1], [0, 0, 1, 1], [], []>} : vector<2x32xf32>, vector<32x32xf32>, vector<2x32xf32> -> vector<2x32xf32>
    %c0_264 = arith.constant 0 : index
    %c0_265 = arith.constant 0 : index
    %1202 = vector.load %arg23[%c0_264, %c0_265] : memref<1x32xf32, #tpu.memory_space<vmem>>, vector<1x32xf32>
    %1203 = vector.broadcast %1202 : vector<1x32xf32> to vector<2x32xf32>
    %1204 = arith.addf %1201, %1203 : vector<2x32xf32>
    %1205 = vector.shape_cast %1204 : vector<2x32xf32> to vector<2x1x32xf32>
    %1206 = vector.broadcast %1205 : vector<2x1x32xf32> to vector<2x8x32xf32>
    %1207 = arith.mulf %1206, %6 : vector<2x8x32xf32>
    %cst_266 = arith.constant dense<0.000000e+00> : vector<2x8xf32>
    %1208 = vector.multi_reduction <add>, %1207, %cst_266 [2] : vector<2x8x32xf32> to vector<2x8xf32>
    %1209 = vector.shape_cast %1208 : vector<2x8xf32> to vector<2x8x1xf32>
    %cst_267 = arith.constant dense<0xFF800000> : vector<2x1xf32>
    %1210 = vector.multi_reduction <maximumf>, %1209, %cst_267 [1] : vector<2x8x1xf32> to vector<2x1xf32>
    %1211 = vector.shape_cast %1210 : vector<2x1xf32> to vector<2x1x1xf32>
    %1212 = vector.broadcast %1211 : vector<2x1x1xf32> to vector<2x8x1xf32>
    %1213 = arith.subf %1209, %1212 : vector<2x8x1xf32>
    %1214 = math.exp %1213 : vector<2x8x1xf32>
    %cst_268 = arith.constant dense<0.000000e+00> : vector<2x1xf32>
    %1215 = vector.multi_reduction <add>, %1214, %cst_268 [1] : vector<2x8x1xf32> to vector<2x1xf32>
    %1216 = vector.shape_cast %1215 : vector<2x1xf32> to vector<2x1x1xf32>
    %1217 = tpu.reciprocal %1216 {approx = true} : vector<2x1x1xf32> -> vector<2x1x1xf32>
    %1218 = vector.broadcast %1217 : vector<2x1x1xf32> to vector<2x8x1xf32>
    %1219 = arith.mulf %1214, %1218 : vector<2x8x1xf32>
    %1220 = vector.broadcast %1219 : vector<2x8x1xf32> to vector<2x8x32xf32>
    %1221 = arith.mulf %1220, %6 : vector<2x8x32xf32>
    %cst_269 = arith.constant dense<0.000000e+00> : vector<2x32xf32>
    %1222 = vector.multi_reduction <add>, %1221, %cst_269 [1] : vector<2x8x32xf32> to vector<2x32xf32>
    %1223 = tpu.concatenate %100, %1222 in 1 : vector<2x32xf32>, vector<2x32xf32> -> vector<2x64xf32>
    %c0_270 = arith.constant 0 : index
    %c0_271 = arith.constant 0 : index
    %1224 = vector.load %arg24[%c0_270, %c0_271] : memref<64x32xf32, #tpu.memory_space<vmem>>, vector<64x32xf32>
    %cst_272 = arith.constant dense<0.000000e+00> : vector<2x32xf32>
    %1225 = tpu.matmul %1223, %1224, %cst_272 {dimension_numbers = #tpu.dot_dimension_numbers<[1], [0], [0], [1], [0, 0, 1, 1], [], []>} : vector<2x64xf32>, vector<64x32xf32>, vector<2x32xf32> -> vector<2x32xf32>
    %c0_273 = arith.constant 0 : index
    %c0_274 = arith.constant 0 : index
    %1226 = vector.load %arg25[%c0_273, %c0_274] : memref<1x32xf32, #tpu.memory_space<vmem>>, vector<1x32xf32>
    %1227 = vector.broadcast %1226 : vector<1x32xf32> to vector<2x32xf32>
    %1228 = arith.addf %1225, %1227 : vector<2x32xf32>
    %1229 = vector.shape_cast %1228 : vector<2x32xf32> to vector<2x1x32xf32>
    %1230 = vector.broadcast %1229 : vector<2x1x32xf32> to vector<2x8x32xf32>
    %1231 = arith.mulf %1230, %1198 : vector<2x8x32xf32>
    %cst_275 = arith.constant dense<0.000000e+00> : vector<2x8xf32>
    %1232 = vector.multi_reduction <add>, %1231, %cst_275 [2] : vector<2x8x32xf32> to vector<2x8xf32>
    %1233 = vector.shape_cast %1232 : vector<2x8xf32> to vector<2x8x1xf32>
    %c2_i32_276 = arith.constant 2 : i32
    %1234 = vector.broadcast %c2_i32_276 : i32 to vector<1x8x1xi32>
    %1235 = arith.cmpi slt, %919, %1234 : vector<1x8x1xi32>
    %cst_277 = arith.constant -1.000000e+30 : f32
    %1236 = vector.shape_cast %1235 : vector<1x8x1xi1> to vector<1x8x1xi1>
    %1237 = vector.broadcast %1236 : vector<1x8x1xi1> to vector<2x8x1xi1>
    %1238 = vector.broadcast %cst_277 : f32 to vector<2x8x1xf32>
    %1239 = arith.select %1237, %1233, %1238 : vector<2x8x1xi1>, vector<2x8x1xf32>
    %cst_278 = arith.constant dense<0xFF800000> : vector<2x1xf32>
    %1240 = vector.multi_reduction <maximumf>, %1239, %cst_278 [1] : vector<2x8x1xf32> to vector<2x1xf32>
    %1241 = vector.shape_cast %1240 : vector<2x1xf32> to vector<2x1x1xf32>
    %1242 = vector.broadcast %1241 : vector<2x1x1xf32> to vector<2x8x1xf32>
    %1243 = arith.subf %1239, %1242 : vector<2x8x1xf32>
    %1244 = math.exp %1243 : vector<2x8x1xf32>
    %cst_279 = arith.constant dense<0.000000e+00> : vector<2x1xf32>
    %1245 = vector.multi_reduction <add>, %1244, %cst_279 [1] : vector<2x8x1xf32> to vector<2x1xf32>
    %1246 = vector.shape_cast %1245 : vector<2x1xf32> to vector<2x1x1xf32>
    %1247 = tpu.reciprocal %1246 {approx = true} : vector<2x1x1xf32> -> vector<2x1x1xf32>
    %1248 = vector.broadcast %1247 : vector<2x1x1xf32> to vector<2x8x1xf32>
    %1249 = arith.mulf %1244, %1248 : vector<2x8x1xf32>
    %1250 = vector.broadcast %1249 : vector<2x8x1xf32> to vector<2x8x32xf32>
    %1251 = arith.mulf %1250, %1198 : vector<2x8x32xf32>
    %cst_280 = arith.constant dense<0.000000e+00> : vector<2x32xf32>
    %1252 = vector.multi_reduction <add>, %1251, %cst_280 [1] : vector<2x8x32xf32> to vector<2x32xf32>
    %1253 = tpu.concatenate %12, %100, %1121, %1222, %1252 in 1 : vector<2x32xf32>, vector<2x32xf32>, vector<2x16xf32>, vector<2x32xf32>, vector<2x32xf32> -> vector<2x144xf32>
    %c0_281 = arith.constant 0 : index
    %c0_282 = arith.constant 0 : index
    %1254 = vector.load %arg26[%c0_281, %c0_282] : memref<144x5xf32, #tpu.memory_space<vmem>>, vector<144x5xf32>
    %cst_283 = arith.constant dense<0.000000e+00> : vector<2x5xf32>
    %1255 = tpu.matmul %1253, %1254, %cst_283 {dimension_numbers = #tpu.dot_dimension_numbers<[1], [0], [0], [1], [0, 0, 1, 1], [], []>} : vector<2x144xf32>, vector<144x5xf32>, vector<2x5xf32> -> vector<2x5xf32>
    %c0_284 = arith.constant 0 : index
    %c0_285 = arith.constant 0 : index
    %1256 = vector.load %arg27[%c0_284, %c0_285] : memref<1x5xf32, #tpu.memory_space<vmem>>, vector<1x5xf32>
    %1257 = vector.broadcast %1256 : vector<1x5xf32> to vector<2x5xf32>
    %1258 = arith.addf %1255, %1257 : vector<2x5xf32>
    %c2 = arith.constant 2 : index
    %c0_286 = arith.constant 0 : index
    %c0_287 = arith.constant 0 : index
    %1259 = vector.load %arg30[%c2, %c0_286, %c0_287] : memref<8x2x5xf32, #tpu.memory_space<vmem>>, vector<1x2x5xf32>
    %1260 = vector.shape_cast %1259 : vector<1x2x5xf32> to vector<2x5xf32>
    %1261 = vector.shape_cast %1258 : vector<2x5xf32> to vector<1x2x5xf32>
    tpu.vector_store %arg30[%c2, %c0_286, %c0_287], %1261 {strides = array<i32>} : memref<8x2x5xf32, #tpu.memory_space<vmem>>, vector<1x2x5xf32>,
    %1262 = tpu.concatenate %346, %598 in 1 : vector<2x8xf32>, vector<2x8xf32> -> vector<2x16xf32>
    %cst_288 = arith.constant 0.000000e+00 : f32
    %1263 = vector.broadcast %cst_288 : f32 to vector<2x16xf32>
    %cst_289 = arith.constant 0.000000e+00 : f32
    %1264 = vector.broadcast %cst_289 : f32 to vector<2x8x16xf32>
    %1265 = vector.extract_strided_slice %693 {offsets = [4, 0], sizes = [2, 64], strides = [1, 1]} : vector<16x64xf32> to vector<2x64xf32>
    %1266 = vector.extract_strided_slice %1265 {offsets = [0, 0], sizes = [2, 16], strides = [1, 1]} : vector<2x64xf32> to vector<2x16xf32>
    %1267 = arith.negf %1266 : vector<2x16xf32>
    %1268 = math.exp %1267 : vector<2x16xf32>
    %cst_290 = arith.constant 1.000000e+00 : f32
    %1269 = vector.broadcast %cst_290 : f32 to vector<2x16xf32>
    %1270 = arith.addf %1269, %1268 : vector<2x16xf32>
    %1271 = arith.divf %1269, %1270 : vector<2x16xf32>
    %1272 = vector.extract_strided_slice %1265 {offsets = [0, 16], sizes = [2, 16], strides = [1, 1]} : vector<2x64xf32> to vector<2x16xf32>
    %1273 = arith.negf %1272 : vector<2x16xf32>
    %1274 = math.exp %1273 : vector<2x16xf32>
    %cst_291 = arith.constant 1.000000e+00 : f32
    %1275 = vector.broadcast %cst_291 : f32 to vector<2x16xf32>
    %1276 = arith.addf %1275, %1274 : vector<2x16xf32>
    %1277 = arith.divf %1275, %1276 : vector<2x16xf32>
    %1278 = vector.extract_strided_slice %1265 {offsets = [0, 32], sizes = [2, 16], strides = [1, 1]} : vector<2x64xf32> to vector<2x16xf32>
    %1279 = math.tanh %1278 : vector<2x16xf32>
    %1280 = vector.extract_strided_slice %1265 {offsets = [0, 48], sizes = [2, 16], strides = [1, 1]} : vector<2x64xf32> to vector<2x16xf32>
    %1281 = arith.negf %1280 : vector<2x16xf32>
    %1282 = math.exp %1281 : vector<2x16xf32>
    %cst_292 = arith.constant 1.000000e+00 : f32
    %1283 = vector.broadcast %cst_292 : f32 to vector<2x16xf32>
    %1284 = arith.addf %1283, %1282 : vector<2x16xf32>
    %1285 = arith.divf %1283, %1284 : vector<2x16xf32>
    %1286 = arith.mulf %1277, %1263 : vector<2x16xf32>
    %1287 = arith.mulf %1271, %1279 : vector<2x16xf32>
    %1288 = arith.addf %1286, %1287 : vector<2x16xf32>
    %1289 = math.tanh %1288 : vector<2x16xf32>
    %1290 = arith.mulf %1285, %1289 : vector<2x16xf32>
    %c2_i32_293 = arith.constant 2 : i32
    %1291 = vector.broadcast %c2_i32_293 : i32 to vector<1x8x1xi32>
    %1292 = arith.cmpi eq, %919, %1291 : vector<1x8x1xi32>
    %1293 = vector.shape_cast %1290 : vector<2x16xf32> to vector<2x1x16xf32>
    %cst_294 = arith.constant 0.000000e+00 : f32
    %1294 = vector.shape_cast %1292 : vector<1x8x1xi1> to vector<1x8x1xi1>
    %1295 = vector.broadcast %1294 : vector<1x8x1xi1> to vector<2x8x16xi1>
    %1296 = vector.shape_cast %1293 : vector<2x1x16xf32> to vector<2x1x16xf32>
    %1297 = vector.broadcast %1296 : vector<2x1x16xf32> to vector<2x8x16xf32>
    %1298 = vector.broadcast %cst_294 : f32 to vector<2x8x16xf32>
    %1299 = arith.select %1295, %1297, %1298 : vector<2x8x16xi1>, vector<2x8x16xf32>
    %1300 = arith.addf %1264, %1299 : vector<2x8x16xf32>
    %1301 = vector.extract_strided_slice %693 {offsets = [2, 0], sizes = [2, 64], strides = [1, 1]} : vector<16x64xf32> to vector<2x64xf32>
    %cst_295 = arith.constant dense<0.000000e+00> : vector<2x64xf32>
    %1302 = tpu.matmul %1290, %918, %cst_295 {dimension_numbers = #tpu.dot_dimension_numbers<[1], [0], [0], [1], [0, 0, 1, 1], [], []>} : vector<2x16xf32>, vector<16x64xf32>, vector<2x64xf32> -> vector<2x64xf32>
    %1303 = arith.addf %1301, %1302 : vector<2x64xf32>
    %1304 = vector.extract_strided_slice %1303 {offsets = [0, 0], sizes = [2, 16], strides = [1, 1]} : vector<2x64xf32> to vector<2x16xf32>
    %1305 = arith.negf %1304 : vector<2x16xf32>
    %1306 = math.exp %1305 : vector<2x16xf32>
    %cst_296 = arith.constant 1.000000e+00 : f32
    %1307 = vector.broadcast %cst_296 : f32 to vector<2x16xf32>
    %1308 = arith.addf %1307, %1306 : vector<2x16xf32>
    %1309 = arith.divf %1307, %1308 : vector<2x16xf32>
    %1310 = vector.extract_strided_slice %1303 {offsets = [0, 16], sizes = [2, 16], strides = [1, 1]} : vector<2x64xf32> to vector<2x16xf32>
    %1311 = arith.negf %1310 : vector<2x16xf32>
    %1312 = math.exp %1311 : vector<2x16xf32>
    %cst_297 = arith.constant 1.000000e+00 : f32
    %1313 = vector.broadcast %cst_297 : f32 to vector<2x16xf32>
    %1314 = arith.addf %1313, %1312 : vector<2x16xf32>
    %1315 = arith.divf %1313, %1314 : vector<2x16xf32>
    %1316 = vector.extract_strided_slice %1303 {offsets = [0, 32], sizes = [2, 16], strides = [1, 1]} : vector<2x64xf32> to vector<2x16xf32>
    %1317 = math.tanh %1316 : vector<2x16xf32>
    %1318 = vector.extract_strided_slice %1303 {offsets = [0, 48], sizes = [2, 16], strides = [1, 1]} : vector<2x64xf32> to vector<2x16xf32>
    %1319 = arith.negf %1318 : vector<2x16xf32>
    %1320 = math.exp %1319 : vector<2x16xf32>
    %cst_298 = arith.constant 1.000000e+00 : f32
    %1321 = vector.broadcast %cst_298 : f32 to vector<2x16xf32>
    %1322 = arith.addf %1321, %1320 : vector<2x16xf32>
    %1323 = arith.divf %1321, %1322 : vector<2x16xf32>
    %1324 = arith.mulf %1315, %1288 : vector<2x16xf32>
    %1325 = arith.mulf %1309, %1317 : vector<2x16xf32>
    %1326 = arith.addf %1324, %1325 : vector<2x16xf32>
    %1327 = math.tanh %1326 : vector<2x16xf32>
    %1328 = arith.mulf %1323, %1327 : vector<2x16xf32>
    %c1_i32_299 = arith.constant 1 : i32
    %1329 = vector.broadcast %c1_i32_299 : i32 to vector<1x8x1xi32>
    %1330 = arith.cmpi eq, %919, %1329 : vector<1x8x1xi32>
    %1331 = vector.shape_cast %1328 : vector<2x16xf32> to vector<2x1x16xf32>
    %cst_300 = arith.constant 0.000000e+00 : f32
    %1332 = vector.shape_cast %1330 : vector<1x8x1xi1> to vector<1x8x1xi1>
    %1333 = vector.broadcast %1332 : vector<1x8x1xi1> to vector<2x8x16xi1>
    %1334 = vector.shape_cast %1331 : vector<2x1x16xf32> to vector<2x1x16xf32>
    %1335 = vector.broadcast %1334 : vector<2x1x16xf32> to vector<2x8x16xf32>
    %1336 = vector.broadcast %cst_300 : f32 to vector<2x8x16xf32>
    %1337 = arith.select %1333, %1335, %1336 : vector<2x8x16xi1>, vector<2x8x16xf32>
    %1338 = arith.addf %1300, %1337 : vector<2x8x16xf32>
    %1339 = vector.extract_strided_slice %693 {offsets = [0, 0], sizes = [2, 64], strides = [1, 1]} : vector<16x64xf32> to vector<2x64xf32>
    %cst_301 = arith.constant dense<0.000000e+00> : vector<2x64xf32>
    %1340 = tpu.matmul %1328, %918, %cst_301 {dimension_numbers = #tpu.dot_dimension_numbers<[1], [0], [0], [1], [0, 0, 1, 1], [], []>} : vector<2x16xf32>, vector<16x64xf32>, vector<2x64xf32> -> vector<2x64xf32>
    %1341 = arith.addf %1339, %1340 : vector<2x64xf32>
    %1342 = vector.extract_strided_slice %1341 {offsets = [0, 0], sizes = [2, 16], strides = [1, 1]} : vector<2x64xf32> to vector<2x16xf32>
    %1343 = arith.negf %1342 : vector<2x16xf32>
    %1344 = math.exp %1343 : vector<2x16xf32>
    %cst_302 = arith.constant 1.000000e+00 : f32
    %1345 = vector.broadcast %cst_302 : f32 to vector<2x16xf32>
    %1346 = arith.addf %1345, %1344 : vector<2x16xf32>
    %1347 = arith.divf %1345, %1346 : vector<2x16xf32>
    %1348 = vector.extract_strided_slice %1341 {offsets = [0, 16], sizes = [2, 16], strides = [1, 1]} : vector<2x64xf32> to vector<2x16xf32>
    %1349 = arith.negf %1348 : vector<2x16xf32>
    %1350 = math.exp %1349 : vector<2x16xf32>
    %cst_303 = arith.constant 1.000000e+00 : f32
    %1351 = vector.broadcast %cst_303 : f32 to vector<2x16xf32>
    %1352 = arith.addf %1351, %1350 : vector<2x16xf32>
    %1353 = arith.divf %1351, %1352 : vector<2x16xf32>
    %1354 = vector.extract_strided_slice %1341 {offsets = [0, 32], sizes = [2, 16], strides = [1, 1]} : vector<2x64xf32> to vector<2x16xf32>
    %1355 = math.tanh %1354 : vector<2x16xf32>
    %1356 = vector.extract_strided_slice %1341 {offsets = [0, 48], sizes = [2, 16], strides = [1, 1]} : vector<2x64xf32> to vector<2x16xf32>
    %1357 = arith.negf %1356 : vector<2x16xf32>
    %1358 = math.exp %1357 : vector<2x16xf32>
    %cst_304 = arith.constant 1.000000e+00 : f32
    %1359 = vector.broadcast %cst_304 : f32 to vector<2x16xf32>
    %1360 = arith.addf %1359, %1358 : vector<2x16xf32>
    %1361 = arith.divf %1359, %1360 : vector<2x16xf32>
    %1362 = arith.mulf %1353, %1326 : vector<2x16xf32>
    %1363 = arith.mulf %1347, %1355 : vector<2x16xf32>
    %1364 = arith.addf %1362, %1363 : vector<2x16xf32>
    %1365 = math.tanh %1364 : vector<2x16xf32>
    %1366 = arith.mulf %1361, %1365 : vector<2x16xf32>
    %c0_i32_305 = arith.constant 0 : i32
    %1367 = vector.broadcast %c0_i32_305 : i32 to vector<1x8x1xi32>
    %1368 = arith.cmpi eq, %919, %1367 : vector<1x8x1xi32>
    %1369 = vector.shape_cast %1366 : vector<2x16xf32> to vector<2x1x16xf32>
    %cst_306 = arith.constant 0.000000e+00 : f32
    %1370 = vector.shape_cast %1368 : vector<1x8x1xi1> to vector<1x8x1xi1>
    %1371 = vector.broadcast %1370 : vector<1x8x1xi1> to vector<2x8x16xi1>
    %1372 = vector.shape_cast %1369 : vector<2x1x16xf32> to vector<2x1x16xf32>
    %1373 = vector.broadcast %1372 : vector<2x1x16xf32> to vector<2x8x16xf32>
    %1374 = vector.broadcast %cst_306 : f32 to vector<2x8x16xf32>
    %1375 = arith.select %1371, %1373, %1374 : vector<2x8x16xi1>, vector<2x8x16xf32>
    %1376 = arith.addf %1338, %1375 : vector<2x8x16xf32>
    %1377 = tpu.concatenate %1000, %1376 in 2 : vector<2x8x16xf32>, vector<2x8x16xf32> -> vector<2x8x32xf32>
    %1378 = tpu.concatenate %777, %1290 in 1 : vector<2x16xf32>, vector<2x16xf32> -> vector<2x32xf32>
    %c0_307 = arith.constant 0 : index
    %c0_308 = arith.constant 0 : index
    %1379 = vector.load %arg22[%c0_307, %c0_308] : memref<32x32xf32, #tpu.memory_space<vmem>>, vector<32x32xf32>
    %cst_309 = arith.constant dense<0.000000e+00> : vector<2x32xf32>
    %1380 = tpu.matmul %1378, %1379, %cst_309 {dimension_numbers = #tpu.dot_dimension_numbers<[1], [0], [0], [1], [0, 0, 1, 1], [], []>} : vector<2x32xf32>, vector<32x32xf32>, vector<2x32xf32> -> vector<2x32xf32>
    %c0_310 = arith.constant 0 : index
    %c0_311 = arith.constant 0 : index
    %1381 = vector.load %arg23[%c0_310, %c0_311] : memref<1x32xf32, #tpu.memory_space<vmem>>, vector<1x32xf32>
    %1382 = vector.broadcast %1381 : vector<1x32xf32> to vector<2x32xf32>
    %1383 = arith.addf %1380, %1382 : vector<2x32xf32>
    %1384 = vector.shape_cast %1383 : vector<2x32xf32> to vector<2x1x32xf32>
    %1385 = vector.broadcast %1384 : vector<2x1x32xf32> to vector<2x8x32xf32>
    %1386 = arith.mulf %1385, %6 : vector<2x8x32xf32>
    %cst_312 = arith.constant dense<0.000000e+00> : vector<2x8xf32>
    %1387 = vector.multi_reduction <add>, %1386, %cst_312 [2] : vector<2x8x32xf32> to vector<2x8xf32>
    %1388 = vector.shape_cast %1387 : vector<2x8xf32> to vector<2x8x1xf32>
    %cst_313 = arith.constant dense<0xFF800000> : vector<2x1xf32>
    %1389 = vector.multi_reduction <maximumf>, %1388, %cst_313 [1] : vector<2x8x1xf32> to vector<2x1xf32>
    %1390 = vector.shape_cast %1389 : vector<2x1xf32> to vector<2x1x1xf32>
    %1391 = vector.broadcast %1390 : vector<2x1x1xf32> to vector<2x8x1xf32>
    %1392 = arith.subf %1388, %1391 : vector<2x8x1xf32>
    %1393 = math.exp %1392 : vector<2x8x1xf32>
    %cst_314 = arith.constant dense<0.000000e+00> : vector<2x1xf32>
    %1394 = vector.multi_reduction <add>, %1393, %cst_314 [1] : vector<2x8x1xf32> to vector<2x1xf32>
    %1395 = vector.shape_cast %1394 : vector<2x1xf32> to vector<2x1x1xf32>
    %1396 = tpu.reciprocal %1395 {approx = true} : vector<2x1x1xf32> -> vector<2x1x1xf32>
    %1397 = vector.broadcast %1396 : vector<2x1x1xf32> to vector<2x8x1xf32>
    %1398 = arith.mulf %1393, %1397 : vector<2x8x1xf32>
    %1399 = vector.broadcast %1398 : vector<2x8x1xf32> to vector<2x8x32xf32>
    %1400 = arith.mulf %1399, %6 : vector<2x8x32xf32>
    %cst_315 = arith.constant dense<0.000000e+00> : vector<2x32xf32>
    %1401 = vector.multi_reduction <add>, %1400, %cst_315 [1] : vector<2x8x32xf32> to vector<2x32xf32>
    %1402 = tpu.concatenate %125, %1401 in 1 : vector<2x32xf32>, vector<2x32xf32> -> vector<2x64xf32>
    %c0_316 = arith.constant 0 : index
    %c0_317 = arith.constant 0 : index
    %1403 = vector.load %arg24[%c0_316, %c0_317] : memref<64x32xf32, #tpu.memory_space<vmem>>, vector<64x32xf32>
    %cst_318 = arith.constant dense<0.000000e+00> : vector<2x32xf32>
    %1404 = tpu.matmul %1402, %1403, %cst_318 {dimension_numbers = #tpu.dot_dimension_numbers<[1], [0], [0], [1], [0, 0, 1, 1], [], []>} : vector<2x64xf32>, vector<64x32xf32>, vector<2x32xf32> -> vector<2x32xf32>
    %c0_319 = arith.constant 0 : index
    %c0_320 = arith.constant 0 : index
    %1405 = vector.load %arg25[%c0_319, %c0_320] : memref<1x32xf32, #tpu.memory_space<vmem>>, vector<1x32xf32>
    %1406 = vector.broadcast %1405 : vector<1x32xf32> to vector<2x32xf32>
    %1407 = arith.addf %1404, %1406 : vector<2x32xf32>
    %1408 = vector.shape_cast %1407 : vector<2x32xf32> to vector<2x1x32xf32>
    %1409 = vector.broadcast %1408 : vector<2x1x32xf32> to vector<2x8x32xf32>
    %1410 = arith.mulf %1409, %1377 : vector<2x8x32xf32>
    %cst_321 = arith.constant dense<0.000000e+00> : vector<2x8xf32>
    %1411 = vector.multi_reduction <add>, %1410, %cst_321 [2] : vector<2x8x32xf32> to vector<2x8xf32>
    %1412 = vector.shape_cast %1411 : vector<2x8xf32> to vector<2x8x1xf32>
    %c3_i32_322 = arith.constant 3 : i32
    %1413 = vector.broadcast %c3_i32_322 : i32 to vector<1x8x1xi32>
    %1414 = arith.cmpi slt, %919, %1413 : vector<1x8x1xi32>
    %cst_323 = arith.constant -1.000000e+30 : f32
    %1415 = vector.shape_cast %1414 : vector<1x8x1xi1> to vector<1x8x1xi1>
    %1416 = vector.broadcast %1415 : vector<1x8x1xi1> to vector<2x8x1xi1>
    %1417 = vector.broadcast %cst_323 : f32 to vector<2x8x1xf32>
    %1418 = arith.select %1416, %1412, %1417 : vector<2x8x1xi1>, vector<2x8x1xf32>
    %cst_324 = arith.constant dense<0xFF800000> : vector<2x1xf32>
    %1419 = vector.multi_reduction <maximumf>, %1418, %cst_324 [1] : vector<2x8x1xf32> to vector<2x1xf32>
    %1420 = vector.shape_cast %1419 : vector<2x1xf32> to vector<2x1x1xf32>
    %1421 = vector.broadcast %1420 : vector<2x1x1xf32> to vector<2x8x1xf32>
    %1422 = arith.subf %1418, %1421 : vector<2x8x1xf32>
    %1423 = math.exp %1422 : vector<2x8x1xf32>
    %cst_325 = arith.constant dense<0.000000e+00> : vector<2x1xf32>
    %1424 = vector.multi_reduction <add>, %1423, %cst_325 [1] : vector<2x8x1xf32> to vector<2x1xf32>
    %1425 = vector.shape_cast %1424 : vector<2x1xf32> to vector<2x1x1xf32>
    %1426 = tpu.reciprocal %1425 {approx = true} : vector<2x1x1xf32> -> vector<2x1x1xf32>
    %1427 = vector.broadcast %1426 : vector<2x1x1xf32> to vector<2x8x1xf32>
    %1428 = arith.mulf %1423, %1427 : vector<2x8x1xf32>
    %1429 = vector.broadcast %1428 : vector<2x8x1xf32> to vector<2x8x32xf32>
    %1430 = arith.mulf %1429, %1377 : vector<2x8x32xf32>
    %cst_326 = arith.constant dense<0.000000e+00> : vector<2x32xf32>
    %1431 = vector.multi_reduction <add>, %1430, %cst_326 [1] : vector<2x8x32xf32> to vector<2x32xf32>
    %1432 = tpu.concatenate %14, %125, %1262, %1401, %1431 in 1 : vector<2x32xf32>, vector<2x32xf32>, vector<2x16xf32>, vector<2x32xf32>, vector<2x32xf32> -> vector<2x144xf32>
    %c0_327 = arith.constant 0 : index
    %c0_328 = arith.constant 0 : index
    %1433 = vector.load %arg26[%c0_327, %c0_328] : memref<144x5xf32, #tpu.memory_space<vmem>>, vector<144x5xf32>
    %cst_329 = arith.constant dense<0.000000e+00> : vector<2x5xf32>
    %1434 = tpu.matmul %1432, %1433, %cst_329 {dimension_numbers = #tpu.dot_dimension_numbers<[1], [0], [0], [1], [0, 0, 1, 1], [], []>} : vector<2x144xf32>, vector<144x5xf32>, vector<2x5xf32> -> vector<2x5xf32>
    %c0_330 = arith.constant 0 : index
    %c0_331 = arith.constant 0 : index
    %1435 = vector.load %arg27[%c0_330, %c0_331] : memref<1x5xf32, #tpu.memory_space<vmem>>, vector<1x5xf32>
    %1436 = vector.broadcast %1435 : vector<1x5xf32> to vector<2x5xf32>
    %1437 = arith.addf %1434, %1436 : vector<2x5xf32>
    %c3 = arith.constant 3 : index
    %c0_332 = arith.constant 0 : index
    %c0_333 = arith.constant 0 : index
    %1438 = vector.load %arg30[%c3, %c0_332, %c0_333] : memref<8x2x5xf32, #tpu.memory_space<vmem>>, vector<1x2x5xf32>
    %1439 = vector.shape_cast %1438 : vector<1x2x5xf32> to vector<2x5xf32>
    %1440 = vector.shape_cast %1437 : vector<2x5xf32> to vector<1x2x5xf32>
    tpu.vector_store %arg30[%c3, %c0_332, %c0_333], %1440 {strides = array<i32>} : memref<8x2x5xf32, #tpu.memory_space<vmem>>, vector<1x2x5xf32>,
    %1441 = tpu.concatenate %374, %570 in 1 : vector<2x8xf32>, vector<2x8xf32> -> vector<2x16xf32>
    %cst_334 = arith.constant 0.000000e+00 : f32
    %1442 = vector.broadcast %cst_334 : f32 to vector<2x16xf32>
    %cst_335 = arith.constant 0.000000e+00 : f32
    %1443 = vector.broadcast %cst_335 : f32 to vector<2x8x16xf32>
    %1444 = vector.extract_strided_slice %693 {offsets = [6, 0], sizes = [2, 64], strides = [1, 1]} : vector<16x64xf32> to vector<2x64xf32>
    %1445 = vector.extract_strided_slice %1444 {offsets = [0, 0], sizes = [2, 16], strides = [1, 1]} : vector<2x64xf32> to vector<2x16xf32>
    %1446 = arith.negf %1445 : vector<2x16xf32>
    %1447 = math.exp %1446 : vector<2x16xf32>
    %cst_336 = arith.constant 1.000000e+00 : f32
    %1448 = vector.broadcast %cst_336 : f32 to vector<2x16xf32>
    %1449 = arith.addf %1448, %1447 : vector<2x16xf32>
    %1450 = arith.divf %1448, %1449 : vector<2x16xf32>
    %1451 = vector.extract_strided_slice %1444 {offsets = [0, 16], sizes = [2, 16], strides = [1, 1]} : vector<2x64xf32> to vector<2x16xf32>
    %1452 = arith.negf %1451 : vector<2x16xf32>
    %1453 = math.exp %1452 : vector<2x16xf32>
    %cst_337 = arith.constant 1.000000e+00 : f32
    %1454 = vector.broadcast %cst_337 : f32 to vector<2x16xf32>
    %1455 = arith.addf %1454, %1453 : vector<2x16xf32>
    %1456 = arith.divf %1454, %1455 : vector<2x16xf32>
    %1457 = vector.extract_strided_slice %1444 {offsets = [0, 32], sizes = [2, 16], strides = [1, 1]} : vector<2x64xf32> to vector<2x16xf32>
    %1458 = math.tanh %1457 : vector<2x16xf32>
    %1459 = vector.extract_strided_slice %1444 {offsets = [0, 48], sizes = [2, 16], strides = [1, 1]} : vector<2x64xf32> to vector<2x16xf32>
    %1460 = arith.negf %1459 : vector<2x16xf32>
    %1461 = math.exp %1460 : vector<2x16xf32>
    %cst_338 = arith.constant 1.000000e+00 : f32
    %1462 = vector.broadcast %cst_338 : f32 to vector<2x16xf32>
    %1463 = arith.addf %1462, %1461 : vector<2x16xf32>
    %1464 = arith.divf %1462, %1463 : vector<2x16xf32>
    %1465 = arith.mulf %1456, %1442 : vector<2x16xf32>
    %1466 = arith.mulf %1450, %1458 : vector<2x16xf32>
    %1467 = arith.addf %1465, %1466 : vector<2x16xf32>
    %1468 = math.tanh %1467 : vector<2x16xf32>
    %1469 = arith.mulf %1464, %1468 : vector<2x16xf32>
    %c3_i32_339 = arith.constant 3 : i32
    %1470 = vector.broadcast %c3_i32_339 : i32 to vector<1x8x1xi32>
    %1471 = arith.cmpi eq, %919, %1470 : vector<1x8x1xi32>
    %1472 = vector.shape_cast %1469 : vector<2x16xf32> to vector<2x1x16xf32>
    %cst_340 = arith.constant 0.000000e+00 : f32
    %1473 = vector.shape_cast %1471 : vector<1x8x1xi1> to vector<1x8x1xi1>
    %1474 = vector.broadcast %1473 : vector<1x8x1xi1> to vector<2x8x16xi1>
    %1475 = vector.shape_cast %1472 : vector<2x1x16xf32> to vector<2x1x16xf32>
    %1476 = vector.broadcast %1475 : vector<2x1x16xf32> to vector<2x8x16xf32>
    %1477 = vector.broadcast %cst_340 : f32 to vector<2x8x16xf32>
    %1478 = arith.select %1474, %1476, %1477 : vector<2x8x16xi1>, vector<2x8x16xf32>
    %1479 = arith.addf %1443, %1478 : vector<2x8x16xf32>
    %1480 = vector.extract_strided_slice %693 {offsets = [4, 0], sizes = [2, 64], strides = [1, 1]} : vector<16x64xf32> to vector<2x64xf32>
    %cst_341 = arith.constant dense<0.000000e+00> : vector<2x64xf32>
    %1481 = tpu.matmul %1469, %918, %cst_341 {dimension_numbers = #tpu.dot_dimension_numbers<[1], [0], [0], [1], [0, 0, 1, 1], [], []>} : vector<2x16xf32>, vector<16x64xf32>, vector<2x64xf32> -> vector<2x64xf32>
    %1482 = arith.addf %1480, %1481 : vector<2x64xf32>
    %1483 = vector.extract_strided_slice %1482 {offsets = [0, 0], sizes = [2, 16], strides = [1, 1]} : vector<2x64xf32> to vector<2x16xf32>
    %1484 = arith.negf %1483 : vector<2x16xf32>
    %1485 = math.exp %1484 : vector<2x16xf32>
    %cst_342 = arith.constant 1.000000e+00 : f32
    %1486 = vector.broadcast %cst_342 : f32 to vector<2x16xf32>
    %1487 = arith.addf %1486, %1485 : vector<2x16xf32>
    %1488 = arith.divf %1486, %1487 : vector<2x16xf32>
    %1489 = vector.extract_strided_slice %1482 {offsets = [0, 16], sizes = [2, 16], strides = [1, 1]} : vector<2x64xf32> to vector<2x16xf32>
    %1490 = arith.negf %1489 : vector<2x16xf32>
    %1491 = math.exp %1490 : vector<2x16xf32>
    %cst_343 = arith.constant 1.000000e+00 : f32
    %1492 = vector.broadcast %cst_343 : f32 to vector<2x16xf32>
    %1493 = arith.addf %1492, %1491 : vector<2x16xf32>
    %1494 = arith.divf %1492, %1493 : vector<2x16xf32>
    %1495 = vector.extract_strided_slice %1482 {offsets = [0, 32], sizes = [2, 16], strides = [1, 1]} : vector<2x64xf32> to vector<2x16xf32>
    %1496 = math.tanh %1495 : vector<2x16xf32>
    %1497 = vector.extract_strided_slice %1482 {offsets = [0, 48], sizes = [2, 16], strides = [1, 1]} : vector<2x64xf32> to vector<2x16xf32>
    %1498 = arith.negf %1497 : vector<2x16xf32>
    %1499 = math.exp %1498 : vector<2x16xf32>
    %cst_344 = arith.constant 1.000000e+00 : f32
    %1500 = vector.broadcast %cst_344 : f32 to vector<2x16xf32>
    %1501 = arith.addf %1500, %1499 : vector<2x16xf32>
    %1502 = arith.divf %1500, %1501 : vector<2x16xf32>
    %1503 = arith.mulf %1494, %1467 : vector<2x16xf32>
    %1504 = arith.mulf %1488, %1496 : vector<2x16xf32>
    %1505 = arith.addf %1503, %1504 : vector<2x16xf32>
    %1506 = math.tanh %1505 : vector<2x16xf32>
    %1507 = arith.mulf %1502, %1506 : vector<2x16xf32>
    %c2_i32_345 = arith.constant 2 : i32
    %1508 = vector.broadcast %c2_i32_345 : i32 to vector<1x8x1xi32>
    %1509 = arith.cmpi eq, %919, %1508 : vector<1x8x1xi32>
    %1510 = vector.shape_cast %1507 : vector<2x16xf32> to vector<2x1x16xf32>
    %cst_346 = arith.constant 0.000000e+00 : f32
    %1511 = vector.shape_cast %1509 : vector<1x8x1xi1> to vector<1x8x1xi1>
    %1512 = vector.broadcast %1511 : vector<1x8x1xi1> to vector<2x8x16xi1>
    %1513 = vector.shape_cast %1510 : vector<2x1x16xf32> to vector<2x1x16xf32>
    %1514 = vector.broadcast %1513 : vector<2x1x16xf32> to vector<2x8x16xf32>
    %1515 = vector.broadcast %cst_346 : f32 to vector<2x8x16xf32>
    %1516 = arith.select %1512, %1514, %1515 : vector<2x8x16xi1>, vector<2x8x16xf32>
    %1517 = arith.addf %1479, %1516 : vector<2x8x16xf32>
    %1518 = vector.extract_strided_slice %693 {offsets = [2, 0], sizes = [2, 64], strides = [1, 1]} : vector<16x64xf32> to vector<2x64xf32>
    %cst_347 = arith.constant dense<0.000000e+00> : vector<2x64xf32>
    %1519 = tpu.matmul %1507, %918, %cst_347 {dimension_numbers = #tpu.dot_dimension_numbers<[1], [0], [0], [1], [0, 0, 1, 1], [], []>} : vector<2x16xf32>, vector<16x64xf32>, vector<2x64xf32> -> vector<2x64xf32>
    %1520 = arith.addf %1518, %1519 : vector<2x64xf32>
    %1521 = vector.extract_strided_slice %1520 {offsets = [0, 0], sizes = [2, 16], strides = [1, 1]} : vector<2x64xf32> to vector<2x16xf32>
    %1522 = arith.negf %1521 : vector<2x16xf32>
    %1523 = math.exp %1522 : vector<2x16xf32>
    %cst_348 = arith.constant 1.000000e+00 : f32
    %1524 = vector.broadcast %cst_348 : f32 to vector<2x16xf32>
    %1525 = arith.addf %1524, %1523 : vector<2x16xf32>
    %1526 = arith.divf %1524, %1525 : vector<2x16xf32>
    %1527 = vector.extract_strided_slice %1520 {offsets = [0, 16], sizes = [2, 16], strides = [1, 1]} : vector<2x64xf32> to vector<2x16xf32>
    %1528 = arith.negf %1527 : vector<2x16xf32>
    %1529 = math.exp %1528 : vector<2x16xf32>
    %cst_349 = arith.constant 1.000000e+00 : f32
    %1530 = vector.broadcast %cst_349 : f32 to vector<2x16xf32>
    %1531 = arith.addf %1530, %1529 : vector<2x16xf32>
    %1532 = arith.divf %1530, %1531 : vector<2x16xf32>
    %1533 = vector.extract_strided_slice %1520 {offsets = [0, 32], sizes = [2, 16], strides = [1, 1]} : vector<2x64xf32> to vector<2x16xf32>
    %1534 = math.tanh %1533 : vector<2x16xf32>
    %1535 = vector.extract_strided_slice %1520 {offsets = [0, 48], sizes = [2, 16], strides = [1, 1]} : vector<2x64xf32> to vector<2x16xf32>
    %1536 = arith.negf %1535 : vector<2x16xf32>
    %1537 = math.exp %1536 : vector<2x16xf32>
    %cst_350 = arith.constant 1.000000e+00 : f32
    %1538 = vector.broadcast %cst_350 : f32 to vector<2x16xf32>
    %1539 = arith.addf %1538, %1537 : vector<2x16xf32>
    %1540 = arith.divf %1538, %1539 : vector<2x16xf32>
    %1541 = arith.mulf %1532, %1505 : vector<2x16xf32>
    %1542 = arith.mulf %1526, %1534 : vector<2x16xf32>
    %1543 = arith.addf %1541, %1542 : vector<2x16xf32>
    %1544 = math.tanh %1543 : vector<2x16xf32>
    %1545 = arith.mulf %1540, %1544 : vector<2x16xf32>
    %c1_i32_351 = arith.constant 1 : i32
    %1546 = vector.broadcast %c1_i32_351 : i32 to vector<1x8x1xi32>
    %1547 = arith.cmpi eq, %919, %1546 : vector<1x8x1xi32>
    %1548 = vector.shape_cast %1545 : vector<2x16xf32> to vector<2x1x16xf32>
    %cst_352 = arith.constant 0.000000e+00 : f32
    %1549 = vector.shape_cast %1547 : vector<1x8x1xi1> to vector<1x8x1xi1>
    %1550 = vector.broadcast %1549 : vector<1x8x1xi1> to vector<2x8x16xi1>
    %1551 = vector.shape_cast %1548 : vector<2x1x16xf32> to vector<2x1x16xf32>
    %1552 = vector.broadcast %1551 : vector<2x1x16xf32> to vector<2x8x16xf32>
    %1553 = vector.broadcast %cst_352 : f32 to vector<2x8x16xf32>
    %1554 = arith.select %1550, %1552, %1553 : vector<2x8x16xi1>, vector<2x8x16xf32>
    %1555 = arith.addf %1517, %1554 : vector<2x8x16xf32>
    %1556 = vector.extract_strided_slice %693 {offsets = [0, 0], sizes = [2, 64], strides = [1, 1]} : vector<16x64xf32> to vector<2x64xf32>
    %cst_353 = arith.constant dense<0.000000e+00> : vector<2x64xf32>
    %1557 = tpu.matmul %1545, %918, %cst_353 {dimension_numbers = #tpu.dot_dimension_numbers<[1], [0], [0], [1], [0, 0, 1, 1], [], []>} : vector<2x16xf32>, vector<16x64xf32>, vector<2x64xf32> -> vector<2x64xf32>
    %1558 = arith.addf %1556, %1557 : vector<2x64xf32>
    %1559 = vector.extract_strided_slice %1558 {offsets = [0, 0], sizes = [2, 16], strides = [1, 1]} : vector<2x64xf32> to vector<2x16xf32>
    %1560 = arith.negf %1559 : vector<2x16xf32>
    %1561 = math.exp %1560 : vector<2x16xf32>
    %cst_354 = arith.constant 1.000000e+00 : f32
    %1562 = vector.broadcast %cst_354 : f32 to vector<2x16xf32>
    %1563 = arith.addf %1562, %1561 : vector<2x16xf32>
    %1564 = arith.divf %1562, %1563 : vector<2x16xf32>
    %1565 = vector.extract_strided_slice %1558 {offsets = [0, 16], sizes = [2, 16], strides = [1, 1]} : vector<2x64xf32> to vector<2x16xf32>
    %1566 = arith.negf %1565 : vector<2x16xf32>
    %1567 = math.exp %1566 : vector<2x16xf32>
    %cst_355 = arith.constant 1.000000e+00 : f32
    %1568 = vector.broadcast %cst_355 : f32 to vector<2x16xf32>
    %1569 = arith.addf %1568, %1567 : vector<2x16xf32>
    %1570 = arith.divf %1568, %1569 : vector<2x16xf32>
    %1571 = vector.extract_strided_slice %1558 {offsets = [0, 32], sizes = [2, 16], strides = [1, 1]} : vector<2x64xf32> to vector<2x16xf32>
    %1572 = math.tanh %1571 : vector<2x16xf32>
    %1573 = vector.extract_strided_slice %1558 {offsets = [0, 48], sizes = [2, 16], strides = [1, 1]} : vector<2x64xf32> to vector<2x16xf32>
    %1574 = arith.negf %1573 : vector<2x16xf32>
    %1575 = math.exp %1574 : vector<2x16xf32>
    %cst_356 = arith.constant 1.000000e+00 : f32
    %1576 = vector.broadcast %cst_356 : f32 to vector<2x16xf32>
    %1577 = arith.addf %1576, %1575 : vector<2x16xf32>
    %1578 = arith.divf %1576, %1577 : vector<2x16xf32>
    %1579 = arith.mulf %1570, %1543 : vector<2x16xf32>
    %1580 = arith.mulf %1564, %1572 : vector<2x16xf32>
    %1581 = arith.addf %1579, %1580 : vector<2x16xf32>
    %1582 = math.tanh %1581 : vector<2x16xf32>
    %1583 = arith.mulf %1578, %1582 : vector<2x16xf32>
    %c0_i32_357 = arith.constant 0 : i32
    %1584 = vector.broadcast %c0_i32_357 : i32 to vector<1x8x1xi32>
    %1585 = arith.cmpi eq, %919, %1584 : vector<1x8x1xi32>
    %1586 = vector.shape_cast %1583 : vector<2x16xf32> to vector<2x1x16xf32>
    %cst_358 = arith.constant 0.000000e+00 : f32
    %1587 = vector.shape_cast %1585 : vector<1x8x1xi1> to vector<1x8x1xi1>
    %1588 = vector.broadcast %1587 : vector<1x8x1xi1> to vector<2x8x16xi1>
    %1589 = vector.shape_cast %1586 : vector<2x1x16xf32> to vector<2x1x16xf32>
    %1590 = vector.broadcast %1589 : vector<2x1x16xf32> to vector<2x8x16xf32>
    %1591 = vector.broadcast %cst_358 : f32 to vector<2x8x16xf32>
    %1592 = arith.select %1588, %1590, %1591 : vector<2x8x16xi1>, vector<2x8x16xf32>
    %1593 = arith.addf %1555, %1592 : vector<2x8x16xf32>
    %1594 = tpu.concatenate %1000, %1593 in 2 : vector<2x8x16xf32>, vector<2x8x16xf32> -> vector<2x8x32xf32>
    %1595 = tpu.concatenate %805, %1469 in 1 : vector<2x16xf32>, vector<2x16xf32> -> vector<2x32xf32>
    %c0_359 = arith.constant 0 : index
    %c0_360 = arith.constant 0 : index
    %1596 = vector.load %arg22[%c0_359, %c0_360] : memref<32x32xf32, #tpu.memory_space<vmem>>, vector<32x32xf32>
    %cst_361 = arith.constant dense<0.000000e+00> : vector<2x32xf32>
    %1597 = tpu.matmul %1595, %1596, %cst_361 {dimension_numbers = #tpu.dot_dimension_numbers<[1], [0], [0], [1], [0, 0, 1, 1], [], []>} : vector<2x32xf32>, vector<32x32xf32>, vector<2x32xf32> -> vector<2x32xf32>
    %c0_362 = arith.constant 0 : index
    %c0_363 = arith.constant 0 : index
    %1598 = vector.load %arg23[%c0_362, %c0_363] : memref<1x32xf32, #tpu.memory_space<vmem>>, vector<1x32xf32>
    %1599 = vector.broadcast %1598 : vector<1x32xf32> to vector<2x32xf32>
    %1600 = arith.addf %1597, %1599 : vector<2x32xf32>
    %1601 = vector.shape_cast %1600 : vector<2x32xf32> to vector<2x1x32xf32>
    %1602 = vector.broadcast %1601 : vector<2x1x32xf32> to vector<2x8x32xf32>
    %1603 = arith.mulf %1602, %6 : vector<2x8x32xf32>
    %cst_364 = arith.constant dense<0.000000e+00> : vector<2x8xf32>
    %1604 = vector.multi_reduction <add>, %1603, %cst_364 [2] : vector<2x8x32xf32> to vector<2x8xf32>
    %1605 = vector.shape_cast %1604 : vector<2x8xf32> to vector<2x8x1xf32>
    %cst_365 = arith.constant dense<0xFF800000> : vector<2x1xf32>
    %1606 = vector.multi_reduction <maximumf>, %1605, %cst_365 [1] : vector<2x8x1xf32> to vector<2x1xf32>
    %1607 = vector.shape_cast %1606 : vector<2x1xf32> to vector<2x1x1xf32>
    %1608 = vector.broadcast %1607 : vector<2x1x1xf32> to vector<2x8x1xf32>
    %1609 = arith.subf %1605, %1608 : vector<2x8x1xf32>
    %1610 = math.exp %1609 : vector<2x8x1xf32>
    %cst_366 = arith.constant dense<0.000000e+00> : vector<2x1xf32>
    %1611 = vector.multi_reduction <add>, %1610, %cst_366 [1] : vector<2x8x1xf32> to vector<2x1xf32>
    %1612 = vector.shape_cast %1611 : vector<2x1xf32> to vector<2x1x1xf32>
    %1613 = tpu.reciprocal %1612 {approx = true} : vector<2x1x1xf32> -> vector<2x1x1xf32>
    %1614 = vector.broadcast %1613 : vector<2x1x1xf32> to vector<2x8x1xf32>
    %1615 = arith.mulf %1610, %1614 : vector<2x8x1xf32>
    %1616 = vector.broadcast %1615 : vector<2x8x1xf32> to vector<2x8x32xf32>
    %1617 = arith.mulf %1616, %6 : vector<2x8x32xf32>
    %cst_367 = arith.constant dense<0.000000e+00> : vector<2x32xf32>
    %1618 = vector.multi_reduction <add>, %1617, %cst_367 [1] : vector<2x8x32xf32> to vector<2x32xf32>
    %1619 = tpu.concatenate %150, %1618 in 1 : vector<2x32xf32>, vector<2x32xf32> -> vector<2x64xf32>
    %c0_368 = arith.constant 0 : index
    %c0_369 = arith.constant 0 : index
    %1620 = vector.load %arg24[%c0_368, %c0_369] : memref<64x32xf32, #tpu.memory_space<vmem>>, vector<64x32xf32>
    %cst_370 = arith.constant dense<0.000000e+00> : vector<2x32xf32>
    %1621 = tpu.matmul %1619, %1620, %cst_370 {dimension_numbers = #tpu.dot_dimension_numbers<[1], [0], [0], [1], [0, 0, 1, 1], [], []>} : vector<2x64xf32>, vector<64x32xf32>, vector<2x32xf32> -> vector<2x32xf32>
    %c0_371 = arith.constant 0 : index
    %c0_372 = arith.constant 0 : index
    %1622 = vector.load %arg25[%c0_371, %c0_372] : memref<1x32xf32, #tpu.memory_space<vmem>>, vector<1x32xf32>
    %1623 = vector.broadcast %1622 : vector<1x32xf32> to vector<2x32xf32>
    %1624 = arith.addf %1621, %1623 : vector<2x32xf32>
    %1625 = vector.shape_cast %1624 : vector<2x32xf32> to vector<2x1x32xf32>
    %1626 = vector.broadcast %1625 : vector<2x1x32xf32> to vector<2x8x32xf32>
    %1627 = arith.mulf %1626, %1594 : vector<2x8x32xf32>
    %cst_373 = arith.constant dense<0.000000e+00> : vector<2x8xf32>
    %1628 = vector.multi_reduction <add>, %1627, %cst_373 [2] : vector<2x8x32xf32> to vector<2x8xf32>
    %1629 = vector.shape_cast %1628 : vector<2x8xf32> to vector<2x8x1xf32>
    %c4_i32_374 = arith.constant 4 : i32
    %1630 = vector.broadcast %c4_i32_374 : i32 to vector<1x8x1xi32>
    %1631 = arith.cmpi slt, %919, %1630 : vector<1x8x1xi32>
    %cst_375 = arith.constant -1.000000e+30 : f32
    %1632 = vector.shape_cast %1631 : vector<1x8x1xi1> to vector<1x8x1xi1>
    %1633 = vector.broadcast %1632 : vector<1x8x1xi1> to vector<2x8x1xi1>
    %1634 = vector.broadcast %cst_375 : f32 to vector<2x8x1xf32>
    %1635 = arith.select %1633, %1629, %1634 : vector<2x8x1xi1>, vector<2x8x1xf32>
    %cst_376 = arith.constant dense<0xFF800000> : vector<2x1xf32>
    %1636 = vector.multi_reduction <maximumf>, %1635, %cst_376 [1] : vector<2x8x1xf32> to vector<2x1xf32>
    %1637 = vector.shape_cast %1636 : vector<2x1xf32> to vector<2x1x1xf32>
    %1638 = vector.broadcast %1637 : vector<2x1x1xf32> to vector<2x8x1xf32>
    %1639 = arith.subf %1635, %1638 : vector<2x8x1xf32>
    %1640 = math.exp %1639 : vector<2x8x1xf32>
    %cst_377 = arith.constant dense<0.000000e+00> : vector<2x1xf32>
    %1641 = vector.multi_reduction <add>, %1640, %cst_377 [1] : vector<2x8x1xf32> to vector<2x1xf32>
    %1642 = vector.shape_cast %1641 : vector<2x1xf32> to vector<2x1x1xf32>
    %1643 = tpu.reciprocal %1642 {approx = true} : vector<2x1x1xf32> -> vector<2x1x1xf32>
    %1644 = vector.broadcast %1643 : vector<2x1x1xf32> to vector<2x8x1xf32>
    %1645 = arith.mulf %1640, %1644 : vector<2x8x1xf32>
    %1646 = vector.broadcast %1645 : vector<2x8x1xf32> to vector<2x8x32xf32>
    %1647 = arith.mulf %1646, %1594 : vector<2x8x32xf32>
    %cst_378 = arith.constant dense<0.000000e+00> : vector<2x32xf32>
    %1648 = vector.multi_reduction <add>, %1647, %cst_378 [1] : vector<2x8x32xf32> to vector<2x32xf32>
    %1649 = tpu.concatenate %16, %150, %1441, %1618, %1648 in 1 : vector<2x32xf32>, vector<2x32xf32>, vector<2x16xf32>, vector<2x32xf32>, vector<2x32xf32> -> vector<2x144xf32>
    %c0_379 = arith.constant 0 : index
    %c0_380 = arith.constant 0 : index
    %1650 = vector.load %arg26[%c0_379, %c0_380] : memref<144x5xf32, #tpu.memory_space<vmem>>, vector<144x5xf32>
    %cst_381 = arith.constant dense<0.000000e+00> : vector<2x5xf32>
    %1651 = tpu.matmul %1649, %1650, %cst_381 {dimension_numbers = #tpu.dot_dimension_numbers<[1], [0], [0], [1], [0, 0, 1, 1], [], []>} : vector<2x144xf32>, vector<144x5xf32>, vector<2x5xf32> -> vector<2x5xf32>
    %c0_382 = arith.constant 0 : index
    %c0_383 = arith.constant 0 : index
    %1652 = vector.load %arg27[%c0_382, %c0_383] : memref<1x5xf32, #tpu.memory_space<vmem>>, vector<1x5xf32>
    %1653 = vector.broadcast %1652 : vector<1x5xf32> to vector<2x5xf32>
    %1654 = arith.addf %1651, %1653 : vector<2x5xf32>
    %c4 = arith.constant 4 : index
    %c0_384 = arith.constant 0 : index
    %c0_385 = arith.constant 0 : index
    %1655 = vector.load %arg30[%c4, %c0_384, %c0_385] : memref<8x2x5xf32, #tpu.memory_space<vmem>>, vector<1x2x5xf32>
    %1656 = vector.shape_cast %1655 : vector<1x2x5xf32> to vector<2x5xf32>
    %1657 = vector.shape_cast %1654 : vector<2x5xf32> to vector<1x2x5xf32>
    tpu.vector_store %arg30[%c4, %c0_384, %c0_385], %1657 {strides = array<i32>} : memref<8x2x5xf32, #tpu.memory_space<vmem>>, vector<1x2x5xf32>,
    %1658 = tpu.concatenate %402, %542 in 1 : vector<2x8xf32>, vector<2x8xf32> -> vector<2x16xf32>
    %cst_386 = arith.constant 0.000000e+00 : f32
    %1659 = vector.broadcast %cst_386 : f32 to vector<2x16xf32>
    %cst_387 = arith.constant 0.000000e+00 : f32
    %1660 = vector.broadcast %cst_387 : f32 to vector<2x8x16xf32>
    %1661 = vector.extract_strided_slice %693 {offsets = [8, 0], sizes = [2, 64], strides = [1, 1]} : vector<16x64xf32> to vector<2x64xf32>
    %1662 = vector.extract_strided_slice %1661 {offsets = [0, 0], sizes = [2, 16], strides = [1, 1]} : vector<2x64xf32> to vector<2x16xf32>
    %1663 = arith.negf %1662 : vector<2x16xf32>
    %1664 = math.exp %1663 : vector<2x16xf32>
    %cst_388 = arith.constant 1.000000e+00 : f32
    %1665 = vector.broadcast %cst_388 : f32 to vector<2x16xf32>
    %1666 = arith.addf %1665, %1664 : vector<2x16xf32>
    %1667 = arith.divf %1665, %1666 : vector<2x16xf32>
    %1668 = vector.extract_strided_slice %1661 {offsets = [0, 16], sizes = [2, 16], strides = [1, 1]} : vector<2x64xf32> to vector<2x16xf32>
    %1669 = arith.negf %1668 : vector<2x16xf32>
    %1670 = math.exp %1669 : vector<2x16xf32>
    %cst_389 = arith.constant 1.000000e+00 : f32
    %1671 = vector.broadcast %cst_389 : f32 to vector<2x16xf32>
    %1672 = arith.addf %1671, %1670 : vector<2x16xf32>
    %1673 = arith.divf %1671, %1672 : vector<2x16xf32>
    %1674 = vector.extract_strided_slice %1661 {offsets = [0, 32], sizes = [2, 16], strides = [1, 1]} : vector<2x64xf32> to vector<2x16xf32>
    %1675 = math.tanh %1674 : vector<2x16xf32>
    %1676 = vector.extract_strided_slice %1661 {offsets = [0, 48], sizes = [2, 16], strides = [1, 1]} : vector<2x64xf32> to vector<2x16xf32>
    %1677 = arith.negf %1676 : vector<2x16xf32>
    %1678 = math.exp %1677 : vector<2x16xf32>
    %cst_390 = arith.constant 1.000000e+00 : f32
    %1679 = vector.broadcast %cst_390 : f32 to vector<2x16xf32>
    %1680 = arith.addf %1679, %1678 : vector<2x16xf32>
    %1681 = arith.divf %1679, %1680 : vector<2x16xf32>
    %1682 = arith.mulf %1673, %1659 : vector<2x16xf32>
    %1683 = arith.mulf %1667, %1675 : vector<2x16xf32>
    %1684 = arith.addf %1682, %1683 : vector<2x16xf32>
    %1685 = math.tanh %1684 : vector<2x16xf32>
    %1686 = arith.mulf %1681, %1685 : vector<2x16xf32>
    %c4_i32_391 = arith.constant 4 : i32
    %1687 = vector.broadcast %c4_i32_391 : i32 to vector<1x8x1xi32>
    %1688 = arith.cmpi eq, %919, %1687 : vector<1x8x1xi32>
    %1689 = vector.shape_cast %1686 : vector<2x16xf32> to vector<2x1x16xf32>
    %cst_392 = arith.constant 0.000000e+00 : f32
    %1690 = vector.shape_cast %1688 : vector<1x8x1xi1> to vector<1x8x1xi1>
    %1691 = vector.broadcast %1690 : vector<1x8x1xi1> to vector<2x8x16xi1>
    %1692 = vector.shape_cast %1689 : vector<2x1x16xf32> to vector<2x1x16xf32>
    %1693 = vector.broadcast %1692 : vector<2x1x16xf32> to vector<2x8x16xf32>
    %1694 = vector.broadcast %cst_392 : f32 to vector<2x8x16xf32>
    %1695 = arith.select %1691, %1693, %1694 : vector<2x8x16xi1>, vector<2x8x16xf32>
    %1696 = arith.addf %1660, %1695 : vector<2x8x16xf32>
    %1697 = vector.extract_strided_slice %693 {offsets = [6, 0], sizes = [2, 64], strides = [1, 1]} : vector<16x64xf32> to vector<2x64xf32>
    %cst_393 = arith.constant dense<0.000000e+00> : vector<2x64xf32>
    %1698 = tpu.matmul %1686, %918, %cst_393 {dimension_numbers = #tpu.dot_dimension_numbers<[1], [0], [0], [1], [0, 0, 1, 1], [], []>} : vector<2x16xf32>, vector<16x64xf32>, vector<2x64xf32> -> vector<2x64xf32>
    %1699 = arith.addf %1697, %1698 : vector<2x64xf32>
    %1700 = vector.extract_strided_slice %1699 {offsets = [0, 0], sizes = [2, 16], strides = [1, 1]} : vector<2x64xf32> to vector<2x16xf32>
    %1701 = arith.negf %1700 : vector<2x16xf32>
    %1702 = math.exp %1701 : vector<2x16xf32>
    %cst_394 = arith.constant 1.000000e+00 : f32
    %1703 = vector.broadcast %cst_394 : f32 to vector<2x16xf32>
    %1704 = arith.addf %1703, %1702 : vector<2x16xf32>
    %1705 = arith.divf %1703, %1704 : vector<2x16xf32>
    %1706 = vector.extract_strided_slice %1699 {offsets = [0, 16], sizes = [2, 16], strides = [1, 1]} : vector<2x64xf32> to vector<2x16xf32>
    %1707 = arith.negf %1706 : vector<2x16xf32>
    %1708 = math.exp %1707 : vector<2x16xf32>
    %cst_395 = arith.constant 1.000000e+00 : f32
    %1709 = vector.broadcast %cst_395 : f32 to vector<2x16xf32>
    %1710 = arith.addf %1709, %1708 : vector<2x16xf32>
    %1711 = arith.divf %1709, %1710 : vector<2x16xf32>
    %1712 = vector.extract_strided_slice %1699 {offsets = [0, 32], sizes = [2, 16], strides = [1, 1]} : vector<2x64xf32> to vector<2x16xf32>
    %1713 = math.tanh %1712 : vector<2x16xf32>
    %1714 = vector.extract_strided_slice %1699 {offsets = [0, 48], sizes = [2, 16], strides = [1, 1]} : vector<2x64xf32> to vector<2x16xf32>
    %1715 = arith.negf %1714 : vector<2x16xf32>
    %1716 = math.exp %1715 : vector<2x16xf32>
    %cst_396 = arith.constant 1.000000e+00 : f32
    %1717 = vector.broadcast %cst_396 : f32 to vector<2x16xf32>
    %1718 = arith.addf %1717, %1716 : vector<2x16xf32>
    %1719 = arith.divf %1717, %1718 : vector<2x16xf32>
    %1720 = arith.mulf %1711, %1684 : vector<2x16xf32>
    %1721 = arith.mulf %1705, %1713 : vector<2x16xf32>
    %1722 = arith.addf %1720, %1721 : vector<2x16xf32>
    %1723 = math.tanh %1722 : vector<2x16xf32>
    %1724 = arith.mulf %1719, %1723 : vector<2x16xf32>
    %c3_i32_397 = arith.constant 3 : i32
    %1725 = vector.broadcast %c3_i32_397 : i32 to vector<1x8x1xi32>
    %1726 = arith.cmpi eq, %919, %1725 : vector<1x8x1xi32>
    %1727 = vector.shape_cast %1724 : vector<2x16xf32> to vector<2x1x16xf32>
    %cst_398 = arith.constant 0.000000e+00 : f32
    %1728 = vector.shape_cast %1726 : vector<1x8x1xi1> to vector<1x8x1xi1>
    %1729 = vector.broadcast %1728 : vector<1x8x1xi1> to vector<2x8x16xi1>
    %1730 = vector.shape_cast %1727 : vector<2x1x16xf32> to vector<2x1x16xf32>
    %1731 = vector.broadcast %1730 : vector<2x1x16xf32> to vector<2x8x16xf32>
    %1732 = vector.broadcast %cst_398 : f32 to vector<2x8x16xf32>
    %1733 = arith.select %1729, %1731, %1732 : vector<2x8x16xi1>, vector<2x8x16xf32>
    %1734 = arith.addf %1696, %1733 : vector<2x8x16xf32>
    %1735 = vector.extract_strided_slice %693 {offsets = [4, 0], sizes = [2, 64], strides = [1, 1]} : vector<16x64xf32> to vector<2x64xf32>
    %cst_399 = arith.constant dense<0.000000e+00> : vector<2x64xf32>
    %1736 = tpu.matmul %1724, %918, %cst_399 {dimension_numbers = #tpu.dot_dimension_numbers<[1], [0], [0], [1], [0, 0, 1, 1], [], []>} : vector<2x16xf32>, vector<16x64xf32>, vector<2x64xf32> -> vector<2x64xf32>
    %1737 = arith.addf %1735, %1736 : vector<2x64xf32>
    %1738 = vector.extract_strided_slice %1737 {offsets = [0, 0], sizes = [2, 16], strides = [1, 1]} : vector<2x64xf32> to vector<2x16xf32>
    %1739 = arith.negf %1738 : vector<2x16xf32>
    %1740 = math.exp %1739 : vector<2x16xf32>
    %cst_400 = arith.constant 1.000000e+00 : f32
    %1741 = vector.broadcast %cst_400 : f32 to vector<2x16xf32>
    %1742 = arith.addf %1741, %1740 : vector<2x16xf32>
    %1743 = arith.divf %1741, %1742 : vector<2x16xf32>
    %1744 = vector.extract_strided_slice %1737 {offsets = [0, 16], sizes = [2, 16], strides = [1, 1]} : vector<2x64xf32> to vector<2x16xf32>
    %1745 = arith.negf %1744 : vector<2x16xf32>
    %1746 = math.exp %1745 : vector<2x16xf32>
    %cst_401 = arith.constant 1.000000e+00 : f32
    %1747 = vector.broadcast %cst_401 : f32 to vector<2x16xf32>
    %1748 = arith.addf %1747, %1746 : vector<2x16xf32>
    %1749 = arith.divf %1747, %1748 : vector<2x16xf32>
    %1750 = vector.extract_strided_slice %1737 {offsets = [0, 32], sizes = [2, 16], strides = [1, 1]} : vector<2x64xf32> to vector<2x16xf32>
    %1751 = math.tanh %1750 : vector<2x16xf32>
    %1752 = vector.extract_strided_slice %1737 {offsets = [0, 48], sizes = [2, 16], strides = [1, 1]} : vector<2x64xf32> to vector<2x16xf32>
    %1753 = arith.negf %1752 : vector<2x16xf32>
    %1754 = math.exp %1753 : vector<2x16xf32>
    %cst_402 = arith.constant 1.000000e+00 : f32
    %1755 = vector.broadcast %cst_402 : f32 to vector<2x16xf32>
    %1756 = arith.addf %1755, %1754 : vector<2x16xf32>
    %1757 = arith.divf %1755, %1756 : vector<2x16xf32>
    %1758 = arith.mulf %1749, %1722 : vector<2x16xf32>
    %1759 = arith.mulf %1743, %1751 : vector<2x16xf32>
    %1760 = arith.addf %1758, %1759 : vector<2x16xf32>
    %1761 = math.tanh %1760 : vector<2x16xf32>
    %1762 = arith.mulf %1757, %1761 : vector<2x16xf32>
    %c2_i32_403 = arith.constant 2 : i32
    %1763 = vector.broadcast %c2_i32_403 : i32 to vector<1x8x1xi32>
    %1764 = arith.cmpi eq, %919, %1763 : vector<1x8x1xi32>
    %1765 = vector.shape_cast %1762 : vector<2x16xf32> to vector<2x1x16xf32>
    %cst_404 = arith.constant 0.000000e+00 : f32
    %1766 = vector.shape_cast %1764 : vector<1x8x1xi1> to vector<1x8x1xi1>
    %1767 = vector.broadcast %1766 : vector<1x8x1xi1> to vector<2x8x16xi1>
    %1768 = vector.shape_cast %1765 : vector<2x1x16xf32> to vector<2x1x16xf32>
    %1769 = vector.broadcast %1768 : vector<2x1x16xf32> to vector<2x8x16xf32>
    %1770 = vector.broadcast %cst_404 : f32 to vector<2x8x16xf32>
    %1771 = arith.select %1767, %1769, %1770 : vector<2x8x16xi1>, vector<2x8x16xf32>
    %1772 = arith.addf %1734, %1771 : vector<2x8x16xf32>
    %1773 = vector.extract_strided_slice %693 {offsets = [2, 0], sizes = [2, 64], strides = [1, 1]} : vector<16x64xf32> to vector<2x64xf32>
    %cst_405 = arith.constant dense<0.000000e+00> : vector<2x64xf32>
    %1774 = tpu.matmul %1762, %918, %cst_405 {dimension_numbers = #tpu.dot_dimension_numbers<[1], [0], [0], [1], [0, 0, 1, 1], [], []>} : vector<2x16xf32>, vector<16x64xf32>, vector<2x64xf32> -> vector<2x64xf32>
    %1775 = arith.addf %1773, %1774 : vector<2x64xf32>
    %1776 = vector.extract_strided_slice %1775 {offsets = [0, 0], sizes = [2, 16], strides = [1, 1]} : vector<2x64xf32> to vector<2x16xf32>
    %1777 = arith.negf %1776 : vector<2x16xf32>
    %1778 = math.exp %1777 : vector<2x16xf32>
    %cst_406 = arith.constant 1.000000e+00 : f32
    %1779 = vector.broadcast %cst_406 : f32 to vector<2x16xf32>
    %1780 = arith.addf %1779, %1778 : vector<2x16xf32>
    %1781 = arith.divf %1779, %1780 : vector<2x16xf32>
    %1782 = vector.extract_strided_slice %1775 {offsets = [0, 16], sizes = [2, 16], strides = [1, 1]} : vector<2x64xf32> to vector<2x16xf32>
    %1783 = arith.negf %1782 : vector<2x16xf32>
    %1784 = math.exp %1783 : vector<2x16xf32>
    %cst_407 = arith.constant 1.000000e+00 : f32
    %1785 = vector.broadcast %cst_407 : f32 to vector<2x16xf32>
    %1786 = arith.addf %1785, %1784 : vector<2x16xf32>
    %1787 = arith.divf %1785, %1786 : vector<2x16xf32>
    %1788 = vector.extract_strided_slice %1775 {offsets = [0, 32], sizes = [2, 16], strides = [1, 1]} : vector<2x64xf32> to vector<2x16xf32>
    %1789 = math.tanh %1788 : vector<2x16xf32>
    %1790 = vector.extract_strided_slice %1775 {offsets = [0, 48], sizes = [2, 16], strides = [1, 1]} : vector<2x64xf32> to vector<2x16xf32>
    %1791 = arith.negf %1790 : vector<2x16xf32>
    %1792 = math.exp %1791 : vector<2x16xf32>
    %cst_408 = arith.constant 1.000000e+00 : f32
    %1793 = vector.broadcast %cst_408 : f32 to vector<2x16xf32>
    %1794 = arith.addf %1793, %1792 : vector<2x16xf32>
    %1795 = arith.divf %1793, %1794 : vector<2x16xf32>
    %1796 = arith.mulf %1787, %1760 : vector<2x16xf32>
    %1797 = arith.mulf %1781, %1789 : vector<2x16xf32>
    %1798 = arith.addf %1796, %1797 : vector<2x16xf32>
    %1799 = math.tanh %1798 : vector<2x16xf32>
    %1800 = arith.mulf %1795, %1799 : vector<2x16xf32>
    %c1_i32_409 = arith.constant 1 : i32
    %1801 = vector.broadcast %c1_i32_409 : i32 to vector<1x8x1xi32>
    %1802 = arith.cmpi eq, %919, %1801 : vector<1x8x1xi32>
    %1803 = vector.shape_cast %1800 : vector<2x16xf32> to vector<2x1x16xf32>
    %cst_410 = arith.constant 0.000000e+00 : f32
    %1804 = vector.shape_cast %1802 : vector<1x8x1xi1> to vector<1x8x1xi1>
    %1805 = vector.broadcast %1804 : vector<1x8x1xi1> to vector<2x8x16xi1>
    %1806 = vector.shape_cast %1803 : vector<2x1x16xf32> to vector<2x1x16xf32>
    %1807 = vector.broadcast %1806 : vector<2x1x16xf32> to vector<2x8x16xf32>
    %1808 = vector.broadcast %cst_410 : f32 to vector<2x8x16xf32>
    %1809 = arith.select %1805, %1807, %1808 : vector<2x8x16xi1>, vector<2x8x16xf32>
    %1810 = arith.addf %1772, %1809 : vector<2x8x16xf32>
    %1811 = vector.extract_strided_slice %693 {offsets = [0, 0], sizes = [2, 64], strides = [1, 1]} : vector<16x64xf32> to vector<2x64xf32>
    %cst_411 = arith.constant dense<0.000000e+00> : vector<2x64xf32>
    %1812 = tpu.matmul %1800, %918, %cst_411 {dimension_numbers = #tpu.dot_dimension_numbers<[1], [0], [0], [1], [0, 0, 1, 1], [], []>} : vector<2x16xf32>, vector<16x64xf32>, vector<2x64xf32> -> vector<2x64xf32>
    %1813 = arith.addf %1811, %1812 : vector<2x64xf32>
    %1814 = vector.extract_strided_slice %1813 {offsets = [0, 0], sizes = [2, 16], strides = [1, 1]} : vector<2x64xf32> to vector<2x16xf32>
    %1815 = arith.negf %1814 : vector<2x16xf32>
    %1816 = math.exp %1815 : vector<2x16xf32>
    %cst_412 = arith.constant 1.000000e+00 : f32
    %1817 = vector.broadcast %cst_412 : f32 to vector<2x16xf32>
    %1818 = arith.addf %1817, %1816 : vector<2x16xf32>
    %1819 = arith.divf %1817, %1818 : vector<2x16xf32>
    %1820 = vector.extract_strided_slice %1813 {offsets = [0, 16], sizes = [2, 16], strides = [1, 1]} : vector<2x64xf32> to vector<2x16xf32>
    %1821 = arith.negf %1820 : vector<2x16xf32>
    %1822 = math.exp %1821 : vector<2x16xf32>
    %cst_413 = arith.constant 1.000000e+00 : f32
    %1823 = vector.broadcast %cst_413 : f32 to vector<2x16xf32>
    %1824 = arith.addf %1823, %1822 : vector<2x16xf32>
    %1825 = arith.divf %1823, %1824 : vector<2x16xf32>
    %1826 = vector.extract_strided_slice %1813 {offsets = [0, 32], sizes = [2, 16], strides = [1, 1]} : vector<2x64xf32> to vector<2x16xf32>
    %1827 = math.tanh %1826 : vector<2x16xf32>
    %1828 = vector.extract_strided_slice %1813 {offsets = [0, 48], sizes = [2, 16], strides = [1, 1]} : vector<2x64xf32> to vector<2x16xf32>
    %1829 = arith.negf %1828 : vector<2x16xf32>
    %1830 = math.exp %1829 : vector<2x16xf32>
    %cst_414 = arith.constant 1.000000e+00 : f32
    %1831 = vector.broadcast %cst_414 : f32 to vector<2x16xf32>
    %1832 = arith.addf %1831, %1830 : vector<2x16xf32>
    %1833 = arith.divf %1831, %1832 : vector<2x16xf32>
    %1834 = arith.mulf %1825, %1798 : vector<2x16xf32>
    %1835 = arith.mulf %1819, %1827 : vector<2x16xf32>
    %1836 = arith.addf %1834, %1835 : vector<2x16xf32>
    %1837 = math.tanh %1836 : vector<2x16xf32>
    %1838 = arith.mulf %1833, %1837 : vector<2x16xf32>
    %c0_i32_415 = arith.constant 0 : i32
    %1839 = vector.broadcast %c0_i32_415 : i32 to vector<1x8x1xi32>
    %1840 = arith.cmpi eq, %919, %1839 : vector<1x8x1xi32>
    %1841 = vector.shape_cast %1838 : vector<2x16xf32> to vector<2x1x16xf32>
    %cst_416 = arith.constant 0.000000e+00 : f32
    %1842 = vector.shape_cast %1840 : vector<1x8x1xi1> to vector<1x8x1xi1>
    %1843 = vector.broadcast %1842 : vector<1x8x1xi1> to vector<2x8x16xi1>
    %1844 = vector.shape_cast %1841 : vector<2x1x16xf32> to vector<2x1x16xf32>
    %1845 = vector.broadcast %1844 : vector<2x1x16xf32> to vector<2x8x16xf32>
    %1846 = vector.broadcast %cst_416 : f32 to vector<2x8x16xf32>
    %1847 = arith.select %1843, %1845, %1846 : vector<2x8x16xi1>, vector<2x8x16xf32>
    %1848 = arith.addf %1810, %1847 : vector<2x8x16xf32>
    %1849 = tpu.concatenate %1000, %1848 in 2 : vector<2x8x16xf32>, vector<2x8x16xf32> -> vector<2x8x32xf32>
    %1850 = tpu.concatenate %833, %1686 in 1 : vector<2x16xf32>, vector<2x16xf32> -> vector<2x32xf32>
    %c0_417 = arith.constant 0 : index
    %c0_418 = arith.constant 0 : index
    %1851 = vector.load %arg22[%c0_417, %c0_418] : memref<32x32xf32, #tpu.memory_space<vmem>>, vector<32x32xf32>
    %cst_419 = arith.constant dense<0.000000e+00> : vector<2x32xf32>
    %1852 = tpu.matmul %1850, %1851, %cst_419 {dimension_numbers = #tpu.dot_dimension_numbers<[1], [0], [0], [1], [0, 0, 1, 1], [], []>} : vector<2x32xf32>, vector<32x32xf32>, vector<2x32xf32> -> vector<2x32xf32>
    %c0_420 = arith.constant 0 : index
    %c0_421 = arith.constant 0 : index
    %1853 = vector.load %arg23[%c0_420, %c0_421] : memref<1x32xf32, #tpu.memory_space<vmem>>, vector<1x32xf32>
    %1854 = vector.broadcast %1853 : vector<1x32xf32> to vector<2x32xf32>
    %1855 = arith.addf %1852, %1854 : vector<2x32xf32>
    %1856 = vector.shape_cast %1855 : vector<2x32xf32> to vector<2x1x32xf32>
    %1857 = vector.broadcast %1856 : vector<2x1x32xf32> to vector<2x8x32xf32>
    %1858 = arith.mulf %1857, %6 : vector<2x8x32xf32>
    %cst_422 = arith.constant dense<0.000000e+00> : vector<2x8xf32>
    %1859 = vector.multi_reduction <add>, %1858, %cst_422 [2] : vector<2x8x32xf32> to vector<2x8xf32>
    %1860 = vector.shape_cast %1859 : vector<2x8xf32> to vector<2x8x1xf32>
    %cst_423 = arith.constant dense<0xFF800000> : vector<2x1xf32>
    %1861 = vector.multi_reduction <maximumf>, %1860, %cst_423 [1] : vector<2x8x1xf32> to vector<2x1xf32>
    %1862 = vector.shape_cast %1861 : vector<2x1xf32> to vector<2x1x1xf32>
    %1863 = vector.broadcast %1862 : vector<2x1x1xf32> to vector<2x8x1xf32>
    %1864 = arith.subf %1860, %1863 : vector<2x8x1xf32>
    %1865 = math.exp %1864 : vector<2x8x1xf32>
    %cst_424 = arith.constant dense<0.000000e+00> : vector<2x1xf32>
    %1866 = vector.multi_reduction <add>, %1865, %cst_424 [1] : vector<2x8x1xf32> to vector<2x1xf32>
    %1867 = vector.shape_cast %1866 : vector<2x1xf32> to vector<2x1x1xf32>
    %1868 = tpu.reciprocal %1867 {approx = true} : vector<2x1x1xf32> -> vector<2x1x1xf32>
    %1869 = vector.broadcast %1868 : vector<2x1x1xf32> to vector<2x8x1xf32>
    %1870 = arith.mulf %1865, %1869 : vector<2x8x1xf32>
    %1871 = vector.broadcast %1870 : vector<2x8x1xf32> to vector<2x8x32xf32>
    %1872 = arith.mulf %1871, %6 : vector<2x8x32xf32>
    %cst_425 = arith.constant dense<0.000000e+00> : vector<2x32xf32>
    %1873 = vector.multi_reduction <add>, %1872, %cst_425 [1] : vector<2x8x32xf32> to vector<2x32xf32>
    %1874 = tpu.concatenate %175, %1873 in 1 : vector<2x32xf32>, vector<2x32xf32> -> vector<2x64xf32>
    %c0_426 = arith.constant 0 : index
    %c0_427 = arith.constant 0 : index
    %1875 = vector.load %arg24[%c0_426, %c0_427] : memref<64x32xf32, #tpu.memory_space<vmem>>, vector<64x32xf32>
    %cst_428 = arith.constant dense<0.000000e+00> : vector<2x32xf32>
    %1876 = tpu.matmul %1874, %1875, %cst_428 {dimension_numbers = #tpu.dot_dimension_numbers<[1], [0], [0], [1], [0, 0, 1, 1], [], []>} : vector<2x64xf32>, vector<64x32xf32>, vector<2x32xf32> -> vector<2x32xf32>
    %c0_429 = arith.constant 0 : index
    %c0_430 = arith.constant 0 : index
    %1877 = vector.load %arg25[%c0_429, %c0_430] : memref<1x32xf32, #tpu.memory_space<vmem>>, vector<1x32xf32>
    %1878 = vector.broadcast %1877 : vector<1x32xf32> to vector<2x32xf32>
    %1879 = arith.addf %1876, %1878 : vector<2x32xf32>
    %1880 = vector.shape_cast %1879 : vector<2x32xf32> to vector<2x1x32xf32>
    %1881 = vector.broadcast %1880 : vector<2x1x32xf32> to vector<2x8x32xf32>
    %1882 = arith.mulf %1881, %1849 : vector<2x8x32xf32>
    %cst_431 = arith.constant dense<0.000000e+00> : vector<2x8xf32>
    %1883 = vector.multi_reduction <add>, %1882, %cst_431 [2] : vector<2x8x32xf32> to vector<2x8xf32>
    %1884 = vector.shape_cast %1883 : vector<2x8xf32> to vector<2x8x1xf32>
    %c5_i32_432 = arith.constant 5 : i32
    %1885 = vector.broadcast %c5_i32_432 : i32 to vector<1x8x1xi32>
    %1886 = arith.cmpi slt, %919, %1885 : vector<1x8x1xi32>
    %cst_433 = arith.constant -1.000000e+30 : f32
    %1887 = vector.shape_cast %1886 : vector<1x8x1xi1> to vector<1x8x1xi1>
    %1888 = vector.broadcast %1887 : vector<1x8x1xi1> to vector<2x8x1xi1>
    %1889 = vector.broadcast %cst_433 : f32 to vector<2x8x1xf32>
    %1890 = arith.select %1888, %1884, %1889 : vector<2x8x1xi1>, vector<2x8x1xf32>
    %cst_434 = arith.constant dense<0xFF800000> : vector<2x1xf32>
    %1891 = vector.multi_reduction <maximumf>, %1890, %cst_434 [1] : vector<2x8x1xf32> to vector<2x1xf32>
    %1892 = vector.shape_cast %1891 : vector<2x1xf32> to vector<2x1x1xf32>
    %1893 = vector.broadcast %1892 : vector<2x1x1xf32> to vector<2x8x1xf32>
    %1894 = arith.subf %1890, %1893 : vector<2x8x1xf32>
    %1895 = math.exp %1894 : vector<2x8x1xf32>
    %cst_435 = arith.constant dense<0.000000e+00> : vector<2x1xf32>
    %1896 = vector.multi_reduction <add>, %1895, %cst_435 [1] : vector<2x8x1xf32> to vector<2x1xf32>
    %1897 = vector.shape_cast %1896 : vector<2x1xf32> to vector<2x1x1xf32>
    %1898 = tpu.reciprocal %1897 {approx = true} : vector<2x1x1xf32> -> vector<2x1x1xf32>
    %1899 = vector.broadcast %1898 : vector<2x1x1xf32> to vector<2x8x1xf32>
    %1900 = arith.mulf %1895, %1899 : vector<2x8x1xf32>
    %1901 = vector.broadcast %1900 : vector<2x8x1xf32> to vector<2x8x32xf32>
    %1902 = arith.mulf %1901, %1849 : vector<2x8x32xf32>
    %cst_436 = arith.constant dense<0.000000e+00> : vector<2x32xf32>
    %1903 = vector.multi_reduction <add>, %1902, %cst_436 [1] : vector<2x8x32xf32> to vector<2x32xf32>
    %1904 = tpu.concatenate %18, %175, %1658, %1873, %1903 in 1 : vector<2x32xf32>, vector<2x32xf32>, vector<2x16xf32>, vector<2x32xf32>, vector<2x32xf32> -> vector<2x144xf32>
    %c0_437 = arith.constant 0 : index
    %c0_438 = arith.constant 0 : index
    %1905 = vector.load %arg26[%c0_437, %c0_438] : memref<144x5xf32, #tpu.memory_space<vmem>>, vector<144x5xf32>
    %cst_439 = arith.constant dense<0.000000e+00> : vector<2x5xf32>
    %1906 = tpu.matmul %1904, %1905, %cst_439 {dimension_numbers = #tpu.dot_dimension_numbers<[1], [0], [0], [1], [0, 0, 1, 1], [], []>} : vector<2x144xf32>, vector<144x5xf32>, vector<2x5xf32> -> vector<2x5xf32>
    %c0_440 = arith.constant 0 : index
    %c0_441 = arith.constant 0 : index
    %1907 = vector.load %arg27[%c0_440, %c0_441] : memref<1x5xf32, #tpu.memory_space<vmem>>, vector<1x5xf32>
    %1908 = vector.broadcast %1907 : vector<1x5xf32> to vector<2x5xf32>
    %1909 = arith.addf %1906, %1908 : vector<2x5xf32>
    %c5 = arith.constant 5 : index
    %c0_442 = arith.constant 0 : index
    %c0_443 = arith.constant 0 : index
    %1910 = vector.load %arg30[%c5, %c0_442, %c0_443] : memref<8x2x5xf32, #tpu.memory_space<vmem>>, vector<1x2x5xf32>
    %1911 = vector.shape_cast %1910 : vector<1x2x5xf32> to vector<2x5xf32>
    %1912 = vector.shape_cast %1909 : vector<2x5xf32> to vector<1x2x5xf32>
    tpu.vector_store %arg30[%c5, %c0_442, %c0_443], %1912 {strides = array<i32>} : memref<8x2x5xf32, #tpu.memory_space<vmem>>, vector<1x2x5xf32>,
    %1913 = tpu.concatenate %430, %514 in 1 : vector<2x8xf32>, vector<2x8xf32> -> vector<2x16xf32>
    %cst_444 = arith.constant 0.000000e+00 : f32
    %1914 = vector.broadcast %cst_444 : f32 to vector<2x16xf32>
    %cst_445 = arith.constant 0.000000e+00 : f32
    %1915 = vector.broadcast %cst_445 : f32 to vector<2x8x16xf32>
    %1916 = vector.extract_strided_slice %693 {offsets = [10, 0], sizes = [2, 64], strides = [1, 1]} : vector<16x64xf32> to vector<2x64xf32>
    %1917 = vector.extract_strided_slice %1916 {offsets = [0, 0], sizes = [2, 16], strides = [1, 1]} : vector<2x64xf32> to vector<2x16xf32>
    %1918 = arith.negf %1917 : vector<2x16xf32>
    %1919 = math.exp %1918 : vector<2x16xf32>
    %cst_446 = arith.constant 1.000000e+00 : f32
    %1920 = vector.broadcast %cst_446 : f32 to vector<2x16xf32>
    %1921 = arith.addf %1920, %1919 : vector<2x16xf32>
    %1922 = arith.divf %1920, %1921 : vector<2x16xf32>
    %1923 = vector.extract_strided_slice %1916 {offsets = [0, 16], sizes = [2, 16], strides = [1, 1]} : vector<2x64xf32> to vector<2x16xf32>
    %1924 = arith.negf %1923 : vector<2x16xf32>
    %1925 = math.exp %1924 : vector<2x16xf32>
    %cst_447 = arith.constant 1.000000e+00 : f32
    %1926 = vector.broadcast %cst_447 : f32 to vector<2x16xf32>
    %1927 = arith.addf %1926, %1925 : vector<2x16xf32>
    %1928 = arith.divf %1926, %1927 : vector<2x16xf32>
    %1929 = vector.extract_strided_slice %1916 {offsets = [0, 32], sizes = [2, 16], strides = [1, 1]} : vector<2x64xf32> to vector<2x16xf32>
    %1930 = math.tanh %1929 : vector<2x16xf32>
    %1931 = vector.extract_strided_slice %1916 {offsets = [0, 48], sizes = [2, 16], strides = [1, 1]} : vector<2x64xf32> to vector<2x16xf32>
    %1932 = arith.negf %1931 : vector<2x16xf32>
    %1933 = math.exp %1932 : vector<2x16xf32>
    %cst_448 = arith.constant 1.000000e+00 : f32
    %1934 = vector.broadcast %cst_448 : f32 to vector<2x16xf32>
    %1935 = arith.addf %1934, %1933 : vector<2x16xf32>
    %1936 = arith.divf %1934, %1935 : vector<2x16xf32>
    %1937 = arith.mulf %1928, %1914 : vector<2x16xf32>
    %1938 = arith.mulf %1922, %1930 : vector<2x16xf32>
    %1939 = arith.addf %1937, %1938 : vector<2x16xf32>
    %1940 = math.tanh %1939 : vector<2x16xf32>
    %1941 = arith.mulf %1936, %1940 : vector<2x16xf32>
    %c5_i32_449 = arith.constant 5 : i32
    %1942 = vector.broadcast %c5_i32_449 : i32 to vector<1x8x1xi32>
    %1943 = arith.cmpi eq, %919, %1942 : vector<1x8x1xi32>
    %1944 = vector.shape_cast %1941 : vector<2x16xf32> to vector<2x1x16xf32>
    %cst_450 = arith.constant 0.000000e+00 : f32
    %1945 = vector.shape_cast %1943 : vector<1x8x1xi1> to vector<1x8x1xi1>
    %1946 = vector.broadcast %1945 : vector<1x8x1xi1> to vector<2x8x16xi1>
    %1947 = vector.shape_cast %1944 : vector<2x1x16xf32> to vector<2x1x16xf32>
    %1948 = vector.broadcast %1947 : vector<2x1x16xf32> to vector<2x8x16xf32>
    %1949 = vector.broadcast %cst_450 : f32 to vector<2x8x16xf32>
    %1950 = arith.select %1946, %1948, %1949 : vector<2x8x16xi1>, vector<2x8x16xf32>
    %1951 = arith.addf %1915, %1950 : vector<2x8x16xf32>
    %1952 = vector.extract_strided_slice %693 {offsets = [8, 0], sizes = [2, 64], strides = [1, 1]} : vector<16x64xf32> to vector<2x64xf32>
    %cst_451 = arith.constant dense<0.000000e+00> : vector<2x64xf32>
    %1953 = tpu.matmul %1941, %918, %cst_451 {dimension_numbers = #tpu.dot_dimension_numbers<[1], [0], [0], [1], [0, 0, 1, 1], [], []>} : vector<2x16xf32>, vector<16x64xf32>, vector<2x64xf32> -> vector<2x64xf32>
    %1954 = arith.addf %1952, %1953 : vector<2x64xf32>
    %1955 = vector.extract_strided_slice %1954 {offsets = [0, 0], sizes = [2, 16], strides = [1, 1]} : vector<2x64xf32> to vector<2x16xf32>
    %1956 = arith.negf %1955 : vector<2x16xf32>
    %1957 = math.exp %1956 : vector<2x16xf32>
    %cst_452 = arith.constant 1.000000e+00 : f32
    %1958 = vector.broadcast %cst_452 : f32 to vector<2x16xf32>
    %1959 = arith.addf %1958, %1957 : vector<2x16xf32>
    %1960 = arith.divf %1958, %1959 : vector<2x16xf32>
    %1961 = vector.extract_strided_slice %1954 {offsets = [0, 16], sizes = [2, 16], strides = [1, 1]} : vector<2x64xf32> to vector<2x16xf32>
    %1962 = arith.negf %1961 : vector<2x16xf32>
    %1963 = math.exp %1962 : vector<2x16xf32>
    %cst_453 = arith.constant 1.000000e+00 : f32
    %1964 = vector.broadcast %cst_453 : f32 to vector<2x16xf32>
    %1965 = arith.addf %1964, %1963 : vector<2x16xf32>
    %1966 = arith.divf %1964, %1965 : vector<2x16xf32>
    %1967 = vector.extract_strided_slice %1954 {offsets = [0, 32], sizes = [2, 16], strides = [1, 1]} : vector<2x64xf32> to vector<2x16xf32>
    %1968 = math.tanh %1967 : vector<2x16xf32>
    %1969 = vector.extract_strided_slice %1954 {offsets = [0, 48], sizes = [2, 16], strides = [1, 1]} : vector<2x64xf32> to vector<2x16xf32>
    %1970 = arith.negf %1969 : vector<2x16xf32>
    %1971 = math.exp %1970 : vector<2x16xf32>
    %cst_454 = arith.constant 1.000000e+00 : f32
    %1972 = vector.broadcast %cst_454 : f32 to vector<2x16xf32>
    %1973 = arith.addf %1972, %1971 : vector<2x16xf32>
    %1974 = arith.divf %1972, %1973 : vector<2x16xf32>
    %1975 = arith.mulf %1966, %1939 : vector<2x16xf32>
    %1976 = arith.mulf %1960, %1968 : vector<2x16xf32>
    %1977 = arith.addf %1975, %1976 : vector<2x16xf32>
    %1978 = math.tanh %1977 : vector<2x16xf32>
    %1979 = arith.mulf %1974, %1978 : vector<2x16xf32>
    %c4_i32_455 = arith.constant 4 : i32
    %1980 = vector.broadcast %c4_i32_455 : i32 to vector<1x8x1xi32>
    %1981 = arith.cmpi eq, %919, %1980 : vector<1x8x1xi32>
    %1982 = vector.shape_cast %1979 : vector<2x16xf32> to vector<2x1x16xf32>
    %cst_456 = arith.constant 0.000000e+00 : f32
    %1983 = vector.shape_cast %1981 : vector<1x8x1xi1> to vector<1x8x1xi1>
    %1984 = vector.broadcast %1983 : vector<1x8x1xi1> to vector<2x8x16xi1>
    %1985 = vector.shape_cast %1982 : vector<2x1x16xf32> to vector<2x1x16xf32>
    %1986 = vector.broadcast %1985 : vector<2x1x16xf32> to vector<2x8x16xf32>
    %1987 = vector.broadcast %cst_456 : f32 to vector<2x8x16xf32>
    %1988 = arith.select %1984, %1986, %1987 : vector<2x8x16xi1>, vector<2x8x16xf32>
    %1989 = arith.addf %1951, %1988 : vector<2x8x16xf32>
    %1990 = vector.extract_strided_slice %693 {offsets = [6, 0], sizes = [2, 64], strides = [1, 1]} : vector<16x64xf32> to vector<2x64xf32>
    %cst_457 = arith.constant dense<0.000000e+00> : vector<2x64xf32>
    %1991 = tpu.matmul %1979, %918, %cst_457 {dimension_numbers = #tpu.dot_dimension_numbers<[1], [0], [0], [1], [0, 0, 1, 1], [], []>} : vector<2x16xf32>, vector<16x64xf32>, vector<2x64xf32> -> vector<2x64xf32>
    %1992 = arith.addf %1990, %1991 : vector<2x64xf32>
    %1993 = vector.extract_strided_slice %1992 {offsets = [0, 0], sizes = [2, 16], strides = [1, 1]} : vector<2x64xf32> to vector<2x16xf32>
    %1994 = arith.negf %1993 : vector<2x16xf32>
    %1995 = math.exp %1994 : vector<2x16xf32>
    %cst_458 = arith.constant 1.000000e+00 : f32
    %1996 = vector.broadcast %cst_458 : f32 to vector<2x16xf32>
    %1997 = arith.addf %1996, %1995 : vector<2x16xf32>
    %1998 = arith.divf %1996, %1997 : vector<2x16xf32>
    %1999 = vector.extract_strided_slice %1992 {offsets = [0, 16], sizes = [2, 16], strides = [1, 1]} : vector<2x64xf32> to vector<2x16xf32>
    %2000 = arith.negf %1999 : vector<2x16xf32>
    %2001 = math.exp %2000 : vector<2x16xf32>
    %cst_459 = arith.constant 1.000000e+00 : f32
    %2002 = vector.broadcast %cst_459 : f32 to vector<2x16xf32>
    %2003 = arith.addf %2002, %2001 : vector<2x16xf32>
    %2004 = arith.divf %2002, %2003 : vector<2x16xf32>
    %2005 = vector.extract_strided_slice %1992 {offsets = [0, 32], sizes = [2, 16], strides = [1, 1]} : vector<2x64xf32> to vector<2x16xf32>
    %2006 = math.tanh %2005 : vector<2x16xf32>
    %2007 = vector.extract_strided_slice %1992 {offsets = [0, 48], sizes = [2, 16], strides = [1, 1]} : vector<2x64xf32> to vector<2x16xf32>
    %2008 = arith.negf %2007 : vector<2x16xf32>
    %2009 = math.exp %2008 : vector<2x16xf32>
    %cst_460 = arith.constant 1.000000e+00 : f32
    %2010 = vector.broadcast %cst_460 : f32 to vector<2x16xf32>
    %2011 = arith.addf %2010, %2009 : vector<2x16xf32>
    %2012 = arith.divf %2010, %2011 : vector<2x16xf32>
    %2013 = arith.mulf %2004, %1977 : vector<2x16xf32>
    %2014 = arith.mulf %1998, %2006 : vector<2x16xf32>
    %2015 = arith.addf %2013, %2014 : vector<2x16xf32>
    %2016 = math.tanh %2015 : vector<2x16xf32>
    %2017 = arith.mulf %2012, %2016 : vector<2x16xf32>
    %c3_i32_461 = arith.constant 3 : i32
    %2018 = vector.broadcast %c3_i32_461 : i32 to vector<1x8x1xi32>
    %2019 = arith.cmpi eq, %919, %2018 : vector<1x8x1xi32>
    %2020 = vector.shape_cast %2017 : vector<2x16xf32> to vector<2x1x16xf32>
    %cst_462 = arith.constant 0.000000e+00 : f32
    %2021 = vector.shape_cast %2019 : vector<1x8x1xi1> to vector<1x8x1xi1>
    %2022 = vector.broadcast %2021 : vector<1x8x1xi1> to vector<2x8x16xi1>
    %2023 = vector.shape_cast %2020 : vector<2x1x16xf32> to vector<2x1x16xf32>
    %2024 = vector.broadcast %2023 : vector<2x1x16xf32> to vector<2x8x16xf32>
    %2025 = vector.broadcast %cst_462 : f32 to vector<2x8x16xf32>
    %2026 = arith.select %2022, %2024, %2025 : vector<2x8x16xi1>, vector<2x8x16xf32>
    %2027 = arith.addf %1989, %2026 : vector<2x8x16xf32>
    %2028 = vector.extract_strided_slice %693 {offsets = [4, 0], sizes = [2, 64], strides = [1, 1]} : vector<16x64xf32> to vector<2x64xf32>
    %cst_463 = arith.constant dense<0.000000e+00> : vector<2x64xf32>
    %2029 = tpu.matmul %2017, %918, %cst_463 {dimension_numbers = #tpu.dot_dimension_numbers<[1], [0], [0], [1], [0, 0, 1, 1], [], []>} : vector<2x16xf32>, vector<16x64xf32>, vector<2x64xf32> -> vector<2x64xf32>
    %2030 = arith.addf %2028, %2029 : vector<2x64xf32>
    %2031 = vector.extract_strided_slice %2030 {offsets = [0, 0], sizes = [2, 16], strides = [1, 1]} : vector<2x64xf32> to vector<2x16xf32>
    %2032 = arith.negf %2031 : vector<2x16xf32>
    %2033 = math.exp %2032 : vector<2x16xf32>
    %cst_464 = arith.constant 1.000000e+00 : f32
    %2034 = vector.broadcast %cst_464 : f32 to vector<2x16xf32>
    %2035 = arith.addf %2034, %2033 : vector<2x16xf32>
    %2036 = arith.divf %2034, %2035 : vector<2x16xf32>
    %2037 = vector.extract_strided_slice %2030 {offsets = [0, 16], sizes = [2, 16], strides = [1, 1]} : vector<2x64xf32> to vector<2x16xf32>
    %2038 = arith.negf %2037 : vector<2x16xf32>
    %2039 = math.exp %2038 : vector<2x16xf32>
    %cst_465 = arith.constant 1.000000e+00 : f32
    %2040 = vector.broadcast %cst_465 : f32 to vector<2x16xf32>
    %2041 = arith.addf %2040, %2039 : vector<2x16xf32>
    %2042 = arith.divf %2040, %2041 : vector<2x16xf32>
    %2043 = vector.extract_strided_slice %2030 {offsets = [0, 32], sizes = [2, 16], strides = [1, 1]} : vector<2x64xf32> to vector<2x16xf32>
    %2044 = math.tanh %2043 : vector<2x16xf32>
    %2045 = vector.extract_strided_slice %2030 {offsets = [0, 48], sizes = [2, 16], strides = [1, 1]} : vector<2x64xf32> to vector<2x16xf32>
    %2046 = arith.negf %2045 : vector<2x16xf32>
    %2047 = math.exp %2046 : vector<2x16xf32>
    %cst_466 = arith.constant 1.000000e+00 : f32
    %2048 = vector.broadcast %cst_466 : f32 to vector<2x16xf32>
    %2049 = arith.addf %2048, %2047 : vector<2x16xf32>
    %2050 = arith.divf %2048, %2049 : vector<2x16xf32>
    %2051 = arith.mulf %2042, %2015 : vector<2x16xf32>
    %2052 = arith.mulf %2036, %2044 : vector<2x16xf32>
    %2053 = arith.addf %2051, %2052 : vector<2x16xf32>
    %2054 = math.tanh %2053 : vector<2x16xf32>
    %2055 = arith.mulf %2050, %2054 : vector<2x16xf32>
    %c2_i32_467 = arith.constant 2 : i32
    %2056 = vector.broadcast %c2_i32_467 : i32 to vector<1x8x1xi32>
    %2057 = arith.cmpi eq, %919, %2056 : vector<1x8x1xi32>
    %2058 = vector.shape_cast %2055 : vector<2x16xf32> to vector<2x1x16xf32>
    %cst_468 = arith.constant 0.000000e+00 : f32
    %2059 = vector.shape_cast %2057 : vector<1x8x1xi1> to vector<1x8x1xi1>
    %2060 = vector.broadcast %2059 : vector<1x8x1xi1> to vector<2x8x16xi1>
    %2061 = vector.shape_cast %2058 : vector<2x1x16xf32> to vector<2x1x16xf32>
    %2062 = vector.broadcast %2061 : vector<2x1x16xf32> to vector<2x8x16xf32>
    %2063 = vector.broadcast %cst_468 : f32 to vector<2x8x16xf32>
    %2064 = arith.select %2060, %2062, %2063 : vector<2x8x16xi1>, vector<2x8x16xf32>
    %2065 = arith.addf %2027, %2064 : vector<2x8x16xf32>
    %2066 = vector.extract_strided_slice %693 {offsets = [2, 0], sizes = [2, 64], strides = [1, 1]} : vector<16x64xf32> to vector<2x64xf32>
    %cst_469 = arith.constant dense<0.000000e+00> : vector<2x64xf32>
    %2067 = tpu.matmul %2055, %918, %cst_469 {dimension_numbers = #tpu.dot_dimension_numbers<[1], [0], [0], [1], [0, 0, 1, 1], [], []>} : vector<2x16xf32>, vector<16x64xf32>, vector<2x64xf32> -> vector<2x64xf32>
    %2068 = arith.addf %2066, %2067 : vector<2x64xf32>
    %2069 = vector.extract_strided_slice %2068 {offsets = [0, 0], sizes = [2, 16], strides = [1, 1]} : vector<2x64xf32> to vector<2x16xf32>
    %2070 = arith.negf %2069 : vector<2x16xf32>
    %2071 = math.exp %2070 : vector<2x16xf32>
    %cst_470 = arith.constant 1.000000e+00 : f32
    %2072 = vector.broadcast %cst_470 : f32 to vector<2x16xf32>
    %2073 = arith.addf %2072, %2071 : vector<2x16xf32>
    %2074 = arith.divf %2072, %2073 : vector<2x16xf32>
    %2075 = vector.extract_strided_slice %2068 {offsets = [0, 16], sizes = [2, 16], strides = [1, 1]} : vector<2x64xf32> to vector<2x16xf32>
    %2076 = arith.negf %2075 : vector<2x16xf32>
    %2077 = math.exp %2076 : vector<2x16xf32>
    %cst_471 = arith.constant 1.000000e+00 : f32
    %2078 = vector.broadcast %cst_471 : f32 to vector<2x16xf32>
    %2079 = arith.addf %2078, %2077 : vector<2x16xf32>
    %2080 = arith.divf %2078, %2079 : vector<2x16xf32>
    %2081 = vector.extract_strided_slice %2068 {offsets = [0, 32], sizes = [2, 16], strides = [1, 1]} : vector<2x64xf32> to vector<2x16xf32>
    %2082 = math.tanh %2081 : vector<2x16xf32>
    %2083 = vector.extract_strided_slice %2068 {offsets = [0, 48], sizes = [2, 16], strides = [1, 1]} : vector<2x64xf32> to vector<2x16xf32>
    %2084 = arith.negf %2083 : vector<2x16xf32>
    %2085 = math.exp %2084 : vector<2x16xf32>
    %cst_472 = arith.constant 1.000000e+00 : f32
    %2086 = vector.broadcast %cst_472 : f32 to vector<2x16xf32>
    %2087 = arith.addf %2086, %2085 : vector<2x16xf32>
    %2088 = arith.divf %2086, %2087 : vector<2x16xf32>
    %2089 = arith.mulf %2080, %2053 : vector<2x16xf32>
    %2090 = arith.mulf %2074, %2082 : vector<2x16xf32>
    %2091 = arith.addf %2089, %2090 : vector<2x16xf32>
    %2092 = math.tanh %2091 : vector<2x16xf32>
    %2093 = arith.mulf %2088, %2092 : vector<2x16xf32>
    %c1_i32_473 = arith.constant 1 : i32
    %2094 = vector.broadcast %c1_i32_473 : i32 to vector<1x8x1xi32>
    %2095 = arith.cmpi eq, %919, %2094 : vector<1x8x1xi32>
    %2096 = vector.shape_cast %2093 : vector<2x16xf32> to vector<2x1x16xf32>
    %cst_474 = arith.constant 0.000000e+00 : f32
    %2097 = vector.shape_cast %2095 : vector<1x8x1xi1> to vector<1x8x1xi1>
    %2098 = vector.broadcast %2097 : vector<1x8x1xi1> to vector<2x8x16xi1>
    %2099 = vector.shape_cast %2096 : vector<2x1x16xf32> to vector<2x1x16xf32>
    %2100 = vector.broadcast %2099 : vector<2x1x16xf32> to vector<2x8x16xf32>
    %2101 = vector.broadcast %cst_474 : f32 to vector<2x8x16xf32>
    %2102 = arith.select %2098, %2100, %2101 : vector<2x8x16xi1>, vector<2x8x16xf32>
    %2103 = arith.addf %2065, %2102 : vector<2x8x16xf32>
    %2104 = vector.extract_strided_slice %693 {offsets = [0, 0], sizes = [2, 64], strides = [1, 1]} : vector<16x64xf32> to vector<2x64xf32>
    %cst_475 = arith.constant dense<0.000000e+00> : vector<2x64xf32>
    %2105 = tpu.matmul %2093, %918, %cst_475 {dimension_numbers = #tpu.dot_dimension_numbers<[1], [0], [0], [1], [0, 0, 1, 1], [], []>} : vector<2x16xf32>, vector<16x64xf32>, vector<2x64xf32> -> vector<2x64xf32>
    %2106 = arith.addf %2104, %2105 : vector<2x64xf32>
    %2107 = vector.extract_strided_slice %2106 {offsets = [0, 0], sizes = [2, 16], strides = [1, 1]} : vector<2x64xf32> to vector<2x16xf32>
    %2108 = arith.negf %2107 : vector<2x16xf32>
    %2109 = math.exp %2108 : vector<2x16xf32>
    %cst_476 = arith.constant 1.000000e+00 : f32
    %2110 = vector.broadcast %cst_476 : f32 to vector<2x16xf32>
    %2111 = arith.addf %2110, %2109 : vector<2x16xf32>
    %2112 = arith.divf %2110, %2111 : vector<2x16xf32>
    %2113 = vector.extract_strided_slice %2106 {offsets = [0, 16], sizes = [2, 16], strides = [1, 1]} : vector<2x64xf32> to vector<2x16xf32>
    %2114 = arith.negf %2113 : vector<2x16xf32>
    %2115 = math.exp %2114 : vector<2x16xf32>
    %cst_477 = arith.constant 1.000000e+00 : f32
    %2116 = vector.broadcast %cst_477 : f32 to vector<2x16xf32>
    %2117 = arith.addf %2116, %2115 : vector<2x16xf32>
    %2118 = arith.divf %2116, %2117 : vector<2x16xf32>
    %2119 = vector.extract_strided_slice %2106 {offsets = [0, 32], sizes = [2, 16], strides = [1, 1]} : vector<2x64xf32> to vector<2x16xf32>
    %2120 = math.tanh %2119 : vector<2x16xf32>
    %2121 = vector.extract_strided_slice %2106 {offsets = [0, 48], sizes = [2, 16], strides = [1, 1]} : vector<2x64xf32> to vector<2x16xf32>
    %2122 = arith.negf %2121 : vector<2x16xf32>
    %2123 = math.exp %2122 : vector<2x16xf32>
    %cst_478 = arith.constant 1.000000e+00 : f32
    %2124 = vector.broadcast %cst_478 : f32 to vector<2x16xf32>
    %2125 = arith.addf %2124, %2123 : vector<2x16xf32>
    %2126 = arith.divf %2124, %2125 : vector<2x16xf32>
    %2127 = arith.mulf %2118, %2091 : vector<2x16xf32>
    %2128 = arith.mulf %2112, %2120 : vector<2x16xf32>
    %2129 = arith.addf %2127, %2128 : vector<2x16xf32>
    %2130 = math.tanh %2129 : vector<2x16xf32>
    %2131 = arith.mulf %2126, %2130 : vector<2x16xf32>
    %c0_i32_479 = arith.constant 0 : i32
    %2132 = vector.broadcast %c0_i32_479 : i32 to vector<1x8x1xi32>
    %2133 = arith.cmpi eq, %919, %2132 : vector<1x8x1xi32>
    %2134 = vector.shape_cast %2131 : vector<2x16xf32> to vector<2x1x16xf32>
    %cst_480 = arith.constant 0.000000e+00 : f32
    %2135 = vector.shape_cast %2133 : vector<1x8x1xi1> to vector<1x8x1xi1>
    %2136 = vector.broadcast %2135 : vector<1x8x1xi1> to vector<2x8x16xi1>
    %2137 = vector.shape_cast %2134 : vector<2x1x16xf32> to vector<2x1x16xf32>
    %2138 = vector.broadcast %2137 : vector<2x1x16xf32> to vector<2x8x16xf32>
    %2139 = vector.broadcast %cst_480 : f32 to vector<2x8x16xf32>
    %2140 = arith.select %2136, %2138, %2139 : vector<2x8x16xi1>, vector<2x8x16xf32>
    %2141 = arith.addf %2103, %2140 : vector<2x8x16xf32>
    %2142 = tpu.concatenate %1000, %2141 in 2 : vector<2x8x16xf32>, vector<2x8x16xf32> -> vector<2x8x32xf32>
    %2143 = tpu.concatenate %861, %1941 in 1 : vector<2x16xf32>, vector<2x16xf32> -> vector<2x32xf32>
    %c0_481 = arith.constant 0 : index
    %c0_482 = arith.constant 0 : index
    %2144 = vector.load %arg22[%c0_481, %c0_482] : memref<32x32xf32, #tpu.memory_space<vmem>>, vector<32x32xf32>
    %cst_483 = arith.constant dense<0.000000e+00> : vector<2x32xf32>
    %2145 = tpu.matmul %2143, %2144, %cst_483 {dimension_numbers = #tpu.dot_dimension_numbers<[1], [0], [0], [1], [0, 0, 1, 1], [], []>} : vector<2x32xf32>, vector<32x32xf32>, vector<2x32xf32> -> vector<2x32xf32>
    %c0_484 = arith.constant 0 : index
    %c0_485 = arith.constant 0 : index
    %2146 = vector.load %arg23[%c0_484, %c0_485] : memref<1x32xf32, #tpu.memory_space<vmem>>, vector<1x32xf32>
    %2147 = vector.broadcast %2146 : vector<1x32xf32> to vector<2x32xf32>
    %2148 = arith.addf %2145, %2147 : vector<2x32xf32>
    %2149 = vector.shape_cast %2148 : vector<2x32xf32> to vector<2x1x32xf32>
    %2150 = vector.broadcast %2149 : vector<2x1x32xf32> to vector<2x8x32xf32>
    %2151 = arith.mulf %2150, %6 : vector<2x8x32xf32>
    %cst_486 = arith.constant dense<0.000000e+00> : vector<2x8xf32>
    %2152 = vector.multi_reduction <add>, %2151, %cst_486 [2] : vector<2x8x32xf32> to vector<2x8xf32>
    %2153 = vector.shape_cast %2152 : vector<2x8xf32> to vector<2x8x1xf32>
    %cst_487 = arith.constant dense<0xFF800000> : vector<2x1xf32>
    %2154 = vector.multi_reduction <maximumf>, %2153, %cst_487 [1] : vector<2x8x1xf32> to vector<2x1xf32>
    %2155 = vector.shape_cast %2154 : vector<2x1xf32> to vector<2x1x1xf32>
    %2156 = vector.broadcast %2155 : vector<2x1x1xf32> to vector<2x8x1xf32>
    %2157 = arith.subf %2153, %2156 : vector<2x8x1xf32>
    %2158 = math.exp %2157 : vector<2x8x1xf32>
    %cst_488 = arith.constant dense<0.000000e+00> : vector<2x1xf32>
    %2159 = vector.multi_reduction <add>, %2158, %cst_488 [1] : vector<2x8x1xf32> to vector<2x1xf32>
    %2160 = vector.shape_cast %2159 : vector<2x1xf32> to vector<2x1x1xf32>
    %2161 = tpu.reciprocal %2160 {approx = true} : vector<2x1x1xf32> -> vector<2x1x1xf32>
    %2162 = vector.broadcast %2161 : vector<2x1x1xf32> to vector<2x8x1xf32>
    %2163 = arith.mulf %2158, %2162 : vector<2x8x1xf32>
    %2164 = vector.broadcast %2163 : vector<2x8x1xf32> to vector<2x8x32xf32>
    %2165 = arith.mulf %2164, %6 : vector<2x8x32xf32>
    %cst_489 = arith.constant dense<0.000000e+00> : vector<2x32xf32>
    %2166 = vector.multi_reduction <add>, %2165, %cst_489 [1] : vector<2x8x32xf32> to vector<2x32xf32>
    %2167 = tpu.concatenate %200, %2166 in 1 : vector<2x32xf32>, vector<2x32xf32> -> vector<2x64xf32>
    %c0_490 = arith.constant 0 : index
    %c0_491 = arith.constant 0 : index
    %2168 = vector.load %arg24[%c0_490, %c0_491] : memref<64x32xf32, #tpu.memory_space<vmem>>, vector<64x32xf32>
    %cst_492 = arith.constant dense<0.000000e+00> : vector<2x32xf32>
    %2169 = tpu.matmul %2167, %2168, %cst_492 {dimension_numbers = #tpu.dot_dimension_numbers<[1], [0], [0], [1], [0, 0, 1, 1], [], []>} : vector<2x64xf32>, vector<64x32xf32>, vector<2x32xf32> -> vector<2x32xf32>
    %c0_493 = arith.constant 0 : index
    %c0_494 = arith.constant 0 : index
    %2170 = vector.load %arg25[%c0_493, %c0_494] : memref<1x32xf32, #tpu.memory_space<vmem>>, vector<1x32xf32>
    %2171 = vector.broadcast %2170 : vector<1x32xf32> to vector<2x32xf32>
    %2172 = arith.addf %2169, %2171 : vector<2x32xf32>
    %2173 = vector.shape_cast %2172 : vector<2x32xf32> to vector<2x1x32xf32>
    %2174 = vector.broadcast %2173 : vector<2x1x32xf32> to vector<2x8x32xf32>
    %2175 = arith.mulf %2174, %2142 : vector<2x8x32xf32>
    %cst_495 = arith.constant dense<0.000000e+00> : vector<2x8xf32>
    %2176 = vector.multi_reduction <add>, %2175, %cst_495 [2] : vector<2x8x32xf32> to vector<2x8xf32>
    %2177 = vector.shape_cast %2176 : vector<2x8xf32> to vector<2x8x1xf32>
    %c6_i32_496 = arith.constant 6 : i32
    %2178 = vector.broadcast %c6_i32_496 : i32 to vector<1x8x1xi32>
    %2179 = arith.cmpi slt, %919, %2178 : vector<1x8x1xi32>
    %cst_497 = arith.constant -1.000000e+30 : f32
    %2180 = vector.shape_cast %2179 : vector<1x8x1xi1> to vector<1x8x1xi1>
    %2181 = vector.broadcast %2180 : vector<1x8x1xi1> to vector<2x8x1xi1>
    %2182 = vector.broadcast %cst_497 : f32 to vector<2x8x1xf32>
    %2183 = arith.select %2181, %2177, %2182 : vector<2x8x1xi1>, vector<2x8x1xf32>
    %cst_498 = arith.constant dense<0xFF800000> : vector<2x1xf32>
    %2184 = vector.multi_reduction <maximumf>, %2183, %cst_498 [1] : vector<2x8x1xf32> to vector<2x1xf32>
    %2185 = vector.shape_cast %2184 : vector<2x1xf32> to vector<2x1x1xf32>
    %2186 = vector.broadcast %2185 : vector<2x1x1xf32> to vector<2x8x1xf32>
    %2187 = arith.subf %2183, %2186 : vector<2x8x1xf32>
    %2188 = math.exp %2187 : vector<2x8x1xf32>
    %cst_499 = arith.constant dense<0.000000e+00> : vector<2x1xf32>
    %2189 = vector.multi_reduction <add>, %2188, %cst_499 [1] : vector<2x8x1xf32> to vector<2x1xf32>
    %2190 = vector.shape_cast %2189 : vector<2x1xf32> to vector<2x1x1xf32>
    %2191 = tpu.reciprocal %2190 {approx = true} : vector<2x1x1xf32> -> vector<2x1x1xf32>
    %2192 = vector.broadcast %2191 : vector<2x1x1xf32> to vector<2x8x1xf32>
    %2193 = arith.mulf %2188, %2192 : vector<2x8x1xf32>
    %2194 = vector.broadcast %2193 : vector<2x8x1xf32> to vector<2x8x32xf32>
    %2195 = arith.mulf %2194, %2142 : vector<2x8x32xf32>
    %cst_500 = arith.constant dense<0.000000e+00> : vector<2x32xf32>
    %2196 = vector.multi_reduction <add>, %2195, %cst_500 [1] : vector<2x8x32xf32> to vector<2x32xf32>
    %2197 = tpu.concatenate %20, %200, %1913, %2166, %2196 in 1 : vector<2x32xf32>, vector<2x32xf32>, vector<2x16xf32>, vector<2x32xf32>, vector<2x32xf32> -> vector<2x144xf32>
    %c0_501 = arith.constant 0 : index
    %c0_502 = arith.constant 0 : index
    %2198 = vector.load %arg26[%c0_501, %c0_502] : memref<144x5xf32, #tpu.memory_space<vmem>>, vector<144x5xf32>
    %cst_503 = arith.constant dense<0.000000e+00> : vector<2x5xf32>
    %2199 = tpu.matmul %2197, %2198, %cst_503 {dimension_numbers = #tpu.dot_dimension_numbers<[1], [0], [0], [1], [0, 0, 1, 1], [], []>} : vector<2x144xf32>, vector<144x5xf32>, vector<2x5xf32> -> vector<2x5xf32>
    %c0_504 = arith.constant 0 : index
    %c0_505 = arith.constant 0 : index
    %2200 = vector.load %arg27[%c0_504, %c0_505] : memref<1x5xf32, #tpu.memory_space<vmem>>, vector<1x5xf32>
    %2201 = vector.broadcast %2200 : vector<1x5xf32> to vector<2x5xf32>
    %2202 = arith.addf %2199, %2201 : vector<2x5xf32>
    %c6 = arith.constant 6 : index
    %c0_506 = arith.constant 0 : index
    %c0_507 = arith.constant 0 : index
    %2203 = vector.load %arg30[%c6, %c0_506, %c0_507] : memref<8x2x5xf32, #tpu.memory_space<vmem>>, vector<1x2x5xf32>
    %2204 = vector.shape_cast %2203 : vector<1x2x5xf32> to vector<2x5xf32>
    %2205 = vector.shape_cast %2202 : vector<2x5xf32> to vector<1x2x5xf32>
    tpu.vector_store %arg30[%c6, %c0_506, %c0_507], %2205 {strides = array<i32>} : memref<8x2x5xf32, #tpu.memory_space<vmem>>, vector<1x2x5xf32>,
    %2206 = tpu.concatenate %458, %486 in 1 : vector<2x8xf32>, vector<2x8xf32> -> vector<2x16xf32>
    %cst_508 = arith.constant 0.000000e+00 : f32
    %2207 = vector.broadcast %cst_508 : f32 to vector<2x16xf32>
    %cst_509 = arith.constant 0.000000e+00 : f32
    %2208 = vector.broadcast %cst_509 : f32 to vector<2x8x16xf32>
    %2209 = vector.extract_strided_slice %693 {offsets = [12, 0], sizes = [2, 64], strides = [1, 1]} : vector<16x64xf32> to vector<2x64xf32>
    %2210 = vector.extract_strided_slice %2209 {offsets = [0, 0], sizes = [2, 16], strides = [1, 1]} : vector<2x64xf32> to vector<2x16xf32>
    %2211 = arith.negf %2210 : vector<2x16xf32>
    %2212 = math.exp %2211 : vector<2x16xf32>
    %cst_510 = arith.constant 1.000000e+00 : f32
    %2213 = vector.broadcast %cst_510 : f32 to vector<2x16xf32>
    %2214 = arith.addf %2213, %2212 : vector<2x16xf32>
    %2215 = arith.divf %2213, %2214 : vector<2x16xf32>
    %2216 = vector.extract_strided_slice %2209 {offsets = [0, 16], sizes = [2, 16], strides = [1, 1]} : vector<2x64xf32> to vector<2x16xf32>
    %2217 = arith.negf %2216 : vector<2x16xf32>
    %2218 = math.exp %2217 : vector<2x16xf32>
    %cst_511 = arith.constant 1.000000e+00 : f32
    %2219 = vector.broadcast %cst_511 : f32 to vector<2x16xf32>
    %2220 = arith.addf %2219, %2218 : vector<2x16xf32>
    %2221 = arith.divf %2219, %2220 : vector<2x16xf32>
    %2222 = vector.extract_strided_slice %2209 {offsets = [0, 32], sizes = [2, 16], strides = [1, 1]} : vector<2x64xf32> to vector<2x16xf32>
    %2223 = math.tanh %2222 : vector<2x16xf32>
    %2224 = vector.extract_strided_slice %2209 {offsets = [0, 48], sizes = [2, 16], strides = [1, 1]} : vector<2x64xf32> to vector<2x16xf32>
    %2225 = arith.negf %2224 : vector<2x16xf32>
    %2226 = math.exp %2225 : vector<2x16xf32>
    %cst_512 = arith.constant 1.000000e+00 : f32
    %2227 = vector.broadcast %cst_512 : f32 to vector<2x16xf32>
    %2228 = arith.addf %2227, %2226 : vector<2x16xf32>
    %2229 = arith.divf %2227, %2228 : vector<2x16xf32>
    %2230 = arith.mulf %2221, %2207 : vector<2x16xf32>
    %2231 = arith.mulf %2215, %2223 : vector<2x16xf32>
    %2232 = arith.addf %2230, %2231 : vector<2x16xf32>
    %2233 = math.tanh %2232 : vector<2x16xf32>
    %2234 = arith.mulf %2229, %2233 : vector<2x16xf32>
    %c6_i32_513 = arith.constant 6 : i32
    %2235 = vector.broadcast %c6_i32_513 : i32 to vector<1x8x1xi32>
    %2236 = arith.cmpi eq, %919, %2235 : vector<1x8x1xi32>
    %2237 = vector.shape_cast %2234 : vector<2x16xf32> to vector<2x1x16xf32>
    %cst_514 = arith.constant 0.000000e+00 : f32
    %2238 = vector.shape_cast %2236 : vector<1x8x1xi1> to vector<1x8x1xi1>
    %2239 = vector.broadcast %2238 : vector<1x8x1xi1> to vector<2x8x16xi1>
    %2240 = vector.shape_cast %2237 : vector<2x1x16xf32> to vector<2x1x16xf32>
    %2241 = vector.broadcast %2240 : vector<2x1x16xf32> to vector<2x8x16xf32>
    %2242 = vector.broadcast %cst_514 : f32 to vector<2x8x16xf32>
    %2243 = arith.select %2239, %2241, %2242 : vector<2x8x16xi1>, vector<2x8x16xf32>
    %2244 = arith.addf %2208, %2243 : vector<2x8x16xf32>
    %2245 = vector.extract_strided_slice %693 {offsets = [10, 0], sizes = [2, 64], strides = [1, 1]} : vector<16x64xf32> to vector<2x64xf32>
    %cst_515 = arith.constant dense<0.000000e+00> : vector<2x64xf32>
    %2246 = tpu.matmul %2234, %918, %cst_515 {dimension_numbers = #tpu.dot_dimension_numbers<[1], [0], [0], [1], [0, 0, 1, 1], [], []>} : vector<2x16xf32>, vector<16x64xf32>, vector<2x64xf32> -> vector<2x64xf32>
    %2247 = arith.addf %2245, %2246 : vector<2x64xf32>
    %2248 = vector.extract_strided_slice %2247 {offsets = [0, 0], sizes = [2, 16], strides = [1, 1]} : vector<2x64xf32> to vector<2x16xf32>
    %2249 = arith.negf %2248 : vector<2x16xf32>
    %2250 = math.exp %2249 : vector<2x16xf32>
    %cst_516 = arith.constant 1.000000e+00 : f32
    %2251 = vector.broadcast %cst_516 : f32 to vector<2x16xf32>
    %2252 = arith.addf %2251, %2250 : vector<2x16xf32>
    %2253 = arith.divf %2251, %2252 : vector<2x16xf32>
    %2254 = vector.extract_strided_slice %2247 {offsets = [0, 16], sizes = [2, 16], strides = [1, 1]} : vector<2x64xf32> to vector<2x16xf32>
    %2255 = arith.negf %2254 : vector<2x16xf32>
    %2256 = math.exp %2255 : vector<2x16xf32>
    %cst_517 = arith.constant 1.000000e+00 : f32
    %2257 = vector.broadcast %cst_517 : f32 to vector<2x16xf32>
    %2258 = arith.addf %2257, %2256 : vector<2x16xf32>
    %2259 = arith.divf %2257, %2258 : vector<2x16xf32>
    %2260 = vector.extract_strided_slice %2247 {offsets = [0, 32], sizes = [2, 16], strides = [1, 1]} : vector<2x64xf32> to vector<2x16xf32>
    %2261 = math.tanh %2260 : vector<2x16xf32>
    %2262 = vector.extract_strided_slice %2247 {offsets = [0, 48], sizes = [2, 16], strides = [1, 1]} : vector<2x64xf32> to vector<2x16xf32>
    %2263 = arith.negf %2262 : vector<2x16xf32>
    %2264 = math.exp %2263 : vector<2x16xf32>
    %cst_518 = arith.constant 1.000000e+00 : f32
    %2265 = vector.broadcast %cst_518 : f32 to vector<2x16xf32>
    %2266 = arith.addf %2265, %2264 : vector<2x16xf32>
    %2267 = arith.divf %2265, %2266 : vector<2x16xf32>
    %2268 = arith.mulf %2259, %2232 : vector<2x16xf32>
    %2269 = arith.mulf %2253, %2261 : vector<2x16xf32>
    %2270 = arith.addf %2268, %2269 : vector<2x16xf32>
    %2271 = math.tanh %2270 : vector<2x16xf32>
    %2272 = arith.mulf %2267, %2271 : vector<2x16xf32>
    %c5_i32_519 = arith.constant 5 : i32
    %2273 = vector.broadcast %c5_i32_519 : i32 to vector<1x8x1xi32>
    %2274 = arith.cmpi eq, %919, %2273 : vector<1x8x1xi32>
    %2275 = vector.shape_cast %2272 : vector<2x16xf32> to vector<2x1x16xf32>
    %cst_520 = arith.constant 0.000000e+00 : f32
    %2276 = vector.shape_cast %2274 : vector<1x8x1xi1> to vector<1x8x1xi1>
    %2277 = vector.broadcast %2276 : vector<1x8x1xi1> to vector<2x8x16xi1>
    %2278 = vector.shape_cast %2275 : vector<2x1x16xf32> to vector<2x1x16xf32>
    %2279 = vector.broadcast %2278 : vector<2x1x16xf32> to vector<2x8x16xf32>
    %2280 = vector.broadcast %cst_520 : f32 to vector<2x8x16xf32>
    %2281 = arith.select %2277, %2279, %2280 : vector<2x8x16xi1>, vector<2x8x16xf32>
    %2282 = arith.addf %2244, %2281 : vector<2x8x16xf32>
    %2283 = vector.extract_strided_slice %693 {offsets = [8, 0], sizes = [2, 64], strides = [1, 1]} : vector<16x64xf32> to vector<2x64xf32>
    %cst_521 = arith.constant dense<0.000000e+00> : vector<2x64xf32>
    %2284 = tpu.matmul %2272, %918, %cst_521 {dimension_numbers = #tpu.dot_dimension_numbers<[1], [0], [0], [1], [0, 0, 1, 1], [], []>} : vector<2x16xf32>, vector<16x64xf32>, vector<2x64xf32> -> vector<2x64xf32>
    %2285 = arith.addf %2283, %2284 : vector<2x64xf32>
    %2286 = vector.extract_strided_slice %2285 {offsets = [0, 0], sizes = [2, 16], strides = [1, 1]} : vector<2x64xf32> to vector<2x16xf32>
    %2287 = arith.negf %2286 : vector<2x16xf32>
    %2288 = math.exp %2287 : vector<2x16xf32>
    %cst_522 = arith.constant 1.000000e+00 : f32
    %2289 = vector.broadcast %cst_522 : f32 to vector<2x16xf32>
    %2290 = arith.addf %2289, %2288 : vector<2x16xf32>
    %2291 = arith.divf %2289, %2290 : vector<2x16xf32>
    %2292 = vector.extract_strided_slice %2285 {offsets = [0, 16], sizes = [2, 16], strides = [1, 1]} : vector<2x64xf32> to vector<2x16xf32>
    %2293 = arith.negf %2292 : vector<2x16xf32>
    %2294 = math.exp %2293 : vector<2x16xf32>
    %cst_523 = arith.constant 1.000000e+00 : f32
    %2295 = vector.broadcast %cst_523 : f32 to vector<2x16xf32>
    %2296 = arith.addf %2295, %2294 : vector<2x16xf32>
    %2297 = arith.divf %2295, %2296 : vector<2x16xf32>
    %2298 = vector.extract_strided_slice %2285 {offsets = [0, 32], sizes = [2, 16], strides = [1, 1]} : vector<2x64xf32> to vector<2x16xf32>
    %2299 = math.tanh %2298 : vector<2x16xf32>
    %2300 = vector.extract_strided_slice %2285 {offsets = [0, 48], sizes = [2, 16], strides = [1, 1]} : vector<2x64xf32> to vector<2x16xf32>
    %2301 = arith.negf %2300 : vector<2x16xf32>
    %2302 = math.exp %2301 : vector<2x16xf32>
    %cst_524 = arith.constant 1.000000e+00 : f32
    %2303 = vector.broadcast %cst_524 : f32 to vector<2x16xf32>
    %2304 = arith.addf %2303, %2302 : vector<2x16xf32>
    %2305 = arith.divf %2303, %2304 : vector<2x16xf32>
    %2306 = arith.mulf %2297, %2270 : vector<2x16xf32>
    %2307 = arith.mulf %2291, %2299 : vector<2x16xf32>
    %2308 = arith.addf %2306, %2307 : vector<2x16xf32>
    %2309 = math.tanh %2308 : vector<2x16xf32>
    %2310 = arith.mulf %2305, %2309 : vector<2x16xf32>
    %c4_i32_525 = arith.constant 4 : i32
    %2311 = vector.broadcast %c4_i32_525 : i32 to vector<1x8x1xi32>
    %2312 = arith.cmpi eq, %919, %2311 : vector<1x8x1xi32>
    %2313 = vector.shape_cast %2310 : vector<2x16xf32> to vector<2x1x16xf32>
    %cst_526 = arith.constant 0.000000e+00 : f32
    %2314 = vector.shape_cast %2312 : vector<1x8x1xi1> to vector<1x8x1xi1>
    %2315 = vector.broadcast %2314 : vector<1x8x1xi1> to vector<2x8x16xi1>
    %2316 = vector.shape_cast %2313 : vector<2x1x16xf32> to vector<2x1x16xf32>
    %2317 = vector.broadcast %2316 : vector<2x1x16xf32> to vector<2x8x16xf32>
    %2318 = vector.broadcast %cst_526 : f32 to vector<2x8x16xf32>
    %2319 = arith.select %2315, %2317, %2318 : vector<2x8x16xi1>, vector<2x8x16xf32>
    %2320 = arith.addf %2282, %2319 : vector<2x8x16xf32>
    %2321 = vector.extract_strided_slice %693 {offsets = [6, 0], sizes = [2, 64], strides = [1, 1]} : vector<16x64xf32> to vector<2x64xf32>
    %cst_527 = arith.constant dense<0.000000e+00> : vector<2x64xf32>
    %2322 = tpu.matmul %2310, %918, %cst_527 {dimension_numbers = #tpu.dot_dimension_numbers<[1], [0], [0], [1], [0, 0, 1, 1], [], []>} : vector<2x16xf32>, vector<16x64xf32>, vector<2x64xf32> -> vector<2x64xf32>
    %2323 = arith.addf %2321, %2322 : vector<2x64xf32>
    %2324 = vector.extract_strided_slice %2323 {offsets = [0, 0], sizes = [2, 16], strides = [1, 1]} : vector<2x64xf32> to vector<2x16xf32>
    %2325 = arith.negf %2324 : vector<2x16xf32>
    %2326 = math.exp %2325 : vector<2x16xf32>
    %cst_528 = arith.constant 1.000000e+00 : f32
    %2327 = vector.broadcast %cst_528 : f32 to vector<2x16xf32>
    %2328 = arith.addf %2327, %2326 : vector<2x16xf32>
    %2329 = arith.divf %2327, %2328 : vector<2x16xf32>
    %2330 = vector.extract_strided_slice %2323 {offsets = [0, 16], sizes = [2, 16], strides = [1, 1]} : vector<2x64xf32> to vector<2x16xf32>
    %2331 = arith.negf %2330 : vector<2x16xf32>
    %2332 = math.exp %2331 : vector<2x16xf32>
    %cst_529 = arith.constant 1.000000e+00 : f32
    %2333 = vector.broadcast %cst_529 : f32 to vector<2x16xf32>
    %2334 = arith.addf %2333, %2332 : vector<2x16xf32>
    %2335 = arith.divf %2333, %2334 : vector<2x16xf32>
    %2336 = vector.extract_strided_slice %2323 {offsets = [0, 32], sizes = [2, 16], strides = [1, 1]} : vector<2x64xf32> to vector<2x16xf32>
    %2337 = math.tanh %2336 : vector<2x16xf32>
    %2338 = vector.extract_strided_slice %2323 {offsets = [0, 48], sizes = [2, 16], strides = [1, 1]} : vector<2x64xf32> to vector<2x16xf32>
    %2339 = arith.negf %2338 : vector<2x16xf32>
    %2340 = math.exp %2339 : vector<2x16xf32>
    %cst_530 = arith.constant 1.000000e+00 : f32
    %2341 = vector.broadcast %cst_530 : f32 to vector<2x16xf32>
    %2342 = arith.addf %2341, %2340 : vector<2x16xf32>
    %2343 = arith.divf %2341, %2342 : vector<2x16xf32>
    %2344 = arith.mulf %2335, %2308 : vector<2x16xf32>
    %2345 = arith.mulf %2329, %2337 : vector<2x16xf32>
    %2346 = arith.addf %2344, %2345 : vector<2x16xf32>
    %2347 = math.tanh %2346 : vector<2x16xf32>
    %2348 = arith.mulf %2343, %2347 : vector<2x16xf32>
    %c3_i32_531 = arith.constant 3 : i32
    %2349 = vector.broadcast %c3_i32_531 : i32 to vector<1x8x1xi32>
    %2350 = arith.cmpi eq, %919, %2349 : vector<1x8x1xi32>
    %2351 = vector.shape_cast %2348 : vector<2x16xf32> to vector<2x1x16xf32>
    %cst_532 = arith.constant 0.000000e+00 : f32
    %2352 = vector.shape_cast %2350 : vector<1x8x1xi1> to vector<1x8x1xi1>
    %2353 = vector.broadcast %2352 : vector<1x8x1xi1> to vector<2x8x16xi1>
    %2354 = vector.shape_cast %2351 : vector<2x1x16xf32> to vector<2x1x16xf32>
    %2355 = vector.broadcast %2354 : vector<2x1x16xf32> to vector<2x8x16xf32>
    %2356 = vector.broadcast %cst_532 : f32 to vector<2x8x16xf32>
    %2357 = arith.select %2353, %2355, %2356 : vector<2x8x16xi1>, vector<2x8x16xf32>
    %2358 = arith.addf %2320, %2357 : vector<2x8x16xf32>
    %2359 = vector.extract_strided_slice %693 {offsets = [4, 0], sizes = [2, 64], strides = [1, 1]} : vector<16x64xf32> to vector<2x64xf32>
    %cst_533 = arith.constant dense<0.000000e+00> : vector<2x64xf32>
    %2360 = tpu.matmul %2348, %918, %cst_533 {dimension_numbers = #tpu.dot_dimension_numbers<[1], [0], [0], [1], [0, 0, 1, 1], [], []>} : vector<2x16xf32>, vector<16x64xf32>, vector<2x64xf32> -> vector<2x64xf32>
    %2361 = arith.addf %2359, %2360 : vector<2x64xf32>
    %2362 = vector.extract_strided_slice %2361 {offsets = [0, 0], sizes = [2, 16], strides = [1, 1]} : vector<2x64xf32> to vector<2x16xf32>
    %2363 = arith.negf %2362 : vector<2x16xf32>
    %2364 = math.exp %2363 : vector<2x16xf32>
    %cst_534 = arith.constant 1.000000e+00 : f32
    %2365 = vector.broadcast %cst_534 : f32 to vector<2x16xf32>
    %2366 = arith.addf %2365, %2364 : vector<2x16xf32>
    %2367 = arith.divf %2365, %2366 : vector<2x16xf32>
    %2368 = vector.extract_strided_slice %2361 {offsets = [0, 16], sizes = [2, 16], strides = [1, 1]} : vector<2x64xf32> to vector<2x16xf32>
    %2369 = arith.negf %2368 : vector<2x16xf32>
    %2370 = math.exp %2369 : vector<2x16xf32>
    %cst_535 = arith.constant 1.000000e+00 : f32
    %2371 = vector.broadcast %cst_535 : f32 to vector<2x16xf32>
    %2372 = arith.addf %2371, %2370 : vector<2x16xf32>
    %2373 = arith.divf %2371, %2372 : vector<2x16xf32>
    %2374 = vector.extract_strided_slice %2361 {offsets = [0, 32], sizes = [2, 16], strides = [1, 1]} : vector<2x64xf32> to vector<2x16xf32>
    %2375 = math.tanh %2374 : vector<2x16xf32>
    %2376 = vector.extract_strided_slice %2361 {offsets = [0, 48], sizes = [2, 16], strides = [1, 1]} : vector<2x64xf32> to vector<2x16xf32>
    %2377 = arith.negf %2376 : vector<2x16xf32>
    %2378 = math.exp %2377 : vector<2x16xf32>
    %cst_536 = arith.constant 1.000000e+00 : f32
    %2379 = vector.broadcast %cst_536 : f32 to vector<2x16xf32>
    %2380 = arith.addf %2379, %2378 : vector<2x16xf32>
    %2381 = arith.divf %2379, %2380 : vector<2x16xf32>
    %2382 = arith.mulf %2373, %2346 : vector<2x16xf32>
    %2383 = arith.mulf %2367, %2375 : vector<2x16xf32>
    %2384 = arith.addf %2382, %2383 : vector<2x16xf32>
    %2385 = math.tanh %2384 : vector<2x16xf32>
    %2386 = arith.mulf %2381, %2385 : vector<2x16xf32>
    %c2_i32_537 = arith.constant 2 : i32
    %2387 = vector.broadcast %c2_i32_537 : i32 to vector<1x8x1xi32>
    %2388 = arith.cmpi eq, %919, %2387 : vector<1x8x1xi32>
    %2389 = vector.shape_cast %2386 : vector<2x16xf32> to vector<2x1x16xf32>
    %cst_538 = arith.constant 0.000000e+00 : f32
    %2390 = vector.shape_cast %2388 : vector<1x8x1xi1> to vector<1x8x1xi1>
    %2391 = vector.broadcast %2390 : vector<1x8x1xi1> to vector<2x8x16xi1>
    %2392 = vector.shape_cast %2389 : vector<2x1x16xf32> to vector<2x1x16xf32>
    %2393 = vector.broadcast %2392 : vector<2x1x16xf32> to vector<2x8x16xf32>
    %2394 = vector.broadcast %cst_538 : f32 to vector<2x8x16xf32>
    %2395 = arith.select %2391, %2393, %2394 : vector<2x8x16xi1>, vector<2x8x16xf32>
    %2396 = arith.addf %2358, %2395 : vector<2x8x16xf32>
    %2397 = vector.extract_strided_slice %693 {offsets = [2, 0], sizes = [2, 64], strides = [1, 1]} : vector<16x64xf32> to vector<2x64xf32>
    %cst_539 = arith.constant dense<0.000000e+00> : vector<2x64xf32>
    %2398 = tpu.matmul %2386, %918, %cst_539 {dimension_numbers = #tpu.dot_dimension_numbers<[1], [0], [0], [1], [0, 0, 1, 1], [], []>} : vector<2x16xf32>, vector<16x64xf32>, vector<2x64xf32> -> vector<2x64xf32>
    %2399 = arith.addf %2397, %2398 : vector<2x64xf32>
    %2400 = vector.extract_strided_slice %2399 {offsets = [0, 0], sizes = [2, 16], strides = [1, 1]} : vector<2x64xf32> to vector<2x16xf32>
    %2401 = arith.negf %2400 : vector<2x16xf32>
    %2402 = math.exp %2401 : vector<2x16xf32>
    %cst_540 = arith.constant 1.000000e+00 : f32
    %2403 = vector.broadcast %cst_540 : f32 to vector<2x16xf32>
    %2404 = arith.addf %2403, %2402 : vector<2x16xf32>
    %2405 = arith.divf %2403, %2404 : vector<2x16xf32>
    %2406 = vector.extract_strided_slice %2399 {offsets = [0, 16], sizes = [2, 16], strides = [1, 1]} : vector<2x64xf32> to vector<2x16xf32>
    %2407 = arith.negf %2406 : vector<2x16xf32>
    %2408 = math.exp %2407 : vector<2x16xf32>
    %cst_541 = arith.constant 1.000000e+00 : f32
    %2409 = vector.broadcast %cst_541 : f32 to vector<2x16xf32>
    %2410 = arith.addf %2409, %2408 : vector<2x16xf32>
    %2411 = arith.divf %2409, %2410 : vector<2x16xf32>
    %2412 = vector.extract_strided_slice %2399 {offsets = [0, 32], sizes = [2, 16], strides = [1, 1]} : vector<2x64xf32> to vector<2x16xf32>
    %2413 = math.tanh %2412 : vector<2x16xf32>
    %2414 = vector.extract_strided_slice %2399 {offsets = [0, 48], sizes = [2, 16], strides = [1, 1]} : vector<2x64xf32> to vector<2x16xf32>
    %2415 = arith.negf %2414 : vector<2x16xf32>
    %2416 = math.exp %2415 : vector<2x16xf32>
    %cst_542 = arith.constant 1.000000e+00 : f32
    %2417 = vector.broadcast %cst_542 : f32 to vector<2x16xf32>
    %2418 = arith.addf %2417, %2416 : vector<2x16xf32>
    %2419 = arith.divf %2417, %2418 : vector<2x16xf32>
    %2420 = arith.mulf %2411, %2384 : vector<2x16xf32>
    %2421 = arith.mulf %2405, %2413 : vector<2x16xf32>
    %2422 = arith.addf %2420, %2421 : vector<2x16xf32>
    %2423 = math.tanh %2422 : vector<2x16xf32>
    %2424 = arith.mulf %2419, %2423 : vector<2x16xf32>
    %c1_i32_543 = arith.constant 1 : i32
    %2425 = vector.broadcast %c1_i32_543 : i32 to vector<1x8x1xi32>
    %2426 = arith.cmpi eq, %919, %2425 : vector<1x8x1xi32>
    %2427 = vector.shape_cast %2424 : vector<2x16xf32> to vector<2x1x16xf32>
    %cst_544 = arith.constant 0.000000e+00 : f32
    %2428 = vector.shape_cast %2426 : vector<1x8x1xi1> to vector<1x8x1xi1>
    %2429 = vector.broadcast %2428 : vector<1x8x1xi1> to vector<2x8x16xi1>
    %2430 = vector.shape_cast %2427 : vector<2x1x16xf32> to vector<2x1x16xf32>
    %2431 = vector.broadcast %2430 : vector<2x1x16xf32> to vector<2x8x16xf32>
    %2432 = vector.broadcast %cst_544 : f32 to vector<2x8x16xf32>
    %2433 = arith.select %2429, %2431, %2432 : vector<2x8x16xi1>, vector<2x8x16xf32>
    %2434 = arith.addf %2396, %2433 : vector<2x8x16xf32>
    %2435 = vector.extract_strided_slice %693 {offsets = [0, 0], sizes = [2, 64], strides = [1, 1]} : vector<16x64xf32> to vector<2x64xf32>
    %cst_545 = arith.constant dense<0.000000e+00> : vector<2x64xf32>
    %2436 = tpu.matmul %2424, %918, %cst_545 {dimension_numbers = #tpu.dot_dimension_numbers<[1], [0], [0], [1], [0, 0, 1, 1], [], []>} : vector<2x16xf32>, vector<16x64xf32>, vector<2x64xf32> -> vector<2x64xf32>
    %2437 = arith.addf %2435, %2436 : vector<2x64xf32>
    %2438 = vector.extract_strided_slice %2437 {offsets = [0, 0], sizes = [2, 16], strides = [1, 1]} : vector<2x64xf32> to vector<2x16xf32>
    %2439 = arith.negf %2438 : vector<2x16xf32>
    %2440 = math.exp %2439 : vector<2x16xf32>
    %cst_546 = arith.constant 1.000000e+00 : f32
    %2441 = vector.broadcast %cst_546 : f32 to vector<2x16xf32>
    %2442 = arith.addf %2441, %2440 : vector<2x16xf32>
    %2443 = arith.divf %2441, %2442 : vector<2x16xf32>
    %2444 = vector.extract_strided_slice %2437 {offsets = [0, 16], sizes = [2, 16], strides = [1, 1]} : vector<2x64xf32> to vector<2x16xf32>
    %2445 = arith.negf %2444 : vector<2x16xf32>
    %2446 = math.exp %2445 : vector<2x16xf32>
    %cst_547 = arith.constant 1.000000e+00 : f32
    %2447 = vector.broadcast %cst_547 : f32 to vector<2x16xf32>
    %2448 = arith.addf %2447, %2446 : vector<2x16xf32>
    %2449 = arith.divf %2447, %2448 : vector<2x16xf32>
    %2450 = vector.extract_strided_slice %2437 {offsets = [0, 32], sizes = [2, 16], strides = [1, 1]} : vector<2x64xf32> to vector<2x16xf32>
    %2451 = math.tanh %2450 : vector<2x16xf32>
    %2452 = vector.extract_strided_slice %2437 {offsets = [0, 48], sizes = [2, 16], strides = [1, 1]} : vector<2x64xf32> to vector<2x16xf32>
    %2453 = arith.negf %2452 : vector<2x16xf32>
    %2454 = math.exp %2453 : vector<2x16xf32>
    %cst_548 = arith.constant 1.000000e+00 : f32
    %2455 = vector.broadcast %cst_548 : f32 to vector<2x16xf32>
    %2456 = arith.addf %2455, %2454 : vector<2x16xf32>
    %2457 = arith.divf %2455, %2456 : vector<2x16xf32>
    %2458 = arith.mulf %2449, %2422 : vector<2x16xf32>
    %2459 = arith.mulf %2443, %2451 : vector<2x16xf32>
    %2460 = arith.addf %2458, %2459 : vector<2x16xf32>
    %2461 = math.tanh %2460 : vector<2x16xf32>
    %2462 = arith.mulf %2457, %2461 : vector<2x16xf32>
    %c0_i32_549 = arith.constant 0 : i32
    %2463 = vector.broadcast %c0_i32_549 : i32 to vector<1x8x1xi32>
    %2464 = arith.cmpi eq, %919, %2463 : vector<1x8x1xi32>
    %2465 = vector.shape_cast %2462 : vector<2x16xf32> to vector<2x1x16xf32>
    %cst_550 = arith.constant 0.000000e+00 : f32
    %2466 = vector.shape_cast %2464 : vector<1x8x1xi1> to vector<1x8x1xi1>
    %2467 = vector.broadcast %2466 : vector<1x8x1xi1> to vector<2x8x16xi1>
    %2468 = vector.shape_cast %2465 : vector<2x1x16xf32> to vector<2x1x16xf32>
    %2469 = vector.broadcast %2468 : vector<2x1x16xf32> to vector<2x8x16xf32>
    %2470 = vector.broadcast %cst_550 : f32 to vector<2x8x16xf32>
    %2471 = arith.select %2467, %2469, %2470 : vector<2x8x16xi1>, vector<2x8x16xf32>
    %2472 = arith.addf %2434, %2471 : vector<2x8x16xf32>
    %2473 = tpu.concatenate %1000, %2472 in 2 : vector<2x8x16xf32>, vector<2x8x16xf32> -> vector<2x8x32xf32>
    %2474 = tpu.concatenate %889, %2234 in 1 : vector<2x16xf32>, vector<2x16xf32> -> vector<2x32xf32>
    %c0_551 = arith.constant 0 : index
    %c0_552 = arith.constant 0 : index
    %2475 = vector.load %arg22[%c0_551, %c0_552] : memref<32x32xf32, #tpu.memory_space<vmem>>, vector<32x32xf32>
    %cst_553 = arith.constant dense<0.000000e+00> : vector<2x32xf32>
    %2476 = tpu.matmul %2474, %2475, %cst_553 {dimension_numbers = #tpu.dot_dimension_numbers<[1], [0], [0], [1], [0, 0, 1, 1], [], []>} : vector<2x32xf32>, vector<32x32xf32>, vector<2x32xf32> -> vector<2x32xf32>
    %c0_554 = arith.constant 0 : index
    %c0_555 = arith.constant 0 : index
    %2477 = vector.load %arg23[%c0_554, %c0_555] : memref<1x32xf32, #tpu.memory_space<vmem>>, vector<1x32xf32>
    %2478 = vector.broadcast %2477 : vector<1x32xf32> to vector<2x32xf32>
    %2479 = arith.addf %2476, %2478 : vector<2x32xf32>
    %2480 = vector.shape_cast %2479 : vector<2x32xf32> to vector<2x1x32xf32>
    %2481 = vector.broadcast %2480 : vector<2x1x32xf32> to vector<2x8x32xf32>
    %2482 = arith.mulf %2481, %6 : vector<2x8x32xf32>
    %cst_556 = arith.constant dense<0.000000e+00> : vector<2x8xf32>
    %2483 = vector.multi_reduction <add>, %2482, %cst_556 [2] : vector<2x8x32xf32> to vector<2x8xf32>
    %2484 = vector.shape_cast %2483 : vector<2x8xf32> to vector<2x8x1xf32>
    %cst_557 = arith.constant dense<0xFF800000> : vector<2x1xf32>
    %2485 = vector.multi_reduction <maximumf>, %2484, %cst_557 [1] : vector<2x8x1xf32> to vector<2x1xf32>
    %2486 = vector.shape_cast %2485 : vector<2x1xf32> to vector<2x1x1xf32>
    %2487 = vector.broadcast %2486 : vector<2x1x1xf32> to vector<2x8x1xf32>
    %2488 = arith.subf %2484, %2487 : vector<2x8x1xf32>
    %2489 = math.exp %2488 : vector<2x8x1xf32>
    %cst_558 = arith.constant dense<0.000000e+00> : vector<2x1xf32>
    %2490 = vector.multi_reduction <add>, %2489, %cst_558 [1] : vector<2x8x1xf32> to vector<2x1xf32>
    %2491 = vector.shape_cast %2490 : vector<2x1xf32> to vector<2x1x1xf32>
    %2492 = tpu.reciprocal %2491 {approx = true} : vector<2x1x1xf32> -> vector<2x1x1xf32>
    %2493 = vector.broadcast %2492 : vector<2x1x1xf32> to vector<2x8x1xf32>
    %2494 = arith.mulf %2489, %2493 : vector<2x8x1xf32>
    %2495 = vector.broadcast %2494 : vector<2x8x1xf32> to vector<2x8x32xf32>
    %2496 = arith.mulf %2495, %6 : vector<2x8x32xf32>
    %cst_559 = arith.constant dense<0.000000e+00> : vector<2x32xf32>
    %2497 = vector.multi_reduction <add>, %2496, %cst_559 [1] : vector<2x8x32xf32> to vector<2x32xf32>
    %2498 = tpu.concatenate %223, %2497 in 1 : vector<2x32xf32>, vector<2x32xf32> -> vector<2x64xf32>
    %c0_560 = arith.constant 0 : index
    %c0_561 = arith.constant 0 : index
    %2499 = vector.load %arg24[%c0_560, %c0_561] : memref<64x32xf32, #tpu.memory_space<vmem>>, vector<64x32xf32>
    %cst_562 = arith.constant dense<0.000000e+00> : vector<2x32xf32>
    %2500 = tpu.matmul %2498, %2499, %cst_562 {dimension_numbers = #tpu.dot_dimension_numbers<[1], [0], [0], [1], [0, 0, 1, 1], [], []>} : vector<2x64xf32>, vector<64x32xf32>, vector<2x32xf32> -> vector<2x32xf32>
    %c0_563 = arith.constant 0 : index
    %c0_564 = arith.constant 0 : index
    %2501 = vector.load %arg25[%c0_563, %c0_564] : memref<1x32xf32, #tpu.memory_space<vmem>>, vector<1x32xf32>
    %2502 = vector.broadcast %2501 : vector<1x32xf32> to vector<2x32xf32>
    %2503 = arith.addf %2500, %2502 : vector<2x32xf32>
    %2504 = vector.shape_cast %2503 : vector<2x32xf32> to vector<2x1x32xf32>
    %2505 = vector.broadcast %2504 : vector<2x1x32xf32> to vector<2x8x32xf32>
    %2506 = arith.mulf %2505, %2473 : vector<2x8x32xf32>
    %cst_565 = arith.constant dense<0.000000e+00> : vector<2x8xf32>
    %2507 = vector.multi_reduction <add>, %2506, %cst_565 [2] : vector<2x8x32xf32> to vector<2x8xf32>
    %2508 = vector.shape_cast %2507 : vector<2x8xf32> to vector<2x8x1xf32>
    %c7_i32_566 = arith.constant 7 : i32
    %2509 = vector.broadcast %c7_i32_566 : i32 to vector<1x8x1xi32>
    %2510 = arith.cmpi slt, %919, %2509 : vector<1x8x1xi32>
    %cst_567 = arith.constant -1.000000e+30 : f32
    %2511 = vector.shape_cast %2510 : vector<1x8x1xi1> to vector<1x8x1xi1>
    %2512 = vector.broadcast %2511 : vector<1x8x1xi1> to vector<2x8x1xi1>
    %2513 = vector.broadcast %cst_567 : f32 to vector<2x8x1xf32>
    %2514 = arith.select %2512, %2508, %2513 : vector<2x8x1xi1>, vector<2x8x1xf32>
    %cst_568 = arith.constant dense<0xFF800000> : vector<2x1xf32>
    %2515 = vector.multi_reduction <maximumf>, %2514, %cst_568 [1] : vector<2x8x1xf32> to vector<2x1xf32>
    %2516 = vector.shape_cast %2515 : vector<2x1xf32> to vector<2x1x1xf32>
    %2517 = vector.broadcast %2516 : vector<2x1x1xf32> to vector<2x8x1xf32>
    %2518 = arith.subf %2514, %2517 : vector<2x8x1xf32>
    %2519 = math.exp %2518 : vector<2x8x1xf32>
    %cst_569 = arith.constant dense<0.000000e+00> : vector<2x1xf32>
    %2520 = vector.multi_reduction <add>, %2519, %cst_569 [1] : vector<2x8x1xf32> to vector<2x1xf32>
    %2521 = vector.shape_cast %2520 : vector<2x1xf32> to vector<2x1x1xf32>
    %2522 = tpu.reciprocal %2521 {approx = true} : vector<2x1x1xf32> -> vector<2x1x1xf32>
    %2523 = vector.broadcast %2522 : vector<2x1x1xf32> to vector<2x8x1xf32>
    %2524 = arith.mulf %2519, %2523 : vector<2x8x1xf32>
    %2525 = vector.broadcast %2524 : vector<2x8x1xf32> to vector<2x8x32xf32>
    %2526 = arith.mulf %2525, %2473 : vector<2x8x32xf32>
    %cst_570 = arith.constant dense<0.000000e+00> : vector<2x32xf32>
    %2527 = vector.multi_reduction <add>, %2526, %cst_570 [1] : vector<2x8x32xf32> to vector<2x32xf32>
    %2528 = tpu.concatenate %22, %223, %2206, %2497, %2527 in 1 : vector<2x32xf32>, vector<2x32xf32>, vector<2x16xf32>, vector<2x32xf32>, vector<2x32xf32> -> vector<2x144xf32>
    %c0_571 = arith.constant 0 : index
    %c0_572 = arith.constant 0 : index
    %2529 = vector.load %arg26[%c0_571, %c0_572] : memref<144x5xf32, #tpu.memory_space<vmem>>, vector<144x5xf32>
    %cst_573 = arith.constant dense<0.000000e+00> : vector<2x5xf32>
    %2530 = tpu.matmul %2528, %2529, %cst_573 {dimension_numbers = #tpu.dot_dimension_numbers<[1], [0], [0], [1], [0, 0, 1, 1], [], []>} : vector<2x144xf32>, vector<144x5xf32>, vector<2x5xf32> -> vector<2x5xf32>
    %c0_574 = arith.constant 0 : index
    %c0_575 = arith.constant 0 : index
    %2531 = vector.load %arg27[%c0_574, %c0_575] : memref<1x5xf32, #tpu.memory_space<vmem>>, vector<1x5xf32>
    %2532 = vector.broadcast %2531 : vector<1x5xf32> to vector<2x5xf32>
    %2533 = arith.addf %2530, %2532 : vector<2x5xf32>
    %c7 = arith.constant 7 : index
    %c0_576 = arith.constant 0 : index
    %c0_577 = arith.constant 0 : index
    %2534 = vector.load %arg30[%c7, %c0_576, %c0_577] : memref<8x2x5xf32, #tpu.memory_space<vmem>>, vector<1x2x5xf32>
    %2535 = vector.shape_cast %2534 : vector<1x2x5xf32> to vector<2x5xf32>
    %2536 = vector.shape_cast %2533 : vector<2x5xf32> to vector<1x2x5xf32>
    tpu.vector_store %arg30[%c7, %c0_576, %c0_577], %2536 {strides = array<i32>} : memref<8x2x5xf32, #tpu.memory_space<vmem>>, vector<1x2x5xf32>,
    return
  }
  func.func @transform_0(%arg0: i32) -> (i32, i32) {
    %c0_i32 = arith.constant 0 : i32
    %c0_i32_0 = arith.constant 0 : i32
    %c0_i32_1 = arith.constant 0 : i32
    return %c0_i32, %c0_i32_0 : i32, i32
  }
  func.func @transform_1(%arg0: i32) -> (i32, i32) {
    %c0_i32 = arith.constant 0 : i32
    %c0_i32_0 = arith.constant 0 : i32
    %c0_i32_1 = arith.constant 0 : i32
    return %c0_i32, %c0_i32_0 : i32, i32
  }
  func.func @transform_2(%arg0: i32) -> (i32, i32) {
    %c0_i32 = arith.constant 0 : i32
    %c0_i32_0 = arith.constant 0 : i32
    %c0_i32_1 = arith.constant 0 : i32
    return %c0_i32, %c0_i32_0 : i32, i32
  }
  func.func @transform_3(%arg0: i32) -> (i32, i32) {
    %c0_i32 = arith.constant 0 : i32
    %c0_i32_0 = arith.constant 0 : i32
    %c0_i32_1 = arith.constant 0 : i32
    return %c0_i32, %c0_i32_0 : i32, i32
  }
  func.func @transform_4(%arg0: i32) -> (i32, i32) {
    %c0_i32 = arith.constant 0 : i32
    %c0_i32_0 = arith.constant 0 : i32
    %c0_i32_1 = arith.constant 0 : i32
    return %c0_i32, %c0_i32_0 : i32, i32
  }
  func.func @transform_5(%arg0: i32) -> (i32, i32) {
    %c0_i32 = arith.constant 0 : i32
    %c0_i32_0 = arith.constant 0 : i32
    %c0_i32_1 = arith.constant 0 : i32
    return %c0_i32, %c0_i32_0 : i32, i32
  }
  func.func @transform_6(%arg0: i32) -> (i32, i32) {
    %c0_i32 = arith.constant 0 : i32
    %c0_i32_0 = arith.constant 0 : i32
    %c0_i32_1 = arith.constant 0 : i32
    return %c0_i32, %c0_i32_0 : i32, i32
  }
  func.func @transform_7(%arg0: i32) -> (i32, i32) {
    %c0_i32 = arith.constant 0 : i32
    %c0_i32_0 = arith.constant 0 : i32
    %c0_i32_1 = arith.constant 0 : i32
    return %c0_i32, %c0_i32_0 : i32, i32
  }
  func.func @transform_8(%arg0: i32) -> (i32, i32) {
    %c0_i32 = arith.constant 0 : i32
    %c0_i32_0 = arith.constant 0 : i32
    %c0_i32_1 = arith.constant 0 : i32
    return %c0_i32, %c0_i32_0 : i32, i32
  }
  func.func @transform_9(%arg0: i32) -> (i32, i32) {
    %c0_i32 = arith.constant 0 : i32
    %c0_i32_0 = arith.constant 0 : i32
    %c0_i32_1 = arith.constant 0 : i32
    return %c0_i32, %c0_i32_0 : i32, i32
  }
  func.func @transform_10(%arg0: i32) -> (i32, i32) {
    %c0_i32 = arith.constant 0 : i32
    %c0_i32_0 = arith.constant 0 : i32
    %c0_i32_1 = arith.constant 0 : i32
    return %c0_i32, %c0_i32_0 : i32, i32
  }
  func.func @transform_11(%arg0: i32) -> (i32, i32) {
    %c0_i32 = arith.constant 0 : i32
    %c0_i32_0 = arith.constant 0 : i32
    %c0_i32_1 = arith.constant 0 : i32
    return %c0_i32, %c0_i32_0 : i32, i32
  }
  func.func @transform_12(%arg0: i32) -> (i32, i32) {
    %c0_i32 = arith.constant 0 : i32
    %c0_i32_0 = arith.constant 0 : i32
    %c0_i32_1 = arith.constant 0 : i32
    return %c0_i32, %c0_i32_0 : i32, i32
  }
  func.func @transform_13(%arg0: i32) -> (i32, i32) {
    %c0_i32 = arith.constant 0 : i32
    %c0_i32_0 = arith.constant 0 : i32
    %c0_i32_1 = arith.constant 0 : i32
    return %c0_i32, %c0_i32_0 : i32, i32
  }
  func.func @transform_14(%arg0: i32) -> (i32, i32) {
    %c0_i32 = arith.constant 0 : i32
    %c0_i32_0 = arith.constant 0 : i32
    %c0_i32_1 = arith.constant 0 : i32
    return %c0_i32, %c0_i32_0 : i32, i32
  }
  func.func @transform_15(%arg0: i32) -> (i32, i32) {
    %c0_i32 = arith.constant 0 : i32
    %c0_i32_0 = arith.constant 0 : i32
    %c0_i32_1 = arith.constant 0 : i32
    return %c0_i32, %c0_i32_0 : i32, i32
  }
  func.func @transform_16(%arg0: i32) -> (i32, i32) {
    %c0_i32 = arith.constant 0 : i32
    %c0_i32_0 = arith.constant 0 : i32
    %c0_i32_1 = arith.constant 0 : i32
    return %c0_i32, %c0_i32_0 : i32, i32
  }
  func.func @transform_17(%arg0: i32) -> (i32, i32) {
    %c0_i32 = arith.constant 0 : i32
    %c0_i32_0 = arith.constant 0 : i32
    %c0_i32_1 = arith.constant 0 : i32
    return %c0_i32, %c0_i32_0 : i32, i32
  }
  func.func @transform_18(%arg0: i32) -> (i32, i32) {
    %c0_i32 = arith.constant 0 : i32
    %c0_i32_0 = arith.constant 0 : i32
    %c0_i32_1 = arith.constant 0 : i32
    return %c0_i32, %c0_i32_0 : i32, i32
  }
  func.func @transform_19(%arg0: i32) -> (i32, i32) {
    %c0_i32 = arith.constant 0 : i32
    %c0_i32_0 = arith.constant 0 : i32
    %c0_i32_1 = arith.constant 0 : i32
    return %c0_i32, %c0_i32_0 : i32, i32
  }
  func.func @transform_20(%arg0: i32) -> (i32, i32) {
    %c0_i32 = arith.constant 0 : i32
    %c0_i32_0 = arith.constant 0 : i32
    %c0_i32_1 = arith.constant 0 : i32
    return %c0_i32, %c0_i32_0 : i32, i32
  }
  func.func @transform_21(%arg0: i32) -> (i32, i32) {
    %c0_i32 = arith.constant 0 : i32
    %c0_i32_0 = arith.constant 0 : i32
    %c0_i32_1 = arith.constant 0 : i32
    return %c0_i32, %c0_i32_0 : i32, i32
  }
  func.func @transform_22(%arg0: i32) -> (i32, i32) {
    %c0_i32 = arith.constant 0 : i32
    %c0_i32_0 = arith.constant 0 : i32
    %c0_i32_1 = arith.constant 0 : i32
    return %c0_i32, %c0_i32_0 : i32, i32
  }
  func.func @transform_23(%arg0: i32) -> (i32, i32) {
    %c0_i32 = arith.constant 0 : i32
    %c0_i32_0 = arith.constant 0 : i32
    %c0_i32_1 = arith.constant 0 : i32
    return %c0_i32, %c0_i32_0 : i32, i32
  }
  func.func @transform_24(%arg0: i32) -> (i32, i32) {
    %c0_i32 = arith.constant 0 : i32
    %c0_i32_0 = arith.constant 0 : i32
    %c0_i32_1 = arith.constant 0 : i32
    return %c0_i32, %c0_i32_0 : i32, i32
  }
  func.func @transform_25(%arg0: i32) -> (i32, i32) {
    %c0_i32 = arith.constant 0 : i32
    %c0_i32_0 = arith.constant 0 : i32
    %c0_i32_1 = arith.constant 0 : i32
    return %c0_i32, %c0_i32_0 : i32, i32
  }
  func.func @transform_26(%arg0: i32) -> (i32, i32) {
    %c0_i32 = arith.constant 0 : i32
    %c0_i32_0 = arith.constant 0 : i32
    %c0_i32_1 = arith.constant 0 : i32
    return %c0_i32, %c0_i32_0 : i32, i32
  }
  func.func @transform_27(%arg0: i32) -> (i32, i32) {
    %c0_i32 = arith.constant 0 : i32
    %c0_i32_0 = arith.constant 0 : i32
    %c0_i32_1 = arith.constant 0 : i32
    return %c0_i32, %c0_i32_0 : i32, i32
  }
  func.func @transform_28(%arg0: i32) -> (i32, i32) {
    %c0_i32 = arith.constant 0 : i32
    %c0_i32_0 = arith.constant 0 : i32
    %c0_i32_1 = arith.constant 0 : i32
    return %c0_i32, %c0_i32_0 : i32, i32
  }
  func.func @transform_29(%arg0: i32) -> (i32, i32, i32) {
    %c0_i32 = arith.constant 0 : i32
    %c0_i32_0 = arith.constant 0 : i32
    %c0_i32_1 = arith.constant 0 : i32
    %c0_i32_2 = arith.constant 0 : i32
    return %c0_i32, %c0_i32_0, %c0_i32_1 : i32, i32, i32
  }
}

</mosaic_0001>

<llo_original>
// kernel: alsap_forward.1
$region0: #{alsap_forward.1}
  #allocation0 [shape = 'u32[]', space=smem, size = 0x4, offset = 0x4, fixed_abs, tag = 'smem constant byte address 0x4 - core index']
  #allocation1 [shape = 'u32[72,128]{1,0:T(1,128)}', space=vmem, size = 0x9000, scoped, tag = 'internal scratch']
  %s0 = inlined_call_operand.smem [shape: u32[30], index: -1, kind: input, shape index: {}]
  %s1 = sld [smem:[%s0]]
  %s2 = scalar_lea.smem %s0, 1
  %s3 = sld [smem:[%s2]]
  %s4 = scalar_lea.smem %s0, 2
  %s5 = sld [smem:[%s4]]
  %s6 = scalar_lea.smem %s0, 3
  %s7 = sld [smem:[%s6]]
  %s8 = scalar_lea.smem %s0, 4
  %s9 = sld [smem:[%s8]]
  %s10 = scalar_lea.smem %s0, 5
  %s11 = sld [smem:[%s10]]
  %s12 = scalar_lea.smem %s0, 6
  %s13 = sld [smem:[%s12]]
  %s14 = scalar_lea.smem %s0, 7
  %s15 = sld [smem:[%s14]]
  %s16 = scalar_lea.smem %s0, 8
  %s17 = sld [smem:[%s16]]
  %s18 = scalar_lea.smem %s0, 9
  %s19 = sld [smem:[%s18]]
  %s20 = scalar_lea.smem %s0, 10
  %s21 = sld [smem:[%s20]]
  %s22 = scalar_lea.smem %s0, 11
  %s23 = sld [smem:[%s22]]
  %s24 = scalar_lea.smem %s0, 12
  %s25 = sld [smem:[%s24]]
  %s26 = scalar_lea.smem %s0, 13
  %s27 = sld [smem:[%s26]]
  %s28 = scalar_lea.smem %s0, 14
  %s29 = sld [smem:[%s28]]
  %s30 = scalar_lea.smem %s0, 15
  %s31 = sld [smem:[%s30]]
  %s32 = scalar_lea.smem %s0, 16
  %s33 = sld [smem:[%s32]]
  %s34 = scalar_lea.smem %s0, 17
  %s35 = sld [smem:[%s34]]
  %s36 = scalar_lea.smem %s0, 18
  %s37 = sld [smem:[%s36]]
  %s38 = scalar_lea.smem %s0, 19
  %s39 = sld [smem:[%s38]]
  %s40 = scalar_lea.smem %s0, 20
  %s41 = sld [smem:[%s40]]
  %s42 = scalar_lea.smem %s0, 21
  %s43 = sld [smem:[%s42]]
  %s44 = scalar_lea.smem %s0, 22
  %s45 = sld [smem:[%s44]]
  %s46 = scalar_lea.smem %s0, 23
  %s47 = sld [smem:[%s46]]
  %s48 = scalar_lea.smem %s0, 24
  %s49 = sld [smem:[%s48]]
  %s50 = scalar_lea.smem %s0, 25
  %s51 = sld [smem:[%s50]]
  %s52 = scalar_lea.smem %s0, 26
  %s53 = sld [smem:[%s52]]
  %s54 = scalar_lea.smem %s0, 27
  %s55 = sld [smem:[%s54]]
  %s56 = scalar_lea.smem %s0, 28
  %s57 = sld [smem:[%s56]]
  %s58 = scalar_lea.smem %s0, 29
  %s59 = sld [smem:[%s58]]
  %s60 = sld [smem:[#allocation0]]
  $region126: #{alsap_forward.1} parent=0
    _
  %s62 = ssub.s32 1, %s60
  %s63 = scalar_select 0, %s62, %s60
  // Predicated region
  $region2: #{alsap_forward.1} parent=0 // pred_check
    _
  $region3: #{alsap_forward.1} parent=0 // pred_check_branch
    %65 = sbr.rel (0) target = $region5
  $region4: #{alsap_forward.1} parent=0 // pred_region
    _
  $region5: #{alsap_forward.1} parent=0 // pred_fallthru
    _
  // Predicated region
  $region6: #{alsap_forward.1} parent=0 // pred_check
    _
  $region7: #{alsap_forward.1} parent=0 // pred_check_branch
    %67 = sbr.rel (0) target = $region9
  $region8: #{alsap_forward.1} parent=0 // pred_region
    _
  $region9: #{alsap_forward.1} parent=0 // pred_fallthru
    _
  // Predicated region
  $region10: #{alsap_forward.1} parent=0 // pred_check
    _
  $region11: #{alsap_forward.1} parent=0 // pred_check_branch
    %69 = sbr.rel (0) target = $region13
  $region12: #{alsap_forward.1} parent=0 // pred_region
    _
  $region13: #{alsap_forward.1} parent=0 // pred_fallthru
    _
  // Predicated region
  $region14: #{alsap_forward.1} parent=0 // pred_check
    _
  $region15: #{alsap_forward.1} parent=0 // pred_check_branch
    %71 = sbr.rel (0) target = $region17
  $region16: #{alsap_forward.1} parent=0 // pred_region
    _
  $region17: #{alsap_forward.1} parent=0 // pred_fallthru
    _
  // Predicated region
  $region18: #{alsap_forward.1} parent=0 // pred_check
    _
  $region19: #{alsap_forward.1} parent=0 // pred_check_branch
    %73 = sbr.rel (0) target = $region21
  $region20: #{alsap_forward.1} parent=0 // pred_region
    _
  $region21: #{alsap_forward.1} parent=0 // pred_fallthru
    _
  // Predicated region
  $region22: #{alsap_forward.1} parent=0 // pred_check
    _
  $region23: #{alsap_forward.1} parent=0 // pred_check_branch
    %75 = sbr.rel (0) target = $region25
  $region24: #{alsap_forward.1} parent=0 // pred_region
    _
  $region25: #{alsap_forward.1} parent=0 // pred_fallthru
    _
  // Predicated region
  $region26: #{alsap_forward.1} parent=0 // pred_check
    _
  $region27: #{alsap_forward.1} parent=0 // pred_check_branch
    %77 = sbr.rel (0) target = $region29
  $region28: #{alsap_forward.1} parent=0 // pred_region
    _
  $region29: #{alsap_forward.1} parent=0 // pred_fallthru
    _
  // Predicated region
  $region30: #{alsap_forward.1} parent=0 // pred_check
    _
  $region31: #{alsap_forward.1} parent=0 // pred_check_branch
    %79 = sbr.rel (0) target = $region33
  $region32: #{alsap_forward.1} parent=0 // pred_region
    _
  $region33: #{alsap_forward.1} parent=0 // pred_fallthru
    _
  // Predicated region
  $region34: #{alsap_forward.1} parent=0 // pred_check
    _
  $region35: #{alsap_forward.1} parent=0 // pred_check_branch
    %81 = sbr.rel (0) target = $region37
  $region36: #{alsap_forward.1} parent=0 // pred_region
    _
  $region37: #{alsap_forward.1} parent=0 // pred_fallthru
    _
  // Predicated region
  $region38: #{alsap_forward.1} parent=0 // pred_check
    _
  $region39: #{alsap_forward.1} parent=0 // pred_check_branch
    %83 = sbr.rel (0) target = $region41
  $region40: #{alsap_forward.1} parent=0 // pred_region
    _
  $region41: #{alsap_forward.1} parent=0 // pred_fallthru
    _
  // Predicated region
  $region42: #{alsap_forward.1} parent=0 // pred_check
    _
  $region43: #{alsap_forward.1} parent=0 // pred_check_branch
    %85 = sbr.rel (0) target = $region45
  $region44: #{alsap_forward.1} parent=0 // pred_region
    _
  $region45: #{alsap_forward.1} parent=0 // pred_fallthru
    _
  // Predicated region
  $region46: #{alsap_forward.1} parent=0 // pred_check
    _
  $region47: #{alsap_forward.1} parent=0 // pred_check_branch
    %87 = sbr.rel (0) target = $region49
  $region48: #{alsap_forward.1} parent=0 // pred_region
    _
  $region49: #{alsap_forward.1} parent=0 // pred_fallthru
    _
  // Predicated region
  $region50: #{alsap_forward.1} parent=0 // pred_check
    _
  $region51: #{alsap_forward.1} parent=0 // pred_check_branch
    %89 = sbr.rel (0) target = $region53
  $region52: #{alsap_forward.1} parent=0 // pred_region
    _
  $region53: #{alsap_forward.1} parent=0 // pred_fallthru
    _
  // Predicated region
  $region54: #{alsap_forward.1} parent=0 // pred_check
    _
  $region55: #{alsap_forward.1} parent=0 // pred_check_branch
    %91 = sbr.rel (0) target = $region57
  $region56: #{alsap_forward.1} parent=0 // pred_region
    _
  $region57: #{alsap_forward.1} parent=0 // pred_fallthru
    _
  // Predicated region
  $region58: #{alsap_forward.1} parent=0 // pred_check
    _
  $region59: #{alsap_forward.1} parent=0 // pred_check_branch
    %93 = sbr.rel (0) target = $region61
  $region60: #{alsap_forward.1} parent=0 // pred_region
    _
  $region61: #{alsap_forward.1} parent=0 // pred_fallthru
    _
  // Predicated region
  $region62: #{alsap_forward.1} parent=0 // pred_check
    _
  $region63: #{alsap_forward.1} parent=0 // pred_check_branch
    %95 = sbr.rel (0) target = $region65
  $region64: #{alsap_forward.1} parent=0 // pred_region
    _
  $region65: #{alsap_forward.1} parent=0 // pred_fallthru
    _
  // Predicated region
  $region66: #{alsap_forward.1} parent=0 // pred_check
    _
  $region67: #{alsap_forward.1} parent=0 // pred_check_branch
    %97 = sbr.rel (0) target = $region69
  $region68: #{alsap_forward.1} parent=0 // pred_region
    _
  $region69: #{alsap_forward.1} parent=0 // pred_fallthru
    _
  // Predicated region
  $region70: #{alsap_forward.1} parent=0 // pred_check
    _
  $region71: #{alsap_forward.1} parent=0 // pred_check_branch
    %99 = sbr.rel (0) target = $region73
  $region72: #{alsap_forward.1} parent=0 // pred_region
    _
  $region73: #{alsap_forward.1} parent=0 // pred_fallthru
    _
  // Predicated region
  $region74: #{alsap_forward.1} parent=0 // pred_check
    _
  $region75: #{alsap_forward.1} parent=0 // pred_check_branch
    %101 = sbr.rel (0) target = $region77
  $region76: #{alsap_forward.1} parent=0 // pred_region
    _
  $region77: #{alsap_forward.1} parent=0 // pred_fallthru
    _
  // Predicated region
  $region78: #{alsap_forward.1} parent=0 // pred_check
    _
  $region79: #{alsap_forward.1} parent=0 // pred_check_branch
    %103 = sbr.rel (0) target = $region81
  $region80: #{alsap_forward.1} parent=0 // pred_region
    _
  $region81: #{alsap_forward.1} parent=0 // pred_fallthru
    _
  // Predicated region
  $region82: #{alsap_forward.1} parent=0 // pred_check
    _
  $region83: #{alsap_forward.1} parent=0 // pred_check_branch
    %105 = sbr.rel (0) target = $region85
  $region84: #{alsap_forward.1} parent=0 // pred_region
    _
  $region85: #{alsap_forward.1} parent=0 // pred_fallthru
    _
  // Predicated region
  $region86: #{alsap_forward.1} parent=0 // pred_check
    _
  $region87: #{alsap_forward.1} parent=0 // pred_check_branch
    %107 = sbr.rel (0) target = $region89
  $region88: #{alsap_forward.1} parent=0 // pred_region
    _
  $region89: #{alsap_forward.1} parent=0 // pred_fallthru
    _
  // Predicated region
  $region90: #{alsap_forward.1} parent=0 // pred_check
    _
  $region91: #{alsap_forward.1} parent=0 // pred_check_branch
    %109 = sbr.rel (0) target = $region93
  $region92: #{alsap_forward.1} parent=0 // pred_region
    _
  $region93: #{alsap_forward.1} parent=0 // pred_fallthru
    _
  // Predicated region
  $region94: #{alsap_forward.1} parent=0 // pred_check
    _
  $region95: #{alsap_forward.1} parent=0 // pred_check_branch
    %111 = sbr.rel (0) target = $region97
  $region96: #{alsap_forward.1} parent=0 // pred_region
    _
  $region97: #{alsap_forward.1} parent=0 // pred_fallthru
    _
  // Predicated region
  $region98: #{alsap_forward.1} parent=0 // pred_check
    _
  $region99: #{alsap_forward.1} parent=0 // pred_check_branch
    %113 = sbr.rel (0) target = $region101
  $region100: #{alsap_forward.1} parent=0 // pred_region
    _
  $region101: #{alsap_forward.1} parent=0 // pred_fallthru
    _
  // Predicated region
  $region102: #{alsap_forward.1} parent=0 // pred_check
    _
  $region103: #{alsap_forward.1} parent=0 // pred_check_branch
    %115 = sbr.rel (0) target = $region105
  $region104: #{alsap_forward.1} parent=0 // pred_region
    _
  $region105: #{alsap_forward.1} parent=0 // pred_fallthru
    _
  // Predicated region
  $region106: #{alsap_forward.1} parent=0 // pred_check
    _
  $region107: #{alsap_forward.1} parent=0 // pred_check_branch
    %117 = sbr.rel (0) target = $region109
  $region108: #{alsap_forward.1} parent=0 // pred_region
    _
  $region109: #{alsap_forward.1} parent=0 // pred_fallthru
    _
  // Predicated region
  $region110: #{alsap_forward.1} parent=0 // pred_check
    _
  $region111: #{alsap_forward.1} parent=0 // pred_check_branch
    %119 = sbr.rel (0) target = $region113
  $region112: #{alsap_forward.1} parent=0 // pred_region
    _
  $region113: #{alsap_forward.1} parent=0 // pred_fallthru
    _
  // Predicated region
  $region114: #{alsap_forward.1} parent=0 // pred_check
    _
  $region115: #{alsap_forward.1} parent=0 // pred_check_branch
    %121 = sbr.rel (0) target = $region117
  $region116: #{alsap_forward.1} parent=0 // pred_region
    _
  $region117: #{alsap_forward.1} parent=0 // pred_fallthru
    _
  %v122 = vld [vmem:[%s1] sm:$0xff]
  %v123 = vld [vmem:[%s1 + $0x8] sm:$0xff]
  %v124 = vld [vmem:[%s1 + $0x10] sm:$0xff]
  %v125 = vld [vmem:[%s1 + $0x18] sm:$0xff]
  %v126 = vld [vmem:[%s1 + $0x20] sm:$0xff]
  %v127 = vld [vmem:[%s1 + $0x28] sm:$0xff]
  %v128 = vld [vmem:[%s3] sm:$0xf]
  %v129 = vld [vmem:[%s3 + $0x4] sm:$0xf]
  %v130 = vld [vmem:[%s3 + $0x8] sm:$0xf]
  %v131 = vld [vmem:[%s3 + $0xc] sm:$0xf]
  %v132 = vld [vmem:[%s3 + $0x10] sm:$0xf]
  %v133 = vld [vmem:[%s3 + $0x14] sm:$0xf]
  %v134 = vld [vmem:[%s3 + $0x18] sm:$0xf]
  %v135 = vld [vmem:[%s3 + $0x1c] sm:$0xf]
  %v136 = vld [vmem:[%s3 + $0x20] sm:$0xf]
  %v137 = vld [vmem:[%s3 + $0x24] sm:$0xf]
  %v138 = vld [vmem:[%s3 + $0x28] sm:$0xf]
  %v139 = vld [vmem:[%s3 + $0x2c] sm:$0xf]
  %v140 = vld [vmem:[%s3 + $0x30] sm:$0xf]
  %v141 = vld [vmem:[%s3 + $0x34] sm:$0xf]
  %v142 = vld [vmem:[%s3 + $0x38] sm:$0xf]
  %v143 = vld [vmem:[%s3 + $0x3c] sm:$0xf]
  %v144 = vld [vmem:[%s3 + $0x40] sm:$0xf]
  %v145 = vld [vmem:[%s3 + $0x44] sm:$0xf]
  %v146 = vld [vmem:[%s3 + $0x48] sm:$0xf]
  %v147 = vld [vmem:[%s3 + $0x4c] sm:$0xf]
  %v148 = vld [vmem:[%s3 + $0x50] sm:$0xf]
  %v149 = vld [vmem:[%s3 + $0x54] sm:$0xf]
  %v150 = vld [vmem:[%s3 + $0x58] sm:$0xf]
  %v151 = vld [vmem:[%s3 + $0x5c] sm:$0xf]
  %v152 = vld [vmem:[%s3 + $0x60] sm:$0xf]
  %v153 = vld [vmem:[%s3 + $0x64] sm:$0xf]
  %v154 = vld [vmem:[%s3 + $0x68] sm:$0xf]
  %v155 = vld [vmem:[%s3 + $0x6c] sm:$0xf]
  %v156 = vld [vmem:[%s3 + $0x70] sm:$0xf]
  %v157 = vld [vmem:[%s3 + $0x74] sm:$0xf]
  %v158 = vld [vmem:[%s3 + $0x78] sm:$0xf]
  %v159 = vld [vmem:[%s3 + $0x7c] sm:$0xf]
  %v160 = vld [vmem:[%s3 + $0x80] sm:$0xf]
  %v161 = vld [vmem:[%s3 + $0x84] sm:$0xf]
  %v162 = vld [vmem:[%s3 + $0x88] sm:$0xf]
  %v163 = vld [vmem:[%s3 + $0x8c] sm:$0xf]
  %v164 = vld [vmem:[%s3 + $0x90] sm:$0xf]
  %v165 = vld [vmem:[%s3 + $0x94] sm:$0xf]
  %v166 = vld [vmem:[%s3 + $0x98] sm:$0xf]
  %v167 = vld [vmem:[%s3 + $0x9c] sm:$0xf]
  %v168 = vld [vmem:[%s3 + $0xa0] sm:$0xf]
  %v169 = vld [vmem:[%s3 + $0xa4] sm:$0xf]
  %v170 = vld [vmem:[%s3 + $0xa8] sm:$0xf]
  %v171 = vld [vmem:[%s3 + $0xac] sm:$0xf]
  %v172 = vld [vmem:[%s3 + $0xb0] sm:$0xf]
  %v173 = vld [vmem:[%s3 + $0xb4] sm:$0xf]
  %v174 = vld [vmem:[%s3 + $0xb8] sm:$0xf]
  %v175 = vld [vmem:[%s3 + $0xbc] sm:$0xf]
  %v176 = vld [vmem:[%s3 + $0xc0] sm:$0xf]
  %v177 = vld [vmem:[%s3 + $0xc4] sm:$0xf]
  %v178 = vld [vmem:[%s3 + $0xc8] sm:$0xf]
  %v179 = vld [vmem:[%s3 + $0xcc] sm:$0xf]
  %v180 = vld [vmem:[%s3 + $0xd0] sm:$0xf]
  %v181 = vld [vmem:[%s3 + $0xd4] sm:$0xf]
  %v182 = vld [vmem:[%s3 + $0xd8] sm:$0xf]
  %v183 = vld [vmem:[%s3 + $0xdc] sm:$0xf]
  %v184 = vld [vmem:[%s3 + $0xe0] sm:$0xf]
  %v185 = vld [vmem:[%s3 + $0xe4] sm:$0xf]
  %v186 = vld [vmem:[%s3 + $0xe8] sm:$0xf]
  %v187 = vld [vmem:[%s3 + $0xec] sm:$0xf]
  %v188 = vld [vmem:[%s3 + $0xf0] sm:$0xf]
  %v189 = vld [vmem:[%s3 + $0xf4] sm:$0xf]
  %v190 = vld [vmem:[%s3 + $0xf8] sm:$0xf]
  %v191 = vld [vmem:[%s3 + $0xfc] sm:$0xf]
  %v192 = vld [vmem:[%s3 + $0x100] sm:$0xf]
  %v193 = vld [vmem:[%s3 + $0x104] sm:$0xf]
  %v194 = vld [vmem:[%s3 + $0x108] sm:$0xf]
  %v195 = vld [vmem:[%s3 + $0x10c] sm:$0xf]
  %v196 = vld [vmem:[%s3 + $0x110] sm:$0xf]
  %v197 = vld [vmem:[%s3 + $0x114] sm:$0xf]
  %v198 = vld [vmem:[%s3 + $0x118] sm:$0xf]
  %v199 = vld [vmem:[%s3 + $0x11c] sm:$0xf]
  %v200 = vld [vmem:[%s3 + $0x120] sm:$0xf]
  %v201 = vld [vmem:[%s3 + $0x124] sm:$0xf]
  %v202 = vld [vmem:[%s3 + $0x128] sm:$0xf]
  %v203 = vld [vmem:[%s3 + $0x12c] sm:$0xf]
  %v204 = vld [vmem:[%s3 + $0x130] sm:$0xf]
  %v205 = vld [vmem:[%s3 + $0x134] sm:$0xf]
  %v206 = vld [vmem:[%s3 + $0x138] sm:$0xf]
  %v207 = vld [vmem:[%s3 + $0x13c] sm:$0xf]
  %v208 = vld [vmem:[%s3 + $0x140] sm:$0xf]
  %v209 = vld [vmem:[%s3 + $0x144] sm:$0xf]
  %v210 = vld [vmem:[%s3 + $0x148] sm:$0xf]
  %v211 = vld [vmem:[%s3 + $0x14c] sm:$0xf]
  %v212 = vld [vmem:[%s3 + $0x150] sm:$0xf]
  %v213 = vld [vmem:[%s3 + $0x154] sm:$0xf]
  %v214 = vld [vmem:[%s3 + $0x158] sm:$0xf]
  %v215 = vld [vmem:[%s3 + $0x15c] sm:$0xf]
  %v216 = vld [vmem:[%s3 + $0x160] sm:$0xf]
  %v217 = vld [vmem:[%s3 + $0x164] sm:$0xf]
  %v218 = vld [vmem:[%s3 + $0x168] sm:$0xf]
  %v219 = vld [vmem:[%s3 + $0x16c] sm:$0xf]
  %v220 = vld [vmem:[%s3 + $0x170] sm:$0xf]
  %v221 = vld [vmem:[%s3 + $0x174] sm:$0xf]
  %v222 = vld [vmem:[%s3 + $0x178] sm:$0xf]
  %v223 = vld [vmem:[%s3 + $0x17c] sm:$0xf]
  %v224 = vld [vmem:[%s5] sm:$0x1]
  %v226 = vperm.slane %v224, 0
  %v234 = vunpack.c.l.b16 %v122
  %v235 = vunpack.c.h.b16 %v122
  %v236 = vunpack.c.l.b16 %v123
  %v237 = vunpack.c.h.b16 %v123
  %v238 = vunpack.c.l.b16 %v124
  %v239 = vunpack.c.h.b16 %v124
  %v240 = vunpack.c.l.b16 %v125
  %v241 = vunpack.c.h.b16 %v125
  %v242 = vunpack.c.l.b16 %v126
  %v243 = vunpack.c.h.b16 %v126
  %v244 = vunpack.c.l.b16 %v127
  %v245 = vunpack.c.h.b16 %v127
  %v246 = vpack.c.b16 %v240, %v234
  %v247 = vpack.c.b16 %v241, %v235
  %v248 = vpack.c.b16 %v242, %v236
  %v249 = vpack.c.b16 %v243, %v237
  %v250 = vpack.c.b16 %v244, %v238
  %v251 = vpack.c.b16 %v245, %v239
  %v354 = vunpack.c.l.b16 %v128
  %v355 = vunpack.c.l.b16 %v129
  %v356 = vunpack.c.l.b16 %v130
  %v357 = vunpack.c.l.b16 %v131
  %v358 = vunpack.c.l.b16 %v132
  %v359 = vunpack.c.l.b16 %v133
  %v360 = vunpack.c.l.b16 %v134
  %v361 = vunpack.c.l.b16 %v135
  %v362 = vunpack.c.l.b16 %v136
  %v363 = vunpack.c.l.b16 %v137
  %v364 = vunpack.c.l.b16 %v138
  %v365 = vunpack.c.l.b16 %v139
  %v366 = vunpack.c.l.b16 %v140
  %v367 = vunpack.c.l.b16 %v141
  %v368 = vunpack.c.l.b16 %v142
  %v369 = vunpack.c.l.b16 %v143
  %v370 = vunpack.c.l.b16 %v144
  %v371 = vunpack.c.l.b16 %v145
  %v372 = vunpack.c.l.b16 %v146
  %v373 = vunpack.c.l.b16 %v147
  %v374 = vunpack.c.l.b16 %v148
  %v375 = vunpack.c.l.b16 %v149
  %v376 = vunpack.c.l.b16 %v150
  %v377 = vunpack.c.l.b16 %v151
  %v378 = vunpack.c.l.b16 %v152
  %v379 = vunpack.c.l.b16 %v153
  %v380 = vunpack.c.l.b16 %v154
  %v381 = vunpack.c.l.b16 %v155
  %v382 = vunpack.c.l.b16 %v156
  %v383 = vunpack.c.l.b16 %v157
  %v384 = vunpack.c.l.b16 %v158
  %v385 = vunpack.c.l.b16 %v159
  %v386 = vunpack.c.l.b16 %v160
  %v387 = vunpack.c.l.b16 %v161
  %v388 = vunpack.c.l.b16 %v162
  %v389 = vunpack.c.l.b16 %v163
  %v390 = vunpack.c.l.b16 %v164
  %v391 = vunpack.c.l.b16 %v165
  %v392 = vunpack.c.l.b16 %v166
  %v393 = vunpack.c.l.b16 %v167
  %v394 = vunpack.c.l.b16 %v168
  %v395 = vunpack.c.l.b16 %v169
  %v396 = vunpack.c.l.b16 %v170
  %v397 = vunpack.c.l.b16 %v171
  %v398 = vunpack.c.l.b16 %v172
  %v399 = vunpack.c.l.b16 %v173
  %v400 = vunpack.c.l.b16 %v174
  %v401 = vunpack.c.l.b16 %v175
  %v402 = vunpack.c.l.b16 %v176
  %v403 = vunpack.c.l.b16 %v177
  %v404 = vunpack.c.l.b16 %v178
  %v405 = vunpack.c.l.b16 %v179
  %v406 = vunpack.c.l.b16 %v180
  %v407 = vunpack.c.l.b16 %v181
  %v408 = vunpack.c.l.b16 %v182
  %v409 = vunpack.c.l.b16 %v183
  %v410 = vunpack.c.l.b16 %v184
  %v411 = vunpack.c.l.b16 %v185
  %v412 = vunpack.c.l.b16 %v186
  %v413 = vunpack.c.l.b16 %v187
  %v414 = vunpack.c.l.b16 %v188
  %v415 = vunpack.c.l.b16 %v189
  %v416 = vunpack.c.l.b16 %v190
  %v417 = vunpack.c.l.b16 %v191
  %v418 = vunpack.c.l.b16 %v192
  %v419 = vunpack.c.l.b16 %v193
  %v420 = vunpack.c.l.b16 %v194
  %v421 = vunpack.c.l.b16 %v195
  %v422 = vunpack.c.l.b16 %v196
  %v423 = vunpack.c.l.b16 %v197
  %v424 = vunpack.c.l.b16 %v198
  %v425 = vunpack.c.l.b16 %v199
  %v426 = vunpack.c.l.b16 %v200
  %v427 = vunpack.c.l.b16 %v201
  %v428 = vunpack.c.l.b16 %v202
  %v429 = vunpack.c.l.b16 %v203
  %v430 = vunpack.c.l.b16 %v204
  %v431 = vunpack.c.l.b16 %v205
  %v432 = vunpack.c.l.b16 %v206
  %v433 = vunpack.c.l.b16 %v207
  %v434 = vunpack.c.l.b16 %v208
  %v435 = vunpack.c.l.b16 %v209
  %v436 = vunpack.c.l.b16 %v210
  %v437 = vunpack.c.l.b16 %v211
  %v438 = vunpack.c.l.b16 %v212
  %v439 = vunpack.c.l.b16 %v213
  %v440 = vunpack.c.l.b16 %v214
  %v441 = vunpack.c.l.b16 %v215
  %v442 = vunpack.c.l.b16 %v216
  %v443 = vunpack.c.l.b16 %v217
  %v444 = vunpack.c.l.b16 %v218
  %v445 = vunpack.c.l.b16 %v219
  %v446 = vunpack.c.l.b16 %v220
  %v447 = vunpack.c.l.b16 %v221
  %v448 = vunpack.c.l.b16 %v222
  %v449 = vunpack.c.l.b16 %v223
  %v450 = vpack.c.b16 %v355, %v354
  %v451 = vpack.c.b16 %v357, %v356
  %v452 = vpack.c.b16 %v359, %v358
  %v453 = vpack.c.b16 %v361, %v360
  %v454 = vpack.c.b16 %v363, %v362
  %v455 = vpack.c.b16 %v365, %v364
  %v456 = vpack.c.b16 %v367, %v366
  %v457 = vpack.c.b16 %v369, %v368
  %v458 = vpack.c.b16 %v371, %v370
  %v459 = vpack.c.b16 %v373, %v372
  %v460 = vpack.c.b16 %v375, %v374
  %v461 = vpack.c.b16 %v377, %v376
  %v462 = vpack.c.b16 %v379, %v378
  %v463 = vpack.c.b16 %v381, %v380
  %v464 = vpack.c.b16 %v383, %v382
  %v465 = vpack.c.b16 %v385, %v384
  %v466 = vpack.c.b16 %v387, %v386
  %v467 = vpack.c.b16 %v389, %v388
  %v468 = vpack.c.b16 %v391, %v390
  %v469 = vpack.c.b16 %v393, %v392
  %v470 = vpack.c.b16 %v395, %v394
  %v471 = vpack.c.b16 %v397, %v396
  %v472 = vpack.c.b16 %v399, %v398
  %v473 = vpack.c.b16 %v401, %v400
  %v474 = vpack.c.b16 %v403, %v402
  %v475 = vpack.c.b16 %v405, %v404
  %v476 = vpack.c.b16 %v407, %v406
  %v477 = vpack.c.b16 %v409, %v408
  %v478 = vpack.c.b16 %v411, %v410
  %v479 = vpack.c.b16 %v413, %v412
  %v480 = vpack.c.b16 %v415, %v414
  %v481 = vpack.c.b16 %v417, %v416
  %v482 = vpack.c.b16 %v419, %v418
  %v483 = vpack.c.b16 %v421, %v420
  %v484 = vpack.c.b16 %v423, %v422
  %v485 = vpack.c.b16 %v425, %v424
  %v486 = vpack.c.b16 %v427, %v426
  %v487 = vpack.c.b16 %v429, %v428
  %v488 = vpack.c.b16 %v431, %v430
  %v489 = vpack.c.b16 %v433, %v432
  %v490 = vpack.c.b16 %v435, %v434
  %v491 = vpack.c.b16 %v437, %v436
  %v492 = vpack.c.b16 %v439, %v438
  %v493 = vpack.c.b16 %v441, %v440
  %v494 = vpack.c.b16 %v443, %v442
  %v495 = vpack.c.b16 %v445, %v444
  %v496 = vpack.c.b16 %v447, %v446
  %v497 = vpack.c.b16 %v449, %v448
  %546 = vmatpush.bf16.msra.mxu0 %v457
  %547 = vmatpush.bf16.msra.mxu0 %v456
  %548 = vmatpush.bf16.msra.mxu0 %v455
  %549 = vmatpush.bf16.msra.mxu0 %v454
  %550 = vmatpush.bf16.msra.mxu0 %v453
  %551 = vmatpush.bf16.msra.mxu0 %v452
  %552 = vmatpush.bf16.msra.mxu0 %v451
  %553 = vmatpush.bf16.msra.mxu0 %v450
  %554 = vmatmul.bf16.gmra.mxu0 %v246
  %v555 = vpop.f32.mrf.mxu0
  %v556 = vadd.f32 %v226, %v555
  %v557 = vpop.f32.mrf.mxu0
  %v558 = vadd.f32 %v226, %v557
  %559 = vdwg.mxu0
  %560 = vmatpush.bf16.msra.mxu0 %v465
  %561 = vmatpush.bf16.msra.mxu0 %v464
  %562 = vmatpush.bf16.msra.mxu0 %v463
  %563 = vmatpush.bf16.msra.mxu0 %v462
  %564 = vmatpush.bf16.msra.mxu0 %v461
  %565 = vmatpush.bf16.msra.mxu0 %v460
  %566 = vmatpush.bf16.msra.mxu0 %v459
  %567 = vmatpush.bf16.msra.mxu0 %v458
  %568 = vmatmul.bf16.gmra.mxu0 %v247
  %v569 = vpop.f32.mrf.mxu0
  %v570 = vadd.f32 %v556, %v569
  %v571 = vpop.f32.mrf.mxu0
  %v572 = vadd.f32 %v558, %v571
  %573 = vdwg.mxu0
  %574 = vmatpush.bf16.msra.mxu0 %v473
  %575 = vmatpush.bf16.msra.mxu0 %v472
  %576 = vmatpush.bf16.msra.mxu0 %v471
  %577 = vmatpush.bf16.msra.mxu0 %v470
  %578 = vmatpush.bf16.msra.mxu0 %v469
  %579 = vmatpush.bf16.msra.mxu0 %v468
  %580 = vmatpush.bf16.msra.mxu0 %v467
  %581 = vmatpush.bf16.msra.mxu0 %v466
  %582 = vmatmul.bf16.gmra.mxu0 %v248
  %v583 = vpop.f32.mrf.mxu0
  %v584 = vadd.f32 %v570, %v583
  %v585 = vpop.f32.mrf.mxu0
  %v586 = vadd.f32 %v572, %v585
  %587 = vdwg.mxu0
  %588 = vmatpush.bf16.msra.mxu0 %v481
  %589 = vmatpush.bf16.msra.mxu0 %v480
  %590 = vmatpush.bf16.msra.mxu0 %v479
  %591 = vmatpush.bf16.msra.mxu0 %v478
  %592 = vmatpush.bf16.msra.mxu0 %v477
  %593 = vmatpush.bf16.msra.mxu0 %v476
  %594 = vmatpush.bf16.msra.mxu0 %v475
  %595 = vmatpush.bf16.msra.mxu0 %v474
  %596 = vmatmul.bf16.gmra.mxu0 %v249
  %v597 = vpop.f32.mrf.mxu0
  %v598 = vadd.f32 %v584, %v597
  %v599 = vpop.f32.mrf.mxu0
  %v600 = vadd.f32 %v586, %v599
  %601 = vdwg.mxu0
  %602 = vmatpush.bf16.msra.mxu0 %v489
  %603 = vmatpush.bf16.msra.mxu0 %v488
  %604 = vmatpush.bf16.msra.mxu0 %v487
  %605 = vmatpush.bf16.msra.mxu0 %v486
  %606 = vmatpush.bf16.msra.mxu0 %v485
  %607 = vmatpush.bf16.msra.mxu0 %v484
  %608 = vmatpush.bf16.msra.mxu0 %v483
  %609 = vmatpush.bf16.msra.mxu0 %v482
  %610 = vmatmul.bf16.gmra.mxu0 %v250
  %v611 = vpop.f32.mrf.mxu0
  %v612 = vadd.f32 %v598, %v611
  %v613 = vpop.f32.mrf.mxu0
  %v614 = vadd.f32 %v600, %v613
  %615 = vdwg.mxu0
  %616 = vmatpush.bf16.msra.mxu0 %v497
  %617 = vmatpush.bf16.msra.mxu0 %v496
  %618 = vmatpush.bf16.msra.mxu0 %v495
  %619 = vmatpush.bf16.msra.mxu0 %v494
  %620 = vmatpush.bf16.msra.mxu0 %v493
  %621 = vmatpush.bf16.msra.mxu0 %v492
  %622 = vmatpush.bf16.msra.mxu0 %v491
  %623 = vmatpush.bf16.msra.mxu0 %v490
  %624 = vmatmul.bf16.gmra.mxu0 %v251
  %v625 = vpop.f32.mrf.mxu0
  %v626 = vadd.f32 %v612, %v625
  %v627 = vpop.f32.mrf.mxu0
  %v628 = vadd.f32 %v614, %v627
  %629 = vdwg.mxu0
  %v630 = vld [vmem:[%s7] sm:$0xff]
  %v631 = vld [vmem:[%s7 + $0x8] sm:$0xff]
  %v632 = vld [vmem:[%s7 + $0x10] sm:$0xff]
  %v633 = vld [vmem:[%s7 + $0x18] sm:$0xff]
  %v634 = vld [vmem:[%s7 + $0x20] sm:$0xff]
  %v635 = vld [vmem:[%s7 + $0x28] sm:$0xff]
  %v636 = vld [vmem:[%s7 + $0x30] sm:$0xff]
  %v637 = vld [vmem:[%s7 + $0x38] sm:$0xff]
  %v638 = vld [vmem:[%s7 + $0x40] sm:$0xff]
  %v639 = vld [vmem:[%s7 + $0x48] sm:$0xff]
  %v640 = vld [vmem:[%s7 + $0x50] sm:$0xff]
  %v641 = vld [vmem:[%s7 + $0x58] sm:$0xff]
  %v642 = vld [vmem:[%s9] sm:$0x1]
  %v645 = vrot.slane %v626, 1
  %vm646 = vcmask 1041409
  %v647 = vsel %vm646, %v628, %v645
  %vm648 = vcmask 261120
  %v649 = vsel %vm648, %v647, 0
  %651 = vmatpush.msra.mxu0 0.0
  %652 = vmatpush.msra.mxu0 0.0
  %653 = vmatpush.msra.mxu0 0.0
  %654 = vmatpush.msra.mxu0 0.0
  %655 = vmatpush.msra.mxu0 0.0
  %656 = vmatpush.msra.mxu0 0.0
  %657 = vmatpush.msra.mxu0 0.0
  %658 = vmatpush.msra.mxu0 0.0
  %659 = vmatpush.msra.mxu0 0.0
  %660 = vmatpush.msra.mxu0 0.0
  %661 = vmatpush.msra.mxu0 0.0
  %662 = vmatpush.msra.mxu0 0.0
  %663 = vmatpush.msra.mxu0 %v637
  %664 = vmatpush.msra.mxu0 %v636
  %665 = vmatpush.msra.mxu0 %v635
  %666 = vmatpush.msra.mxu0 %v634
  %667 = vmatmul.f32.gmra.mxu0 %v649
  %v668 = vpop.f32.mrf.mxu0
  %v669 = vadd.f32 0.0, %v668
  %670 = vdwg.mxu0
  %v671 = vrot.slane %v628, 7
  %v672 = vsel %vm646, %v671, %v626
  %v673 = vsel %vm648, %v672, 0
  %675 = vmatpush.msra.mxu0 0.0
  %676 = vmatpush.msra.mxu0 0.0
  %677 = vmatpush.msra.mxu0 0.0
  %678 = vmatpush.msra.mxu0 0.0
  %679 = vmatpush.msra.mxu0 0.0
  %680 = vmatpush.msra.mxu0 0.0
  %681 = vmatpush.msra.mxu0 0.0
  %682 = vmatpush.msra.mxu0 0.0
  %683 = vmatpush.msra.mxu0 0.0
  %684 = vmatpush.msra.mxu0 0.0
  %685 = vmatpush.msra.mxu0 0.0
  %686 = vmatpush.msra.mxu0 0.0
  %687 = vmatpush.msra.mxu0 %v633
  %688 = vmatpush.msra.mxu0 %v632
  %689 = vmatpush.msra.mxu0 %v631
  %690 = vmatpush.msra.mxu0 %v630
  %691 = vmatmul.f32.gmra.mxu0 %v673
  %v692 = vpop.f32.mrf.mxu0
  %v693 = vadd.f32 %v669, %v692
  %694 = vdwg.mxu0
  %v696 = vperm.slane %v642, 0
  %v698 = vadd.f32 %v693, %v696
  %v700 = vrot.slane %v698, 1
  %v701 = vperm.slane %v698, 0
  %v702 = vperm.slane %v700, 0
  %v705 = vmul.f32 %v701, %v626
  %v706 = vmul.f32 %v702, %v628
  %v707 = vsel %vm648, %v705, 0.0
  %708 = vadd.xlane.f32.xlu0 %v707
  %v709 = vpop.xlane.xlu0 %708
  %v710 = vsel %vm648, %v706, 0.0
  %711 = vadd.xlane.f32.xlu0 %v710
  %v712 = vpop.xlane.xlu0 %711
  %v713 = vrot.slane %v709, 4
  %v714 = vmax.f32 %v709, %v713
  %v715 = vrot.slane %v714, 2
  %v716 = vmax.f32 %v714, %v715
  %v717 = vrot.slane %v716, 1
  %v718 = vmax.f32 %v716, %v717
  %v719 = vrot.slane %v712, 4
  %v720 = vmax.f32 %v712, %v719
  %v721 = vrot.slane %v720, 2
  %v722 = vmax.f32 %v720, %v721
  %v723 = vrot.slane %v722, 1
  %v724 = vmax.f32 %v722, %v723
  %v725 = vsub.f32 %v709, %v718
  %v726 = vsub.f32 %v712, %v724
  %v727 = vmul.f32 %v725, 1.442695
  %v728 = vpow.pop %v727
  %v729 = vmul.f32 %v726, 1.442695
  %v730 = vpow.pop %v729
  %v731 = vrot.slane %v728, 4
  %v732 = vadd.f32 %v728, %v731
  %v733 = vrot.slane %v732, 2
  %v734 = vadd.f32 %v732, %v733
  %v735 = vrot.slane %v734, 1
  %v736 = vadd.f32 %v734, %v735
  %v737 = vrot.slane %v730, 4
  %v738 = vadd.f32 %v730, %v737
  %v739 = vrot.slane %v738, 2
  %v740 = vadd.f32 %v738, %v739
  %v741 = vrot.slane %v740, 1
  %v742 = vadd.f32 %v740, %v741
  %v743 = vrcp.pop %v736
  %v744 = vrcp.pop %v742
  %v745 = vmul.f32 %v728, %v743
  %v746 = vmul.f32 %v730, %v744
  %v747 = vmul.f32 %v745, %v626
  %v748 = vmul.f32 %v746, %v628
  %v749 = vsel %vm648, %v747, 0.0
  %v750 = vrot.slane %v749, 4
  %v751 = vadd.f32 %v749, %v750
  %v752 = vrot.slane %v751, 2
  %v753 = vadd.f32 %v751, %v752
  %v754 = vrot.slane %v753, 1
  %v755 = vadd.f32 %v753, %v754
  %v756 = vsel %vm648, %v748, 0.0
  %v757 = vrot.slane %v756, 4
  %v758 = vadd.f32 %v756, %v757
  %v759 = vrot.slane %v758, 2
  %v760 = vadd.f32 %v758, %v759
  %v761 = vrot.slane %v760, 1
  %v762 = vadd.f32 %v760, %v761
  %v763 = vrot.slane %v626, 2
  %v764 = vrot.slane %v628, 1
  %v765 = vsel %vm646, %v764, %v763
  %v766 = vsel %vm648, %v765, 0
  %768 = vmatpush.msra.mxu0 0.0
  %769 = vmatpush.msra.mxu0 0.0
  %770 = vmatpush.msra.mxu0 0.0
  %771 = vmatpush.msra.mxu0 0.0
  %772 = vmatpush.msra.mxu0 0.0
  %773 = vmatpush.msra.mxu0 0.0
  %774 = vmatpush.msra.mxu0 0.0
  %775 = vmatpush.msra.mxu0 0.0
  %776 = vmatpush.msra.mxu0 0.0
  %777 = vmatpush.msra.mxu0 0.0
  %778 = vmatpush.msra.mxu0 0.0
  %779 = vmatpush.msra.mxu0 0.0
  %780 = vmatpush.msra.mxu0 %v641
  %781 = vmatpush.msra.mxu0 %v640
  %782 = vmatpush.msra.mxu0 %v639
  %783 = vmatpush.msra.mxu0 %v638
  %784 = vmatmul.f32.gmra.mxu0 %v766
  %v785 = vpop.f32.mrf.mxu0
  %v786 = vadd.f32 0.0, %v785
  %787 = vdwg.mxu0
  %v788 = vadd.f32 %v698, %v786
  %v790 = vrot.slane %v788, 1
  %v791 = vperm.slane %v788, 0
  %v792 = vperm.slane %v790, 0
  %v795 = vmul.f32 %v791, %v626
  %v796 = vmul.f32 %v792, %v628
  %v797 = vsel %vm648, %v795, 0.0
  %798 = vadd.xlane.f32.xlu0 %v797
  %v799 = vpop.xlane.xlu0 %798
  %v800 = vsel %vm648, %v796, 0.0
  %801 = vadd.xlane.f32.xlu0 %v800
  %v802 = vpop.xlane.xlu0 %801
  %v803 = vrot.slane %v799, 4
  %v804 = vmax.f32 %v799, %v803
  %v805 = vrot.slane %v804, 2
  %v806 = vmax.f32 %v804, %v805
  %v807 = vrot.slane %v806, 1
  %v808 = vmax.f32 %v806, %v807
  %v809 = vrot.slane %v802, 4
  %v810 = vmax.f32 %v802, %v809
  %v811 = vrot.slane %v810, 2
  %v812 = vmax.f32 %v810, %v811
  %v813 = vrot.slane %v812, 1
  %v814 = vmax.f32 %v812, %v813
  %v815 = vsub.f32 %v799, %v808
  %v816 = vsub.f32 %v802, %v814
  %v817 = vmul.f32 %v815, 1.442695
  %v818 = vpow.pop %v817
  %v819 = vmul.f32 %v816, 1.442695
  %v820 = vpow.pop %v819
  %v821 = vrot.slane %v818, 4
  %v822 = vadd.f32 %v818, %v821
  %v823 = vrot.slane %v822, 2
  %v824 = vadd.f32 %v822, %v823
  %v825 = vrot.slane %v824, 1
  %v826 = vadd.f32 %v824, %v825
  %v827 = vrot.slane %v820, 4
  %v828 = vadd.f32 %v820, %v827
  %v829 = vrot.slane %v828, 2
  %v830 = vadd.f32 %v828, %v829
  %v831 = vrot.slane %v830, 1
  %v832 = vadd.f32 %v830, %v831
  %v833 = vrcp.pop %v826
  %v834 = vrcp.pop %v832
  %v835 = vmul.f32 %v818, %v833
  %v836 = vmul.f32 %v820, %v834
  %v837 = vmul.f32 %v835, %v626
  %v838 = vmul.f32 %v836, %v628
  %v839 = vsel %vm648, %v837, 0.0
  %v840 = vrot.slane %v839, 4
  %v841 = vadd.f32 %v839, %v840
  %v842 = vrot.slane %v841, 2
  %v843 = vadd.f32 %v841, %v842
  %v844 = vrot.slane %v843, 1
  %v845 = vadd.f32 %v843, %v844
  %v846 = vsel %vm648, %v838, 0.0
  %v847 = vrot.slane %v846, 4
  %v848 = vadd.f32 %v846, %v847
  %v849 = vrot.slane %v848, 2
  %v850 = vadd.f32 %v848, %v849
  %v851 = vrot.slane %v850, 1
  %v852 = vadd.f32 %v850, %v851
  %853 = vmatpush.msra.mxu0 0.0
  %854 = vmatpush.msra.mxu0 0.0
  %855 = vmatpush.msra.mxu0 0.0
  %856 = vmatpush.msra.mxu0 0.0
  %857 = vmatpush.msra.mxu0 0.0
  %858 = vmatpush.msra.mxu0 0.0
  %859 = vmatpush.msra.mxu0 0.0
  %860 = vmatpush.msra.mxu0 0.0
  %861 = vmatpush.msra.mxu0 0.0
  %862 = vmatpush.msra.mxu0 0.0
  %863 = vmatpush.msra.mxu0 0.0
  %864 = vmatpush.msra.mxu0 0.0
  %865 = vmatpush.msra.mxu0 %v637
  %866 = vmatpush.msra.mxu0 %v636
  %867 = vmatpush.msra.mxu0 %v635
  %868 = vmatpush.msra.mxu0 %v634
  %869 = vmatmul.f32.gmra.mxu0 %v766
  %v870 = vpop.f32.mrf.mxu0
  %v871 = vadd.f32 0.0, %v870
  %872 = vdwg.mxu0
  %873 = vmatpush.msra.mxu0 0.0
  %874 = vmatpush.msra.mxu0 0.0
  %875 = vmatpush.msra.mxu0 0.0
  %876 = vmatpush.msra.mxu0 0.0
  %877 = vmatpush.msra.mxu0 0.0
  %878 = vmatpush.msra.mxu0 0.0
  %879 = vmatpush.msra.mxu0 0.0
  %880 = vmatpush.msra.mxu0 0.0
  %881 = vmatpush.msra.mxu0 0.0
  %882 = vmatpush.msra.mxu0 0.0
  %883 = vmatpush.msra.mxu0 0.0
  %884 = vmatpush.msra.mxu0 0.0
  %885 = vmatpush.msra.mxu0 %v633
  %886 = vmatpush.msra.mxu0 %v632
  %887 = vmatpush.msra.mxu0 %v631
  %888 = vmatpush.msra.mxu0 %v630
  %889 = vmatmul.f32.gmra.mxu0 %v649
  %v890 = vpop.f32.mrf.mxu0
  %v891 = vadd.f32 %v871, %v890
  %892 = vdwg.mxu0
  %v893 = vadd.f32 %v891, %v696
  %v894 = vrot.slane %v626, 3
  %v895 = vrot.slane %v628, 2
  %v896 = vsel %vm646, %v895, %v894
  %v897 = vsel %vm648, %v896, 0
  %899 = vmatpush.msra.mxu0 0.0
  %900 = vmatpush.msra.mxu0 0.0
  %901 = vmatpush.msra.mxu0 0.0
  %902 = vmatpush.msra.mxu0 0.0
  %903 = vmatpush.msra.mxu0 0.0
  %904 = vmatpush.msra.mxu0 0.0
  %905 = vmatpush.msra.mxu0 0.0
  %906 = vmatpush.msra.mxu0 0.0
  %907 = vmatpush.msra.mxu0 0.0
  %908 = vmatpush.msra.mxu0 0.0
  %909 = vmatpush.msra.mxu0 0.0
  %910 = vmatpush.msra.mxu0 0.0
  %911 = vmatpush.msra.mxu0 %v641
  %912 = vmatpush.msra.mxu0 %v640
  %913 = vmatpush.msra.mxu0 %v639
  %914 = vmatpush.msra.mxu0 %v638
  %915 = vmatmul.f32.gmra.mxu0 %v897
  %v916 = vpop.f32.mrf.mxu0
  %v917 = vadd.f32 0.0, %v916
  %918 = vdwg.mxu0
  %v919 = vadd.f32 %v893, %v917
  %v921 = vrot.slane %v919, 1
  %v922 = vperm.slane %v919, 0
  %v923 = vperm.slane %v921, 0
  %v926 = vmul.f32 %v922, %v626
  %v927 = vmul.f32 %v923, %v628
  %v928 = vsel %vm648, %v926, 0.0
  %929 = vadd.xlane.f32.xlu0 %v928
  %v930 = vpop.xlane.xlu0 %929
  %v931 = vsel %vm648, %v927, 0.0
  %932 = vadd.xlane.f32.xlu0 %v931
  %v933 = vpop.xlane.xlu0 %932
  %v934 = vrot.slane %v930, 4
  %v935 = vmax.f32 %v930, %v934
  %v936 = vrot.slane %v935, 2
  %v937 = vmax.f32 %v935, %v936
  %v938 = vrot.slane %v937, 1
  %v939 = vmax.f32 %v937, %v938
  %v940 = vrot.slane %v933, 4
  %v941 = vmax.f32 %v933, %v940
  %v942 = vrot.slane %v941, 2
  %v943 = vmax.f32 %v941, %v942
  %v944 = vrot.slane %v943, 1
  %v945 = vmax.f32 %v943, %v944
  %v946 = vsub.f32 %v930, %v939
  %v947 = vsub.f32 %v933, %v945
  %v948 = vmul.f32 %v946, 1.442695
  %v949 = vpow.pop %v948
  %v950 = vmul.f32 %v947, 1.442695
  %v951 = vpow.pop %v950
  %v952 = vrot.slane %v949, 4
  %v953 = vadd.f32 %v949, %v952
  %v954 = vrot.slane %v953, 2
  %v955 = vadd.f32 %v953, %v954
  %v956 = vrot.slane %v955, 1
  %v957 = vadd.f32 %v955, %v956
  %v958 = vrot.slane %v951, 4
  %v959 = vadd.f32 %v951, %v958
  %v960 = vrot.slane %v959, 2
  %v961 = vadd.f32 %v959, %v960
  %v962 = vrot.slane %v961, 1
  %v963 = vadd.f32 %v961, %v962
  %v964 = vrcp.pop %v957
  %v965 = vrcp.pop %v963
  %v966 = vmul.f32 %v949, %v964
  %v967 = vmul.f32 %v951, %v965
  %v968 = vmul.f32 %v966, %v626
  %v969 = vmul.f32 %v967, %v628
  %v970 = vsel %vm648, %v968, 0.0
  %v971 = vrot.slane %v970, 4
  %v972 = vadd.f32 %v970, %v971
  %v973 = vrot.slane %v972, 2
  %v974 = vadd.f32 %v972, %v973
  %v975 = vrot.slane %v974, 1
  %v976 = vadd.f32 %v974, %v975
  %v977 = vsel %vm648, %v969, 0.0
  %v978 = vrot.slane %v977, 4
  %v979 = vadd.f32 %v977, %v978
  %v980 = vrot.slane %v979, 2
  %v981 = vadd.f32 %v979, %v980
  %v982 = vrot.slane %v981, 1
  %v983 = vadd.f32 %v981, %v982
  %984 = vmatpush.msra.mxu0 0.0
  %985 = vmatpush.msra.mxu0 0.0
  %986 = vmatpush.msra.mxu0 0.0
  %987 = vmatpush.msra.mxu0 0.0
  %988 = vmatpush.msra.mxu0 0.0
  %989 = vmatpush.msra.mxu0 0.0
  %990 = vmatpush.msra.mxu0 0.0
  %991 = vmatpush.msra.mxu0 0.0
  %992 = vmatpush.msra.mxu0 0.0
  %993 = vmatpush.msra.mxu0 0.0
  %994 = vmatpush.msra.mxu0 0.0
  %995 = vmatpush.msra.mxu0 0.0
  %996 = vmatpush.msra.mxu0 %v637
  %997 = vmatpush.msra.mxu0 %v636
  %998 = vmatpush.msra.mxu0 %v635
  %999 = vmatpush.msra.mxu0 %v634
  %1000 = vmatmul.f32.gmra.mxu0 %v897
  %v1001 = vpop.f32.mrf.mxu0
  %v1002 = vadd.f32 0.0, %v1001
  %1003 = vdwg.mxu0
  %1004 = vmatpush.msra.mxu0 0.0
  %1005 = vmatpush.msra.mxu0 0.0
  %1006 = vmatpush.msra.mxu0 0.0
  %1007 = vmatpush.msra.mxu0 0.0
  %1008 = vmatpush.msra.mxu0 0.0
  %1009 = vmatpush.msra.mxu0 0.0
  %1010 = vmatpush.msra.mxu0 0.0
  %1011 = vmatpush.msra.mxu0 0.0
  %1012 = vmatpush.msra.mxu0 0.0
  %1013 = vmatpush.msra.mxu0 0.0
  %1014 = vmatpush.msra.mxu0 0.0
  %1015 = vmatpush.msra.mxu0 0.0
  %1016 = vmatpush.msra.mxu0 %v633
  %1017 = vmatpush.msra.mxu0 %v632
  %1018 = vmatpush.msra.mxu0 %v631
  %1019 = vmatpush.msra.mxu0 %v630
  %1020 = vmatmul.f32.gmra.mxu0 %v766
  %v1021 = vpop.f32.mrf.mxu0
  %v1022 = vadd.f32 %v1002, %v1021
  %1023 = vdwg.mxu0
  %v1024 = vadd.f32 %v1022, %v696
  %v1025 = vrot.slane %v626, 4
  %v1026 = vrot.slane %v628, 3
  %v1027 = vsel %vm646, %v1026, %v1025
  %v1028 = vsel %vm648, %v1027, 0
  %1030 = vmatpush.msra.mxu0 0.0
  %1031 = vmatpush.msra.mxu0 0.0
  %1032 = vmatpush.msra.mxu0 0.0
  %1033 = vmatpush.msra.mxu0 0.0
  %1034 = vmatpush.msra.mxu0 0.0
  %1035 = vmatpush.msra.mxu0 0.0
  %1036 = vmatpush.msra.mxu0 0.0
  %1037 = vmatpush.msra.mxu0 0.0
  %1038 = vmatpush.msra.mxu0 0.0
  %1039 = vmatpush.msra.mxu0 0.0
  %1040 = vmatpush.msra.mxu0 0.0
  %1041 = vmatpush.msra.mxu0 0.0
  %1042 = vmatpush.msra.mxu0 %v641
  %1043 = vmatpush.msra.mxu0 %v640
  %1044 = vmatpush.msra.mxu0 %v639
  %1045 = vmatpush.msra.mxu0 %v638
  %1046 = vmatmul.f32.gmra.mxu0 %v1028
  %v1047 = vpop.f32.mrf.mxu0
  %v1048 = vadd.f32 0.0, %v1047
  %1049 = vdwg.mxu0
  %v1050 = vadd.f32 %v1024, %v1048
  %v1052 = vrot.slane %v1050, 1
  %v1053 = vperm.slane %v1050, 0
  %v1054 = vperm.slane %v1052, 0
  %v1057 = vmul.f32 %v1053, %v626
  %v1058 = vmul.f32 %v1054, %v628
  %v1059 = vsel %vm648, %v1057, 0.0
  %1060 = vadd.xlane.f32.xlu0 %v1059
  %v1061 = vpop.xlane.xlu0 %1060
  %v1062 = vsel %vm648, %v1058, 0.0
  %1063 = vadd.xlane.f32.xlu0 %v1062
  %v1064 = vpop.xlane.xlu0 %1063
  %v1065 = vrot.slane %v1061, 4
  %v1066 = vmax.f32 %v1061, %v1065
  %v1067 = vrot.slane %v1066, 2
  %v1068 = vmax.f32 %v1066, %v1067
  %v1069 = vrot.slane %v1068, 1
  %v1070 = vmax.f32 %v1068, %v1069
  %v1071 = vrot.slane %v1064, 4
  %v1072 = vmax.f32 %v1064, %v1071
  %v1073 = vrot.slane %v1072, 2
  %v1074 = vmax.f32 %v1072, %v1073
  %v1075 = vrot.slane %v1074, 1
  %v1076 = vmax.f32 %v1074, %v1075
  %v1077 = vsub.f32 %v1061, %v1070
  %v1078 = vsub.f32 %v1064, %v1076
  %v1079 = vmul.f32 %v1077, 1.442695
  %v1080 = vpow.pop %v1079
  %v1081 = vmul.f32 %v1078, 1.442695
  %v1082 = vpow.pop %v1081
  %v1083 = vrot.slane %v1080, 4
  %v1084 = vadd.f32 %v1080, %v1083
  %v1085 = vrot.slane %v1084, 2
  %v1086 = vadd.f32 %v1084, %v1085
  %v1087 = vrot.slane %v1086, 1
  %v1088 = vadd.f32 %v1086, %v1087
  %v1089 = vrot.slane %v1082, 4
  %v1090 = vadd.f32 %v1082, %v1089
  %v1091 = vrot.slane %v1090, 2
  %v1092 = vadd.f32 %v1090, %v1091
  %v1093 = vrot.slane %v1092, 1
  %v1094 = vadd.f32 %v1092, %v1093
  %v1095 = vrcp.pop %v1088
  %v1096 = vrcp.pop %v1094
  %v1097 = vmul.f32 %v1080, %v1095
  %v1098 = vmul.f32 %v1082, %v1096
  %v1099 = vmul.f32 %v1097, %v626
  %v1100 = vmul.f32 %v1098, %v628
  %v1101 = vsel %vm648, %v1099, 0.0
  %v1102 = vrot.slane %v1101, 4
  %v1103 = vadd.f32 %v1101, %v1102
  %v1104 = vrot.slane %v1103, 2
  %v1105 = vadd.f32 %v1103, %v1104
  %v1106 = vrot.slane %v1105, 1
  %v1107 = vadd.f32 %v1105, %v1106
  %v1108 = vsel %vm648, %v1100, 0.0
  %v1109 = vrot.slane %v1108, 4
  %v1110 = vadd.f32 %v1108, %v1109
  %v1111 = vrot.slane %v1110, 2
  %v1112 = vadd.f32 %v1110, %v1111
  %v1113 = vrot.slane %v1112, 1
  %v1114 = vadd.f32 %v1112, %v1113
  %1115 = vmatpush.msra.mxu0 0.0
  %1116 = vmatpush.msra.mxu0 0.0
  %1117 = vmatpush.msra.mxu0 0.0
  %1118 = vmatpush.msra.mxu0 0.0
  %1119 = vmatpush.msra.mxu0 0.0
  %1120 = vmatpush.msra.mxu0 0.0
  %1121 = vmatpush.msra.mxu0 0.0
  %1122 = vmatpush.msra.mxu0 0.0
  %1123 = vmatpush.msra.mxu0 0.0
  %1124 = vmatpush.msra.mxu0 0.0
  %1125 = vmatpush.msra.mxu0 0.0
  %1126 = vmatpush.msra.mxu0 0.0
  %1127 = vmatpush.msra.mxu0 %v637
  %1128 = vmatpush.msra.mxu0 %v636
  %1129 = vmatpush.msra.mxu0 %v635
  %1130 = vmatpush.msra.mxu0 %v634
  %1131 = vmatmul.f32.gmra.mxu0 %v1028
  %v1132 = vpop.f32.mrf.mxu0
  %v1133 = vadd.f32 0.0, %v1132
  %1134 = vdwg.mxu0
  %1135 = vmatpush.msra.mxu0 0.0
  %1136 = vmatpush.msra.mxu0 0.0
  %1137 = vmatpush.msra.mxu0 0.0
  %1138 = vmatpush.msra.mxu0 0.0
  %1139 = vmatpush.msra.mxu0 0.0
  %1140 = vmatpush.msra.mxu0 0.0
  %1141 = vmatpush.msra.mxu0 0.0
  %1142 = vmatpush.msra.mxu0 0.0
  %1143 = vmatpush.msra.mxu0 0.0
  %1144 = vmatpush.msra.mxu0 0.0
  %1145 = vmatpush.msra.mxu0 0.0
  %1146 = vmatpush.msra.mxu0 0.0
  %1147 = vmatpush.msra.mxu0 %v633
  %1148 = vmatpush.msra.mxu0 %v632
  %1149 = vmatpush.msra.mxu0 %v631
  %1150 = vmatpush.msra.mxu0 %v630
  %1151 = vmatmul.f32.gmra.mxu0 %v897
  %v1152 = vpop.f32.mrf.mxu0
  %v1153 = vadd.f32 %v1133, %v1152
  %1154 = vdwg.mxu0
  %v1155 = vadd.f32 %v1153, %v696
  %v1156 = vrot.slane %v626, 5
  %v1157 = vrot.slane %v628, 4
  %v1158 = vsel %vm646, %v1157, %v1156
  %v1159 = vsel %vm648, %v1158, 0
  %1161 = vmatpush.msra.mxu0 0.0
  %1162 = vmatpush.msra.mxu0 0.0
  %1163 = vmatpush.msra.mxu0 0.0
  %1164 = vmatpush.msra.mxu0 0.0
  %1165 = vmatpush.msra.mxu0 0.0
  %1166 = vmatpush.msra.mxu0 0.0
  %1167 = vmatpush.msra.mxu0 0.0
  %1168 = vmatpush.msra.mxu0 0.0
  %1169 = vmatpush.msra.mxu0 0.0
  %1170 = vmatpush.msra.mxu0 0.0
  %1171 = vmatpush.msra.mxu0 0.0
  %1172 = vmatpush.msra.mxu0 0.0
  %1173 = vmatpush.msra.mxu0 %v641
  %1174 = vmatpush.msra.mxu0 %v640
  %1175 = vmatpush.msra.mxu0 %v639
  %1176 = vmatpush.msra.mxu0 %v638
  %1177 = vmatmul.f32.gmra.mxu0 %v1159
  %v1178 = vpop.f32.mrf.mxu0
  %v1179 = vadd.f32 0.0, %v1178
  %1180 = vdwg.mxu0
  %v1181 = vadd.f32 %v1155, %v1179
  %v1183 = vrot.slane %v1181, 1
  %v1184 = vperm.slane %v1181, 0
  %v1185 = vperm.slane %v1183, 0
  %v1188 = vmul.f32 %v1184, %v626
  %v1189 = vmul.f32 %v1185, %v628
  %v1190 = vsel %vm648, %v1188, 0.0
  %1191 = vadd.xlane.f32.xlu0 %v1190
  %v1192 = vpop.xlane.xlu0 %1191
  %v1193 = vsel %vm648, %v1189, 0.0
  %1194 = vadd.xlane.f32.xlu0 %v1193
  %v1195 = vpop.xlane.xlu0 %1194
  %v1196 = vrot.slane %v1192, 4
  %v1197 = vmax.f32 %v1192, %v1196
  %v1198 = vrot.slane %v1197, 2
  %v1199 = vmax.f32 %v1197, %v1198
  %v1200 = vrot.slane %v1199, 1
  %v1201 = vmax.f32 %v1199, %v1200
  %v1202 = vrot.slane %v1195, 4
  %v1203 = vmax.f32 %v1195, %v1202
  %v1204 = vrot.slane %v1203, 2
  %v1205 = vmax.f32 %v1203, %v1204
  %v1206 = vrot.slane %v1205, 1
  %v1207 = vmax.f32 %v1205, %v1206
  %v1208 = vsub.f32 %v1192, %v1201
  %v1209 = vsub.f32 %v1195, %v1207
  %v1210 = vmul.f32 %v1208, 1.442695
  %v1211 = vpow.pop %v1210
  %v1212 = vmul.f32 %v1209, 1.442695
  %v1213 = vpow.pop %v1212
  %v1214 = vrot.slane %v1211, 4
  %v1215 = vadd.f32 %v1211, %v1214
  %v1216 = vrot.slane %v1215, 2
  %v1217 = vadd.f32 %v1215, %v1216
  %v1218 = vrot.slane %v1217, 1
  %v1219 = vadd.f32 %v1217, %v1218
  %v1220 = vrot.slane %v1213, 4
  %v1221 = vadd.f32 %v1213, %v1220
  %v1222 = vrot.slane %v1221, 2
  %v1223 = vadd.f32 %v1221, %v1222
  %v1224 = vrot.slane %v1223, 1
  %v1225 = vadd.f32 %v1223, %v1224
  %v1226 = vrcp.pop %v1219
  %v1227 = vrcp.pop %v1225
  %v1228 = vmul.f32 %v1211, %v1226
  %v1229 = vmul.f32 %v1213, %v1227
  %v1230 = vmul.f32 %v1228, %v626
  %v1231 = vmul.f32 %v1229, %v628
  %v1232 = vsel %vm648, %v1230, 0.0
  %v1233 = vrot.slane %v1232, 4
  %v1234 = vadd.f32 %v1232, %v1233
  %v1235 = vrot.slane %v1234, 2
  %v1236 = vadd.f32 %v1234, %v1235
  %v1237 = vrot.slane %v1236, 1
  %v1238 = vadd.f32 %v1236, %v1237
  %v1239 = vsel %vm648, %v1231, 0.0
  %v1240 = vrot.slane %v1239, 4
  %v1241 = vadd.f32 %v1239, %v1240
  %v1242 = vrot.slane %v1241, 2
  %v1243 = vadd.f32 %v1241, %v1242
  %v1244 = vrot.slane %v1243, 1
  %v1245 = vadd.f32 %v1243, %v1244
  %1246 = vmatpush.msra.mxu0 0.0
  %1247 = vmatpush.msra.mxu0 0.0
  %1248 = vmatpush.msra.mxu0 0.0
  %1249 = vmatpush.msra.mxu0 0.0
  %1250 = vmatpush.msra.mxu0 0.0
  %1251 = vmatpush.msra.mxu0 0.0
  %1252 = vmatpush.msra.mxu0 0.0
  %1253 = vmatpush.msra.mxu0 0.0
  %1254 = vmatpush.msra.mxu0 0.0
  %1255 = vmatpush.msra.mxu0 0.0
  %1256 = vmatpush.msra.mxu0 0.0
  %1257 = vmatpush.msra.mxu0 0.0
  %1258 = vmatpush.msra.mxu0 %v637
  %1259 = vmatpush.msra.mxu0 %v636
  %1260 = vmatpush.msra.mxu0 %v635
  %1261 = vmatpush.msra.mxu0 %v634
  %1262 = vmatmul.f32.gmra.mxu0 %v1159
  %v1263 = vpop.f32.mrf.mxu0
  %v1264 = vadd.f32 0.0, %v1263
  %1265 = vdwg.mxu0
  %1266 = vmatpush.msra.mxu0 0.0
  %1267 = vmatpush.msra.mxu0 0.0
  %1268 = vmatpush.msra.mxu0 0.0
  %1269 = vmatpush.msra.mxu0 0.0
  %1270 = vmatpush.msra.mxu0 0.0
  %1271 = vmatpush.msra.mxu0 0.0
  %1272 = vmatpush.msra.mxu0 0.0
  %1273 = vmatpush.msra.mxu0 0.0
  %1274 = vmatpush.msra.mxu0 0.0
  %1275 = vmatpush.msra.mxu0 0.0
  %1276 = vmatpush.msra.mxu0 0.0
  %1277 = vmatpush.msra.mxu0 0.0
  %1278 = vmatpush.msra.mxu0 %v633
  %1279 = vmatpush.msra.mxu0 %v632
  %1280 = vmatpush.msra.mxu0 %v631
  %1281 = vmatpush.msra.mxu0 %v630
  %1282 = vmatmul.f32.gmra.mxu0 %v1028
  %v1283 = vpop.f32.mrf.mxu0
  %v1284 = vadd.f32 %v1264, %v1283
  %1285 = vdwg.mxu0
  %v1286 = vadd.f32 %v1284, %v696
  %v1287 = vrot.slane %v626, 6
  %v1288 = vrot.slane %v628, 5
  %v1289 = vsel %vm646, %v1288, %v1287
  %v1290 = vsel %vm648, %v1289, 0
  %1292 = vmatpush.msra.mxu0 0.0
  %1293 = vmatpush.msra.mxu0 0.0
  %1294 = vmatpush.msra.mxu0 0.0
  %1295 = vmatpush.msra.mxu0 0.0
  %1296 = vmatpush.msra.mxu0 0.0
  %1297 = vmatpush.msra.mxu0 0.0
  %1298 = vmatpush.msra.mxu0 0.0
  %1299 = vmatpush.msra.mxu0 0.0
  %1300 = vmatpush.msra.mxu0 0.0
  %1301 = vmatpush.msra.mxu0 0.0
  %1302 = vmatpush.msra.mxu0 0.0
  %1303 = vmatpush.msra.mxu0 0.0
  %1304 = vmatpush.msra.mxu0 %v641
  %1305 = vmatpush.msra.mxu0 %v640
  %1306 = vmatpush.msra.mxu0 %v639
  %1307 = vmatpush.msra.mxu0 %v638
  %1308 = vmatmul.f32.gmra.mxu0 %v1290
  %v1309 = vpop.f32.mrf.mxu0
  %v1310 = vadd.f32 0.0, %v1309
  %1311 = vdwg.mxu0
  %v1312 = vadd.f32 %v1286, %v1310
  %v1314 = vrot.slane %v1312, 1
  %v1315 = vperm.slane %v1312, 0
  %v1316 = vperm.slane %v1314, 0
  %v1319 = vmul.f32 %v1315, %v626
  %v1320 = vmul.f32 %v1316, %v628
  %v1321 = vsel %vm648, %v1319, 0.0
  %1322 = vadd.xlane.f32.xlu0 %v1321
  %v1323 = vpop.xlane.xlu0 %1322
  %v1324 = vsel %vm648, %v1320, 0.0
  %1325 = vadd.xlane.f32.xlu0 %v1324
  %v1326 = vpop.xlane.xlu0 %1325
  %v1327 = vrot.slane %v1323, 4
  %v1328 = vmax.f32 %v1323, %v1327
  %v1329 = vrot.slane %v1328, 2
  %v1330 = vmax.f32 %v1328, %v1329
  %v1331 = vrot.slane %v1330, 1
  %v1332 = vmax.f32 %v1330, %v1331
  %v1333 = vrot.slane %v1326, 4
  %v1334 = vmax.f32 %v1326, %v1333
  %v1335 = vrot.slane %v1334, 2
  %v1336 = vmax.f32 %v1334, %v1335
  %v1337 = vrot.slane %v1336, 1
  %v1338 = vmax.f32 %v1336, %v1337
  %v1339 = vsub.f32 %v1323, %v1332
  %v1340 = vsub.f32 %v1326, %v1338
  %v1341 = vmul.f32 %v1339, 1.442695
  %v1342 = vpow.pop %v1341
  %v1343 = vmul.f32 %v1340, 1.442695
  %v1344 = vpow.pop %v1343
  %v1345 = vrot.slane %v1342, 4
  %v1346 = vadd.f32 %v1342, %v1345
  %v1347 = vrot.slane %v1346, 2
  %v1348 = vadd.f32 %v1346, %v1347
  %v1349 = vrot.slane %v1348, 1
  %v1350 = vadd.f32 %v1348, %v1349
  %v1351 = vrot.slane %v1344, 4
  %v1352 = vadd.f32 %v1344, %v1351
  %v1353 = vrot.slane %v1352, 2
  %v1354 = vadd.f32 %v1352, %v1353
  %v1355 = vrot.slane %v1354, 1
  %v1356 = vadd.f32 %v1354, %v1355
  %v1357 = vrcp.pop %v1350
  %v1358 = vrcp.pop %v1356
  %v1359 = vmul.f32 %v1342, %v1357
  %v1360 = vmul.f32 %v1344, %v1358
  %v1361 = vmul.f32 %v1359, %v626
  %v1362 = vmul.f32 %v1360, %v628
  %v1363 = vsel %vm648, %v1361, 0.0
  %v1364 = vrot.slane %v1363, 4
  %v1365 = vadd.f32 %v1363, %v1364
  %v1366 = vrot.slane %v1365, 2
  %v1367 = vadd.f32 %v1365, %v1366
  %v1368 = vrot.slane %v1367, 1
  %v1369 = vadd.f32 %v1367, %v1368
  %v1370 = vsel %vm648, %v1362, 0.0
  %v1371 = vrot.slane %v1370, 4
  %v1372 = vadd.f32 %v1370, %v1371
  %v1373 = vrot.slane %v1372, 2
  %v1374 = vadd.f32 %v1372, %v1373
  %v1375 = vrot.slane %v1374, 1
  %v1376 = vadd.f32 %v1374, %v1375
  %1377 = vmatpush.msra.mxu0 0.0
  %1378 = vmatpush.msra.mxu0 0.0
  %1379 = vmatpush.msra.mxu0 0.0
  %1380 = vmatpush.msra.mxu0 0.0
  %1381 = vmatpush.msra.mxu0 0.0
  %1382 = vmatpush.msra.mxu0 0.0
  %1383 = vmatpush.msra.mxu0 0.0
  %1384 = vmatpush.msra.mxu0 0.0
  %1385 = vmatpush.msra.mxu0 0.0
  %1386 = vmatpush.msra.mxu0 0.0
  %1387 = vmatpush.msra.mxu0 0.0
  %1388 = vmatpush.msra.mxu0 0.0
  %1389 = vmatpush.msra.mxu0 %v637
  %1390 = vmatpush.msra.mxu0 %v636
  %1391 = vmatpush.msra.mxu0 %v635
  %1392 = vmatpush.msra.mxu0 %v634
  %1393 = vmatmul.f32.gmra.mxu0 %v1290
  %v1394 = vpop.f32.mrf.mxu0
  %v1395 = vadd.f32 0.0, %v1394
  %1396 = vdwg.mxu0
  %1397 = vmatpush.msra.mxu0 0.0
  %1398 = vmatpush.msra.mxu0 0.0
  %1399 = vmatpush.msra.mxu0 0.0
  %1400 = vmatpush.msra.mxu0 0.0
  %1401 = vmatpush.msra.mxu0 0.0
  %1402 = vmatpush.msra.mxu0 0.0
  %1403 = vmatpush.msra.mxu0 0.0
  %1404 = vmatpush.msra.mxu0 0.0
  %1405 = vmatpush.msra.mxu0 0.0
  %1406 = vmatpush.msra.mxu0 0.0
  %1407 = vmatpush.msra.mxu0 0.0
  %1408 = vmatpush.msra.mxu0 0.0
  %1409 = vmatpush.msra.mxu0 %v633
  %1410 = vmatpush.msra.mxu0 %v632
  %1411 = vmatpush.msra.mxu0 %v631
  %1412 = vmatpush.msra.mxu0 %v630
  %1413 = vmatmul.f32.gmra.mxu0 %v1159
  %v1414 = vpop.f32.mrf.mxu0
  %v1415 = vadd.f32 %v1395, %v1414
  %1416 = vdwg.mxu0
  %v1417 = vadd.f32 %v1415, %v696
  %v1418 = vrot.slane %v626, 7
  %v1419 = vrot.slane %v628, 6
  %v1420 = vsel %vm646, %v1419, %v1418
  %v1421 = vsel %vm648, %v1420, 0
  %1423 = vmatpush.msra.mxu0 0.0
  %1424 = vmatpush.msra.mxu0 0.0
  %1425 = vmatpush.msra.mxu0 0.0
  %1426 = vmatpush.msra.mxu0 0.0
  %1427 = vmatpush.msra.mxu0 0.0
  %1428 = vmatpush.msra.mxu0 0.0
  %1429 = vmatpush.msra.mxu0 0.0
  %1430 = vmatpush.msra.mxu0 0.0
  %1431 = vmatpush.msra.mxu0 0.0
  %1432 = vmatpush.msra.mxu0 0.0
  %1433 = vmatpush.msra.mxu0 0.0
  %1434 = vmatpush.msra.mxu0 0.0
  %1435 = vmatpush.msra.mxu0 %v641
  %1436 = vmatpush.msra.mxu0 %v640
  %1437 = vmatpush.msra.mxu0 %v639
  %1438 = vmatpush.msra.mxu0 %v638
  %1439 = vmatmul.f32.gmra.mxu0 %v1421
  %v1440 = vpop.f32.mrf.mxu0
  %v1441 = vadd.f32 0.0, %v1440
  %1442 = vdwg.mxu0
  %v1443 = vadd.f32 %v1417, %v1441
  %v1445 = vrot.slane %v1443, 1
  %v1446 = vperm.slane %v1443, 0
  %v1447 = vperm.slane %v1445, 0
  %v1450 = vmul.f32 %v1446, %v626
  %v1451 = vmul.f32 %v1447, %v628
  %v1452 = vsel %vm648, %v1450, 0.0
  %1453 = vadd.xlane.f32.xlu0 %v1452
  %v1454 = vpop.xlane.xlu0 %1453
  %v1455 = vsel %vm648, %v1451, 0.0
  %1456 = vadd.xlane.f32.xlu0 %v1455
  %v1457 = vpop.xlane.xlu0 %1456
  %v1458 = vrot.slane %v1454, 4
  %v1459 = vmax.f32 %v1454, %v1458
  %v1460 = vrot.slane %v1459, 2
  %v1461 = vmax.f32 %v1459, %v1460
  %v1462 = vrot.slane %v1461, 1
  %v1463 = vmax.f32 %v1461, %v1462
  %v1464 = vrot.slane %v1457, 4
  %v1465 = vmax.f32 %v1457, %v1464
  %v1466 = vrot.slane %v1465, 2
  %v1467 = vmax.f32 %v1465, %v1466
  %v1468 = vrot.slane %v1467, 1
  %v1469 = vmax.f32 %v1467, %v1468
  %v1470 = vsub.f32 %v1454, %v1463
  %v1471 = vsub.f32 %v1457, %v1469
  %v1472 = vmul.f32 %v1470, 1.442695
  %v1473 = vpow.pop %v1472
  %v1474 = vmul.f32 %v1471, 1.442695
  %v1475 = vpow.pop %v1474
  %v1476 = vrot.slane %v1473, 4
  %v1477 = vadd.f32 %v1473, %v1476
  %v1478 = vrot.slane %v1477, 2
  %v1479 = vadd.f32 %v1477, %v1478
  %v1480 = vrot.slane %v1479, 1
  %v1481 = vadd.f32 %v1479, %v1480
  %v1482 = vrot.slane %v1475, 4
  %v1483 = vadd.f32 %v1475, %v1482
  %v1484 = vrot.slane %v1483, 2
  %v1485 = vadd.f32 %v1483, %v1484
  %v1486 = vrot.slane %v1485, 1
  %v1487 = vadd.f32 %v1485, %v1486
  %v1488 = vrcp.pop %v1481
  %v1489 = vrcp.pop %v1487
  %v1490 = vmul.f32 %v1473, %v1488
  %v1491 = vmul.f32 %v1475, %v1489
  %v1492 = vmul.f32 %v1490, %v626
  %v1493 = vmul.f32 %v1491, %v628
  %v1494 = vsel %vm648, %v1492, 0.0
  %v1495 = vrot.slane %v1494, 4
  %v1496 = vadd.f32 %v1494, %v1495
  %v1497 = vrot.slane %v1496, 2
  %v1498 = vadd.f32 %v1496, %v1497
  %v1499 = vrot.slane %v1498, 1
  %v1500 = vadd.f32 %v1498, %v1499
  %v1501 = vsel %vm648, %v1493, 0.0
  %v1502 = vrot.slane %v1501, 4
  %v1503 = vadd.f32 %v1501, %v1502
  %v1504 = vrot.slane %v1503, 2
  %v1505 = vadd.f32 %v1503, %v1504
  %v1506 = vrot.slane %v1505, 1
  %v1507 = vadd.f32 %v1505, %v1506
  %1508 = vmatpush.msra.mxu0 0.0
  %1509 = vmatpush.msra.mxu0 0.0
  %1510 = vmatpush.msra.mxu0 0.0
  %1511 = vmatpush.msra.mxu0 0.0
  %1512 = vmatpush.msra.mxu0 0.0
  %1513 = vmatpush.msra.mxu0 0.0
  %1514 = vmatpush.msra.mxu0 0.0
  %1515 = vmatpush.msra.mxu0 0.0
  %1516 = vmatpush.msra.mxu0 0.0
  %1517 = vmatpush.msra.mxu0 0.0
  %1518 = vmatpush.msra.mxu0 0.0
  %1519 = vmatpush.msra.mxu0 0.0
  %1520 = vmatpush.msra.mxu0 %v637
  %1521 = vmatpush.msra.mxu0 %v636
  %1522 = vmatpush.msra.mxu0 %v635
  %1523 = vmatpush.msra.mxu0 %v634
  %1524 = vmatmul.f32.gmra.mxu0 %v1421
  %v1525 = vpop.f32.mrf.mxu0
  %v1526 = vadd.f32 0.0, %v1525
  %1527 = vdwg.mxu0
  %1528 = vmatpush.msra.mxu0 0.0
  %1529 = vmatpush.msra.mxu0 0.0
  %1530 = vmatpush.msra.mxu0 0.0
  %1531 = vmatpush.msra.mxu0 0.0
  %1532 = vmatpush.msra.mxu0 0.0
  %1533 = vmatpush.msra.mxu0 0.0
  %1534 = vmatpush.msra.mxu0 0.0
  %1535 = vmatpush.msra.mxu0 0.0
  %1536 = vmatpush.msra.mxu0 0.0
  %1537 = vmatpush.msra.mxu0 0.0
  %1538 = vmatpush.msra.mxu0 0.0
  %1539 = vmatpush.msra.mxu0 0.0
  %1540 = vmatpush.msra.mxu0 %v633
  %1541 = vmatpush.msra.mxu0 %v632
  %1542 = vmatpush.msra.mxu0 %v631
  %1543 = vmatpush.msra.mxu0 %v630
  %1544 = vmatmul.f32.gmra.mxu0 %v1290
  %v1545 = vpop.f32.mrf.mxu0
  %v1546 = vadd.f32 %v1526, %v1545
  %1547 = vdwg.mxu0
  %v1548 = vadd.f32 %v1546, %v696
  %v1550 = vrot.slane %v1548, 1
  %v1551 = vperm.slane %v1548, 0
  %v1552 = vperm.slane %v1550, 0
  %v1555 = vmul.f32 %v1551, %v626
  %v1556 = vmul.f32 %v1552, %v628
  %v1557 = vsel %vm648, %v1555, 0.0
  %1558 = vadd.xlane.f32.xlu0 %v1557
  %v1559 = vpop.xlane.xlu0 %1558
  %v1560 = vsel %vm648, %v1556, 0.0
  %1561 = vadd.xlane.f32.xlu0 %v1560
  %v1562 = vpop.xlane.xlu0 %1561
  %v1563 = vrot.slane %v1559, 4
  %v1564 = vmax.f32 %v1559, %v1563
  %v1565 = vrot.slane %v1564, 2
  %v1566 = vmax.f32 %v1564, %v1565
  %v1567 = vrot.slane %v1566, 1
  %v1568 = vmax.f32 %v1566, %v1567
  %v1569 = vrot.slane %v1562, 4
  %v1570 = vmax.f32 %v1562, %v1569
  %v1571 = vrot.slane %v1570, 2
  %v1572 = vmax.f32 %v1570, %v1571
  %v1573 = vrot.slane %v1572, 1
  %v1574 = vmax.f32 %v1572, %v1573
  %v1575 = vsub.f32 %v1559, %v1568
  %v1576 = vsub.f32 %v1562, %v1574
  %v1577 = vmul.f32 %v1575, 1.442695
  %v1578 = vpow.pop %v1577
  %v1579 = vmul.f32 %v1576, 1.442695
  %v1580 = vpow.pop %v1579
  %v1581 = vrot.slane %v1578, 4
  %v1582 = vadd.f32 %v1578, %v1581
  %v1583 = vrot.slane %v1582, 2
  %v1584 = vadd.f32 %v1582, %v1583
  %v1585 = vrot.slane %v1584, 1
  %v1586 = vadd.f32 %v1584, %v1585
  %v1587 = vrot.slane %v1580, 4
  %v1588 = vadd.f32 %v1580, %v1587
  %v1589 = vrot.slane %v1588, 2
  %v1590 = vadd.f32 %v1588, %v1589
  %v1591 = vrot.slane %v1590, 1
  %v1592 = vadd.f32 %v1590, %v1591
  %v1593 = vrcp.pop %v1586
  %v1594 = vrcp.pop %v1592
  %v1595 = vmul.f32 %v1578, %v1593
  %v1596 = vmul.f32 %v1580, %v1594
  %v1597 = vmul.f32 %v1595, %v626
  %v1598 = vmul.f32 %v1596, %v628
  %v1599 = vsel %vm648, %v1597, 0.0
  %v1600 = vrot.slane %v1599, 4
  %v1601 = vadd.f32 %v1599, %v1600
  %v1602 = vrot.slane %v1601, 2
  %v1603 = vadd.f32 %v1601, %v1602
  %v1604 = vrot.slane %v1603, 1
  %v1605 = vadd.f32 %v1603, %v1604
  %v1606 = vsel %vm648, %v1598, 0.0
  %v1607 = vrot.slane %v1606, 4
  %v1608 = vadd.f32 %v1606, %v1607
  %v1609 = vrot.slane %v1608, 2
  %v1610 = vadd.f32 %v1608, %v1609
  %v1611 = vrot.slane %v1610, 1
  %v1612 = vadd.f32 %v1610, %v1611
  %v1613 = vld [vmem:[%s11] sm:$0xff]
  %v1614 = vld [vmem:[%s11 + $0x8] sm:$0xff]
  %v1615 = vld [vmem:[%s13] sm:$0xff]
  %v1616 = vld [vmem:[%s17] sm:$0x1]
  %v1618 = vperm.slane %v1616, 0
  %vm1620 = vcmask 64512
  %v1622 = vsel %vm1620, %v1613, 0
  %v1625 = vsel %vm1620, %v1614, 0
  %1627 = vmatpush.msra.mxu0 0.0
  %1628 = vmatpush.msra.mxu0 0.0
  %1629 = vmatpush.msra.mxu0 0.0
  %1630 = vmatpush.msra.mxu0 0.0
  %1631 = vmatpush.msra.mxu0 0.0
  %1632 = vmatpush.msra.mxu0 0.0
  %1633 = vmatpush.msra.mxu0 0.0
  %1634 = vmatpush.msra.mxu0 0.0
  %1635 = vmatpush.msra.mxu0 0.0
  %1636 = vmatpush.msra.mxu0 0.0
  %1637 = vmatpush.msra.mxu0 0.0
  %1638 = vmatpush.msra.mxu0 0.0
  %1639 = vmatpush.msra.mxu0 0.0
  %1640 = vmatpush.msra.mxu0 0.0
  %1641 = vmatpush.msra.mxu0 0.0
  %1642 = vmatpush.msra.mxu0 %v1615
  %1643 = vmatmul.f32.gmra.mxu0 %v1622
  %v1644 = vpop.f32.mrf.mxu0
  %v1645 = vadd.f32 %v1618, %v1644
  %1646 = vmatmul.f32.gmra.mxu0 %v1625
  %v1647 = vpop.f32.mrf.mxu0
  %v1648 = vadd.f32 %v1618, %v1647
  %1649 = vdwg.mxu0
  %v1650 = vld [vmem:[%s19] sm:$0xff]
  %v1651 = vld [vmem:[%s23] sm:$0x1]
  %v1653 = vperm.slane %v1651, 0
  %1655 = vmatpush.msra.mxu0 0.0
  %1656 = vmatpush.msra.mxu0 0.0
  %1657 = vmatpush.msra.mxu0 0.0
  %1658 = vmatpush.msra.mxu0 0.0
  %1659 = vmatpush.msra.mxu0 0.0
  %1660 = vmatpush.msra.mxu0 0.0
  %1661 = vmatpush.msra.mxu0 0.0
  %1662 = vmatpush.msra.mxu0 0.0
  %1663 = vmatpush.msra.mxu0 0.0
  %1664 = vmatpush.msra.mxu0 0.0
  %1665 = vmatpush.msra.mxu0 0.0
  %1666 = vmatpush.msra.mxu0 0.0
  %1667 = vmatpush.msra.mxu0 0.0
  %1668 = vmatpush.msra.mxu0 0.0
  %1669 = vmatpush.msra.mxu0 0.0
  %1670 = vmatpush.msra.mxu0 %v1650
  %1671 = vmatmul.f32.gmra.mxu0 %v1622
  %v1672 = vpop.f32.mrf.mxu0
  %v1673 = vadd.f32 %v1653, %v1672
  %1674 = vmatmul.f32.gmra.mxu0 %v1625
  %v1675 = vpop.f32.mrf.mxu0
  %v1676 = vadd.f32 %v1653, %v1675
  %1677 = vdwg.mxu0
  %v1678 = vld [vmem:[%s15] sm:$0xff]
  %v1679 = vxor.u32 %v1645, 2147483648
  %v1680 = vmul.f32 %v1679, 1.442695
  %v1681 = vpow.pop %v1680
  %v1682 = vadd.f32 %v1681, 1.0
  %v1683 = vrcp.pop %v1682
  %v1684 = vmul.f32 %v1682, %v1683
  %v1685 = vsub.f32 1.0, %v1684
  %v1686 = vmul.f32 %v1683, %v1685
  %v1687 = vadd.f32 %v1683, %v1686
  %vm1688 = vweird.f32 %v1682
  %vm1689 = vweird.f32 %v1683
  %vm1690 = vmor %vm1688, %vm1689
  %v1691 = vsel %vm1690, %v1683, %v1687
  %v1692 = vand.u32 2147483647, %v1682
  %vm1693 = vcmp.eq.f32.partialorder %v1692, 8.507059e+37
  %v1694 = vand.u32 %v1682, 2147483648
  %v1695 = vor.u32 1.1754944e-38, %v1694
  %v1696 = vsel %vm1693, %v1695, %v1691
  %v1697 = vmul.f32 1.0, %v1696
  %v1698 = vtanh.pop %v1645
  %v1699 = vmul.f32 %v1697, 0.0
  %1701 = vrot.lane.b32.xlu0 %v1698, 112
  %v1702 = vpop.permute.xlu0 %1701
  %v1704 = vmul.f32 %v1697, %v1702
  %1706 = vrot.lane.b32.xlu0 %v1704, 8
  %v1707 = vpop.permute.xlu0 %1706
  %v1709 = vadd.f32 %v1699, %v1707
  %v1710 = vtanh.pop %v1709
  %1712 = vrot.lane.b32.xlu0 %v1710, 16
  %v1713 = vpop.permute.xlu0 %1712
  %v1715 = vmul.f32 %v1697, %v1713
  %1717 = vrot.lane.b32.xlu0 %v1715, 104
  %v1718 = vpop.permute.xlu0 %1717
  %v1719 = vsel %vm1620, %v1718, 0
  %1721 = vmatpush.msra.mxu0 0.0
  %1722 = vmatpush.msra.mxu0 0.0
  %1723 = vmatpush.msra.mxu0 0.0
  %1724 = vmatpush.msra.mxu0 0.0
  %1725 = vmatpush.msra.mxu0 0.0
  %1726 = vmatpush.msra.mxu0 0.0
  %1727 = vmatpush.msra.mxu0 0.0
  %1728 = vmatpush.msra.mxu0 0.0
  %1729 = vmatpush.msra.mxu0 0.0
  %1730 = vmatpush.msra.mxu0 0.0
  %1731 = vmatpush.msra.mxu0 0.0
  %1732 = vmatpush.msra.mxu0 0.0
  %1733 = vmatpush.msra.mxu0 0.0
  %1734 = vmatpush.msra.mxu0 0.0
  %1735 = vmatpush.msra.mxu0 0.0
  %1736 = vmatpush.msra.mxu0 %v1678
  %1737 = vmatmul.f32.gmra.mxu0 %v1719
  %v1738 = vpop.f32.mrf.mxu0
  %v1739 = vadd.f32 0.0, %v1738
  %1740 = vdwg.mxu0
  %v1742 = vrot.slane %v1739, 6
  %v1744 = vadd.f32 %v1645, %v1742
  %v1745 = vxor.u32 %v1744, 2147483648
  %v1746 = vmul.f32 %v1745, 1.442695
  %v1747 = vpow.pop %v1746
  %v1748 = vadd.f32 %v1747, 1.0
  %v1749 = vrcp.pop %v1748
  %v1750 = vmul.f32 %v1748, %v1749
  %v1751 = vsub.f32 1.0, %v1750
  %v1752 = vmul.f32 %v1749, %v1751
  %v1753 = vadd.f32 %v1749, %v1752
  %vm1754 = vweird.f32 %v1748
  %vm1755 = vweird.f32 %v1749
  %vm1756 = vmor %vm1754, %vm1755
  %v1757 = vsel %vm1756, %v1749, %v1753
  %v1758 = vand.u32 2147483647, %v1748
  %vm1759 = vcmp.eq.f32.partialorder %v1758, 8.507059e+37
  %v1760 = vand.u32 %v1748, 2147483648
  %v1761 = vor.u32 1.1754944e-38, %v1760
  %v1762 = vsel %vm1759, %v1761, %v1757
  %v1763 = vmul.f32 1.0, %v1762
  %v1764 = vtanh.pop %v1744
  %v1766 = vrot.slane %v1709, 6
  %v1768 = vmul.f32 %v1763, %v1766
  %1770 = vrot.lane.b32.xlu0 %v1764, 112
  %v1771 = vpop.permute.xlu0 %1770
  %v1773 = vmul.f32 %v1763, %v1771
  %1775 = vrot.lane.b32.xlu0 %v1773, 8
  %v1776 = vpop.permute.xlu0 %1775
  %v1778 = vadd.f32 %v1768, %v1776
  %v1779 = vtanh.pop %v1778
  %1781 = vrot.lane.b32.xlu0 %v1779, 16
  %v1782 = vpop.permute.xlu0 %1781
  %v1784 = vmul.f32 %v1763, %v1782
  %v1786 = vrot.slane %v1784, 2
  %1787 = vrot.lane.b32.xlu0 %v1786, 104
  %v1788 = vpop.permute.xlu0 %1787
  %v1789 = vsel %vm1620, %v1788, 0
  %1791 = vmatpush.msra.mxu0 0.0
  %1792 = vmatpush.msra.mxu0 0.0
  %1793 = vmatpush.msra.mxu0 0.0
  %1794 = vmatpush.msra.mxu0 0.0
  %1795 = vmatpush.msra.mxu0 0.0
  %1796 = vmatpush.msra.mxu0 0.0
  %1797 = vmatpush.msra.mxu0 0.0
  %1798 = vmatpush.msra.mxu0 0.0
  %1799 = vmatpush.msra.mxu0 0.0
  %1800 = vmatpush.msra.mxu0 0.0
  %1801 = vmatpush.msra.mxu0 0.0
  %1802 = vmatpush.msra.mxu0 0.0
  %1803 = vmatpush.msra.mxu0 0.0
  %1804 = vmatpush.msra.mxu0 0.0
  %1805 = vmatpush.msra.mxu0 0.0
  %1806 = vmatpush.msra.mxu0 %v1678
  %1807 = vmatmul.f32.gmra.mxu0 %v1789
  %v1808 = vpop.f32.mrf.mxu0
  %v1809 = vadd.f32 0.0, %v1808
  %1810 = vdwg.mxu0
  %v1812 = vrot.slane %v1809, 4
  %v1814 = vadd.f32 %v1645, %v1812
  %v1815 = vxor.u32 %v1814, 2147483648
  %v1816 = vmul.f32 %v1815, 1.442695
  %v1817 = vpow.pop %v1816
  %v1818 = vadd.f32 %v1817, 1.0
  %v1819 = vrcp.pop %v1818
  %v1820 = vmul.f32 %v1818, %v1819
  %v1821 = vsub.f32 1.0, %v1820
  %v1822 = vmul.f32 %v1819, %v1821
  %v1823 = vadd.f32 %v1819, %v1822
  %vm1824 = vweird.f32 %v1818
  %vm1825 = vweird.f32 %v1819
  %vm1826 = vmor %vm1824, %vm1825
  %v1827 = vsel %vm1826, %v1819, %v1823
  %v1828 = vand.u32 2147483647, %v1818
  %vm1829 = vcmp.eq.f32.partialorder %v1828, 8.507059e+37
  %v1830 = vand.u32 %v1818, 2147483648
  %v1831 = vor.u32 1.1754944e-38, %v1830
  %v1832 = vsel %vm1829, %v1831, %v1827
  %v1833 = vmul.f32 1.0, %v1832
  %v1834 = vtanh.pop %v1814
  %v1836 = vrot.slane %v1778, 6
  %v1838 = vmul.f32 %v1833, %v1836
  %1840 = vrot.lane.b32.xlu0 %v1834, 112
  %v1841 = vpop.permute.xlu0 %1840
  %v1843 = vmul.f32 %v1833, %v1841
  %1845 = vrot.lane.b32.xlu0 %v1843, 8
  %v1846 = vpop.permute.xlu0 %1845
  %v1848 = vadd.f32 %v1838, %v1846
  %v1849 = vtanh.pop %v1848
  %1851 = vrot.lane.b32.xlu0 %v1849, 16
  %v1852 = vpop.permute.xlu0 %1851
  %v1854 = vmul.f32 %v1833, %v1852
  %v1856 = vrot.slane %v1854, 4
  %1857 = vrot.lane.b32.xlu0 %v1856, 104
  %v1858 = vpop.permute.xlu0 %1857
  %v1859 = vsel %vm1620, %v1858, 0
  %1861 = vmatpush.msra.mxu0 0.0
  %1862 = vmatpush.msra.mxu0 0.0
  %1863 = vmatpush.msra.mxu0 0.0
  %1864 = vmatpush.msra.mxu0 0.0
  %1865 = vmatpush.msra.mxu0 0.0
  %1866 = vmatpush.msra.mxu0 0.0
  %1867 = vmatpush.msra.mxu0 0.0
  %1868 = vmatpush.msra.mxu0 0.0
  %1869 = vmatpush.msra.mxu0 0.0
  %1870 = vmatpush.msra.mxu0 0.0
  %1871 = vmatpush.msra.mxu0 0.0
  %1872 = vmatpush.msra.mxu0 0.0
  %1873 = vmatpush.msra.mxu0 0.0
  %1874 = vmatpush.msra.mxu0 0.0
  %1875 = vmatpush.msra.mxu0 0.0
  %1876 = vmatpush.msra.mxu0 %v1678
  %1877 = vmatmul.f32.gmra.mxu0 %v1859
  %v1878 = vpop.f32.mrf.mxu0
  %v1879 = vadd.f32 0.0, %v1878
  %1880 = vdwg.mxu0
  %v1882 = vrot.slane %v1879, 2
  %v1884 = vadd.f32 %v1645, %v1882
  %v1885 = vxor.u32 %v1884, 2147483648
  %v1886 = vmul.f32 %v1885, 1.442695
  %v1887 = vpow.pop %v1886
  %v1888 = vadd.f32 %v1887, 1.0
  %v1889 = vrcp.pop %v1888
  %v1890 = vmul.f32 %v1888, %v1889
  %v1891 = vsub.f32 1.0, %v1890
  %v1892 = vmul.f32 %v1889, %v1891
  %v1893 = vadd.f32 %v1889, %v1892
  %vm1894 = vweird.f32 %v1888
  %vm1895 = vweird.f32 %v1889
  %vm1896 = vmor %vm1894, %vm1895
  %v1897 = vsel %vm1896, %v1889, %v1893
  %v1898 = vand.u32 2147483647, %v1888
  %vm1899 = vcmp.eq.f32.partialorder %v1898, 8.507059e+37
  %v1900 = vand.u32 %v1888, 2147483648
  %v1901 = vor.u32 1.1754944e-38, %v1900
  %v1902 = vsel %vm1899, %v1901, %v1897
  %v1903 = vmul.f32 1.0, %v1902
  %v1904 = vtanh.pop %v1884
  %v1906 = vrot.slane %v1848, 6
  %v1908 = vmul.f32 %v1903, %v1906
  %1910 = vrot.lane.b32.xlu0 %v1904, 112
  %v1911 = vpop.permute.xlu0 %1910
  %v1913 = vmul.f32 %v1903, %v1911
  %1915 = vrot.lane.b32.xlu0 %v1913, 8
  %v1916 = vpop.permute.xlu0 %1915
  %v1918 = vadd.f32 %v1908, %v1916
  %v1919 = vtanh.pop %v1918
  %1921 = vrot.lane.b32.xlu0 %v1919, 16
  %v1922 = vpop.permute.xlu0 %1921
  %v1924 = vmul.f32 %v1903, %v1922
  %v1926 = vrot.slane %v1924, 6
  %1927 = vrot.lane.b32.xlu0 %v1926, 104
  %v1928 = vpop.permute.xlu0 %1927
  %v1929 = vsel %vm1620, %v1928, 0
  %1931 = vmatpush.msra.mxu0 0.0
  %1932 = vmatpush.msra.mxu0 0.0
  %1933 = vmatpush.msra.mxu0 0.0
  %1934 = vmatpush.msra.mxu0 0.0
  %1935 = vmatpush.msra.mxu0 0.0
  %1936 = vmatpush.msra.mxu0 0.0
  %1937 = vmatpush.msra.mxu0 0.0
  %1938 = vmatpush.msra.mxu0 0.0
  %1939 = vmatpush.msra.mxu0 0.0
  %1940 = vmatpush.msra.mxu0 0.0
  %1941 = vmatpush.msra.mxu0 0.0
  %1942 = vmatpush.msra.mxu0 0.0
  %1943 = vmatpush.msra.mxu0 0.0
  %1944 = vmatpush.msra.mxu0 0.0
  %1945 = vmatpush.msra.mxu0 0.0
  %1946 = vmatpush.msra.mxu0 %v1678
  %1947 = vmatmul.f32.gmra.mxu0 %v1929
  %v1948 = vpop.f32.mrf.mxu0
  %v1949 = vadd.f32 0.0, %v1948
  %1950 = vdwg.mxu0
  %v1951 = vadd.f32 %v1648, %v1949
  %v1952 = vxor.u32 %v1951, 2147483648
  %v1953 = vmul.f32 %v1952, 1.442695
  %v1954 = vpow.pop %v1953
  %v1955 = vadd.f32 %v1954, 1.0
  %v1956 = vrcp.pop %v1955
  %v1957 = vmul.f32 %v1955, %v1956
  %v1958 = vsub.f32 1.0, %v1957
  %v1959 = vmul.f32 %v1956, %v1958
  %v1960 = vadd.f32 %v1956, %v1959
  %vm1961 = vweird.f32 %v1955
  %vm1962 = vweird.f32 %v1956
  %vm1963 = vmor %vm1961, %vm1962
  %v1964 = vsel %vm1963, %v1956, %v1960
  %v1965 = vand.u32 2147483647, %v1955
  %vm1966 = vcmp.eq.f32.partialorder %v1965, 8.507059e+37
  %v1967 = vand.u32 %v1955, 2147483648
  %v1968 = vor.u32 1.1754944e-38, %v1967
  %v1969 = vsel %vm1966, %v1968, %v1964
  %v1970 = vmul.f32 1.0, %v1969
  %v1971 = vtanh.pop %v1951
  %v1973 = vrot.slane %v1918, 6
  %v1975 = vmul.f32 %v1970, %v1973
  %1977 = vrot.lane.b32.xlu0 %v1971, 112
  %v1978 = vpop.permute.xlu0 %1977
  %v1980 = vmul.f32 %v1970, %v1978
  %1982 = vrot.lane.b32.xlu0 %v1980, 8
  %v1983 = vpop.permute.xlu0 %1982
  %v1985 = vadd.f32 %v1975, %v1983
  %v1986 = vtanh.pop %v1985
  %1988 = vrot.lane.b32.xlu0 %v1986, 16
  %v1989 = vpop.permute.xlu0 %1988
  %v1991 = vmul.f32 %v1970, %v1989
  %1993 = vrot.lane.b32.xlu0 %v1991, 104
  %v1994 = vpop.permute.xlu0 %1993
  %v1995 = vsel %vm1620, %v1994, 0
  %1997 = vmatpush.msra.mxu0 0.0
  %1998 = vmatpush.msra.mxu0 0.0
  %1999 = vmatpush.msra.mxu0 0.0
  %2000 = vmatpush.msra.mxu0 0.0
  %2001 = vmatpush.msra.mxu0 0.0
  %2002 = vmatpush.msra.mxu0 0.0
  %2003 = vmatpush.msra.mxu0 0.0
  %2004 = vmatpush.msra.mxu0 0.0
  %2005 = vmatpush.msra.mxu0 0.0
  %2006 = vmatpush.msra.mxu0 0.0
  %2007 = vmatpush.msra.mxu0 0.0
  %2008 = vmatpush.msra.mxu0 0.0
  %2009 = vmatpush.msra.mxu0 0.0
  %2010 = vmatpush.msra.mxu0 0.0
  %2011 = vmatpush.msra.mxu0 0.0
  %2012 = vmatpush.msra.mxu0 %v1678
  %2013 = vmatmul.f32.gmra.mxu0 %v1995
  %v2014 = vpop.f32.mrf.mxu0
  %v2015 = vadd.f32 0.0, %v2014
  %2016 = vdwg.mxu0
  %v2018 = vrot.slane %v2015, 6
  %v2020 = vadd.f32 %v1648, %v2018
  %v2021 = vxor.u32 %v2020, 2147483648
  %v2022 = vmul.f32 %v2021, 1.442695
  %v2023 = vpow.pop %v2022
  %v2024 = vadd.f32 %v2023, 1.0
  %v2025 = vrcp.pop %v2024
  %v2026 = vmul.f32 %v2024, %v2025
  %v2027 = vsub.f32 1.0, %v2026
  %v2028 = vmul.f32 %v2025, %v2027
  %v2029 = vadd.f32 %v2025, %v2028
  %vm2030 = vweird.f32 %v2024
  %vm2031 = vweird.f32 %v2025
  %vm2032 = vmor %vm2030, %vm2031
  %v2033 = vsel %vm2032, %v2025, %v2029
  %v2034 = vand.u32 2147483647, %v2024
  %vm2035 = vcmp.eq.f32.partialorder %v2034, 8.507059e+37
  %v2036 = vand.u32 %v2024, 2147483648
  %v2037 = vor.u32 1.1754944e-38, %v2036
  %v2038 = vsel %vm2035, %v2037, %v2033
  %v2039 = vmul.f32 1.0, %v2038
  %v2040 = vtanh.pop %v2020
  %v2042 = vrot.slane %v1985, 6
  %v2044 = vmul.f32 %v2039, %v2042
  %2046 = vrot.lane.b32.xlu0 %v2040, 112
  %v2047 = vpop.permute.xlu0 %2046
  %v2049 = vmul.f32 %v2039, %v2047
  %2051 = vrot.lane.b32.xlu0 %v2049, 8
  %v2052 = vpop.permute.xlu0 %2051
  %v2054 = vadd.f32 %v2044, %v2052
  %v2055 = vtanh.pop %v2054
  %2057 = vrot.lane.b32.xlu0 %v2055, 16
  %v2058 = vpop.permute.xlu0 %2057
  %v2060 = vmul.f32 %v2039, %v2058
  %v2062 = vrot.slane %v2060, 2
  %2063 = vrot.lane.b32.xlu0 %v2062, 104
  %v2064 = vpop.permute.xlu0 %2063
  %v2065 = vsel %vm1620, %v2064, 0
  %2067 = vmatpush.msra.mxu0 0.0
  %2068 = vmatpush.msra.mxu0 0.0
  %2069 = vmatpush.msra.mxu0 0.0
  %2070 = vmatpush.msra.mxu0 0.0
  %2071 = vmatpush.msra.mxu0 0.0
  %2072 = vmatpush.msra.mxu0 0.0
  %2073 = vmatpush.msra.mxu0 0.0
  %2074 = vmatpush.msra.mxu0 0.0
  %2075 = vmatpush.msra.mxu0 0.0
  %2076 = vmatpush.msra.mxu0 0.0
  %2077 = vmatpush.msra.mxu0 0.0
  %2078 = vmatpush.msra.mxu0 0.0
  %2079 = vmatpush.msra.mxu0 0.0
  %2080 = vmatpush.msra.mxu0 0.0
  %2081 = vmatpush.msra.mxu0 0.0
  %2082 = vmatpush.msra.mxu0 %v1678
  %2083 = vmatmul.f32.gmra.mxu0 %v2065
  %v2084 = vpop.f32.mrf.mxu0
  %v2085 = vadd.f32 0.0, %v2084
  %2086 = vdwg.mxu0
  %v2088 = vrot.slane %v2085, 4
  %v2090 = vadd.f32 %v1648, %v2088
  %v2091 = vxor.u32 %v2090, 2147483648
  %v2092 = vmul.f32 %v2091, 1.442695
  %v2093 = vpow.pop %v2092
  %v2094 = vadd.f32 %v2093, 1.0
  %v2095 = vrcp.pop %v2094
  %v2096 = vmul.f32 %v2094, %v2095
  %v2097 = vsub.f32 1.0, %v2096
  %v2098 = vmul.f32 %v2095, %v2097
  %v2099 = vadd.f32 %v2095, %v2098
  %vm2100 = vweird.f32 %v2094
  %vm2101 = vweird.f32 %v2095
  %vm2102 = vmor %vm2100, %vm2101
  %v2103 = vsel %vm2102, %v2095, %v2099
  %v2104 = vand.u32 2147483647, %v2094
  %vm2105 = vcmp.eq.f32.partialorder %v2104, 8.507059e+37
  %v2106 = vand.u32 %v2094, 2147483648
  %v2107 = vor.u32 1.1754944e-38, %v2106
  %v2108 = vsel %vm2105, %v2107, %v2103
  %v2109 = vmul.f32 1.0, %v2108
  %v2110 = vtanh.pop %v2090
  %v2112 = vrot.slane %v2054, 6
  %v2114 = vmul.f32 %v2109, %v2112
  %2116 = vrot.lane.b32.xlu0 %v2110, 112
  %v2117 = vpop.permute.xlu0 %2116
  %v2119 = vmul.f32 %v2109, %v2117
  %2121 = vrot.lane.b32.xlu0 %v2119, 8
  %v2122 = vpop.permute.xlu0 %2121
  %v2124 = vadd.f32 %v2114, %v2122
  %v2125 = vtanh.pop %v2124
  %2127 = vrot.lane.b32.xlu0 %v2125, 16
  %v2128 = vpop.permute.xlu0 %2127
  %v2130 = vmul.f32 %v2109, %v2128
  %v2132 = vrot.slane %v2130, 4
  %2133 = vrot.lane.b32.xlu0 %v2132, 104
  %v2134 = vpop.permute.xlu0 %2133
  %v2135 = vsel %vm1620, %v2134, 0
  %2137 = vmatpush.msra.mxu0 0.0
  %2138 = vmatpush.msra.mxu0 0.0
  %2139 = vmatpush.msra.mxu0 0.0
  %2140 = vmatpush.msra.mxu0 0.0
  %2141 = vmatpush.msra.mxu0 0.0
  %2142 = vmatpush.msra.mxu0 0.0
  %2143 = vmatpush.msra.mxu0 0.0
  %2144 = vmatpush.msra.mxu0 0.0
  %2145 = vmatpush.msra.mxu0 0.0
  %2146 = vmatpush.msra.mxu0 0.0
  %2147 = vmatpush.msra.mxu0 0.0
  %2148 = vmatpush.msra.mxu0 0.0
  %2149 = vmatpush.msra.mxu0 0.0
  %2150 = vmatpush.msra.mxu0 0.0
  %2151 = vmatpush.msra.mxu0 0.0
  %2152 = vmatpush.msra.mxu0 %v1678
  %2153 = vmatmul.f32.gmra.mxu0 %v2135
  %v2154 = vpop.f32.mrf.mxu0
  %v2155 = vadd.f32 0.0, %v2154
  %2156 = vdwg.mxu0
  %v2158 = vrot.slane %v2155, 2
  %v2160 = vadd.f32 %v1648, %v2158
  %v2161 = vxor.u32 %v2160, 2147483648
  %v2162 = vmul.f32 %v2161, 1.442695
  %v2163 = vpow.pop %v2162
  %v2164 = vadd.f32 %v2163, 1.0
  %v2165 = vrcp.pop %v2164
  %v2166 = vmul.f32 %v2164, %v2165
  %v2167 = vsub.f32 1.0, %v2166
  %v2168 = vmul.f32 %v2165, %v2167
  %v2169 = vadd.f32 %v2165, %v2168
  %vm2170 = vweird.f32 %v2164
  %vm2171 = vweird.f32 %v2165
  %vm2172 = vmor %vm2170, %vm2171
  %v2173 = vsel %vm2172, %v2165, %v2169
  %v2174 = vand.u32 2147483647, %v2164
  %vm2175 = vcmp.eq.f32.partialorder %v2174, 8.507059e+37
  %v2176 = vand.u32 %v2164, 2147483648
  %v2177 = vor.u32 1.1754944e-38, %v2176
  %v2178 = vsel %vm2175, %v2177, %v2173
  %v2179 = vmul.f32 1.0, %v2178
  %v2180 = vtanh.pop %v2160
  %v2182 = vrot.slane %v2124, 6
  %v2184 = vmul.f32 %v2179, %v2182
  %2186 = vrot.lane.b32.xlu0 %v2180, 112
  %v2187 = vpop.permute.xlu0 %2186
  %v2189 = vmul.f32 %v2179, %v2187
  %2191 = vrot.lane.b32.xlu0 %v2189, 8
  %v2192 = vpop.permute.xlu0 %2191
  %v2194 = vadd.f32 %v2184, %v2192
  %v2195 = vtanh.pop %v2194
  %2197 = vrot.lane.b32.xlu0 %v2195, 16
  %v2198 = vpop.permute.xlu0 %2197
  %v2200 = vmul.f32 %v2179, %v2198
  %v2201 = vld [vmem:[%s21] sm:$0xff]
  %v2202 = vxor.u32 %v1676, 2147483648
  %v2203 = vmul.f32 %v2202, 1.442695
  %v2204 = vpow.pop %v2203
  %v2205 = vadd.f32 %v2204, 1.0
  %v2206 = vrcp.pop %v2205
  %v2207 = vmul.f32 %v2205, %v2206
  %v2208 = vsub.f32 1.0, %v2207
  %v2209 = vmul.f32 %v2206, %v2208
  %v2210 = vadd.f32 %v2206, %v2209
  %vm2211 = vweird.f32 %v2205
  %vm2212 = vweird.f32 %v2206
  %vm2213 = vmor %vm2211, %vm2212
  %v2214 = vsel %vm2213, %v2206, %v2210
  %v2215 = vand.u32 2147483647, %v2205
  %vm2216 = vcmp.eq.f32.partialorder %v2215, 8.507059e+37
  %v2217 = vand.u32 %v2205, 2147483648
  %v2218 = vor.u32 1.1754944e-38, %v2217
  %v2219 = vsel %vm2216, %v2218, %v2214
  %v2220 = vmul.f32 1.0, %v2219
  %v2221 = vtanh.pop %v1676
  %v2222 = vmul.f32 %v2220, 0.0
  %2224 = vrot.lane.b32.xlu0 %v2221, 112
  %v2225 = vpop.permute.xlu0 %2224
  %v2227 = vmul.f32 %v2220, %v2225
  %2229 = vrot.lane.b32.xlu0 %v2227, 8
  %v2230 = vpop.permute.xlu0 %2229
  %v2232 = vadd.f32 %v2222, %v2230
  %v2233 = vtanh.pop %v2232
  %2235 = vrot.lane.b32.xlu0 %v2233, 16
  %v2236 = vpop.permute.xlu0 %2235
  %v2238 = vmul.f32 %v2220, %v2236
  %v2240 = vrot.slane %v2238, 6
  %2241 = vrot.lane.b32.xlu0 %v2240, 104
  %v2242 = vpop.permute.xlu0 %2241
  %v2243 = vsel %vm1620, %v2242, 0
  %2245 = vmatpush.msra.mxu0 0.0
  %2246 = vmatpush.msra.mxu0 0.0
  %2247 = vmatpush.msra.mxu0 0.0
  %2248 = vmatpush.msra.mxu0 0.0
  %2249 = vmatpush.msra.mxu0 0.0
  %2250 = vmatpush.msra.mxu0 0.0
  %2251 = vmatpush.msra.mxu0 0.0
  %2252 = vmatpush.msra.mxu0 0.0
  %2253 = vmatpush.msra.mxu0 0.0
  %2254 = vmatpush.msra.mxu0 0.0
  %2255 = vmatpush.msra.mxu0 0.0
  %2256 = vmatpush.msra.mxu0 0.0
  %2257 = vmatpush.msra.mxu0 0.0
  %2258 = vmatpush.msra.mxu0 0.0
  %2259 = vmatpush.msra.mxu0 0.0
  %2260 = vmatpush.msra.mxu0 %v2201
  %2261 = vmatmul.f32.gmra.mxu0 %v2243
  %v2262 = vpop.f32.mrf.mxu0
  %v2263 = vadd.f32 0.0, %v2262
  %2264 = vdwg.mxu0
  %v2266 = vrot.slane %v2263, 4
  %v2268 = vadd.f32 %v1676, %v2266
  %v2269 = vxor.u32 %v2268, 2147483648
  %v2270 = vmul.f32 %v2269, 1.442695
  %v2271 = vpow.pop %v2270
  %v2272 = vadd.f32 %v2271, 1.0
  %v2273 = vrcp.pop %v2272
  %v2274 = vmul.f32 %v2272, %v2273
  %v2275 = vsub.f32 1.0, %v2274
  %v2276 = vmul.f32 %v2273, %v2275
  %v2277 = vadd.f32 %v2273, %v2276
  %vm2278 = vweird.f32 %v2272
  %vm2279 = vweird.f32 %v2273
  %vm2280 = vmor %vm2278, %vm2279
  %v2281 = vsel %vm2280, %v2273, %v2277
  %v2282 = vand.u32 2147483647, %v2272
  %vm2283 = vcmp.eq.f32.partialorder %v2282, 8.507059e+37
  %v2284 = vand.u32 %v2272, 2147483648
  %v2285 = vor.u32 1.1754944e-38, %v2284
  %v2286 = vsel %vm2283, %v2285, %v2281
  %v2287 = vmul.f32 1.0, %v2286
  %v2288 = vtanh.pop %v2268
  %v2290 = vrot.slane %v2232, 2
  %v2292 = vmul.f32 %v2287, %v2290
  %2294 = vrot.lane.b32.xlu0 %v2288, 112
  %v2295 = vpop.permute.xlu0 %2294
  %v2297 = vmul.f32 %v2287, %v2295
  %2299 = vrot.lane.b32.xlu0 %v2297, 8
  %v2300 = vpop.permute.xlu0 %2299
  %v2302 = vadd.f32 %v2292, %v2300
  %v2303 = vtanh.pop %v2302
  %2305 = vrot.lane.b32.xlu0 %v2303, 16
  %v2306 = vpop.permute.xlu0 %2305
  %v2308 = vmul.f32 %v2287, %v2306
  %v2310 = vrot.slane %v2308, 4
  %2311 = vrot.lane.b32.xlu0 %v2310, 104
  %v2312 = vpop.permute.xlu0 %2311
  %v2313 = vsel %vm1620, %v2312, 0
  %2315 = vmatpush.msra.mxu0 0.0
  %2316 = vmatpush.msra.mxu0 0.0
  %2317 = vmatpush.msra.mxu0 0.0
  %2318 = vmatpush.msra.mxu0 0.0
  %2319 = vmatpush.msra.mxu0 0.0
  %2320 = vmatpush.msra.mxu0 0.0
  %2321 = vmatpush.msra.mxu0 0.0
  %2322 = vmatpush.msra.mxu0 0.0
  %2323 = vmatpush.msra.mxu0 0.0
  %2324 = vmatpush.msra.mxu0 0.0
  %2325 = vmatpush.msra.mxu0 0.0
  %2326 = vmatpush.msra.mxu0 0.0
  %2327 = vmatpush.msra.mxu0 0.0
  %2328 = vmatpush.msra.mxu0 0.0
  %2329 = vmatpush.msra.mxu0 0.0
  %2330 = vmatpush.msra.mxu0 %v2201
  %2331 = vmatmul.f32.gmra.mxu0 %v2313
  %v2332 = vpop.f32.mrf.mxu0
  %v2333 = vadd.f32 0.0, %v2332
  %2334 = vdwg.mxu0
  %v2336 = vrot.slane %v2333, 6
  %v2338 = vadd.f32 %v1676, %v2336
  %v2339 = vxor.u32 %v2338, 2147483648
  %v2340 = vmul.f32 %v2339, 1.442695
  %v2341 = vpow.pop %v2340
  %v2342 = vadd.f32 %v2341, 1.0
  %v2343 = vrcp.pop %v2342
  %v2344 = vmul.f32 %v2342, %v2343
  %v2345 = vsub.f32 1.0, %v2344
  %v2346 = vmul.f32 %v2343, %v2345
  %v2347 = vadd.f32 %v2343, %v2346
  %vm2348 = vweird.f32 %v2342
  %vm2349 = vweird.f32 %v2343
  %vm2350 = vmor %vm2348, %vm2349
  %v2351 = vsel %vm2350, %v2343, %v2347
  %v2352 = vand.u32 2147483647, %v2342
  %vm2353 = vcmp.eq.f32.partialorder %v2352, 8.507059e+37
  %v2354 = vand.u32 %v2342, 2147483648
  %v2355 = vor.u32 1.1754944e-38, %v2354
  %v2356 = vsel %vm2353, %v2355, %v2351
  %v2357 = vmul.f32 1.0, %v2356
  %v2358 = vtanh.pop %v2338
  %v2360 = vrot.slane %v2302, 2
  %v2362 = vmul.f32 %v2357, %v2360
  %2364 = vrot.lane.b32.xlu0 %v2358, 112
  %v2365 = vpop.permute.xlu0 %2364
  %v2367 = vmul.f32 %v2357, %v2365
  %2369 = vrot.lane.b32.xlu0 %v2367, 8
  %v2370 = vpop.permute.xlu0 %2369
  %v2372 = vadd.f32 %v2362, %v2370
  %v2373 = vtanh.pop %v2372
  %2375 = vrot.lane.b32.xlu0 %v2373, 16
  %v2376 = vpop.permute.xlu0 %2375
  %v2378 = vmul.f32 %v2357, %v2376
  %v2380 = vrot.slane %v2378, 2
  %2381 = vrot.lane.b32.xlu0 %v2380, 104
  %v2382 = vpop.permute.xlu0 %2381
  %v2383 = vsel %vm1620, %v2382, 0
  %2385 = vmatpush.msra.mxu0 0.0
  %2386 = vmatpush.msra.mxu0 0.0
  %2387 = vmatpush.msra.mxu0 0.0
  %2388 = vmatpush.msra.mxu0 0.0
  %2389 = vmatpush.msra.mxu0 0.0
  %2390 = vmatpush.msra.mxu0 0.0
  %2391 = vmatpush.msra.mxu0 0.0
  %2392 = vmatpush.msra.mxu0 0.0
  %2393 = vmatpush.msra.mxu0 0.0
  %2394 = vmatpush.msra.mxu0 0.0
  %2395 = vmatpush.msra.mxu0 0.0
  %2396 = vmatpush.msra.mxu0 0.0
  %2397 = vmatpush.msra.mxu0 0.0
  %2398 = vmatpush.msra.mxu0 0.0
  %2399 = vmatpush.msra.mxu0 0.0
  %2400 = vmatpush.msra.mxu0 %v2201
  %2401 = vmatmul.f32.gmra.mxu0 %v2383
  %v2402 = vpop.f32.mrf.mxu0
  %v2403 = vadd.f32 0.0, %v2402
  %2404 = vdwg.mxu0
  %v2405 = vadd.f32 %v1676, %v2403
  %v2406 = vxor.u32 %v2405, 2147483648
  %v2407 = vmul.f32 %v2406, 1.442695
  %v2408 = vpow.pop %v2407
  %v2409 = vadd.f32 %v2408, 1.0
  %v2410 = vrcp.pop %v2409
  %v2411 = vmul.f32 %v2409, %v2410
  %v2412 = vsub.f32 1.0, %v2411
  %v2413 = vmul.f32 %v2410, %v2412
  %v2414 = vadd.f32 %v2410, %v2413
  %vm2415 = vweird.f32 %v2409
  %vm2416 = vweird.f32 %v2410
  %vm2417 = vmor %vm2415, %vm2416
  %v2418 = vsel %vm2417, %v2410, %v2414
  %v2419 = vand.u32 2147483647, %v2409
  %vm2420 = vcmp.eq.f32.partialorder %v2419, 8.507059e+37
  %v2421 = vand.u32 %v2409, 2147483648
  %v2422 = vor.u32 1.1754944e-38, %v2421
  %v2423 = vsel %vm2420, %v2422, %v2418
  %v2424 = vmul.f32 1.0, %v2423
  %v2425 = vtanh.pop %v2405
  %v2427 = vrot.slane %v2372, 2
  %v2429 = vmul.f32 %v2424, %v2427
  %2431 = vrot.lane.b32.xlu0 %v2425, 112
  %v2432 = vpop.permute.xlu0 %2431
  %v2434 = vmul.f32 %v2424, %v2432
  %2436 = vrot.lane.b32.xlu0 %v2434, 8
  %v2437 = vpop.permute.xlu0 %2436
  %v2439 = vadd.f32 %v2429, %v2437
  %v2440 = vtanh.pop %v2439
  %2442 = vrot.lane.b32.xlu0 %v2440, 16
  %v2443 = vpop.permute.xlu0 %2442
  %v2445 = vmul.f32 %v2424, %v2443
  %2447 = vrot.lane.b32.xlu0 %v2445, 104
  %v2448 = vpop.permute.xlu0 %2447
  %v2449 = vsel %vm1620, %v2448, 0
  %2451 = vmatpush.msra.mxu0 0.0
  %2452 = vmatpush.msra.mxu0 0.0
  %2453 = vmatpush.msra.mxu0 0.0
  %2454 = vmatpush.msra.mxu0 0.0
  %2455 = vmatpush.msra.mxu0 0.0
  %2456 = vmatpush.msra.mxu0 0.0
  %2457 = vmatpush.msra.mxu0 0.0
  %2458 = vmatpush.msra.mxu0 0.0
  %2459 = vmatpush.msra.mxu0 0.0
  %2460 = vmatpush.msra.mxu0 0.0
  %2461 = vmatpush.msra.mxu0 0.0
  %2462 = vmatpush.msra.mxu0 0.0
  %2463 = vmatpush.msra.mxu0 0.0
  %2464 = vmatpush.msra.mxu0 0.0
  %2465 = vmatpush.msra.mxu0 0.0
  %2466 = vmatpush.msra.mxu0 %v2201
  %2467 = vmatmul.f32.gmra.mxu0 %v2449
  %v2468 = vpop.f32.mrf.mxu0
  %v2469 = vadd.f32 0.0, %v2468
  %2470 = vdwg.mxu0
  %v2472 = vrot.slane %v2469, 2
  %v2474 = vadd.f32 %v1673, %v2472
  %v2475 = vxor.u32 %v2474, 2147483648
  %v2476 = vmul.f32 %v2475, 1.442695
  %v2477 = vpow.pop %v2476
  %v2478 = vadd.f32 %v2477, 1.0
  %v2479 = vrcp.pop %v2478
  %v2480 = vmul.f32 %v2478, %v2479
  %v2481 = vsub.f32 1.0, %v2480
  %v2482 = vmul.f32 %v2479, %v2481
  %v2483 = vadd.f32 %v2479, %v2482
  %vm2484 = vweird.f32 %v2478
  %vm2485 = vweird.f32 %v2479
  %vm2486 = vmor %vm2484, %vm2485
  %v2487 = vsel %vm2486, %v2479, %v2483
  %v2488 = vand.u32 2147483647, %v2478
  %vm2489 = vcmp.eq.f32.partialorder %v2488, 8.507059e+37
  %v2490 = vand.u32 %v2478, 2147483648
  %v2491 = vor.u32 1.1754944e-38, %v2490
  %v2492 = vsel %vm2489, %v2491, %v2487
  %v2493 = vmul.f32 1.0, %v2492
  %v2494 = vtanh.pop %v2474
  %v2496 = vrot.slane %v2439, 2
  %v2498 = vmul.f32 %v2493, %v2496
  %2500 = vrot.lane.b32.xlu0 %v2494, 112
  %v2501 = vpop.permute.xlu0 %2500
  %v2503 = vmul.f32 %v2493, %v2501
  %2505 = vrot.lane.b32.xlu0 %v2503, 8
  %v2506 = vpop.permute.xlu0 %2505
  %v2508 = vadd.f32 %v2498, %v2506
  %v2509 = vtanh.pop %v2508
  %2511 = vrot.lane.b32.xlu0 %v2509, 16
  %v2512 = vpop.permute.xlu0 %2511
  %v2514 = vmul.f32 %v2493, %v2512
  %v2516 = vrot.slane %v2514, 6
  %2517 = vrot.lane.b32.xlu0 %v2516, 104
  %v2518 = vpop.permute.xlu0 %2517
  %v2519 = vsel %vm1620, %v2518, 0
  %2521 = vmatpush.msra.mxu0 0.0
  %2522 = vmatpush.msra.mxu0 0.0
  %2523 = vmatpush.msra.mxu0 0.0
  %2524 = vmatpush.msra.mxu0 0.0
  %2525 = vmatpush.msra.mxu0 0.0
  %2526 = vmatpush.msra.mxu0 0.0
  %2527 = vmatpush.msra.mxu0 0.0
  %2528 = vmatpush.msra.mxu0 0.0
  %2529 = vmatpush.msra.mxu0 0.0
  %2530 = vmatpush.msra.mxu0 0.0
  %2531 = vmatpush.msra.mxu0 0.0
  %2532 = vmatpush.msra.mxu0 0.0
  %2533 = vmatpush.msra.mxu0 0.0
  %2534 = vmatpush.msra.mxu0 0.0
  %2535 = vmatpush.msra.mxu0 0.0
  %2536 = vmatpush.msra.mxu0 %v2201
  %2537 = vmatmul.f32.gmra.mxu0 %v2519
  %v2538 = vpop.f32.mrf.mxu0
  %v2539 = vadd.f32 0.0, %v2538
  %2540 = vdwg.mxu0
  %v2542 = vrot.slane %v2539, 4
  %v2544 = vadd.f32 %v1673, %v2542
  %v2545 = vxor.u32 %v2544, 2147483648
  %v2546 = vmul.f32 %v2545, 1.442695
  %v2547 = vpow.pop %v2546
  %v2548 = vadd.f32 %v2547, 1.0
  %v2549 = vrcp.pop %v2548
  %v2550 = vmul.f32 %v2548, %v2549
  %v2551 = vsub.f32 1.0, %v2550
  %v2552 = vmul.f32 %v2549, %v2551
  %v2553 = vadd.f32 %v2549, %v2552
  %vm2554 = vweird.f32 %v2548
  %vm2555 = vweird.f32 %v2549
  %vm2556 = vmor %vm2554, %vm2555
  %v2557 = vsel %vm2556, %v2549, %v2553
  %v2558 = vand.u32 2147483647, %v2548
  %vm2559 = vcmp.eq.f32.partialorder %v2558, 8.507059e+37
  %v2560 = vand.u32 %v2548, 2147483648
  %v2561 = vor.u32 1.1754944e-38, %v2560
  %v2562 = vsel %vm2559, %v2561, %v2557
  %v2563 = vmul.f32 1.0, %v2562
  %v2564 = vtanh.pop %v2544
  %v2566 = vrot.slane %v2508, 2
  %v2568 = vmul.f32 %v2563, %v2566
  %2570 = vrot.lane.b32.xlu0 %v2564, 112
  %v2571 = vpop.permute.xlu0 %2570
  %v2573 = vmul.f32 %v2563, %v2571
  %2575 = vrot.lane.b32.xlu0 %v2573, 8
  %v2576 = vpop.permute.xlu0 %2575
  %v2578 = vadd.f32 %v2568, %v2576
  %v2579 = vtanh.pop %v2578
  %2581 = vrot.lane.b32.xlu0 %v2579, 16
  %v2582 = vpop.permute.xlu0 %2581
  %v2584 = vmul.f32 %v2563, %v2582
  %v2586 = vrot.slane %v2584, 4
  %2587 = vrot.lane.b32.xlu0 %v2586, 104
  %v2588 = vpop.permute.xlu0 %2587
  %v2589 = vsel %vm1620, %v2588, 0
  %2591 = vmatpush.msra.mxu0 0.0
  %2592 = vmatpush.msra.mxu0 0.0
  %2593 = vmatpush.msra.mxu0 0.0
  %2594 = vmatpush.msra.mxu0 0.0
  %2595 = vmatpush.msra.mxu0 0.0
  %2596 = vmatpush.msra.mxu0 0.0
  %2597 = vmatpush.msra.mxu0 0.0
  %2598 = vmatpush.msra.mxu0 0.0
  %2599 = vmatpush.msra.mxu0 0.0
  %2600 = vmatpush.msra.mxu0 0.0
  %2601 = vmatpush.msra.mxu0 0.0
  %2602 = vmatpush.msra.mxu0 0.0
  %2603 = vmatpush.msra.mxu0 0.0
  %2604 = vmatpush.msra.mxu0 0.0
  %2605 = vmatpush.msra.mxu0 0.0
  %2606 = vmatpush.msra.mxu0 %v2201
  %2607 = vmatmul.f32.gmra.mxu0 %v2589
  %v2608 = vpop.f32.mrf.mxu0
  %v2609 = vadd.f32 0.0, %v2608
  %2610 = vdwg.mxu0
  %v2612 = vrot.slane %v2609, 6
  %v2614 = vadd.f32 %v1673, %v2612
  %v2615 = vxor.u32 %v2614, 2147483648
  %v2616 = vmul.f32 %v2615, 1.442695
  %v2617 = vpow.pop %v2616
  %v2618 = vadd.f32 %v2617, 1.0
  %v2619 = vrcp.pop %v2618
  %v2620 = vmul.f32 %v2618, %v2619
  %v2621 = vsub.f32 1.0, %v2620
  %v2622 = vmul.f32 %v2619, %v2621
  %v2623 = vadd.f32 %v2619, %v2622
  %vm2624 = vweird.f32 %v2618
  %vm2625 = vweird.f32 %v2619
  %vm2626 = vmor %vm2624, %vm2625
  %v2627 = vsel %vm2626, %v2619, %v2623
  %v2628 = vand.u32 2147483647, %v2618
  %vm2629 = vcmp.eq.f32.partialorder %v2628, 8.507059e+37
  %v2630 = vand.u32 %v2618, 2147483648
  %v2631 = vor.u32 1.1754944e-38, %v2630
  %v2632 = vsel %vm2629, %v2631, %v2627
  %v2633 = vmul.f32 1.0, %v2632
  %v2634 = vtanh.pop %v2614
  %v2636 = vrot.slane %v2578, 2
  %v2638 = vmul.f32 %v2633, %v2636
  %2640 = vrot.lane.b32.xlu0 %v2634, 112
  %v2641 = vpop.permute.xlu0 %2640
  %v2643 = vmul.f32 %v2633, %v2641
  %2645 = vrot.lane.b32.xlu0 %v2643, 8
  %v2646 = vpop.permute.xlu0 %2645
  %v2648 = vadd.f32 %v2638, %v2646
  %v2649 = vtanh.pop %v2648
  %2651 = vrot.lane.b32.xlu0 %v2649, 16
  %v2652 = vpop.permute.xlu0 %2651
  %v2654 = vmul.f32 %v2633, %v2652
  %v2656 = vrot.slane %v2654, 2
  %2657 = vrot.lane.b32.xlu0 %v2656, 104
  %v2658 = vpop.permute.xlu0 %2657
  %v2659 = vsel %vm1620, %v2658, 0
  %2661 = vmatpush.msra.mxu0 0.0
  %2662 = vmatpush.msra.mxu0 0.0
  %2663 = vmatpush.msra.mxu0 0.0
  %2664 = vmatpush.msra.mxu0 0.0
  %2665 = vmatpush.msra.mxu0 0.0
  %2666 = vmatpush.msra.mxu0 0.0
  %2667 = vmatpush.msra.mxu0 0.0
  %2668 = vmatpush.msra.mxu0 0.0
  %2669 = vmatpush.msra.mxu0 0.0
  %2670 = vmatpush.msra.mxu0 0.0
  %2671 = vmatpush.msra.mxu0 0.0
  %2672 = vmatpush.msra.mxu0 0.0
  %2673 = vmatpush.msra.mxu0 0.0
  %2674 = vmatpush.msra.mxu0 0.0
  %2675 = vmatpush.msra.mxu0 0.0
  %2676 = vmatpush.msra.mxu0 %v2201
  %2677 = vmatmul.f32.gmra.mxu0 %v2659
  %v2678 = vpop.f32.mrf.mxu0
  %v2679 = vadd.f32 0.0, %v2678
  %2680 = vdwg.mxu0
  %v2681 = vadd.f32 %v1673, %v2679
  %v2682 = vxor.u32 %v2681, 2147483648
  %v2683 = vmul.f32 %v2682, 1.442695
  %v2684 = vpow.pop %v2683
  %v2685 = vadd.f32 %v2684, 1.0
  %v2686 = vrcp.pop %v2685
  %v2687 = vmul.f32 %v2685, %v2686
  %v2688 = vsub.f32 1.0, %v2687
  %v2689 = vmul.f32 %v2686, %v2688
  %v2690 = vadd.f32 %v2686, %v2689
  %vm2691 = vweird.f32 %v2685
  %vm2692 = vweird.f32 %v2686
  %vm2693 = vmor %vm2691, %vm2692
  %v2694 = vsel %vm2693, %v2686, %v2690
  %v2695 = vand.u32 2147483647, %v2685
  %vm2696 = vcmp.eq.f32.partialorder %v2695, 8.507059e+37
  %v2697 = vand.u32 %v2685, 2147483648
  %v2698 = vor.u32 1.1754944e-38, %v2697
  %v2699 = vsel %vm2696, %v2698, %v2694
  %v2700 = vmul.f32 1.0, %v2699
  %v2701 = vtanh.pop %v2681
  %v2703 = vrot.slane %v2648, 2
  %v2705 = vmul.f32 %v2700, %v2703
  %2707 = vrot.lane.b32.xlu0 %v2701, 112
  %v2708 = vpop.permute.xlu0 %2707
  %v2710 = vmul.f32 %v2700, %v2708
  %2712 = vrot.lane.b32.xlu0 %v2710, 8
  %v2713 = vpop.permute.xlu0 %2712
  %v2715 = vadd.f32 %v2705, %v2713
  %v2716 = vtanh.pop %v2715
  %2718 = vrot.lane.b32.xlu0 %v2716, 16
  %v2719 = vpop.permute.xlu0 %2718
  %v2721 = vmul.f32 %v2700, %v2719
  %v2722 = vld [vmem:[%s25] sm:$0xff]
  %v2723 = vld [vmem:[%s25 + $0x8] sm:$0xff]
  %v2724 = vld [vmem:[%s27] sm:$0xff]
  %v2725 = vld [vmem:[%s27 + $0x8] sm:$0xff]
  %v2726 = vld [vmem:[%s31] sm:$0x1]
  %v2728 = vperm.slane %v2726, 0
  %vm2730 = vcmask 130048
  %v2732 = vsel %vm2730, %v2722, 0
  %v2735 = vsel %vm2730, %v2723, 0
  %2737 = vmatpush.msra.mxu0 0.0
  %2738 = vmatpush.msra.mxu0 0.0
  %2739 = vmatpush.msra.mxu0 0.0
  %2740 = vmatpush.msra.mxu0 0.0
  %2741 = vmatpush.msra.mxu0 0.0
  %2742 = vmatpush.msra.mxu0 0.0
  %2743 = vmatpush.msra.mxu0 0.0
  %2744 = vmatpush.msra.mxu0 0.0
  %2745 = vmatpush.msra.mxu0 0.0
  %2746 = vmatpush.msra.mxu0 0.0
  %2747 = vmatpush.msra.mxu0 0.0
  %2748 = vmatpush.msra.mxu0 0.0
  %2749 = vmatpush.msra.mxu0 0.0
  %2750 = vmatpush.msra.mxu0 0.0
  %2751 = vmatpush.msra.mxu0 %v2725
  %2752 = vmatpush.msra.mxu0 %v2724
  %2753 = vmatmul.f32.gmra.mxu0 %v2732
  %v2754 = vpop.f32.mrf.mxu0
  %v2755 = vadd.f32 %v2728, %v2754
  %2756 = vmatmul.f32.gmra.mxu0 %v2735
  %v2757 = vpop.f32.mrf.mxu0
  %v2758 = vadd.f32 %v2728, %v2757
  %2759 = vdwg.mxu0
  %v2760 = vld [vmem:[%s33] sm:$0xff]
  %v2761 = vld [vmem:[%s33 + $0x8] sm:$0xff]
  %v2762 = vld [vmem:[%s37] sm:$0x1]
  %v2764 = vperm.slane %v2762, 0
  %2766 = vmatpush.msra.mxu0 0.0
  %2767 = vmatpush.msra.mxu0 0.0
  %2768 = vmatpush.msra.mxu0 0.0
  %2769 = vmatpush.msra.mxu0 0.0
  %2770 = vmatpush.msra.mxu0 0.0
  %2771 = vmatpush.msra.mxu0 0.0
  %2772 = vmatpush.msra.mxu0 0.0
  %2773 = vmatpush.msra.mxu0 0.0
  %2774 = vmatpush.msra.mxu0 0.0
  %2775 = vmatpush.msra.mxu0 0.0
  %2776 = vmatpush.msra.mxu0 0.0
  %2777 = vmatpush.msra.mxu0 0.0
  %2778 = vmatpush.msra.mxu0 0.0
  %2779 = vmatpush.msra.mxu0 0.0
  %2780 = vmatpush.msra.mxu0 %v2761
  %2781 = vmatpush.msra.mxu0 %v2760
  %2782 = vmatmul.f32.gmra.mxu0 %v2732
  %v2783 = vpop.f32.mrf.mxu0
  %v2784 = vadd.f32 %v2764, %v2783
  %2785 = vmatmul.f32.gmra.mxu0 %v2735
  %v2786 = vpop.f32.mrf.mxu0
  %v2787 = vadd.f32 %v2764, %v2786
  %2788 = vdwg.mxu0
  %v2789 = vld [vmem:[%s29] sm:$0xff]
  %v2790 = vld [vmem:[%s29 + $0x8] sm:$0xff]
  %v2791 = vxor.u32 %v2755, 2147483648
  %v2792 = vmul.f32 %v2791, 1.442695
  %v2793 = vpow.pop %v2792
  %v2794 = vadd.f32 %v2793, 1.0
  %v2795 = vrcp.pop %v2794
  %v2796 = vmul.f32 %v2794, %v2795
  %v2797 = vsub.f32 1.0, %v2796
  %v2798 = vmul.f32 %v2795, %v2797
  %v2799 = vadd.f32 %v2795, %v2798
  %vm2800 = vweird.f32 %v2794
  %vm2801 = vweird.f32 %v2795
  %vm2802 = vmor %vm2800, %vm2801
  %v2803 = vsel %vm2802, %v2795, %v2799
  %v2804 = vand.u32 2147483647, %v2794
  %vm2805 = vcmp.eq.f32.partialorder %v2804, 8.507059e+37
  %v2806 = vand.u32 %v2794, 2147483648
  %v2807 = vor.u32 1.1754944e-38, %v2806
  %v2808 = vsel %vm2805, %v2807, %v2803
  %v2809 = vmul.f32 1.0, %v2808
  %v2810 = vtanh.pop %v2755
  %v2811 = vmul.f32 %v2809, 0.0
  %2813 = vrot.lane.b32.xlu0 %v2810, 96
  %v2814 = vpop.permute.xlu0 %2813
  %v2816 = vmul.f32 %v2809, %v2814
  %2818 = vrot.lane.b32.xlu0 %v2816, 16
  %v2819 = vpop.permute.xlu0 %2818
  %v2821 = vadd.f32 %v2811, %v2819
  %v2822 = vtanh.pop %v2821
  %2824 = vrot.lane.b32.xlu0 %v2822, 32
  %v2825 = vpop.permute.xlu0 %2824
  %v2827 = vmul.f32 %v2809, %v2825
  %2829 = vrot.lane.b32.xlu0 %v2827, 80
  %v2830 = vpop.permute.xlu0 %2829
  %v2831 = vsel %vm2730, %v2830, 0
  %2833 = vmatpush.msra.mxu0 0.0
  %2834 = vmatpush.msra.mxu0 0.0
  %2835 = vmatpush.msra.mxu0 0.0
  %2836 = vmatpush.msra.mxu0 0.0
  %2837 = vmatpush.msra.mxu0 0.0
  %2838 = vmatpush.msra.mxu0 0.0
  %2839 = vmatpush.msra.mxu0 0.0
  %2840 = vmatpush.msra.mxu0 0.0
  %2841 = vmatpush.msra.mxu0 0.0
  %2842 = vmatpush.msra.mxu0 0.0
  %2843 = vmatpush.msra.mxu0 0.0
  %2844 = vmatpush.msra.mxu0 0.0
  %2845 = vmatpush.msra.mxu0 0.0
  %2846 = vmatpush.msra.mxu0 0.0
  %2847 = vmatpush.msra.mxu0 %v2790
  %2848 = vmatpush.msra.mxu0 %v2789
  %2849 = vmatmul.f32.gmra.mxu0 %v2831
  %v2850 = vpop.f32.mrf.mxu0
  %v2851 = vadd.f32 0.0, %v2850
  %2852 = vdwg.mxu0
  %v2854 = vrot.slane %v2851, 6
  %v2856 = vadd.f32 %v2755, %v2854
  %v2857 = vxor.u32 %v2856, 2147483648
  %v2858 = vmul.f32 %v2857, 1.442695
  %v2859 = vpow.pop %v2858
  %v2860 = vadd.f32 %v2859, 1.0
  %v2861 = vrcp.pop %v2860
  %v2862 = vmul.f32 %v2860, %v2861
  %v2863 = vsub.f32 1.0, %v2862
  %v2864 = vmul.f32 %v2861, %v2863
  %v2865 = vadd.f32 %v2861, %v2864
  %vm2866 = vweird.f32 %v2860
  %vm2867 = vweird.f32 %v2861
  %vm2868 = vmor %vm2866, %vm2867
  %v2869 = vsel %vm2868, %v2861, %v2865
  %v2870 = vand.u32 2147483647, %v2860
  %vm2871 = vcmp.eq.f32.partialorder %v2870, 8.507059e+37
  %v2872 = vand.u32 %v2860, 2147483648
  %v2873 = vor.u32 1.1754944e-38, %v2872
  %v2874 = vsel %vm2871, %v2873, %v2869
  %v2875 = vmul.f32 1.0, %v2874
  %v2876 = vtanh.pop %v2856
  %v2878 = vrot.slane %v2821, 6
  %v2880 = vmul.f32 %v2875, %v2878
  %2882 = vrot.lane.b32.xlu0 %v2876, 96
  %v2883 = vpop.permute.xlu0 %2882
  %v2885 = vmul.f32 %v2875, %v2883
  %2887 = vrot.lane.b32.xlu0 %v2885, 16
  %v2888 = vpop.permute.xlu0 %2887
  %v2890 = vadd.f32 %v2880, %v2888
  %v2891 = vtanh.pop %v2890
  %2893 = vrot.lane.b32.xlu0 %v2891, 32
  %v2894 = vpop.permute.xlu0 %2893
  %v2896 = vmul.f32 %v2875, %v2894
  %v2898 = vrot.slane %v2896, 2
  %2899 = vrot.lane.b32.xlu0 %v2898, 80
  %v2900 = vpop.permute.xlu0 %2899
  %v2901 = vsel %vm2730, %v2900, 0
  %2903 = vmatpush.msra.mxu0 0.0
  %2904 = vmatpush.msra.mxu0 0.0
  %2905 = vmatpush.msra.mxu0 0.0
  %2906 = vmatpush.msra.mxu0 0.0
  %2907 = vmatpush.msra.mxu0 0.0
  %2908 = vmatpush.msra.mxu0 0.0
  %2909 = vmatpush.msra.mxu0 0.0
  %2910 = vmatpush.msra.mxu0 0.0
  %2911 = vmatpush.msra.mxu0 0.0
  %2912 = vmatpush.msra.mxu0 0.0
  %2913 = vmatpush.msra.mxu0 0.0
  %2914 = vmatpush.msra.mxu0 0.0
  %2915 = vmatpush.msra.mxu0 0.0
  %2916 = vmatpush.msra.mxu0 0.0
  %2917 = vmatpush.msra.mxu0 %v2790
  %2918 = vmatpush.msra.mxu0 %v2789
  %2919 = vmatmul.f32.gmra.mxu0 %v2901
  %v2920 = vpop.f32.mrf.mxu0
  %v2921 = vadd.f32 0.0, %v2920
  %2922 = vdwg.mxu0
  %v2924 = vrot.slane %v2921, 4
  %v2926 = vadd.f32 %v2755, %v2924
  %v2927 = vxor.u32 %v2926, 2147483648
  %v2928 = vmul.f32 %v2927, 1.442695
  %v2929 = vpow.pop %v2928
  %v2930 = vadd.f32 %v2929, 1.0
  %v2931 = vrcp.pop %v2930
  %v2932 = vmul.f32 %v2930, %v2931
  %v2933 = vsub.f32 1.0, %v2932
  %v2934 = vmul.f32 %v2931, %v2933
  %v2935 = vadd.f32 %v2931, %v2934
  %vm2936 = vweird.f32 %v2930
  %vm2937 = vweird.f32 %v2931
  %vm2938 = vmor %vm2936, %vm2937
  %v2939 = vsel %vm2938, %v2931, %v2935
  %v2940 = vand.u32 2147483647, %v2930
  %vm2941 = vcmp.eq.f32.partialorder %v2940, 8.507059e+37
  %v2942 = vand.u32 %v2930, 2147483648
  %v2943 = vor.u32 1.1754944e-38, %v2942
  %v2944 = vsel %vm2941, %v2943, %v2939
  %v2945 = vmul.f32 1.0, %v2944
  %v2946 = vtanh.pop %v2926
  %v2948 = vrot.slane %v2890, 6
  %v2950 = vmul.f32 %v2945, %v2948
  %2952 = vrot.lane.b32.xlu0 %v2946, 96
  %v2953 = vpop.permute.xlu0 %2952
  %v2955 = vmul.f32 %v2945, %v2953
  %2957 = vrot.lane.b32.xlu0 %v2955, 16
  %v2958 = vpop.permute.xlu0 %2957
  %v2960 = vadd.f32 %v2950, %v2958
  %v2961 = vtanh.pop %v2960
  %2963 = vrot.lane.b32.xlu0 %v2961, 32
  %v2964 = vpop.permute.xlu0 %2963
  %v2966 = vmul.f32 %v2945, %v2964
  %v2968 = vrot.slane %v2966, 4
  %2969 = vrot.lane.b32.xlu0 %v2968, 80
  %v2970 = vpop.permute.xlu0 %2969
  %v2971 = vsel %vm2730, %v2970, 0
  %2973 = vmatpush.msra.mxu0 0.0
  %2974 = vmatpush.msra.mxu0 0.0
  %2975 = vmatpush.msra.mxu0 0.0
  %2976 = vmatpush.msra.mxu0 0.0
  %2977 = vmatpush.msra.mxu0 0.0
  %2978 = vmatpush.msra.mxu0 0.0
  %2979 = vmatpush.msra.mxu0 0.0
  %2980 = vmatpush.msra.mxu0 0.0
  %2981 = vmatpush.msra.mxu0 0.0
  %2982 = vmatpush.msra.mxu0 0.0
  %2983 = vmatpush.msra.mxu0 0.0
  %2984 = vmatpush.msra.mxu0 0.0
  %2985 = vmatpush.msra.mxu0 0.0
  %2986 = vmatpush.msra.mxu0 0.0
  %2987 = vmatpush.msra.mxu0 %v2790
  %2988 = vmatpush.msra.mxu0 %v2789
  %2989 = vmatmul.f32.gmra.mxu0 %v2971
  %v2990 = vpop.f32.mrf.mxu0
  %v2991 = vadd.f32 0.0, %v2990
  %2992 = vdwg.mxu0
  %v2994 = vrot.slane %v2991, 2
  %v2996 = vadd.f32 %v2755, %v2994
  %v2997 = vxor.u32 %v2996, 2147483648
  %v2998 = vmul.f32 %v2997, 1.442695
  %v2999 = vpow.pop %v2998
  %v3000 = vadd.f32 %v2999, 1.0
  %v3001 = vrcp.pop %v3000
  %v3002 = vmul.f32 %v3000, %v3001
  %v3003 = vsub.f32 1.0, %v3002
  %v3004 = vmul.f32 %v3001, %v3003
  %v3005 = vadd.f32 %v3001, %v3004
  %vm3006 = vweird.f32 %v3000
  %vm3007 = vweird.f32 %v3001
  %vm3008 = vmor %vm3006, %vm3007
  %v3009 = vsel %vm3008, %v3001, %v3005
  %v3010 = vand.u32 2147483647, %v3000
  %vm3011 = vcmp.eq.f32.partialorder %v3010, 8.507059e+37
  %v3012 = vand.u32 %v3000, 2147483648
  %v3013 = vor.u32 1.1754944e-38, %v3012
  %v3014 = vsel %vm3011, %v3013, %v3009
  %v3015 = vmul.f32 1.0, %v3014
  %v3016 = vtanh.pop %v2996
  %v3018 = vrot.slane %v2960, 6
  %v3020 = vmul.f32 %v3015, %v3018
  %3022 = vrot.lane.b32.xlu0 %v3016, 96
  %v3023 = vpop.permute.xlu0 %3022
  %v3025 = vmul.f32 %v3015, %v3023
  %3027 = vrot.lane.b32.xlu0 %v3025, 16
  %v3028 = vpop.permute.xlu0 %3027
  %v3030 = vadd.f32 %v3020, %v3028
  %v3031 = vtanh.pop %v3030
  %3033 = vrot.lane.b32.xlu0 %v3031, 32
  %v3034 = vpop.permute.xlu0 %3033
  %v3036 = vmul.f32 %v3015, %v3034
  %v3038 = vrot.slane %v3036, 6
  %3039 = vrot.lane.b32.xlu0 %v3038, 80
  %v3040 = vpop.permute.xlu0 %3039
  %v3041 = vsel %vm2730, %v3040, 0
  %3043 = vmatpush.msra.mxu0 0.0
  %3044 = vmatpush.msra.mxu0 0.0
  %3045 = vmatpush.msra.mxu0 0.0
  %3046 = vmatpush.msra.mxu0 0.0
  %3047 = vmatpush.msra.mxu0 0.0
  %3048 = vmatpush.msra.mxu0 0.0
  %3049 = vmatpush.msra.mxu0 0.0
  %3050 = vmatpush.msra.mxu0 0.0
  %3051 = vmatpush.msra.mxu0 0.0
  %3052 = vmatpush.msra.mxu0 0.0
  %3053 = vmatpush.msra.mxu0 0.0
  %3054 = vmatpush.msra.mxu0 0.0
  %3055 = vmatpush.msra.mxu0 0.0
  %3056 = vmatpush.msra.mxu0 0.0
  %3057 = vmatpush.msra.mxu0 %v2790
  %3058 = vmatpush.msra.mxu0 %v2789
  %3059 = vmatmul.f32.gmra.mxu0 %v3041
  %v3060 = vpop.f32.mrf.mxu0
  %v3061 = vadd.f32 0.0, %v3060
  %3062 = vdwg.mxu0
  %v3063 = vadd.f32 %v2758, %v3061
  %v3064 = vxor.u32 %v3063, 2147483648
  %v3065 = vmul.f32 %v3064, 1.442695
  %v3066 = vpow.pop %v3065
  %v3067 = vadd.f32 %v3066, 1.0
  %v3068 = vrcp.pop %v3067
  %v3069 = vmul.f32 %v3067, %v3068
  %v3070 = vsub.f32 1.0, %v3069
  %v3071 = vmul.f32 %v3068, %v3070
  %v3072 = vadd.f32 %v3068, %v3071
  %vm3073 = vweird.f32 %v3067
  %vm3074 = vweird.f32 %v3068
  %vm3075 = vmor %vm3073, %vm3074
  %v3076 = vsel %vm3075, %v3068, %v3072
  %v3077 = vand.u32 2147483647, %v3067
  %vm3078 = vcmp.eq.f32.partialorder %v3077, 8.507059e+37
  %v3079 = vand.u32 %v3067, 2147483648
  %v3080 = vor.u32 1.1754944e-38, %v3079
  %v3081 = vsel %vm3078, %v3080, %v3076
  %v3082 = vmul.f32 1.0, %v3081
  %v3083 = vtanh.pop %v3063
  %v3085 = vrot.slane %v3030, 6
  %v3087 = vmul.f32 %v3082, %v3085
  %3089 = vrot.lane.b32.xlu0 %v3083, 96
  %v3090 = vpop.permute.xlu0 %3089
  %v3092 = vmul.f32 %v3082, %v3090
  %3094 = vrot.lane.b32.xlu0 %v3092, 16
  %v3095 = vpop.permute.xlu0 %3094
  %v3097 = vadd.f32 %v3087, %v3095
  %v3098 = vtanh.pop %v3097
  %3100 = vrot.lane.b32.xlu0 %v3098, 32
  %v3101 = vpop.permute.xlu0 %3100
  %v3103 = vmul.f32 %v3082, %v3101
  %3105 = vrot.lane.b32.xlu0 %v3103, 80
  %v3106 = vpop.permute.xlu0 %3105
  %v3107 = vsel %vm2730, %v3106, 0
  %3109 = vmatpush.msra.mxu0 0.0
  %3110 = vmatpush.msra.mxu0 0.0
  %3111 = vmatpush.msra.mxu0 0.0
  %3112 = vmatpush.msra.mxu0 0.0
  %3113 = vmatpush.msra.mxu0 0.0
  %3114 = vmatpush.msra.mxu0 0.0
  %3115 = vmatpush.msra.mxu0 0.0
  %3116 = vmatpush.msra.mxu0 0.0
  %3117 = vmatpush.msra.mxu0 0.0
  %3118 = vmatpush.msra.mxu0 0.0
  %3119 = vmatpush.msra.mxu0 0.0
  %3120 = vmatpush.msra.mxu0 0.0
  %3121 = vmatpush.msra.mxu0 0.0
  %3122 = vmatpush.msra.mxu0 0.0
  %3123 = vmatpush.msra.mxu0 %v2790
  %3124 = vmatpush.msra.mxu0 %v2789
  %3125 = vmatmul.f32.gmra.mxu0 %v3107
  %v3126 = vpop.f32.mrf.mxu0
  %v3127 = vadd.f32 0.0, %v3126
  %3128 = vdwg.mxu0
  %v3130 = vrot.slane %v3127, 6
  %v3132 = vadd.f32 %v2758, %v3130
  %v3133 = vxor.u32 %v3132, 2147483648
  %v3134 = vmul.f32 %v3133, 1.442695
  %v3135 = vpow.pop %v3134
  %v3136 = vadd.f32 %v3135, 1.0
  %v3137 = vrcp.pop %v3136
  %v3138 = vmul.f32 %v3136, %v3137
  %v3139 = vsub.f32 1.0, %v3138
  %v3140 = vmul.f32 %v3137, %v3139
  %v3141 = vadd.f32 %v3137, %v3140
  %vm3142 = vweird.f32 %v3136
  %vm3143 = vweird.f32 %v3137
  %vm3144 = vmor %vm3142, %vm3143
  %v3145 = vsel %vm3144, %v3137, %v3141
  %v3146 = vand.u32 2147483647, %v3136
  %vm3147 = vcmp.eq.f32.partialorder %v3146, 8.507059e+37
  %v3148 = vand.u32 %v3136, 2147483648
  %v3149 = vor.u32 1.1754944e-38, %v3148
  %v3150 = vsel %vm3147, %v3149, %v3145
  %v3151 = vmul.f32 1.0, %v3150
  %v3152 = vtanh.pop %v3132
  %v3154 = vrot.slane %v3097, 6
  %v3156 = vmul.f32 %v3151, %v3154
  %3158 = vrot.lane.b32.xlu0 %v3152, 96
  %v3159 = vpop.permute.xlu0 %3158
  %v3161 = vmul.f32 %v3151, %v3159
  %3163 = vrot.lane.b32.xlu0 %v3161, 16
  %v3164 = vpop.permute.xlu0 %3163
  %v3166 = vadd.f32 %v3156, %v3164
  %v3167 = vtanh.pop %v3166
  %3169 = vrot.lane.b32.xlu0 %v3167, 32
  %v3170 = vpop.permute.xlu0 %3169
  %v3172 = vmul.f32 %v3151, %v3170
  %v3174 = vrot.slane %v3172, 2
  %3175 = vrot.lane.b32.xlu0 %v3174, 80
  %v3176 = vpop.permute.xlu0 %3175
  %v3177 = vsel %vm2730, %v3176, 0
  %3179 = vmatpush.msra.mxu0 0.0
  %3180 = vmatpush.msra.mxu0 0.0
  %3181 = vmatpush.msra.mxu0 0.0
  %3182 = vmatpush.msra.mxu0 0.0
  %3183 = vmatpush.msra.mxu0 0.0
  %3184 = vmatpush.msra.mxu0 0.0
  %3185 = vmatpush.msra.mxu0 0.0
  %3186 = vmatpush.msra.mxu0 0.0
  %3187 = vmatpush.msra.mxu0 0.0
  %3188 = vmatpush.msra.mxu0 0.0
  %3189 = vmatpush.msra.mxu0 0.0
  %3190 = vmatpush.msra.mxu0 0.0
  %3191 = vmatpush.msra.mxu0 0.0
  %3192 = vmatpush.msra.mxu0 0.0
  %3193 = vmatpush.msra.mxu0 %v2790
  %3194 = vmatpush.msra.mxu0 %v2789
  %3195 = vmatmul.f32.gmra.mxu0 %v3177
  %v3196 = vpop.f32.mrf.mxu0
  %v3197 = vadd.f32 0.0, %v3196
  %3198 = vdwg.mxu0
  %v3200 = vrot.slane %v3197, 4
  %v3202 = vadd.f32 %v2758, %v3200
  %v3203 = vxor.u32 %v3202, 2147483648
  %v3204 = vmul.f32 %v3203, 1.442695
  %v3205 = vpow.pop %v3204
  %v3206 = vadd.f32 %v3205, 1.0
  %v3207 = vrcp.pop %v3206
  %v3208 = vmul.f32 %v3206, %v3207
  %v3209 = vsub.f32 1.0, %v3208
  %v3210 = vmul.f32 %v3207, %v3209
  %v3211 = vadd.f32 %v3207, %v3210
  %vm3212 = vweird.f32 %v3206
  %vm3213 = vweird.f32 %v3207
  %vm3214 = vmor %vm3212, %vm3213
  %v3215 = vsel %vm3214, %v3207, %v3211
  %v3216 = vand.u32 2147483647, %v3206
  %vm3217 = vcmp.eq.f32.partialorder %v3216, 8.507059e+37
  %v3218 = vand.u32 %v3206, 2147483648
  %v3219 = vor.u32 1.1754944e-38, %v3218
  %v3220 = vsel %vm3217, %v3219, %v3215
  %v3221 = vmul.f32 1.0, %v3220
  %v3222 = vtanh.pop %v3202
  %v3224 = vrot.slane %v3166, 6
  %v3226 = vmul.f32 %v3221, %v3224
  %3228 = vrot.lane.b32.xlu0 %v3222, 96
  %v3229 = vpop.permute.xlu0 %3228
  %v3231 = vmul.f32 %v3221, %v3229
  %3233 = vrot.lane.b32.xlu0 %v3231, 16
  %v3234 = vpop.permute.xlu0 %3233
  %v3236 = vadd.f32 %v3226, %v3234
  %v3237 = vtanh.pop %v3236
  %3239 = vrot.lane.b32.xlu0 %v3237, 32
  %v3240 = vpop.permute.xlu0 %3239
  %v3242 = vmul.f32 %v3221, %v3240
  %v3244 = vrot.slane %v3242, 4
  %3245 = vrot.lane.b32.xlu0 %v3244, 80
  %v3246 = vpop.permute.xlu0 %3245
  %v3247 = vsel %vm2730, %v3246, 0
  %3249 = vmatpush.msra.mxu0 0.0
  %3250 = vmatpush.msra.mxu0 0.0
  %3251 = vmatpush.msra.mxu0 0.0
  %3252 = vmatpush.msra.mxu0 0.0
  %3253 = vmatpush.msra.mxu0 0.0
  %3254 = vmatpush.msra.mxu0 0.0
  %3255 = vmatpush.msra.mxu0 0.0
  %3256 = vmatpush.msra.mxu0 0.0
  %3257 = vmatpush.msra.mxu0 0.0
  %3258 = vmatpush.msra.mxu0 0.0
  %3259 = vmatpush.msra.mxu0 0.0
  %3260 = vmatpush.msra.mxu0 0.0
  %3261 = vmatpush.msra.mxu0 0.0
  %3262 = vmatpush.msra.mxu0 0.0
  %3263 = vmatpush.msra.mxu0 %v2790
  %3264 = vmatpush.msra.mxu0 %v2789
  %3265 = vmatmul.f32.gmra.mxu0 %v3247
  %v3266 = vpop.f32.mrf.mxu0
  %v3267 = vadd.f32 0.0, %v3266
  %3268 = vdwg.mxu0
  %v3270 = vrot.slane %v3267, 2
  %v3272 = vadd.f32 %v2758, %v3270
  %v3273 = vxor.u32 %v3272, 2147483648
  %v3274 = vmul.f32 %v3273, 1.442695
  %v3275 = vpow.pop %v3274
  %v3276 = vadd.f32 %v3275, 1.0
  %v3277 = vrcp.pop %v3276
  %v3278 = vmul.f32 %v3276, %v3277
  %v3279 = vsub.f32 1.0, %v3278
  %v3280 = vmul.f32 %v3277, %v3279
  %v3281 = vadd.f32 %v3277, %v3280
  %vm3282 = vweird.f32 %v3276
  %vm3283 = vweird.f32 %v3277
  %vm3284 = vmor %vm3282, %vm3283
  %v3285 = vsel %vm3284, %v3277, %v3281
  %v3286 = vand.u32 2147483647, %v3276
  %vm3287 = vcmp.eq.f32.partialorder %v3286, 8.507059e+37
  %v3288 = vand.u32 %v3276, 2147483648
  %v3289 = vor.u32 1.1754944e-38, %v3288
  %v3290 = vsel %vm3287, %v3289, %v3285
  %v3291 = vmul.f32 1.0, %v3290
  %v3292 = vtanh.pop %v3272
  %v3294 = vrot.slane %v3236, 6
  %v3296 = vmul.f32 %v3291, %v3294
  %3298 = vrot.lane.b32.xlu0 %v3292, 96
  %v3299 = vpop.permute.xlu0 %3298
  %v3301 = vmul.f32 %v3291, %v3299
  %3303 = vrot.lane.b32.xlu0 %v3301, 16
  %v3304 = vpop.permute.xlu0 %3303
  %v3306 = vadd.f32 %v3296, %v3304
  %v3307 = vtanh.pop %v3306
  %3309 = vrot.lane.b32.xlu0 %v3307, 32
  %v3310 = vpop.permute.xlu0 %3309
  %v3312 = vmul.f32 %v3291, %v3310
  %v3313 = vld [vmem:[%s35] sm:$0xff]
  %v3314 = vld [vmem:[%s35 + $0x8] sm:$0xff]
  %v3315 = vlaneseq
  %v3316 = vshrl.u32 %v3315, 7
  %vm3317 = vcmp.eq.s32.totalorder %v3316, 0
  %v3318 = vrot.slane %v2827, 1
  %v3319 = vsel %vm3317, 1, 0
  %vm3320 = vcmp.eq.s32.totalorder %v3319, 1
  %v3321 = vperm.slane %v2827, 0
  %v3322 = vperm.slane %v3318, 0
  %v3325 = vsel %vm3320, %v3321, 0.0
  %v3326 = vsel %vm3320, %v3322, 0.0
  %v3327 = vadd.f32 %v3325, 0.0
  %v3328 = vadd.f32 %v3326, 0.0
  %vm3329 = vcmp.eq.s32.totalorder %v3316, 1
  %3330 = vst [vmem:[#allocation1] sm:$0xff] %v2896
  %s3331 = scalar_lea.vmem [#allocation1], 2
  %v3332 = vld [vmem:[%s3331] ss:$9 sm:$0xff]
  %s3333 = scalar_lea.vmem [#allocation1], 3
  %v3334 = vld [vmem:[%s3333] ss:$9 sm:$0xff]
  %v3335 = vsel %vm3329, 1, 0
  %vm3336 = vcmp.eq.s32.totalorder %v3335, 1
  %v3337 = vperm.slane %v3332, 0
  %v3338 = vperm.slane %v3334, 0
  %v3341 = vsel %vm3336, %v3337, 0.0
  %v3342 = vsel %vm3336, %v3338, 0.0
  %v3343 = vadd.f32 %v3327, %v3341
  %v3344 = vadd.f32 %v3328, %v3342
  %vm3345 = vcmp.eq.s32.totalorder %v3316, 2
  %3346 = vst [vmem:[#allocation1] sm:$0xff] %v2966
  %s3347 = scalar_lea.vmem [#allocation1], 4
  %v3348 = vld [vmem:[%s3347] ss:$9 sm:$0xff]
  %s3349 = scalar_lea.vmem [#allocation1], 5
  %v3350 = vld [vmem:[%s3349] ss:$9 sm:$0xff]
  %v3351 = vsel %vm3345, 1, 0
  %vm3352 = vcmp.eq.s32.totalorder %v3351, 1
  %v3353 = vperm.slane %v3348, 0
  %v3354 = vperm.slane %v3350, 0
  %v3357 = vsel %vm3352, %v3353, 0.0
  %v3358 = vsel %vm3352, %v3354, 0.0
  %v3359 = vadd.f32 %v3343, %v3357
  %v3360 = vadd.f32 %v3344, %v3358
  %vm3361 = vcmp.eq.s32.totalorder %v3316, 3
  %3362 = vst [vmem:[#allocation1] sm:$0xff] %v3036
  %s3363 = scalar_lea.vmem [#allocation1], 6
  %v3364 = vld [vmem:[%s3363] ss:$9 sm:$0xff]
  %s3365 = scalar_lea.vmem [#allocation1], 7
  %v3366 = vld [vmem:[%s3365] ss:$9 sm:$0xff]
  %v3367 = vsel %vm3361, 1, 0
  %vm3368 = vcmp.eq.s32.totalorder %v3367, 1
  %v3369 = vperm.slane %v3364, 0
  %v3370 = vperm.slane %v3366, 0
  %v3373 = vsel %vm3368, %v3369, 0.0
  %v3374 = vsel %vm3368, %v3370, 0.0
  %v3375 = vadd.f32 %v3359, %v3373
  %v3376 = vadd.f32 %v3360, %v3374
  %vm3377 = vcmp.eq.s32.totalorder %v3316, 4
  %v3378 = vrot.slane %v3103, 1
  %v3379 = vsel %vm3377, 1, 0
  %vm3380 = vcmp.eq.s32.totalorder %v3379, 1
  %v3381 = vperm.slane %v3103, 0
  %v3382 = vperm.slane %v3378, 0
  %v3385 = vsel %vm3380, %v3381, 0.0
  %v3386 = vsel %vm3380, %v3382, 0.0
  %v3387 = vadd.f32 %v3375, %v3385
  %v3388 = vadd.f32 %v3376, %v3386
  %vm3389 = vcmp.eq.s32.totalorder %v3316, 5
  %3390 = vst [vmem:[#allocation1] sm:$0xff] %v3172
  %s3391 = scalar_lea.vmem [#allocation1], 2
  %v3392 = vld [vmem:[%s3391] ss:$9 sm:$0xff]
  %s3393 = scalar_lea.vmem [#allocation1], 3
  %v3394 = vld [vmem:[%s3393] ss:$9 sm:$0xff]
  %v3395 = vsel %vm3389, 1, 0
  %vm3396 = vcmp.eq.s32.totalorder %v3395, 1
  %v3397 = vperm.slane %v3392, 0
  %v3398 = vperm.slane %v3394, 0
  %v3401 = vsel %vm3396, %v3397, 0.0
  %v3402 = vsel %vm3396, %v3398, 0.0
  %v3403 = vadd.f32 %v3387, %v3401
  %v3404 = vadd.f32 %v3388, %v3402
  %vm3405 = vcmp.eq.s32.totalorder %v3316, 6
  %3406 = vst [vmem:[#allocation1] sm:$0xff] %v3242
  %s3407 = scalar_lea.vmem [#allocation1], 4
  %v3408 = vld [vmem:[%s3407] ss:$9 sm:$0xff]
  %s3409 = scalar_lea.vmem [#allocation1], 5
  %v3410 = vld [vmem:[%s3409] ss:$9 sm:$0xff]
  %v3411 = vsel %vm3405, 1, 0
  %vm3412 = vcmp.eq.s32.totalorder %v3411, 1
  %v3413 = vperm.slane %v3408, 0
  %v3414 = vperm.slane %v3410, 0
  %v3417 = vsel %vm3412, %v3413, 0.0
  %v3418 = vsel %vm3412, %v3414, 0.0
  %v3419 = vadd.f32 %v3403, %v3417
  %v3420 = vadd.f32 %v3404, %v3418
  %vm3421 = vcmp.eq.s32.totalorder %v3316, 7
  %3423 = vst [vmem:[#allocation1] sm:$0xff] %v3312
  %s3424 = scalar_lea.vmem [#allocation1], 6
  %v3425 = vld [vmem:[%s3424] ss:$9 sm:$0xff]
  %s3426 = scalar_lea.vmem [#allocation1], 7
  %v3427 = vld [vmem:[%s3426] ss:$9 sm:$0xff]
  %v3428 = vsel %vm3421, 1, 0
  %vm3429 = vcmp.eq.s32.totalorder %v3428, 1
  %v3430 = vperm.slane %v3425, 0
  %v3431 = vperm.slane %v3427, 0
  %v3434 = vsel %vm3429, %v3430, 0.0
  %v3435 = vsel %vm3429, %v3431, 0.0
  %v3436 = vadd.f32 %v3419, %v3434
  %v3437 = vadd.f32 %v3420, %v3435
  %3440 = vrot.lane.b32.xlu0 %v2721, 112
  %v3441 = vpop.permute.xlu0 %3440
  %v3443 = vsel %vm1620, %v1718, %v3441
  %v3446 = vsel %vm646, %v762, %v755
  %v3448 = vsel %vm648, %v3446, 0.0
  %v3449 = vld [vmem:[%s39] sm:$0xff]
  %v3450 = vld [vmem:[%s39 + $0x8] sm:$0xff]
  %v3451 = vld [vmem:[%s39 + $0x10] sm:$0xff]
  %v3452 = vld [vmem:[%s39 + $0x18] sm:$0xff]
  %v3453 = vld [vmem:[%s39 + $0x20] sm:$0xff]
  %v3454 = vld [vmem:[%s39 + $0x28] sm:$0xff]
  %v3455 = vld [vmem:[%s39 + $0x30] sm:$0xff]
  %v3456 = vld [vmem:[%s39 + $0x38] sm:$0xff]
  %v3457 = vld [vmem:[%s41] sm:$0x1]
  %v3459 = vperm.slane %v3457, 0
  %vm3461 = vcmask 523264
  %v3463 = vsel %vm3461, %v3448, 0
  %3465 = vmatpush.msra.mxu0 0.0
  %3466 = vmatpush.msra.mxu0 0.0
  %3467 = vmatpush.msra.mxu0 0.0
  %3468 = vmatpush.msra.mxu0 0.0
  %3469 = vmatpush.msra.mxu0 0.0
  %3470 = vmatpush.msra.mxu0 0.0
  %3471 = vmatpush.msra.mxu0 0.0
  %3472 = vmatpush.msra.mxu0 0.0
  %3473 = vmatpush.msra.mxu0 %v3456
  %3474 = vmatpush.msra.mxu0 %v3455
  %3475 = vmatpush.msra.mxu0 %v3454
  %3476 = vmatpush.msra.mxu0 %v3453
  %3477 = vmatpush.msra.mxu0 %v3452
  %3478 = vmatpush.msra.mxu0 %v3451
  %3479 = vmatpush.msra.mxu0 %v3450
  %3480 = vmatpush.msra.mxu0 %v3449
  %3481 = vmatmul.f32.gmra.mxu0 %v3463
  %v3482 = vpop.f32.mrf.mxu0
  %v3483 = vadd.f32 %v3459, %v3482
  %3484 = vdwg.mxu0
  %3486 = vrot.lane.b32.xlu0 %v672, 32
  %v3487 = vpop.permute.xlu0 %3486
  %3489 = vrot.lane.b32.xlu0 %v3446, 64
  %v3490 = vpop.permute.xlu0 %3489
  %3493 = vrot.lane.b32.xlu0 %v3443, 96
  %v3494 = vpop.permute.xlu0 %3493
  %3497 = vrot.lane.b32.xlu0 %v3483, 112
  %v3498 = vpop.permute.xlu0 %3497
  %v3500 = vsel %vm648, %v672, %v3487
  %v3501 = vsel %vm3461, %v3500, %v3490
  %vm3502 = vcmask 785408
  %v3503 = vsel %vm3502, %v3501, %v3494
  %vm3504 = vcmask 916480
  %v3505 = vsel %vm3504, %v3503, %v3498
  %v3506 = vld [vmem:[%s55] sm:$0xff]
  %v3507 = vld [vmem:[%s55 + $0x8] sm:$0xff]
  %v3508 = vld [vmem:[%s55 + $0x10] sm:$0xff]
  %v3509 = vld [vmem:[%s55 + $0x18] sm:$0xff]
  %v3510 = vld [vmem:[%s55 + $0x20] sm:$0xff]
  %v3511 = vld [vmem:[%s55 + $0x28] sm:$0xff]
  %v3512 = vld [vmem:[%s55 + $0x30] sm:$0xff]
  %v3513 = vld [vmem:[%s55 + $0x38] sm:$0xff]
  %v3514 = vld [vmem:[%s55 + $0x40] sm:$0xff]
  %v3515 = vld [vmem:[%s55 + $0x48] sm:$0xff]
  %v3516 = vld [vmem:[%s55 + $0x50] sm:$0xff]
  %v3517 = vld [vmem:[%s55 + $0x58] sm:$0xff]
  %v3518 = vld [vmem:[%s55 + $0x60] sm:$0xff]
  %v3519 = vld [vmem:[%s55 + $0x68] sm:$0xff]
  %v3520 = vld [vmem:[%s55 + $0x70] sm:$0xff]
  %v3521 = vld [vmem:[%s55 + $0x78] sm:$0xff]
  %v3522 = vld [vmem:[%s55 + $0x80] sm:$0xff]
  %v3523 = vld [vmem:[%s55 + $0x88] sm:$0xff]
  %v3524 = vld [vmem:[%s57] sm:$0x1]
  %v3526 = vperm.slane %v3524, 0
  %v3528 = vsel %vm2730, %v3483, 0
  %3530 = vmatpush.msra.mxu0 %v3521
  %3531 = vmatpush.msra.mxu0 %v3520
  %3532 = vmatpush.msra.mxu0 %v3519
  %3533 = vmatpush.msra.mxu0 %v3518
  %3534 = vmatpush.msra.mxu0 %v3517
  %3535 = vmatpush.msra.mxu0 %v3516
  %3536 = vmatpush.msra.mxu0 %v3515
  %3537 = vmatpush.msra.mxu0 %v3514
  %3538 = vmatpush.msra.mxu0 %v3513
  %3539 = vmatpush.msra.mxu0 %v3512
  %3540 = vmatpush.msra.mxu0 %v3511
  %3541 = vmatpush.msra.mxu0 %v3510
  %3542 = vmatpush.msra.mxu0 %v3509
  %3543 = vmatpush.msra.mxu0 %v3508
  %3544 = vmatpush.msra.mxu0 %v3507
  %3545 = vmatpush.msra.mxu0 %v3506
  %3546 = vmatmul.f32.gmra.mxu0 %v3505
  %v3547 = vpop.f32.mrf.mxu0
  %v3548 = vadd.f32 %v3526, %v3547
  %3549 = vdwg.mxu0
  %3550 = vmatpush.msra.mxu0 0.0
  %3551 = vmatpush.msra.mxu0 0.0
  %3552 = vmatpush.msra.mxu0 0.0
  %3553 = vmatpush.msra.mxu0 0.0
  %3554 = vmatpush.msra.mxu0 0.0
  %3555 = vmatpush.msra.mxu0 0.0
  %3556 = vmatpush.msra.mxu0 0.0
  %3557 = vmatpush.msra.mxu0 0.0
  %3558 = vmatpush.msra.mxu0 0.0
  %3559 = vmatpush.msra.mxu0 0.0
  %3560 = vmatpush.msra.mxu0 0.0
  %3561 = vmatpush.msra.mxu0 0.0
  %3562 = vmatpush.msra.mxu0 0.0
  %3563 = vmatpush.msra.mxu0 0.0
  %3564 = vmatpush.msra.mxu0 %v3523
  %3565 = vmatpush.msra.mxu0 %v3522
  %3566 = vmatmul.f32.gmra.mxu0 %v3528
  %v3567 = vpop.f32.mrf.mxu0
  %v3568 = vadd.f32 %v3548, %v3567
  %3569 = vdwg.mxu0
  %vm3570 = vcmask 33792
  %3571 = vst.msk [vmem:[%s59] sm:$0x3] %vm3570, %v3568
  %3572 = vrot.lane.b32.xlu0 %v1784, 104
  %v3573 = vpop.permute.xlu0 %3572
  %3575 = vrot.lane.b32.xlu0 %v2654, 112
  %v3576 = vpop.permute.xlu0 %3575
  %v3578 = vsel %vm1620, %v3573, %v3576
  %v3579 = vxor.u32 %v2784, 2147483648
  %v3580 = vmul.f32 %v3579, 1.442695
  %v3581 = vpow.pop %v3580
  %v3582 = vadd.f32 %v3581, 1.0
  %v3583 = vrcp.pop %v3582
  %v3584 = vmul.f32 %v3582, %v3583
  %v3585 = vsub.f32 1.0, %v3584
  %v3586 = vmul.f32 %v3583, %v3585
  %v3587 = vadd.f32 %v3583, %v3586
  %vm3588 = vweird.f32 %v3582
  %vm3589 = vweird.f32 %v3583
  %vm3590 = vmor %vm3588, %vm3589
  %v3591 = vsel %vm3590, %v3583, %v3587
  %v3592 = vand.u32 2147483647, %v3582
  %vm3593 = vcmp.eq.f32.partialorder %v3592, 8.507059e+37
  %v3594 = vand.u32 %v3582, 2147483648
  %v3595 = vor.u32 1.1754944e-38, %v3594
  %v3596 = vsel %vm3593, %v3595, %v3591
  %v3597 = vmul.f32 1.0, %v3596
  %v3598 = vtanh.pop %v2784
  %v3599 = vmul.f32 %v3597, 0.0
  %3601 = vrot.lane.b32.xlu0 %v3598, 96
  %v3602 = vpop.permute.xlu0 %3601
  %v3604 = vmul.f32 %v3597, %v3602
  %3606 = vrot.lane.b32.xlu0 %v3604, 16
  %v3607 = vpop.permute.xlu0 %3606
  %v3609 = vadd.f32 %v3599, %v3607
  %v3610 = vtanh.pop %v3609
  %3612 = vrot.lane.b32.xlu0 %v3610, 32
  %v3613 = vpop.permute.xlu0 %3612
  %v3615 = vmul.f32 %v3597, %v3613
  %v3617 = vrot.slane %v3615, 1
  %v3618 = vperm.slane %v3615, 0
  %v3619 = vperm.slane %v3617, 0
  %v3622 = vsel %vm3320, %v3618, 0.0
  %v3623 = vsel %vm3320, %v3619, 0.0
  %v3624 = vadd.f32 %v3622, 0.0
  %v3625 = vadd.f32 %v3623, 0.0
  %3628 = vrot.lane.b32.xlu0 %v3436, 80
  %v3629 = vpop.permute.xlu0 %3628
  %3630 = vrot.lane.b32.xlu0 %v3437, 80
  %v3631 = vpop.permute.xlu0 %3630
  %3636 = vrot.lane.b32.xlu0 %v3624, 96
  %v3637 = vpop.permute.xlu0 %3636
  %3638 = vrot.lane.b32.xlu0 %v3625, 96
  %v3639 = vpop.permute.xlu0 %3638
  %v3642 = vsel %vm2730, %v3629, %v3637
  %v3643 = vsel %vm2730, %v3631, %v3639
  %3645 = vrot.lane.b32.xlu0 %v3615, 96
  %v3646 = vpop.permute.xlu0 %3645
  %v3648 = vsel %vm2730, %v2830, %v3646
  %v3649 = vld [vmem:[%s43] sm:$0xff]
  %v3650 = vld [vmem:[%s43 + $0x8] sm:$0xff]
  %v3651 = vld [vmem:[%s43 + $0x10] sm:$0xff]
  %v3652 = vld [vmem:[%s43 + $0x18] sm:$0xff]
  %v3653 = vld [vmem:[%s45] sm:$0x1]
  %v3655 = vperm.slane %v3653, 0
  %v3658 = vsel %vm648, %v3648, 0
  %3660 = vmatpush.msra.mxu0 0.0
  %3661 = vmatpush.msra.mxu0 0.0
  %3662 = vmatpush.msra.mxu0 0.0
  %3663 = vmatpush.msra.mxu0 0.0
  %3664 = vmatpush.msra.mxu0 0.0
  %3665 = vmatpush.msra.mxu0 0.0
  %3666 = vmatpush.msra.mxu0 0.0
  %3667 = vmatpush.msra.mxu0 0.0
  %3668 = vmatpush.msra.mxu0 0.0
  %3669 = vmatpush.msra.mxu0 0.0
  %3670 = vmatpush.msra.mxu0 0.0
  %3671 = vmatpush.msra.mxu0 0.0
  %3672 = vmatpush.msra.mxu0 %v3652
  %3673 = vmatpush.msra.mxu0 %v3651
  %3674 = vmatpush.msra.mxu0 %v3650
  %3675 = vmatpush.msra.mxu0 %v3649
  %3676 = vmatmul.f32.gmra.mxu0 %v3658
  %v3677 = vpop.f32.mrf.mxu0
  %v3678 = vadd.f32 %v3655, %v3677
  %3679 = vdwg.mxu0
  %v3681 = vrot.slane %v3678, 1
  %v3682 = vperm.slane %v3678, 0
  %v3683 = vperm.slane %v3681, 0
  %v3686 = vmul.f32 %v3682, %v626
  %v3687 = vmul.f32 %v3683, %v628
  %v3688 = vsel %vm648, %v3686, 0.0
  %3689 = vadd.xlane.f32.xlu0 %v3688
  %v3690 = vpop.xlane.xlu0 %3689
  %v3691 = vsel %vm648, %v3687, 0.0
  %3692 = vadd.xlane.f32.xlu0 %v3691
  %v3693 = vpop.xlane.xlu0 %3692
  %v3694 = vrot.slane %v3690, 4
  %v3695 = vmax.f32 %v3690, %v3694
  %v3696 = vrot.slane %v3695, 2
  %v3697 = vmax.f32 %v3695, %v3696
  %v3698 = vrot.slane %v3697, 1
  %v3699 = vmax.f32 %v3697, %v3698
  %v3700 = vrot.slane %v3693, 4
  %v3701 = vmax.f32 %v3693, %v3700
  %v3702 = vrot.slane %v3701, 2
  %v3703 = vmax.f32 %v3701, %v3702
  %v3704 = vrot.slane %v3703, 1
  %v3705 = vmax.f32 %v3703, %v3704
  %v3706 = vsub.f32 %v3690, %v3699
  %v3707 = vsub.f32 %v3693, %v3705
  %v3708 = vmul.f32 %v3706, 1.442695
  %v3709 = vpow.pop %v3708
  %v3710 = vmul.f32 %v3707, 1.442695
  %v3711 = vpow.pop %v3710
  %v3712 = vrot.slane %v3709, 4
  %v3713 = vadd.f32 %v3709, %v3712
  %v3714 = vrot.slane %v3713, 2
  %v3715 = vadd.f32 %v3713, %v3714
  %v3716 = vrot.slane %v3715, 1
  %v3717 = vadd.f32 %v3715, %v3716
  %v3718 = vrot.slane %v3711, 4
  %v3719 = vadd.f32 %v3711, %v3718
  %v3720 = vrot.slane %v3719, 2
  %v3721 = vadd.f32 %v3719, %v3720
  %v3722 = vrot.slane %v3721, 1
  %v3723 = vadd.f32 %v3721, %v3722
  %v3724 = vrcp.pop %v3717
  %v3725 = vrcp.pop %v3723
  %v3726 = vmul.f32 %v3709, %v3724
  %v3727 = vmul.f32 %v3711, %v3725
  %v3728 = vmul.f32 %v3726, %v626
  %v3729 = vmul.f32 %v3727, %v628
  %v3730 = vsel %vm648, %v3728, 0.0
  %v3731 = vrot.slane %v3730, 4
  %v3732 = vadd.f32 %v3730, %v3731
  %v3733 = vrot.slane %v3732, 2
  %v3734 = vadd.f32 %v3732, %v3733
  %v3735 = vrot.slane %v3734, 1
  %v3736 = vadd.f32 %v3734, %v3735
  %v3737 = vsel %vm648, %v3729, 0.0
  %v3738 = vrot.slane %v3737, 4
  %v3739 = vadd.f32 %v3737, %v3738
  %v3740 = vrot.slane %v3739, 2
  %v3741 = vadd.f32 %v3739, %v3740
  %v3742 = vrot.slane %v3741, 1
  %v3743 = vadd.f32 %v3741, %v3742
  %v3746 = vsel %vm646, %v852, %v845
  %v3750 = vsel %vm646, %v3743, %v3736
  %3751 = vrot.lane.b32.xlu0 %v3750, 32
  %v3752 = vpop.permute.xlu0 %3751
  %v3754 = vsel %vm648, %v3746, %v3752
  %v3755 = vld [vmem:[%s47] sm:$0xff]
  %v3756 = vld [vmem:[%s47 + $0x8] sm:$0xff]
  %v3757 = vld [vmem:[%s47 + $0x10] sm:$0xff]
  %v3758 = vld [vmem:[%s47 + $0x18] sm:$0xff]
  %v3759 = vld [vmem:[%s47 + $0x20] sm:$0xff]
  %v3760 = vld [vmem:[%s47 + $0x28] sm:$0xff]
  %v3761 = vld [vmem:[%s47 + $0x30] sm:$0xff]
  %v3762 = vld [vmem:[%s47 + $0x38] sm:$0xff]
  %v3763 = vld [vmem:[%s49] sm:$0x1]
  %v3765 = vperm.slane %v3763, 0
  %v3768 = vsel %vm3461, %v3754, 0
  %3770 = vmatpush.msra.mxu0 0.0
  %3771 = vmatpush.msra.mxu0 0.0
  %3772 = vmatpush.msra.mxu0 0.0
  %3773 = vmatpush.msra.mxu0 0.0
  %3774 = vmatpush.msra.mxu0 0.0
  %3775 = vmatpush.msra.mxu0 0.0
  %3776 = vmatpush.msra.mxu0 0.0
  %3777 = vmatpush.msra.mxu0 0.0
  %3778 = vmatpush.msra.mxu0 %v3762
  %3779 = vmatpush.msra.mxu0 %v3761
  %3780 = vmatpush.msra.mxu0 %v3760
  %3781 = vmatpush.msra.mxu0 %v3759
  %3782 = vmatpush.msra.mxu0 %v3758
  %3783 = vmatpush.msra.mxu0 %v3757
  %3784 = vmatpush.msra.mxu0 %v3756
  %3785 = vmatpush.msra.mxu0 %v3755
  %3786 = vmatmul.f32.gmra.mxu0 %v3768
  %v3787 = vpop.f32.mrf.mxu0
  %v3788 = vadd.f32 %v3765, %v3787
  %3789 = vdwg.mxu0
  %v3791 = vrot.slane %v3788, 1
  %v3792 = vperm.slane %v3788, 0
  %v3793 = vperm.slane %v3791, 0
  %v3796 = vmul.f32 %v3792, %v3642
  %v3797 = vmul.f32 %v3793, %v3643
  %v3798 = vsel %vm648, %v3796, 0.0
  %3799 = vadd.xlane.f32.xlu0 %v3798
  %v3800 = vpop.xlane.xlu0 %3799
  %v3801 = vsel %vm648, %v3797, 0.0
  %3802 = vadd.xlane.f32.xlu0 %v3801
  %v3803 = vpop.xlane.xlu0 %3802
  %vm3804 = vcmp.lt.s32.totalorder %v3316, 1
  %v3805 = vsel %vm3804, 1, 0
  %vm3806 = vcmp.eq.s32.totalorder %v3805, 1
  %v3807 = vsel %vm3806, %v3800, -1e+30
  %v3808 = vsel %vm3806, %v3803, -1e+30
  %v3809 = vrot.slane %v3807, 4
  %v3810 = vmax.f32 %v3807, %v3809
  %v3811 = vrot.slane %v3810, 2
  %v3812 = vmax.f32 %v3810, %v3811
  %v3813 = vrot.slane %v3812, 1
  %v3814 = vmax.f32 %v3812, %v3813
  %v3815 = vrot.slane %v3808, 4
  %v3816 = vmax.f32 %v3808, %v3815
  %v3817 = vrot.slane %v3816, 2
  %v3818 = vmax.f32 %v3816, %v3817
  %v3819 = vrot.slane %v3818, 1
  %v3820 = vmax.f32 %v3818, %v3819
  %v3821 = vsub.f32 %v3807, %v3814
  %v3822 = vsub.f32 %v3808, %v3820
  %v3823 = vmul.f32 %v3821, 1.442695
  %v3824 = vpow.pop %v3823
  %v3825 = vmul.f32 %v3822, 1.442695
  %v3826 = vpow.pop %v3825
  %v3827 = vrot.slane %v3824, 4
  %v3828 = vadd.f32 %v3824, %v3827
  %v3829 = vrot.slane %v3828, 2
  %v3830 = vadd.f32 %v3828, %v3829
  %v3831 = vrot.slane %v3830, 1
  %v3832 = vadd.f32 %v3830, %v3831
  %v3833 = vrot.slane %v3826, 4
  %v3834 = vadd.f32 %v3826, %v3833
  %v3835 = vrot.slane %v3834, 2
  %v3836 = vadd.f32 %v3834, %v3835
  %v3837 = vrot.slane %v3836, 1
  %v3838 = vadd.f32 %v3836, %v3837
  %v3839 = vrcp.pop %v3832
  %v3840 = vrcp.pop %v3838
  %v3841 = vmul.f32 %v3824, %v3839
  %v3842 = vmul.f32 %v3826, %v3840
  %v3843 = vmul.f32 %v3841, %v3642
  %v3844 = vmul.f32 %v3842, %v3643
  %v3845 = vsel %vm648, %v3843, 0.0
  %v3846 = vrot.slane %v3845, 4
  %v3847 = vadd.f32 %v3845, %v3846
  %v3848 = vrot.slane %v3847, 2
  %v3849 = vadd.f32 %v3847, %v3848
  %v3850 = vrot.slane %v3849, 1
  %v3851 = vadd.f32 %v3849, %v3850
  %v3852 = vsel %vm648, %v3844, 0.0
  %v3853 = vrot.slane %v3852, 4
  %v3854 = vadd.f32 %v3852, %v3853
  %v3855 = vrot.slane %v3854, 2
  %v3856 = vadd.f32 %v3854, %v3855
  %v3857 = vrot.slane %v3856, 1
  %v3858 = vadd.f32 %v3856, %v3857
  %vm3859 = vcmask 1042434
  %v3860 = vsel %vm3859, %v671, %v626
  %v3862 = vsel %vm3859, %v852, %v845
  %3863 = vrot.lane.b32.xlu0 %v3862, 32
  %v3864 = vpop.permute.xlu0 %3863
  %v3867 = vrot.slane %v3578, 1
  %3868 = vrot.lane.b32.xlu0 %v3867, 64
  %v3869 = vpop.permute.xlu0 %3868
  %v3871 = vsel %vm3859, %v3743, %v3736
  %3872 = vrot.lane.b32.xlu0 %v3871, 80
  %v3873 = vpop.permute.xlu0 %3872
  %v3877 = vsel %vm3859, %v3858, %v3851
  %3878 = vrot.lane.b32.xlu0 %v3877, 112
  %v3879 = vpop.permute.xlu0 %3878
  %v3881 = vsel %vm648, %v3860, %v3864
  %v3882 = vsel %vm3461, %v3881, %v3869
  %vm3883 = vcmask 654336
  %v3884 = vsel %vm3883, %v3882, %v3873
  %v3885 = vsel %vm3504, %v3884, %v3879
  %v3886 = vld [vmem:[%s51] sm:$0xff]
  %v3887 = vld [vmem:[%s51 + $0x8] sm:$0xff]
  %v3888 = vld [vmem:[%s51 + $0x10] sm:$0xff]
  %v3889 = vld [vmem:[%s51 + $0x18] sm:$0xff]
  %v3890 = vld [vmem:[%s51 + $0x20] sm:$0xff]
  %v3891 = vld [vmem:[%s51 + $0x28] sm:$0xff]
  %v3892 = vld [vmem:[%s51 + $0x30] sm:$0xff]
  %v3893 = vld [vmem:[%s51 + $0x38] sm:$0xff]
  %v3894 = vld [vmem:[%s51 + $0x40] sm:$0xff]
  %v3895 = vld [vmem:[%s51 + $0x48] sm:$0xff]
  %v3896 = vld [vmem:[%s51 + $0x50] sm:$0xff]
  %v3897 = vld [vmem:[%s51 + $0x58] sm:$0xff]
  %v3898 = vld [vmem:[%s51 + $0x60] sm:$0xff]
  %v3899 = vld [vmem:[%s51 + $0x68] sm:$0xff]
  %v3900 = vld [vmem:[%s51 + $0x70] sm:$0xff]
  %v3901 = vld [vmem:[%s51 + $0x78] sm:$0xff]
  %v3902 = vld [vmem:[%s51 + $0x80] sm:$0xff]
  %v3903 = vld [vmem:[%s51 + $0x88] sm:$0xff]
  %v3904 = vld [vmem:[%s53] sm:$0x1]
  %v3906 = vperm.slane %v3904, 0
  %v3909 = vrot.slane %v3885, 1
  %v3910 = vrot.slane %v3879, 1
  %v3912 = vsel %vm2730, %v3910, 0
  %3914 = vmatpush.msra.mxu0 %v3901
  %3915 = vmatpush.msra.mxu0 %v3900
  %3916 = vmatpush.msra.mxu0 %v3899
  %3917 = vmatpush.msra.mxu0 %v3898
  %3918 = vmatpush.msra.mxu0 %v3897
  %3919 = vmatpush.msra.mxu0 %v3896
  %3920 = vmatpush.msra.mxu0 %v3895
  %3921 = vmatpush.msra.mxu0 %v3894
  %3922 = vmatpush.msra.mxu0 %v3893
  %3923 = vmatpush.msra.mxu0 %v3892
  %3924 = vmatpush.msra.mxu0 %v3891
  %3925 = vmatpush.msra.mxu0 %v3890
  %3926 = vmatpush.msra.mxu0 %v3889
  %3927 = vmatpush.msra.mxu0 %v3888
  %3928 = vmatpush.msra.mxu0 %v3887
  %3929 = vmatpush.msra.mxu0 %v3886
  %3930 = vmatmul.f32.gmra.mxu0 %v3909
  %v3931 = vpop.f32.mrf.mxu0
  %v3932 = vadd.f32 %v3906, %v3931
  %3933 = vdwg.mxu0
  %3934 = vmatpush.msra.mxu0 0.0
  %3935 = vmatpush.msra.mxu0 0.0
  %3936 = vmatpush.msra.mxu0 0.0
  %3937 = vmatpush.msra.mxu0 0.0
  %3938 = vmatpush.msra.mxu0 0.0
  %3939 = vmatpush.msra.mxu0 0.0
  %3940 = vmatpush.msra.mxu0 0.0
  %3941 = vmatpush.msra.mxu0 0.0
  %3942 = vmatpush.msra.mxu0 0.0
  %3943 = vmatpush.msra.mxu0 0.0
  %3944 = vmatpush.msra.mxu0 0.0
  %3945 = vmatpush.msra.mxu0 0.0
  %3946 = vmatpush.msra.mxu0 0.0
  %3947 = vmatpush.msra.mxu0 0.0
  %3948 = vmatpush.msra.mxu0 %v3903
  %3949 = vmatpush.msra.mxu0 %v3902
  %3950 = vmatmul.f32.gmra.mxu0 %v3912
  %v3951 = vpop.f32.mrf.mxu0
  %v3952 = vadd.f32 %v3932, %v3951
  %3953 = vdwg.mxu0
  %s3954 = scalar_lea.vmem %s59, 2
  %3955 = vst.msk [vmem:[%s3954] sm:$0x3] %vm3570, %v3952
  %3956 = vrot.lane.b32.xlu0 %v1854, 104
  %v3957 = vpop.permute.xlu0 %3956
  %3959 = vrot.lane.b32.xlu0 %v2584, 112
  %v3960 = vpop.permute.xlu0 %3959
  %v3962 = vsel %vm1620, %v3957, %v3960
  %3963 = vst [vmem:[#allocation1] sm:$0xff] %v3615
  %s3964 = scalar_lea.vmem [#allocation1], 2
  %v3965 = vld [vmem:[%s3964] ss:$9 sm:$0xff]
  %s3966 = scalar_lea.vmem [#allocation1], 3
  %v3967 = vld [vmem:[%s3966] ss:$9 sm:$0xff]
  %v3968 = vperm.slane %v3965, 0
  %v3969 = vperm.slane %v3967, 0
  %v3972 = vsel %vm3336, %v3968, 0.0
  %v3973 = vsel %vm3336, %v3969, 0.0
  %v3974 = vadd.f32 %v3972, 0.0
  %v3975 = vadd.f32 %v3973, 0.0
  %v3976 = vrot.slane %v3615, 2
  %3977 = vrot.lane.b32.xlu0 %v3976, 80
  %v3978 = vpop.permute.xlu0 %3977
  %v3979 = vsel %vm2730, %v3978, 0
  %3981 = vmatpush.msra.mxu0 0.0
  %3982 = vmatpush.msra.mxu0 0.0
  %3983 = vmatpush.msra.mxu0 0.0
  %3984 = vmatpush.msra.mxu0 0.0
  %3985 = vmatpush.msra.mxu0 0.0
  %3986 = vmatpush.msra.mxu0 0.0
  %3987 = vmatpush.msra.mxu0 0.0
  %3988 = vmatpush.msra.mxu0 0.0
  %3989 = vmatpush.msra.mxu0 0.0
  %3990 = vmatpush.msra.mxu0 0.0
  %3991 = vmatpush.msra.mxu0 0.0
  %3992 = vmatpush.msra.mxu0 0.0
  %3993 = vmatpush.msra.mxu0 0.0
  %3994 = vmatpush.msra.mxu0 0.0
  %3995 = vmatpush.msra.mxu0 %v3314
  %3996 = vmatpush.msra.mxu0 %v3313
  %3997 = vmatmul.f32.gmra.mxu0 %v3979
  %v3998 = vpop.f32.mrf.mxu0
  %v3999 = vadd.f32 0.0, %v3998
  %4000 = vdwg.mxu0
  %v4001 = vadd.f32 %v2784, %v3999
  %v4002 = vxor.u32 %v4001, 2147483648
  %v4003 = vmul.f32 %v4002, 1.442695
  %v4004 = vpow.pop %v4003
  %v4005 = vadd.f32 %v4004, 1.0
  %v4006 = vrcp.pop %v4005
  %v4007 = vmul.f32 %v4005, %v4006
  %v4008 = vsub.f32 1.0, %v4007
  %v4009 = vmul.f32 %v4006, %v4008
  %v4010 = vadd.f32 %v4006, %v4009
  %vm4011 = vweird.f32 %v4005
  %vm4012 = vweird.f32 %v4006
  %vm4013 = vmor %vm4011, %vm4012
  %v4014 = vsel %vm4013, %v4006, %v4010
  %v4015 = vand.u32 2147483647, %v4005
  %vm4016 = vcmp.eq.f32.partialorder %v4015, 8.507059e+37
  %v4017 = vand.u32 %v4005, 2147483648
  %v4018 = vor.u32 1.1754944e-38, %v4017
  %v4019 = vsel %vm4016, %v4018, %v4014
  %v4020 = vmul.f32 1.0, %v4019
  %v4021 = vtanh.pop %v4001
  %v4023 = vrot.slane %v3609, 2
  %v4025 = vmul.f32 %v4020, %v4023
  %4027 = vrot.lane.b32.xlu0 %v4021, 96
  %v4028 = vpop.permute.xlu0 %4027
  %v4030 = vmul.f32 %v4020, %v4028
  %4032 = vrot.lane.b32.xlu0 %v4030, 16
  %v4033 = vpop.permute.xlu0 %4032
  %v4035 = vadd.f32 %v4025, %v4033
  %v4036 = vtanh.pop %v4035
  %4038 = vrot.lane.b32.xlu0 %v4036, 32
  %v4039 = vpop.permute.xlu0 %4038
  %v4041 = vmul.f32 %v4020, %v4039
  %v4043 = vrot.slane %v4041, 1
  %v4044 = vperm.slane %v4041, 0
  %v4045 = vperm.slane %v4043, 0
  %v4048 = vsel %vm3320, %v4044, 0.0
  %v4049 = vsel %vm3320, %v4045, 0.0
  %v4050 = vadd.f32 %v3974, %v4048
  %v4051 = vadd.f32 %v3975, %v4049
  %4054 = vrot.lane.b32.xlu0 %v4050, 96
  %v4055 = vpop.permute.xlu0 %4054
  %4056 = vrot.lane.b32.xlu0 %v4051, 96
  %v4057 = vpop.permute.xlu0 %4056
  %v4060 = vsel %vm2730, %v3629, %v4055
  %v4061 = vsel %vm2730, %v3631, %v4057
  %4062 = vrot.lane.b32.xlu0 %v2896, 80
  %v4063 = vpop.permute.xlu0 %4062
  %v4065 = vsel %vm2730, %v4063, %v3646
  %v4066 = vld [vmem:[%s43] sm:$0xff]
  %v4067 = vld [vmem:[%s43 + $0x8] sm:$0xff]
  %v4068 = vld [vmem:[%s43 + $0x10] sm:$0xff]
  %v4069 = vld [vmem:[%s43 + $0x18] sm:$0xff]
  %v4070 = vld [vmem:[%s45] sm:$0x1]
  %v4072 = vperm.slane %v4070, 0
  %v4075 = vrot.slane %v4065, 2
  %v4076 = vsel %vm648, %v4075, 0
  %4078 = vmatpush.msra.mxu0 0.0
  %4079 = vmatpush.msra.mxu0 0.0
  %4080 = vmatpush.msra.mxu0 0.0
  %4081 = vmatpush.msra.mxu0 0.0
  %4082 = vmatpush.msra.mxu0 0.0
  %4083 = vmatpush.msra.mxu0 0.0
  %4084 = vmatpush.msra.mxu0 0.0
  %4085 = vmatpush.msra.mxu0 0.0
  %4086 = vmatpush.msra.mxu0 0.0
  %4087 = vmatpush.msra.mxu0 0.0
  %4088 = vmatpush.msra.mxu0 0.0
  %4089 = vmatpush.msra.mxu0 0.0
  %4090 = vmatpush.msra.mxu0 %v4069
  %4091 = vmatpush.msra.mxu0 %v4068
  %4092 = vmatpush.msra.mxu0 %v4067
  %4093 = vmatpush.msra.mxu0 %v4066
  %4094 = vmatmul.f32.gmra.mxu0 %v4076
  %v4095 = vpop.f32.mrf.mxu0
  %v4096 = vadd.f32 %v4072, %v4095
  %4097 = vdwg.mxu0
  %v4099 = vrot.slane %v4096, 1
  %v4100 = vperm.slane %v4096, 0
  %v4101 = vperm.slane %v4099, 0
  %v4104 = vmul.f32 %v4100, %v626
  %v4105 = vmul.f32 %v4101, %v628
  %v4106 = vsel %vm648, %v4104, 0.0
  %4107 = vadd.xlane.f32.xlu0 %v4106
  %v4108 = vpop.xlane.xlu0 %4107
  %v4109 = vsel %vm648, %v4105, 0.0
  %4110 = vadd.xlane.f32.xlu0 %v4109
  %v4111 = vpop.xlane.xlu0 %4110
  %v4112 = vrot.slane %v4108, 4
  %v4113 = vmax.f32 %v4108, %v4112
  %v4114 = vrot.slane %v4113, 2
  %v4115 = vmax.f32 %v4113, %v4114
  %v4116 = vrot.slane %v4115, 1
  %v4117 = vmax.f32 %v4115, %v4116
  %v4118 = vrot.slane %v4111, 4
  %v4119 = vmax.f32 %v4111, %v4118
  %v4120 = vrot.slane %v4119, 2
  %v4121 = vmax.f32 %v4119, %v4120
  %v4122 = vrot.slane %v4121, 1
  %v4123 = vmax.f32 %v4121, %v4122
  %v4124 = vsub.f32 %v4108, %v4117
  %v4125 = vsub.f32 %v4111, %v4123
  %v4126 = vmul.f32 %v4124, 1.442695
  %v4127 = vpow.pop %v4126
  %v4128 = vmul.f32 %v4125, 1.442695
  %v4129 = vpow.pop %v4128
  %v4130 = vrot.slane %v4127, 4
  %v4131 = vadd.f32 %v4127, %v4130
  %v4132 = vrot.slane %v4131, 2
  %v4133 = vadd.f32 %v4131, %v4132
  %v4134 = vrot.slane %v4133, 1
  %v4135 = vadd.f32 %v4133, %v4134
  %v4136 = vrot.slane %v4129, 4
  %v4137 = vadd.f32 %v4129, %v4136
  %v4138 = vrot.slane %v4137, 2
  %v4139 = vadd.f32 %v4137, %v4138
  %v4140 = vrot.slane %v4139, 1
  %v4141 = vadd.f32 %v4139, %v4140
  %v4142 = vrcp.pop %v4135
  %v4143 = vrcp.pop %v4141
  %v4144 = vmul.f32 %v4127, %v4142
  %v4145 = vmul.f32 %v4129, %v4143
  %v4146 = vmul.f32 %v4144, %v626
  %v4147 = vmul.f32 %v4145, %v628
  %v4148 = vsel %vm648, %v4146, 0.0
  %v4149 = vrot.slane %v4148, 4
  %v4150 = vadd.f32 %v4148, %v4149
  %v4151 = vrot.slane %v4150, 2
  %v4152 = vadd.f32 %v4150, %v4151
  %v4153 = vrot.slane %v4152, 1
  %v4154 = vadd.f32 %v4152, %v4153
  %v4155 = vsel %vm648, %v4147, 0.0
  %v4156 = vrot.slane %v4155, 4
  %v4157 = vadd.f32 %v4155, %v4156
  %v4158 = vrot.slane %v4157, 2
  %v4159 = vadd.f32 %v4157, %v4158
  %v4160 = vrot.slane %v4159, 1
  %v4161 = vadd.f32 %v4159, %v4160
  %v4164 = vsel %vm646, %v983, %v976
  %v4168 = vsel %vm646, %v4161, %v4154
  %4169 = vrot.lane.b32.xlu0 %v4168, 32
  %v4170 = vpop.permute.xlu0 %4169
  %v4172 = vsel %vm648, %v4164, %v4170
  %v4173 = vld [vmem:[%s47] sm:$0xff]
  %v4174 = vld [vmem:[%s47 + $0x8] sm:$0xff]
  %v4175 = vld [vmem:[%s47 + $0x10] sm:$0xff]
  %v4176 = vld [vmem:[%s47 + $0x18] sm:$0xff]
  %v4177 = vld [vmem:[%s47 + $0x20] sm:$0xff]
  %v4178 = vld [vmem:[%s47 + $0x28] sm:$0xff]
  %v4179 = vld [vmem:[%s47 + $0x30] sm:$0xff]
  %v4180 = vld [vmem:[%s47 + $0x38] sm:$0xff]
  %v4181 = vld [vmem:[%s49] sm:$0x1]
  %v4183 = vperm.slane %v4181, 0
  %v4186 = vsel %vm3461, %v4172, 0
  %4188 = vmatpush.msra.mxu0 0.0
  %4189 = vmatpush.msra.mxu0 0.0
  %4190 = vmatpush.msra.mxu0 0.0
  %4191 = vmatpush.msra.mxu0 0.0
  %4192 = vmatpush.msra.mxu0 0.0
  %4193 = vmatpush.msra.mxu0 0.0
  %4194 = vmatpush.msra.mxu0 0.0
  %4195 = vmatpush.msra.mxu0 0.0
  %4196 = vmatpush.msra.mxu0 %v4180
  %4197 = vmatpush.msra.mxu0 %v4179
  %4198 = vmatpush.msra.mxu0 %v4178
  %4199 = vmatpush.msra.mxu0 %v4177
  %4200 = vmatpush.msra.mxu0 %v4176
  %4201 = vmatpush.msra.mxu0 %v4175
  %4202 = vmatpush.msra.mxu0 %v4174
  %4203 = vmatpush.msra.mxu0 %v4173
  %4204 = vmatmul.f32.gmra.mxu0 %v4186
  %v4205 = vpop.f32.mrf.mxu0
  %v4206 = vadd.f32 %v4183, %v4205
  %4207 = vdwg.mxu0
  %v4209 = vrot.slane %v4206, 1
  %v4210 = vperm.slane %v4206, 0
  %v4211 = vperm.slane %v4209, 0
  %v4214 = vmul.f32 %v4210, %v4060
  %v4215 = vmul.f32 %v4211, %v4061
  %v4216 = vsel %vm648, %v4214, 0.0
  %4217 = vadd.xlane.f32.xlu0 %v4216
  %v4218 = vpop.xlane.xlu0 %4217
  %v4219 = vsel %vm648, %v4215, 0.0
  %4220 = vadd.xlane.f32.xlu0 %v4219
  %v4221 = vpop.xlane.xlu0 %4220
  %vm4222 = vcmp.lt.s32.totalorder %v3316, 2
  %v4223 = vsel %vm4222, 1, 0
  %vm4224 = vcmp.eq.s32.totalorder %v4223, 1
  %v4225 = vsel %vm4224, %v4218, -1e+30
  %v4226 = vsel %vm4224, %v4221, -1e+30
  %v4227 = vrot.slane %v4225, 4
  %v4228 = vmax.f32 %v4225, %v4227
  %v4229 = vrot.slane %v4228, 2
  %v4230 = vmax.f32 %v4228, %v4229
  %v4231 = vrot.slane %v4230, 1
  %v4232 = vmax.f32 %v4230, %v4231
  %v4233 = vrot.slane %v4226, 4
  %v4234 = vmax.f32 %v4226, %v4233
  %v4235 = vrot.slane %v4234, 2
  %v4236 = vmax.f32 %v4234, %v4235
  %v4237 = vrot.slane %v4236, 1
  %v4238 = vmax.f32 %v4236, %v4237
  %v4239 = vsub.f32 %v4225, %v4232
  %v4240 = vsub.f32 %v4226, %v4238
  %v4241 = vmul.f32 %v4239, 1.442695
  %v4242 = vpow.pop %v4241
  %v4243 = vmul.f32 %v4240, 1.442695
  %v4244 = vpow.pop %v4243
  %v4245 = vrot.slane %v4242, 4
  %v4246 = vadd.f32 %v4242, %v4245
  %v4247 = vrot.slane %v4246, 2
  %v4248 = vadd.f32 %v4246, %v4247
  %v4249 = vrot.slane %v4248, 1
  %v4250 = vadd.f32 %v4248, %v4249
  %v4251 = vrot.slane %v4244, 4
  %v4252 = vadd.f32 %v4244, %v4251
  %v4253 = vrot.slane %v4252, 2
  %v4254 = vadd.f32 %v4252, %v4253
  %v4255 = vrot.slane %v4254, 1
  %v4256 = vadd.f32 %v4254, %v4255
  %v4257 = vrcp.pop %v4250
  %v4258 = vrcp.pop %v4256
  %v4259 = vmul.f32 %v4242, %v4257
  %v4260 = vmul.f32 %v4244, %v4258
  %v4261 = vmul.f32 %v4259, %v4060
  %v4262 = vmul.f32 %v4260, %v4061
  %v4263 = vsel %vm648, %v4261, 0.0
  %v4264 = vrot.slane %v4263, 4
  %v4265 = vadd.f32 %v4263, %v4264
  %v4266 = vrot.slane %v4265, 2
  %v4267 = vadd.f32 %v4265, %v4266
  %v4268 = vrot.slane %v4267, 1
  %v4269 = vadd.f32 %v4267, %v4268
  %v4270 = vsel %vm648, %v4262, 0.0
  %v4271 = vrot.slane %v4270, 4
  %v4272 = vadd.f32 %v4270, %v4271
  %v4273 = vrot.slane %v4272, 2
  %v4274 = vadd.f32 %v4272, %v4273
  %v4275 = vrot.slane %v4274, 1
  %v4276 = vadd.f32 %v4274, %v4275
  %vm4277 = vcmask 1043459
  %v4278 = vsel %vm4277, %v671, %v626
  %v4280 = vsel %vm4277, %v983, %v976
  %4281 = vrot.lane.b32.xlu0 %v4280, 32
  %v4282 = vpop.permute.xlu0 %4281
  %v4285 = vrot.slane %v3962, 2
  %4286 = vrot.lane.b32.xlu0 %v4285, 64
  %v4287 = vpop.permute.xlu0 %4286
  %v4289 = vsel %vm4277, %v4161, %v4154
  %4290 = vrot.lane.b32.xlu0 %v4289, 80
  %v4291 = vpop.permute.xlu0 %4290
  %v4295 = vsel %vm4277, %v4276, %v4269
  %4296 = vrot.lane.b32.xlu0 %v4295, 112
  %v4297 = vpop.permute.xlu0 %4296
  %v4299 = vsel %vm648, %v4278, %v4282
  %v4300 = vsel %vm3461, %v4299, %v4287
  %v4301 = vsel %vm3883, %v4300, %v4291
  %v4302 = vsel %vm3504, %v4301, %v4297
  %v4303 = vld [vmem:[%s51] sm:$0xff]
  %v4304 = vld [vmem:[%s51 + $0x8] sm:$0xff]
  %v4305 = vld [vmem:[%s51 + $0x10] sm:$0xff]
  %v4306 = vld [vmem:[%s51 + $0x18] sm:$0xff]
  %v4307 = vld [vmem:[%s51 + $0x20] sm:$0xff]
  %v4308 = vld [vmem:[%s51 + $0x28] sm:$0xff]
  %v4309 = vld [vmem:[%s51 + $0x30] sm:$0xff]
  %v4310 = vld [vmem:[%s51 + $0x38] sm:$0xff]
  %v4311 = vld [vmem:[%s51 + $0x40] sm:$0xff]
  %v4312 = vld [vmem:[%s51 + $0x48] sm:$0xff]
  %v4313 = vld [vmem:[%s51 + $0x50] sm:$0xff]
  %v4314 = vld [vmem:[%s51 + $0x58] sm:$0xff]
  %v4315 = vld [vmem:[%s51 + $0x60] sm:$0xff]
  %v4316 = vld [vmem:[%s51 + $0x68] sm:$0xff]
  %v4317 = vld [vmem:[%s51 + $0x70] sm:$0xff]
  %v4318 = vld [vmem:[%s51 + $0x78] sm:$0xff]
  %v4319 = vld [vmem:[%s51 + $0x80] sm:$0xff]
  %v4320 = vld [vmem:[%s51 + $0x88] sm:$0xff]
  %v4321 = vld [vmem:[%s53] sm:$0x1]
  %v4323 = vperm.slane %v4321, 0
  %v4326 = vrot.slane %v4302, 2
  %v4327 = vrot.slane %v4297, 2
  %v4329 = vsel %vm2730, %v4327, 0
  %4331 = vmatpush.msra.mxu0 %v4318
  %4332 = vmatpush.msra.mxu0 %v4317
  %4333 = vmatpush.msra.mxu0 %v4316
  %4334 = vmatpush.msra.mxu0 %v4315
  %4335 = vmatpush.msra.mxu0 %v4314
  %4336 = vmatpush.msra.mxu0 %v4313
  %4337 = vmatpush.msra.mxu0 %v4312
  %4338 = vmatpush.msra.mxu0 %v4311
  %4339 = vmatpush.msra.mxu0 %v4310
  %4340 = vmatpush.msra.mxu0 %v4309
  %4341 = vmatpush.msra.mxu0 %v4308
  %4342 = vmatpush.msra.mxu0 %v4307
  %4343 = vmatpush.msra.mxu0 %v4306
  %4344 = vmatpush.msra.mxu0 %v4305
  %4345 = vmatpush.msra.mxu0 %v4304
  %4346 = vmatpush.msra.mxu0 %v4303
  %4347 = vmatmul.f32.gmra.mxu0 %v4326
  %v4348 = vpop.f32.mrf.mxu0
  %v4349 = vadd.f32 %v4323, %v4348
  %4350 = vdwg.mxu0
  %4351 = vmatpush.msra.mxu0 0.0
  %4352 = vmatpush.msra.mxu0 0.0
  %4353 = vmatpush.msra.mxu0 0.0
  %4354 = vmatpush.msra.mxu0 0.0
  %4355 = vmatpush.msra.mxu0 0.0
  %4356 = vmatpush.msra.mxu0 0.0
  %4357 = vmatpush.msra.mxu0 0.0
  %4358 = vmatpush.msra.mxu0 0.0
  %4359 = vmatpush.msra.mxu0 0.0
  %4360 = vmatpush.msra.mxu0 0.0
  %4361 = vmatpush.msra.mxu0 0.0
  %4362 = vmatpush.msra.mxu0 0.0
  %4363 = vmatpush.msra.mxu0 0.0
  %4364 = vmatpush.msra.mxu0 0.0
  %4365 = vmatpush.msra.mxu0 %v4320
  %4366 = vmatpush.msra.mxu0 %v4319
  %4367 = vmatmul.f32.gmra.mxu0 %v4329
  %v4368 = vpop.f32.mrf.mxu0
  %v4369 = vadd.f32 %v4349, %v4368
  %4370 = vdwg.mxu0
  %s4371 = scalar_lea.vmem %s59, 4
  %4372 = vst.msk [vmem:[%s4371] sm:$0x3] %vm3570, %v4369
  %4373 = vrot.lane.b32.xlu0 %v1924, 104
  %v4374 = vpop.permute.xlu0 %4373
  %4376 = vrot.lane.b32.xlu0 %v2514, 112
  %v4377 = vpop.permute.xlu0 %4376
  %v4379 = vsel %vm1620, %v4374, %v4377
  %4380 = vst [vmem:[#allocation1] sm:$0xff] %v3615
  %s4381 = scalar_lea.vmem [#allocation1], 4
  %v4382 = vld [vmem:[%s4381] ss:$9 sm:$0xff]
  %s4383 = scalar_lea.vmem [#allocation1], 5
  %v4384 = vld [vmem:[%s4383] ss:$9 sm:$0xff]
  %v4385 = vperm.slane %v4382, 0
  %v4386 = vperm.slane %v4384, 0
  %v4389 = vsel %vm3352, %v4385, 0.0
  %v4390 = vsel %vm3352, %v4386, 0.0
  %v4391 = vadd.f32 %v4389, 0.0
  %v4392 = vadd.f32 %v4390, 0.0
  %v4393 = vrot.slane %v3615, 4
  %4394 = vrot.lane.b32.xlu0 %v4393, 80
  %v4395 = vpop.permute.xlu0 %4394
  %v4396 = vsel %vm2730, %v4395, 0
  %4398 = vmatpush.msra.mxu0 0.0
  %4399 = vmatpush.msra.mxu0 0.0
  %4400 = vmatpush.msra.mxu0 0.0
  %4401 = vmatpush.msra.mxu0 0.0
  %4402 = vmatpush.msra.mxu0 0.0
  %4403 = vmatpush.msra.mxu0 0.0
  %4404 = vmatpush.msra.mxu0 0.0
  %4405 = vmatpush.msra.mxu0 0.0
  %4406 = vmatpush.msra.mxu0 0.0
  %4407 = vmatpush.msra.mxu0 0.0
  %4408 = vmatpush.msra.mxu0 0.0
  %4409 = vmatpush.msra.mxu0 0.0
  %4410 = vmatpush.msra.mxu0 0.0
  %4411 = vmatpush.msra.mxu0 0.0
  %4412 = vmatpush.msra.mxu0 %v3314
  %4413 = vmatpush.msra.mxu0 %v3313
  %4414 = vmatmul.f32.gmra.mxu0 %v4396
  %v4415 = vpop.f32.mrf.mxu0
  %v4416 = vadd.f32 0.0, %v4415
  %4417 = vdwg.mxu0
  %v4419 = vrot.slane %v4416, 6
  %v4421 = vadd.f32 %v2784, %v4419
  %v4422 = vxor.u32 %v4421, 2147483648
  %v4423 = vmul.f32 %v4422, 1.442695
  %v4424 = vpow.pop %v4423
  %v4425 = vadd.f32 %v4424, 1.0
  %v4426 = vrcp.pop %v4425
  %v4427 = vmul.f32 %v4425, %v4426
  %v4428 = vsub.f32 1.0, %v4427
  %v4429 = vmul.f32 %v4426, %v4428
  %v4430 = vadd.f32 %v4426, %v4429
  %vm4431 = vweird.f32 %v4425
  %vm4432 = vweird.f32 %v4426
  %vm4433 = vmor %vm4431, %vm4432
  %v4434 = vsel %vm4433, %v4426, %v4430
  %v4435 = vand.u32 2147483647, %v4425
  %vm4436 = vcmp.eq.f32.partialorder %v4435, 8.507059e+37
  %v4437 = vand.u32 %v4425, 2147483648
  %v4438 = vor.u32 1.1754944e-38, %v4437
  %v4439 = vsel %vm4436, %v4438, %v4434
  %v4440 = vmul.f32 1.0, %v4439
  %v4441 = vtanh.pop %v4421
  %v4442 = vmul.f32 %v4440, %v4023
  %4444 = vrot.lane.b32.xlu0 %v4441, 96
  %v4445 = vpop.permute.xlu0 %4444
  %v4447 = vmul.f32 %v4440, %v4445
  %4449 = vrot.lane.b32.xlu0 %v4447, 16
  %v4450 = vpop.permute.xlu0 %4449
  %v4452 = vadd.f32 %v4442, %v4450
  %v4453 = vtanh.pop %v4452
  %4455 = vrot.lane.b32.xlu0 %v4453, 32
  %v4456 = vpop.permute.xlu0 %4455
  %v4458 = vmul.f32 %v4440, %v4456
  %4460 = vst [vmem:[#allocation1] sm:$0xff] %v4458
  %s4461 = scalar_lea.vmem [#allocation1], 2
  %v4462 = vld [vmem:[%s4461] ss:$9 sm:$0xff]
  %s4463 = scalar_lea.vmem [#allocation1], 3
  %v4464 = vld [vmem:[%s4463] ss:$9 sm:$0xff]
  %v4465 = vperm.slane %v4462, 0
  %v4466 = vperm.slane %v4464, 0
  %v4469 = vsel %vm3336, %v4465, 0.0
  %v4470 = vsel %vm3336, %v4466, 0.0
  %v4471 = vadd.f32 %v4391, %v4469
  %v4472 = vadd.f32 %v4392, %v4470
  %v4473 = vrot.slane %v4458, 2
  %4474 = vrot.lane.b32.xlu0 %v4473, 80
  %v4475 = vpop.permute.xlu0 %4474
  %v4476 = vsel %vm2730, %v4475, 0
  %4478 = vmatpush.msra.mxu0 0.0
  %4479 = vmatpush.msra.mxu0 0.0
  %4480 = vmatpush.msra.mxu0 0.0
  %4481 = vmatpush.msra.mxu0 0.0
  %4482 = vmatpush.msra.mxu0 0.0
  %4483 = vmatpush.msra.mxu0 0.0
  %4484 = vmatpush.msra.mxu0 0.0
  %4485 = vmatpush.msra.mxu0 0.0
  %4486 = vmatpush.msra.mxu0 0.0
  %4487 = vmatpush.msra.mxu0 0.0
  %4488 = vmatpush.msra.mxu0 0.0
  %4489 = vmatpush.msra.mxu0 0.0
  %4490 = vmatpush.msra.mxu0 0.0
  %4491 = vmatpush.msra.mxu0 0.0
  %4492 = vmatpush.msra.mxu0 %v3314
  %4493 = vmatpush.msra.mxu0 %v3313
  %4494 = vmatmul.f32.gmra.mxu0 %v4476
  %v4495 = vpop.f32.mrf.mxu0
  %v4496 = vadd.f32 0.0, %v4495
  %4497 = vdwg.mxu0
  %v4498 = vadd.f32 %v2784, %v4496
  %v4499 = vxor.u32 %v4498, 2147483648
  %v4500 = vmul.f32 %v4499, 1.442695
  %v4501 = vpow.pop %v4500
  %v4502 = vadd.f32 %v4501, 1.0
  %v4503 = vrcp.pop %v4502
  %v4504 = vmul.f32 %v4502, %v4503
  %v4505 = vsub.f32 1.0, %v4504
  %v4506 = vmul.f32 %v4503, %v4505
  %v4507 = vadd.f32 %v4503, %v4506
  %vm4508 = vweird.f32 %v4502
  %vm4509 = vweird.f32 %v4503
  %vm4510 = vmor %vm4508, %vm4509
  %v4511 = vsel %vm4510, %v4503, %v4507
  %v4512 = vand.u32 2147483647, %v4502
  %vm4513 = vcmp.eq.f32.partialorder %v4512, 8.507059e+37
  %v4514 = vand.u32 %v4502, 2147483648
  %v4515 = vor.u32 1.1754944e-38, %v4514
  %v4516 = vsel %vm4513, %v4515, %v4511
  %v4517 = vmul.f32 1.0, %v4516
  %v4518 = vtanh.pop %v4498
  %v4520 = vrot.slane %v4452, 2
  %v4522 = vmul.f32 %v4517, %v4520
  %4524 = vrot.lane.b32.xlu0 %v4518, 96
  %v4525 = vpop.permute.xlu0 %4524
  %v4527 = vmul.f32 %v4517, %v4525
  %4529 = vrot.lane.b32.xlu0 %v4527, 16
  %v4530 = vpop.permute.xlu0 %4529
  %v4532 = vadd.f32 %v4522, %v4530
  %v4533 = vtanh.pop %v4532
  %4535 = vrot.lane.b32.xlu0 %v4533, 32
  %v4536 = vpop.permute.xlu0 %4535
  %v4538 = vmul.f32 %v4517, %v4536
  %v4540 = vrot.slane %v4538, 1
  %v4541 = vperm.slane %v4538, 0
  %v4542 = vperm.slane %v4540, 0
  %v4545 = vsel %vm3320, %v4541, 0.0
  %v4546 = vsel %vm3320, %v4542, 0.0
  %v4547 = vadd.f32 %v4471, %v4545
  %v4548 = vadd.f32 %v4472, %v4546
  %4551 = vrot.lane.b32.xlu0 %v4547, 96
  %v4552 = vpop.permute.xlu0 %4551
  %4553 = vrot.lane.b32.xlu0 %v4548, 96
  %v4554 = vpop.permute.xlu0 %4553
  %v4557 = vsel %vm2730, %v3629, %v4552
  %v4558 = vsel %vm2730, %v3631, %v4554
  %4559 = vrot.lane.b32.xlu0 %v2966, 80
  %v4560 = vpop.permute.xlu0 %4559
  %v4562 = vsel %vm2730, %v4560, %v3646
  %v4563 = vld [vmem:[%s43] sm:$0xff]
  %v4564 = vld [vmem:[%s43 + $0x8] sm:$0xff]
  %v4565 = vld [vmem:[%s43 + $0x10] sm:$0xff]
  %v4566 = vld [vmem:[%s43 + $0x18] sm:$0xff]
  %v4567 = vld [vmem:[%s45] sm:$0x1]
  %v4569 = vperm.slane %v4567, 0
  %v4572 = vrot.slane %v4562, 4
  %v4573 = vsel %vm648, %v4572, 0
  %4575 = vmatpush.msra.mxu0 0.0
  %4576 = vmatpush.msra.mxu0 0.0
  %4577 = vmatpush.msra.mxu0 0.0
  %4578 = vmatpush.msra.mxu0 0.0
  %4579 = vmatpush.msra.mxu0 0.0
  %4580 = vmatpush.msra.mxu0 0.0
  %4581 = vmatpush.msra.mxu0 0.0
  %4582 = vmatpush.msra.mxu0 0.0
  %4583 = vmatpush.msra.mxu0 0.0
  %4584 = vmatpush.msra.mxu0 0.0
  %4585 = vmatpush.msra.mxu0 0.0
  %4586 = vmatpush.msra.mxu0 0.0
  %4587 = vmatpush.msra.mxu0 %v4566
  %4588 = vmatpush.msra.mxu0 %v4565
  %4589 = vmatpush.msra.mxu0 %v4564
  %4590 = vmatpush.msra.mxu0 %v4563
  %4591 = vmatmul.f32.gmra.mxu0 %v4573
  %v4592 = vpop.f32.mrf.mxu0
  %v4593 = vadd.f32 %v4569, %v4592
  %4594 = vdwg.mxu0
  %v4596 = vrot.slane %v4593, 1
  %v4597 = vperm.slane %v4593, 0
  %v4598 = vperm.slane %v4596, 0
  %v4601 = vmul.f32 %v4597, %v626
  %v4602 = vmul.f32 %v4598, %v628
  %v4603 = vsel %vm648, %v4601, 0.0
  %4604 = vadd.xlane.f32.xlu0 %v4603
  %v4605 = vpop.xlane.xlu0 %4604
  %v4606 = vsel %vm648, %v4602, 0.0
  %4607 = vadd.xlane.f32.xlu0 %v4606
  %v4608 = vpop.xlane.xlu0 %4607
  %v4609 = vrot.slane %v4605, 4
  %v4610 = vmax.f32 %v4605, %v4609
  %v4611 = vrot.slane %v4610, 2
  %v4612 = vmax.f32 %v4610, %v4611
  %v4613 = vrot.slane %v4612, 1
  %v4614 = vmax.f32 %v4612, %v4613
  %v4615 = vrot.slane %v4608, 4
  %v4616 = vmax.f32 %v4608, %v4615
  %v4617 = vrot.slane %v4616, 2
  %v4618 = vmax.f32 %v4616, %v4617
  %v4619 = vrot.slane %v4618, 1
  %v4620 = vmax.f32 %v4618, %v4619
  %v4621 = vsub.f32 %v4605, %v4614
  %v4622 = vsub.f32 %v4608, %v4620
  %v4623 = vmul.f32 %v4621, 1.442695
  %v4624 = vpow.pop %v4623
  %v4625 = vmul.f32 %v4622, 1.442695
  %v4626 = vpow.pop %v4625
  %v4627 = vrot.slane %v4624, 4
  %v4628 = vadd.f32 %v4624, %v4627
  %v4629 = vrot.slane %v4628, 2
  %v4630 = vadd.f32 %v4628, %v4629
  %v4631 = vrot.slane %v4630, 1
  %v4632 = vadd.f32 %v4630, %v4631
  %v4633 = vrot.slane %v4626, 4
  %v4634 = vadd.f32 %v4626, %v4633
  %v4635 = vrot.slane %v4634, 2
  %v4636 = vadd.f32 %v4634, %v4635
  %v4637 = vrot.slane %v4636, 1
  %v4638 = vadd.f32 %v4636, %v4637
  %v4639 = vrcp.pop %v4632
  %v4640 = vrcp.pop %v4638
  %v4641 = vmul.f32 %v4624, %v4639
  %v4642 = vmul.f32 %v4626, %v4640
  %v4643 = vmul.f32 %v4641, %v626
  %v4644 = vmul.f32 %v4642, %v628
  %v4645 = vsel %vm648, %v4643, 0.0
  %v4646 = vrot.slane %v4645, 4
  %v4647 = vadd.f32 %v4645, %v4646
  %v4648 = vrot.slane %v4647, 2
  %v4649 = vadd.f32 %v4647, %v4648
  %v4650 = vrot.slane %v4649, 1
  %v4651 = vadd.f32 %v4649, %v4650
  %v4652 = vsel %vm648, %v4644, 0.0
  %v4653 = vrot.slane %v4652, 4
  %v4654 = vadd.f32 %v4652, %v4653
  %v4655 = vrot.slane %v4654, 2
  %v4656 = vadd.f32 %v4654, %v4655
  %v4657 = vrot.slane %v4656, 1
  %v4658 = vadd.f32 %v4656, %v4657
  %v4661 = vsel %vm646, %v1114, %v1107
  %v4665 = vsel %vm646, %v4658, %v4651
  %4666 = vrot.lane.b32.xlu0 %v4665, 32
  %v4667 = vpop.permute.xlu0 %4666
  %v4669 = vsel %vm648, %v4661, %v4667
  %v4670 = vld [vmem:[%s47] sm:$0xff]
  %v4671 = vld [vmem:[%s47 + $0x8] sm:$0xff]
  %v4672 = vld [vmem:[%s47 + $0x10] sm:$0xff]
  %v4673 = vld [vmem:[%s47 + $0x18] sm:$0xff]
  %v4674 = vld [vmem:[%s47 + $0x20] sm:$0xff]
  %v4675 = vld [vmem:[%s47 + $0x28] sm:$0xff]
  %v4676 = vld [vmem:[%s47 + $0x30] sm:$0xff]
  %v4677 = vld [vmem:[%s47 + $0x38] sm:$0xff]
  %v4678 = vld [vmem:[%s49] sm:$0x1]
  %v4680 = vperm.slane %v4678, 0
  %v4683 = vsel %vm3461, %v4669, 0
  %4685 = vmatpush.msra.mxu0 0.0
  %4686 = vmatpush.msra.mxu0 0.0
  %4687 = vmatpush.msra.mxu0 0.0
  %4688 = vmatpush.msra.mxu0 0.0
  %4689 = vmatpush.msra.mxu0 0.0
  %4690 = vmatpush.msra.mxu0 0.0
  %4691 = vmatpush.msra.mxu0 0.0
  %4692 = vmatpush.msra.mxu0 0.0
  %4693 = vmatpush.msra.mxu0 %v4677
  %4694 = vmatpush.msra.mxu0 %v4676
  %4695 = vmatpush.msra.mxu0 %v4675
  %4696 = vmatpush.msra.mxu0 %v4674
  %4697 = vmatpush.msra.mxu0 %v4673
  %4698 = vmatpush.msra.mxu0 %v4672
  %4699 = vmatpush.msra.mxu0 %v4671
  %4700 = vmatpush.msra.mxu0 %v4670
  %4701 = vmatmul.f32.gmra.mxu0 %v4683
  %v4702 = vpop.f32.mrf.mxu0
  %v4703 = vadd.f32 %v4680, %v4702
  %4704 = vdwg.mxu0
  %v4706 = vrot.slane %v4703, 1
  %v4707 = vperm.slane %v4703, 0
  %v4708 = vperm.slane %v4706, 0
  %v4711 = vmul.f32 %v4707, %v4557
  %v4712 = vmul.f32 %v4708, %v4558
  %v4713 = vsel %vm648, %v4711, 0.0
  %4714 = vadd.xlane.f32.xlu0 %v4713
  %v4715 = vpop.xlane.xlu0 %4714
  %v4716 = vsel %vm648, %v4712, 0.0
  %4717 = vadd.xlane.f32.xlu0 %v4716
  %v4718 = vpop.xlane.xlu0 %4717
  %vm4719 = vcmp.lt.s32.totalorder %v3316, 3
  %v4720 = vsel %vm4719, 1, 0
  %vm4721 = vcmp.eq.s32.totalorder %v4720, 1
  %v4722 = vsel %vm4721, %v4715, -1e+30
  %v4723 = vsel %vm4721, %v4718, -1e+30
  %v4724 = vrot.slane %v4722, 4
  %v4725 = vmax.f32 %v4722, %v4724
  %v4726 = vrot.slane %v4725, 2
  %v4727 = vmax.f32 %v4725, %v4726
  %v4728 = vrot.slane %v4727, 1
  %v4729 = vmax.f32 %v4727, %v4728
  %v4730 = vrot.slane %v4723, 4
  %v4731 = vmax.f32 %v4723, %v4730
  %v4732 = vrot.slane %v4731, 2
  %v4733 = vmax.f32 %v4731, %v4732
  %v4734 = vrot.slane %v4733, 1
  %v4735 = vmax.f32 %v4733, %v4734
  %v4736 = vsub.f32 %v4722, %v4729
  %v4737 = vsub.f32 %v4723, %v4735
  %v4738 = vmul.f32 %v4736, 1.442695
  %v4739 = vpow.pop %v4738
  %v4740 = vmul.f32 %v4737, 1.442695
  %v4741 = vpow.pop %v4740
  %v4742 = vrot.slane %v4739, 4
  %v4743 = vadd.f32 %v4739, %v4742
  %v4744 = vrot.slane %v4743, 2
  %v4745 = vadd.f32 %v4743, %v4744
  %v4746 = vrot.slane %v4745, 1
  %v4747 = vadd.f32 %v4745, %v4746
  %v4748 = vrot.slane %v4741, 4
  %v4749 = vadd.f32 %v4741, %v4748
  %v4750 = vrot.slane %v4749, 2
  %v4751 = vadd.f32 %v4749, %v4750
  %v4752 = vrot.slane %v4751, 1
  %v4753 = vadd.f32 %v4751, %v4752
  %v4754 = vrcp.pop %v4747
  %v4755 = vrcp.pop %v4753
  %v4756 = vmul.f32 %v4739, %v4754
  %v4757 = vmul.f32 %v4741, %v4755
  %v4758 = vmul.f32 %v4756, %v4557
  %v4759 = vmul.f32 %v4757, %v4558
  %v4760 = vsel %vm648, %v4758, 0.0
  %v4761 = vrot.slane %v4760, 4
  %v4762 = vadd.f32 %v4760, %v4761
  %v4763 = vrot.slane %v4762, 2
  %v4764 = vadd.f32 %v4762, %v4763
  %v4765 = vrot.slane %v4764, 1
  %v4766 = vadd.f32 %v4764, %v4765
  %v4767 = vsel %vm648, %v4759, 0.0
  %v4768 = vrot.slane %v4767, 4
  %v4769 = vadd.f32 %v4767, %v4768
  %v4770 = vrot.slane %v4769, 2
  %v4771 = vadd.f32 %v4769, %v4770
  %v4772 = vrot.slane %v4771, 1
  %v4773 = vadd.f32 %v4771, %v4772
  %vm4774 = vcmask 1044484
  %v4775 = vsel %vm4774, %v671, %v626
  %v4777 = vsel %vm4774, %v1114, %v1107
  %4778 = vrot.lane.b32.xlu0 %v4777, 32
  %v4779 = vpop.permute.xlu0 %4778
  %v4782 = vrot.slane %v4379, 3
  %4783 = vrot.lane.b32.xlu0 %v4782, 64
  %v4784 = vpop.permute.xlu0 %4783
  %v4786 = vsel %vm4774, %v4658, %v4651
  %4787 = vrot.lane.b32.xlu0 %v4786, 80
  %v4788 = vpop.permute.xlu0 %4787
  %v4792 = vsel %vm4774, %v4773, %v4766
  %4793 = vrot.lane.b32.xlu0 %v4792, 112
  %v4794 = vpop.permute.xlu0 %4793
  %v4796 = vsel %vm648, %v4775, %v4779
  %v4797 = vsel %vm3461, %v4796, %v4784
  %v4798 = vsel %vm3883, %v4797, %v4788
  %v4799 = vsel %vm3504, %v4798, %v4794
  %v4800 = vld [vmem:[%s51] sm:$0xff]
  %v4801 = vld [vmem:[%s51 + $0x8] sm:$0xff]
  %v4802 = vld [vmem:[%s51 + $0x10] sm:$0xff]
  %v4803 = vld [vmem:[%s51 + $0x18] sm:$0xff]
  %v4804 = vld [vmem:[%s51 + $0x20] sm:$0xff]
  %v4805 = vld [vmem:[%s51 + $0x28] sm:$0xff]
  %v4806 = vld [vmem:[%s51 + $0x30] sm:$0xff]
  %v4807 = vld [vmem:[%s51 + $0x38] sm:$0xff]
  %v4808 = vld [vmem:[%s51 + $0x40] sm:$0xff]
  %v4809 = vld [vmem:[%s51 + $0x48] sm:$0xff]
  %v4810 = vld [vmem:[%s51 + $0x50] sm:$0xff]
  %v4811 = vld [vmem:[%s51 + $0x58] sm:$0xff]
  %v4812 = vld [vmem:[%s51 + $0x60] sm:$0xff]
  %v4813 = vld [vmem:[%s51 + $0x68] sm:$0xff]
  %v4814 = vld [vmem:[%s51 + $0x70] sm:$0xff]
  %v4815 = vld [vmem:[%s51 + $0x78] sm:$0xff]
  %v4816 = vld [vmem:[%s51 + $0x80] sm:$0xff]
  %v4817 = vld [vmem:[%s51 + $0x88] sm:$0xff]
  %v4818 = vld [vmem:[%s53] sm:$0x1]
  %v4820 = vperm.slane %v4818, 0
  %v4823 = vrot.slane %v4799, 3
  %v4824 = vrot.slane %v4794, 3
  %v4826 = vsel %vm2730, %v4824, 0
  %4828 = vmatpush.msra.mxu0 %v4815
  %4829 = vmatpush.msra.mxu0 %v4814
  %4830 = vmatpush.msra.mxu0 %v4813
  %4831 = vmatpush.msra.mxu0 %v4812
  %4832 = vmatpush.msra.mxu0 %v4811
  %4833 = vmatpush.msra.mxu0 %v4810
  %4834 = vmatpush.msra.mxu0 %v4809
  %4835 = vmatpush.msra.mxu0 %v4808
  %4836 = vmatpush.msra.mxu0 %v4807
  %4837 = vmatpush.msra.mxu0 %v4806
  %4838 = vmatpush.msra.mxu0 %v4805
  %4839 = vmatpush.msra.mxu0 %v4804
  %4840 = vmatpush.msra.mxu0 %v4803
  %4841 = vmatpush.msra.mxu0 %v4802
  %4842 = vmatpush.msra.mxu0 %v4801
  %4843 = vmatpush.msra.mxu0 %v4800
  %4844 = vmatmul.f32.gmra.mxu0 %v4823
  %v4845 = vpop.f32.mrf.mxu0
  %v4846 = vadd.f32 %v4820, %v4845
  %4847 = vdwg.mxu0
  %4848 = vmatpush.msra.mxu0 0.0
  %4849 = vmatpush.msra.mxu0 0.0
  %4850 = vmatpush.msra.mxu0 0.0
  %4851 = vmatpush.msra.mxu0 0.0
  %4852 = vmatpush.msra.mxu0 0.0
  %4853 = vmatpush.msra.mxu0 0.0
  %4854 = vmatpush.msra.mxu0 0.0
  %4855 = vmatpush.msra.mxu0 0.0
  %4856 = vmatpush.msra.mxu0 0.0
  %4857 = vmatpush.msra.mxu0 0.0
  %4858 = vmatpush.msra.mxu0 0.0
  %4859 = vmatpush.msra.mxu0 0.0
  %4860 = vmatpush.msra.mxu0 0.0
  %4861 = vmatpush.msra.mxu0 0.0
  %4862 = vmatpush.msra.mxu0 %v4817
  %4863 = vmatpush.msra.mxu0 %v4816
  %4864 = vmatmul.f32.gmra.mxu0 %v4826
  %v4865 = vpop.f32.mrf.mxu0
  %v4866 = vadd.f32 %v4846, %v4865
  %4867 = vdwg.mxu0
  %s4868 = scalar_lea.vmem %s59, 6
  %4869 = vst.msk [vmem:[%s4868] sm:$0x3] %vm3570, %v4866
  %4871 = vrot.lane.b32.xlu0 %v2445, 112
  %v4872 = vpop.permute.xlu0 %4871
  %v4874 = vsel %vm1620, %v1994, %v4872
  %4875 = vst [vmem:[#allocation1] sm:$0xff] %v3615
  %s4876 = scalar_lea.vmem [#allocation1], 6
  %v4877 = vld [vmem:[%s4876] ss:$9 sm:$0xff]
  %s4878 = scalar_lea.vmem [#allocation1], 7
  %v4879 = vld [vmem:[%s4878] ss:$9 sm:$0xff]
  %v4880 = vperm.slane %v4877, 0
  %v4881 = vperm.slane %v4879, 0
  %v4884 = vsel %vm3368, %v4880, 0.0
  %v4885 = vsel %vm3368, %v4881, 0.0
  %v4886 = vadd.f32 %v4884, 0.0
  %v4887 = vadd.f32 %v4885, 0.0
  %v4888 = vrot.slane %v3615, 6
  %4889 = vrot.lane.b32.xlu0 %v4888, 80
  %v4890 = vpop.permute.xlu0 %4889
  %v4891 = vsel %vm2730, %v4890, 0
  %4893 = vmatpush.msra.mxu0 0.0
  %4894 = vmatpush.msra.mxu0 0.0
  %4895 = vmatpush.msra.mxu0 0.0
  %4896 = vmatpush.msra.mxu0 0.0
  %4897 = vmatpush.msra.mxu0 0.0
  %4898 = vmatpush.msra.mxu0 0.0
  %4899 = vmatpush.msra.mxu0 0.0
  %4900 = vmatpush.msra.mxu0 0.0
  %4901 = vmatpush.msra.mxu0 0.0
  %4902 = vmatpush.msra.mxu0 0.0
  %4903 = vmatpush.msra.mxu0 0.0
  %4904 = vmatpush.msra.mxu0 0.0
  %4905 = vmatpush.msra.mxu0 0.0
  %4906 = vmatpush.msra.mxu0 0.0
  %4907 = vmatpush.msra.mxu0 %v3314
  %4908 = vmatpush.msra.mxu0 %v3313
  %4909 = vmatmul.f32.gmra.mxu0 %v4891
  %v4910 = vpop.f32.mrf.mxu0
  %v4911 = vadd.f32 0.0, %v4910
  %4912 = vdwg.mxu0
  %v4914 = vrot.slane %v4911, 4
  %v4916 = vadd.f32 %v2784, %v4914
  %v4917 = vxor.u32 %v4916, 2147483648
  %v4918 = vmul.f32 %v4917, 1.442695
  %v4919 = vpow.pop %v4918
  %v4920 = vadd.f32 %v4919, 1.0
  %v4921 = vrcp.pop %v4920
  %v4922 = vmul.f32 %v4920, %v4921
  %v4923 = vsub.f32 1.0, %v4922
  %v4924 = vmul.f32 %v4921, %v4923
  %v4925 = vadd.f32 %v4921, %v4924
  %vm4926 = vweird.f32 %v4920
  %vm4927 = vweird.f32 %v4921
  %vm4928 = vmor %vm4926, %vm4927
  %v4929 = vsel %vm4928, %v4921, %v4925
  %v4930 = vand.u32 2147483647, %v4920
  %vm4931 = vcmp.eq.f32.partialorder %v4930, 8.507059e+37
  %v4932 = vand.u32 %v4920, 2147483648
  %v4933 = vor.u32 1.1754944e-38, %v4932
  %v4934 = vsel %vm4931, %v4933, %v4929
  %v4935 = vmul.f32 1.0, %v4934
  %v4936 = vtanh.pop %v4916
  %v4937 = vmul.f32 %v4935, %v4023
  %4939 = vrot.lane.b32.xlu0 %v4936, 96
  %v4940 = vpop.permute.xlu0 %4939
  %v4942 = vmul.f32 %v4935, %v4940
  %4944 = vrot.lane.b32.xlu0 %v4942, 16
  %v4945 = vpop.permute.xlu0 %4944
  %v4947 = vadd.f32 %v4937, %v4945
  %v4948 = vtanh.pop %v4947
  %4950 = vrot.lane.b32.xlu0 %v4948, 32
  %v4951 = vpop.permute.xlu0 %4950
  %v4953 = vmul.f32 %v4935, %v4951
  %4955 = vst [vmem:[#allocation1] sm:$0xff] %v4953
  %s4956 = scalar_lea.vmem [#allocation1], 4
  %v4957 = vld [vmem:[%s4956] ss:$9 sm:$0xff]
  %s4958 = scalar_lea.vmem [#allocation1], 5
  %v4959 = vld [vmem:[%s4958] ss:$9 sm:$0xff]
  %v4960 = vperm.slane %v4957, 0
  %v4961 = vperm.slane %v4959, 0
  %v4964 = vsel %vm3352, %v4960, 0.0
  %v4965 = vsel %vm3352, %v4961, 0.0
  %v4966 = vadd.f32 %v4886, %v4964
  %v4967 = vadd.f32 %v4887, %v4965
  %v4968 = vrot.slane %v4953, 4
  %4969 = vrot.lane.b32.xlu0 %v4968, 80
  %v4970 = vpop.permute.xlu0 %4969
  %v4971 = vsel %vm2730, %v4970, 0
  %4973 = vmatpush.msra.mxu0 0.0
  %4974 = vmatpush.msra.mxu0 0.0
  %4975 = vmatpush.msra.mxu0 0.0
  %4976 = vmatpush.msra.mxu0 0.0
  %4977 = vmatpush.msra.mxu0 0.0
  %4978 = vmatpush.msra.mxu0 0.0
  %4979 = vmatpush.msra.mxu0 0.0
  %4980 = vmatpush.msra.mxu0 0.0
  %4981 = vmatpush.msra.mxu0 0.0
  %4982 = vmatpush.msra.mxu0 0.0
  %4983 = vmatpush.msra.mxu0 0.0
  %4984 = vmatpush.msra.mxu0 0.0
  %4985 = vmatpush.msra.mxu0 0.0
  %4986 = vmatpush.msra.mxu0 0.0
  %4987 = vmatpush.msra.mxu0 %v3314
  %4988 = vmatpush.msra.mxu0 %v3313
  %4989 = vmatmul.f32.gmra.mxu0 %v4971
  %v4990 = vpop.f32.mrf.mxu0
  %v4991 = vadd.f32 0.0, %v4990
  %4992 = vdwg.mxu0
  %v4994 = vrot.slane %v4991, 6
  %v4996 = vadd.f32 %v2784, %v4994
  %v4997 = vxor.u32 %v4996, 2147483648
  %v4998 = vmul.f32 %v4997, 1.442695
  %v4999 = vpow.pop %v4998
  %v5000 = vadd.f32 %v4999, 1.0
  %v5001 = vrcp.pop %v5000
  %v5002 = vmul.f32 %v5000, %v5001
  %v5003 = vsub.f32 1.0, %v5002
  %v5004 = vmul.f32 %v5001, %v5003
  %v5005 = vadd.f32 %v5001, %v5004
  %vm5006 = vweird.f32 %v5000
  %vm5007 = vweird.f32 %v5001
  %vm5008 = vmor %vm5006, %vm5007
  %v5009 = vsel %vm5008, %v5001, %v5005
  %v5010 = vand.u32 2147483647, %v5000
  %vm5011 = vcmp.eq.f32.partialorder %v5010, 8.507059e+37
  %v5012 = vand.u32 %v5000, 2147483648
  %v5013 = vor.u32 1.1754944e-38, %v5012
  %v5014 = vsel %vm5011, %v5013, %v5009
  %v5015 = vmul.f32 1.0, %v5014
  %v5016 = vtanh.pop %v4996
  %v5018 = vrot.slane %v4947, 2
  %v5020 = vmul.f32 %v5015, %v5018
  %5022 = vrot.lane.b32.xlu0 %v5016, 96
  %v5023 = vpop.permute.xlu0 %5022
  %v5025 = vmul.f32 %v5015, %v5023
  %5027 = vrot.lane.b32.xlu0 %v5025, 16
  %v5028 = vpop.permute.xlu0 %5027
  %v5030 = vadd.f32 %v5020, %v5028
  %v5031 = vtanh.pop %v5030
  %5033 = vrot.lane.b32.xlu0 %v5031, 32
  %v5034 = vpop.permute.xlu0 %5033
  %v5036 = vmul.f32 %v5015, %v5034
  %5038 = vst [vmem:[#allocation1] sm:$0xff] %v5036
  %s5039 = scalar_lea.vmem [#allocation1], 2
  %v5040 = vld [vmem:[%s5039] ss:$9 sm:$0xff]
  %s5041 = scalar_lea.vmem [#allocation1], 3
  %v5042 = vld [vmem:[%s5041] ss:$9 sm:$0xff]
  %v5043 = vperm.slane %v5040, 0
  %v5044 = vperm.slane %v5042, 0
  %v5047 = vsel %vm3336, %v5043, 0.0
  %v5048 = vsel %vm3336, %v5044, 0.0
  %v5049 = vadd.f32 %v4966, %v5047
  %v5050 = vadd.f32 %v4967, %v5048
  %v5051 = vrot.slane %v5036, 2
  %5052 = vrot.lane.b32.xlu0 %v5051, 80
  %v5053 = vpop.permute.xlu0 %5052
  %v5054 = vsel %vm2730, %v5053, 0
  %5056 = vmatpush.msra.mxu0 0.0
  %5057 = vmatpush.msra.mxu0 0.0
  %5058 = vmatpush.msra.mxu0 0.0
  %5059 = vmatpush.msra.mxu0 0.0
  %5060 = vmatpush.msra.mxu0 0.0
  %5061 = vmatpush.msra.mxu0 0.0
  %5062 = vmatpush.msra.mxu0 0.0
  %5063 = vmatpush.msra.mxu0 0.0
  %5064 = vmatpush.msra.mxu0 0.0
  %5065 = vmatpush.msra.mxu0 0.0
  %5066 = vmatpush.msra.mxu0 0.0
  %5067 = vmatpush.msra.mxu0 0.0
  %5068 = vmatpush.msra.mxu0 0.0
  %5069 = vmatpush.msra.mxu0 0.0
  %5070 = vmatpush.msra.mxu0 %v3314
  %5071 = vmatpush.msra.mxu0 %v3313
  %5072 = vmatmul.f32.gmra.mxu0 %v5054
  %v5073 = vpop.f32.mrf.mxu0
  %v5074 = vadd.f32 0.0, %v5073
  %5075 = vdwg.mxu0
  %v5076 = vadd.f32 %v2784, %v5074
  %v5077 = vxor.u32 %v5076, 2147483648
  %v5078 = vmul.f32 %v5077, 1.442695
  %v5079 = vpow.pop %v5078
  %v5080 = vadd.f32 %v5079, 1.0
  %v5081 = vrcp.pop %v5080
  %v5082 = vmul.f32 %v5080, %v5081
  %v5083 = vsub.f32 1.0, %v5082
  %v5084 = vmul.f32 %v5081, %v5083
  %v5085 = vadd.f32 %v5081, %v5084
  %vm5086 = vweird.f32 %v5080
  %vm5087 = vweird.f32 %v5081
  %vm5088 = vmor %vm5086, %vm5087
  %v5089 = vsel %vm5088, %v5081, %v5085
  %v5090 = vand.u32 2147483647, %v5080
  %vm5091 = vcmp.eq.f32.partialorder %v5090, 8.507059e+37
  %v5092 = vand.u32 %v5080, 2147483648
  %v5093 = vor.u32 1.1754944e-38, %v5092
  %v5094 = vsel %vm5091, %v5093, %v5089
  %v5095 = vmul.f32 1.0, %v5094
  %v5096 = vtanh.pop %v5076
  %v5098 = vrot.slane %v5030, 2
  %v5100 = vmul.f32 %v5095, %v5098
  %5102 = vrot.lane.b32.xlu0 %v5096, 96
  %v5103 = vpop.permute.xlu0 %5102
  %v5105 = vmul.f32 %v5095, %v5103
  %5107 = vrot.lane.b32.xlu0 %v5105, 16
  %v5108 = vpop.permute.xlu0 %5107
  %v5110 = vadd.f32 %v5100, %v5108
  %v5111 = vtanh.pop %v5110
  %5113 = vrot.lane.b32.xlu0 %v5111, 32
  %v5114 = vpop.permute.xlu0 %5113
  %v5116 = vmul.f32 %v5095, %v5114
  %v5118 = vrot.slane %v5116, 1
  %v5119 = vperm.slane %v5116, 0
  %v5120 = vperm.slane %v5118, 0
  %v5123 = vsel %vm3320, %v5119, 0.0
  %v5124 = vsel %vm3320, %v5120, 0.0
  %v5125 = vadd.f32 %v5049, %v5123
  %v5126 = vadd.f32 %v5050, %v5124
  %5129 = vrot.lane.b32.xlu0 %v5125, 96
  %v5130 = vpop.permute.xlu0 %5129
  %5131 = vrot.lane.b32.xlu0 %v5126, 96
  %v5132 = vpop.permute.xlu0 %5131
  %v5135 = vsel %vm2730, %v3629, %v5130
  %v5136 = vsel %vm2730, %v3631, %v5132
  %5137 = vrot.lane.b32.xlu0 %v3036, 80
  %v5138 = vpop.permute.xlu0 %5137
  %v5140 = vsel %vm2730, %v5138, %v3646
  %v5141 = vld [vmem:[%s43] sm:$0xff]
  %v5142 = vld [vmem:[%s43 + $0x8] sm:$0xff]
  %v5143 = vld [vmem:[%s43 + $0x10] sm:$0xff]
  %v5144 = vld [vmem:[%s43 + $0x18] sm:$0xff]
  %v5145 = vld [vmem:[%s45] sm:$0x1]
  %v5147 = vperm.slane %v5145, 0
  %v5150 = vrot.slane %v5140, 6
  %v5151 = vsel %vm648, %v5150, 0
  %5153 = vmatpush.msra.mxu0 0.0
  %5154 = vmatpush.msra.mxu0 0.0
  %5155 = vmatpush.msra.mxu0 0.0
  %5156 = vmatpush.msra.mxu0 0.0
  %5157 = vmatpush.msra.mxu0 0.0
  %5158 = vmatpush.msra.mxu0 0.0
  %5159 = vmatpush.msra.mxu0 0.0
  %5160 = vmatpush.msra.mxu0 0.0
  %5161 = vmatpush.msra.mxu0 0.0
  %5162 = vmatpush.msra.mxu0 0.0
  %5163 = vmatpush.msra.mxu0 0.0
  %5164 = vmatpush.msra.mxu0 0.0
  %5165 = vmatpush.msra.mxu0 %v5144
  %5166 = vmatpush.msra.mxu0 %v5143
  %5167 = vmatpush.msra.mxu0 %v5142
  %5168 = vmatpush.msra.mxu0 %v5141
  %5169 = vmatmul.f32.gmra.mxu0 %v5151
  %v5170 = vpop.f32.mrf.mxu0
  %v5171 = vadd.f32 %v5147, %v5170
  %5172 = vdwg.mxu0
  %v5174 = vrot.slane %v5171, 1
  %v5175 = vperm.slane %v5171, 0
  %v5176 = vperm.slane %v5174, 0
  %v5179 = vmul.f32 %v5175, %v626
  %v5180 = vmul.f32 %v5176, %v628
  %v5181 = vsel %vm648, %v5179, 0.0
  %5182 = vadd.xlane.f32.xlu0 %v5181
  %v5183 = vpop.xlane.xlu0 %5182
  %v5184 = vsel %vm648, %v5180, 0.0
  %5185 = vadd.xlane.f32.xlu0 %v5184
  %v5186 = vpop.xlane.xlu0 %5185
  %v5187 = vrot.slane %v5183, 4
  %v5188 = vmax.f32 %v5183, %v5187
  %v5189 = vrot.slane %v5188, 2
  %v5190 = vmax.f32 %v5188, %v5189
  %v5191 = vrot.slane %v5190, 1
  %v5192 = vmax.f32 %v5190, %v5191
  %v5193 = vrot.slane %v5186, 4
  %v5194 = vmax.f32 %v5186, %v5193
  %v5195 = vrot.slane %v5194, 2
  %v5196 = vmax.f32 %v5194, %v5195
  %v5197 = vrot.slane %v5196, 1
  %v5198 = vmax.f32 %v5196, %v5197
  %v5199 = vsub.f32 %v5183, %v5192
  %v5200 = vsub.f32 %v5186, %v5198
  %v5201 = vmul.f32 %v5199, 1.442695
  %v5202 = vpow.pop %v5201
  %v5203 = vmul.f32 %v5200, 1.442695
  %v5204 = vpow.pop %v5203
  %v5205 = vrot.slane %v5202, 4
  %v5206 = vadd.f32 %v5202, %v5205
  %v5207 = vrot.slane %v5206, 2
  %v5208 = vadd.f32 %v5206, %v5207
  %v5209 = vrot.slane %v5208, 1
  %v5210 = vadd.f32 %v5208, %v5209
  %v5211 = vrot.slane %v5204, 4
  %v5212 = vadd.f32 %v5204, %v5211
  %v5213 = vrot.slane %v5212, 2
  %v5214 = vadd.f32 %v5212, %v5213
  %v5215 = vrot.slane %v5214, 1
  %v5216 = vadd.f32 %v5214, %v5215
  %v5217 = vrcp.pop %v5210
  %v5218 = vrcp.pop %v5216
  %v5219 = vmul.f32 %v5202, %v5217
  %v5220 = vmul.f32 %v5204, %v5218
  %v5221 = vmul.f32 %v5219, %v626
  %v5222 = vmul.f32 %v5220, %v628
  %v5223 = vsel %vm648, %v5221, 0.0
  %v5224 = vrot.slane %v5223, 4
  %v5225 = vadd.f32 %v5223, %v5224
  %v5226 = vrot.slane %v5225, 2
  %v5227 = vadd.f32 %v5225, %v5226
  %v5228 = vrot.slane %v5227, 1
  %v5229 = vadd.f32 %v5227, %v5228
  %v5230 = vsel %vm648, %v5222, 0.0
  %v5231 = vrot.slane %v5230, 4
  %v5232 = vadd.f32 %v5230, %v5231
  %v5233 = vrot.slane %v5232, 2
  %v5234 = vadd.f32 %v5232, %v5233
  %v5235 = vrot.slane %v5234, 1
  %v5236 = vadd.f32 %v5234, %v5235
  %v5239 = vsel %vm646, %v1245, %v1238
  %v5243 = vsel %vm646, %v5236, %v5229
  %5244 = vrot.lane.b32.xlu0 %v5243, 32
  %v5245 = vpop.permute.xlu0 %5244
  %v5247 = vsel %vm648, %v5239, %v5245
  %v5248 = vld [vmem:[%s47] sm:$0xff]
  %v5249 = vld [vmem:[%s47 + $0x8] sm:$0xff]
  %v5250 = vld [vmem:[%s47 + $0x10] sm:$0xff]
  %v5251 = vld [vmem:[%s47 + $0x18] sm:$0xff]
  %v5252 = vld [vmem:[%s47 + $0x20] sm:$0xff]
  %v5253 = vld [vmem:[%s47 + $0x28] sm:$0xff]
  %v5254 = vld [vmem:[%s47 + $0x30] sm:$0xff]
  %v5255 = vld [vmem:[%s47 + $0x38] sm:$0xff]
  %v5256 = vld [vmem:[%s49] sm:$0x1]
  %v5258 = vperm.slane %v5256, 0
  %v5261 = vsel %vm3461, %v5247, 0
  %5263 = vmatpush.msra.mxu0 0.0
  %5264 = vmatpush.msra.mxu0 0.0
  %5265 = vmatpush.msra.mxu0 0.0
  %5266 = vmatpush.msra.mxu0 0.0
  %5267 = vmatpush.msra.mxu0 0.0
  %5268 = vmatpush.msra.mxu0 0.0
  %5269 = vmatpush.msra.mxu0 0.0
  %5270 = vmatpush.msra.mxu0 0.0
  %5271 = vmatpush.msra.mxu0 %v5255
  %5272 = vmatpush.msra.mxu0 %v5254
  %5273 = vmatpush.msra.mxu0 %v5253
  %5274 = vmatpush.msra.mxu0 %v5252
  %5275 = vmatpush.msra.mxu0 %v5251
  %5276 = vmatpush.msra.mxu0 %v5250
  %5277 = vmatpush.msra.mxu0 %v5249
  %5278 = vmatpush.msra.mxu0 %v5248
  %5279 = vmatmul.f32.gmra.mxu0 %v5261
  %v5280 = vpop.f32.mrf.mxu0
  %v5281 = vadd.f32 %v5258, %v5280
  %5282 = vdwg.mxu0
  %v5284 = vrot.slane %v5281, 1
  %v5285 = vperm.slane %v5281, 0
  %v5286 = vperm.slane %v5284, 0
  %v5289 = vmul.f32 %v5285, %v5135
  %v5290 = vmul.f32 %v5286, %v5136
  %v5291 = vsel %vm648, %v5289, 0.0
  %5292 = vadd.xlane.f32.xlu0 %v5291
  %v5293 = vpop.xlane.xlu0 %5292
  %v5294 = vsel %vm648, %v5290, 0.0
  %5295 = vadd.xlane.f32.xlu0 %v5294
  %v5296 = vpop.xlane.xlu0 %5295
  %vm5297 = vcmp.lt.s32.totalorder %v3316, 4
  %v5298 = vsel %vm5297, 1, 0
  %vm5299 = vcmp.eq.s32.totalorder %v5298, 1
  %v5300 = vsel %vm5299, %v5293, -1e+30
  %v5301 = vsel %vm5299, %v5296, -1e+30
  %v5302 = vrot.slane %v5300, 4
  %v5303 = vmax.f32 %v5300, %v5302
  %v5304 = vrot.slane %v5303, 2
  %v5305 = vmax.f32 %v5303, %v5304
  %v5306 = vrot.slane %v5305, 1
  %v5307 = vmax.f32 %v5305, %v5306
  %v5308 = vrot.slane %v5301, 4
  %v5309 = vmax.f32 %v5301, %v5308
  %v5310 = vrot.slane %v5309, 2
  %v5311 = vmax.f32 %v5309, %v5310
  %v5312 = vrot.slane %v5311, 1
  %v5313 = vmax.f32 %v5311, %v5312
  %v5314 = vsub.f32 %v5300, %v5307
  %v5315 = vsub.f32 %v5301, %v5313
  %v5316 = vmul.f32 %v5314, 1.442695
  %v5317 = vpow.pop %v5316
  %v5318 = vmul.f32 %v5315, 1.442695
  %v5319 = vpow.pop %v5318
  %v5320 = vrot.slane %v5317, 4
  %v5321 = vadd.f32 %v5317, %v5320
  %v5322 = vrot.slane %v5321, 2
  %v5323 = vadd.f32 %v5321, %v5322
  %v5324 = vrot.slane %v5323, 1
  %v5325 = vadd.f32 %v5323, %v5324
  %v5326 = vrot.slane %v5319, 4
  %v5327 = vadd.f32 %v5319, %v5326
  %v5328 = vrot.slane %v5327, 2
  %v5329 = vadd.f32 %v5327, %v5328
  %v5330 = vrot.slane %v5329, 1
  %v5331 = vadd.f32 %v5329, %v5330
  %v5332 = vrcp.pop %v5325
  %v5333 = vrcp.pop %v5331
  %v5334 = vmul.f32 %v5317, %v5332
  %v5335 = vmul.f32 %v5319, %v5333
  %v5336 = vmul.f32 %v5334, %v5135
  %v5337 = vmul.f32 %v5335, %v5136
  %v5338 = vsel %vm648, %v5336, 0.0
  %v5339 = vrot.slane %v5338, 4
  %v5340 = vadd.f32 %v5338, %v5339
  %v5341 = vrot.slane %v5340, 2
  %v5342 = vadd.f32 %v5340, %v5341
  %v5343 = vrot.slane %v5342, 1
  %v5344 = vadd.f32 %v5342, %v5343
  %v5345 = vsel %vm648, %v5337, 0.0
  %v5346 = vrot.slane %v5345, 4
  %v5347 = vadd.f32 %v5345, %v5346
  %v5348 = vrot.slane %v5347, 2
  %v5349 = vadd.f32 %v5347, %v5348
  %v5350 = vrot.slane %v5349, 1
  %v5351 = vadd.f32 %v5349, %v5350
  %vm5352 = vcmask 1045509
  %v5353 = vsel %vm5352, %v671, %v626
  %v5355 = vsel %vm5352, %v1245, %v1238
  %5356 = vrot.lane.b32.xlu0 %v5355, 32
  %v5357 = vpop.permute.xlu0 %5356
  %v5360 = vrot.slane %v4874, 4
  %5361 = vrot.lane.b32.xlu0 %v5360, 64
  %v5362 = vpop.permute.xlu0 %5361
  %v5364 = vsel %vm5352, %v5236, %v5229
  %5365 = vrot.lane.b32.xlu0 %v5364, 80
  %v5366 = vpop.permute.xlu0 %5365
  %v5370 = vsel %vm5352, %v5351, %v5344
  %5371 = vrot.lane.b32.xlu0 %v5370, 112
  %v5372 = vpop.permute.xlu0 %5371
  %v5374 = vsel %vm648, %v5353, %v5357
  %v5375 = vsel %vm3461, %v5374, %v5362
  %v5376 = vsel %vm3883, %v5375, %v5366
  %v5377 = vsel %vm3504, %v5376, %v5372
  %v5378 = vld [vmem:[%s51] sm:$0xff]
  %v5379 = vld [vmem:[%s51 + $0x8] sm:$0xff]
  %v5380 = vld [vmem:[%s51 + $0x10] sm:$0xff]
  %v5381 = vld [vmem:[%s51 + $0x18] sm:$0xff]
  %v5382 = vld [vmem:[%s51 + $0x20] sm:$0xff]
  %v5383 = vld [vmem:[%s51 + $0x28] sm:$0xff]
  %v5384 = vld [vmem:[%s51 + $0x30] sm:$0xff]
  %v5385 = vld [vmem:[%s51 + $0x38] sm:$0xff]
  %v5386 = vld [vmem:[%s51 + $0x40] sm:$0xff]
  %v5387 = vld [vmem:[%s51 + $0x48] sm:$0xff]
  %v5388 = vld [vmem:[%s51 + $0x50] sm:$0xff]
  %v5389 = vld [vmem:[%s51 + $0x58] sm:$0xff]
  %v5390 = vld [vmem:[%s51 + $0x60] sm:$0xff]
  %v5391 = vld [vmem:[%s51 + $0x68] sm:$0xff]
  %v5392 = vld [vmem:[%s51 + $0x70] sm:$0xff]
  %v5393 = vld [vmem:[%s51 + $0x78] sm:$0xff]
  %v5394 = vld [vmem:[%s51 + $0x80] sm:$0xff]
  %v5395 = vld [vmem:[%s51 + $0x88] sm:$0xff]
  %v5396 = vld [vmem:[%s53] sm:$0x1]
  %v5398 = vperm.slane %v5396, 0
  %v5401 = vrot.slane %v5377, 4
  %v5402 = vrot.slane %v5372, 4
  %v5404 = vsel %vm2730, %v5402, 0
  %5406 = vmatpush.msra.mxu0 %v5393
  %5407 = vmatpush.msra.mxu0 %v5392
  %5408 = vmatpush.msra.mxu0 %v5391
  %5409 = vmatpush.msra.mxu0 %v5390
  %5410 = vmatpush.msra.mxu0 %v5389
  %5411 = vmatpush.msra.mxu0 %v5388
  %5412 = vmatpush.msra.mxu0 %v5387
  %5413 = vmatpush.msra.mxu0 %v5386
  %5414 = vmatpush.msra.mxu0 %v5385
  %5415 = vmatpush.msra.mxu0 %v5384
  %5416 = vmatpush.msra.mxu0 %v5383
  %5417 = vmatpush.msra.mxu0 %v5382
  %5418 = vmatpush.msra.mxu0 %v5381
  %5419 = vmatpush.msra.mxu0 %v5380
  %5420 = vmatpush.msra.mxu0 %v5379
  %5421 = vmatpush.msra.mxu0 %v5378
  %5422 = vmatmul.f32.gmra.mxu0 %v5401
  %v5423 = vpop.f32.mrf.mxu0
  %v5424 = vadd.f32 %v5398, %v5423
  %5425 = vdwg.mxu0
  %5426 = vmatpush.msra.mxu0 0.0
  %5427 = vmatpush.msra.mxu0 0.0
  %5428 = vmatpush.msra.mxu0 0.0
  %5429 = vmatpush.msra.mxu0 0.0
  %5430 = vmatpush.msra.mxu0 0.0
  %5431 = vmatpush.msra.mxu0 0.0
  %5432 = vmatpush.msra.mxu0 0.0
  %5433 = vmatpush.msra.mxu0 0.0
  %5434 = vmatpush.msra.mxu0 0.0
  %5435 = vmatpush.msra.mxu0 0.0
  %5436 = vmatpush.msra.mxu0 0.0
  %5437 = vmatpush.msra.mxu0 0.0
  %5438 = vmatpush.msra.mxu0 0.0
  %5439 = vmatpush.msra.mxu0 0.0
  %5440 = vmatpush.msra.mxu0 %v5395
  %5441 = vmatpush.msra.mxu0 %v5394
  %5442 = vmatmul.f32.gmra.mxu0 %v5404
  %v5443 = vpop.f32.mrf.mxu0
  %v5444 = vadd.f32 %v5424, %v5443
  %5445 = vdwg.mxu0
  %s5446 = scalar_lea.vmem %s59, 8
  %5447 = vst.msk [vmem:[%s5446] sm:$0x3] %vm3570, %v5444
  %5448 = vrot.lane.b32.xlu0 %v2060, 104
  %v5449 = vpop.permute.xlu0 %5448
  %5451 = vrot.lane.b32.xlu0 %v2378, 112
  %v5452 = vpop.permute.xlu0 %5451
  %v5454 = vsel %vm1620, %v5449, %v5452
  %v5455 = vxor.u32 %v2787, 2147483648
  %v5456 = vmul.f32 %v5455, 1.442695
  %v5457 = vpow.pop %v5456
  %v5458 = vadd.f32 %v5457, 1.0
  %v5459 = vrcp.pop %v5458
  %v5460 = vmul.f32 %v5458, %v5459
  %v5461 = vsub.f32 1.0, %v5460
  %v5462 = vmul.f32 %v5459, %v5461
  %v5463 = vadd.f32 %v5459, %v5462
  %vm5464 = vweird.f32 %v5458
  %vm5465 = vweird.f32 %v5459
  %vm5466 = vmor %vm5464, %vm5465
  %v5467 = vsel %vm5466, %v5459, %v5463
  %v5468 = vand.u32 2147483647, %v5458
  %vm5469 = vcmp.eq.f32.partialorder %v5468, 8.507059e+37
  %v5470 = vand.u32 %v5458, 2147483648
  %v5471 = vor.u32 1.1754944e-38, %v5470
  %v5472 = vsel %vm5469, %v5471, %v5467
  %v5473 = vmul.f32 1.0, %v5472
  %v5474 = vtanh.pop %v2787
  %v5475 = vmul.f32 %v5473, 0.0
  %5477 = vrot.lane.b32.xlu0 %v5474, 96
  %v5478 = vpop.permute.xlu0 %5477
  %v5480 = vmul.f32 %v5473, %v5478
  %5482 = vrot.lane.b32.xlu0 %v5480, 16
  %v5483 = vpop.permute.xlu0 %5482
  %v5485 = vadd.f32 %v5475, %v5483
  %v5486 = vtanh.pop %v5485
  %5488 = vrot.lane.b32.xlu0 %v5486, 32
  %v5489 = vpop.permute.xlu0 %5488
  %v5491 = vmul.f32 %v5473, %v5489
  %v5493 = vrot.slane %v5491, 1
  %v5494 = vperm.slane %v5491, 0
  %v5495 = vperm.slane %v5493, 0
  %v5498 = vsel %vm3380, %v5494, 0.0
  %v5499 = vsel %vm3380, %v5495, 0.0
  %v5500 = vadd.f32 %v5498, 0.0
  %v5501 = vadd.f32 %v5499, 0.0
  %5502 = vrot.lane.b32.xlu0 %v5491, 80
  %v5503 = vpop.permute.xlu0 %5502
  %v5504 = vsel %vm2730, %v5503, 0
  %5506 = vmatpush.msra.mxu0 0.0
  %5507 = vmatpush.msra.mxu0 0.0
  %5508 = vmatpush.msra.mxu0 0.0
  %5509 = vmatpush.msra.mxu0 0.0
  %5510 = vmatpush.msra.mxu0 0.0
  %5511 = vmatpush.msra.mxu0 0.0
  %5512 = vmatpush.msra.mxu0 0.0
  %5513 = vmatpush.msra.mxu0 0.0
  %5514 = vmatpush.msra.mxu0 0.0
  %5515 = vmatpush.msra.mxu0 0.0
  %5516 = vmatpush.msra.mxu0 0.0
  %5517 = vmatpush.msra.mxu0 0.0
  %5518 = vmatpush.msra.mxu0 0.0
  %5519 = vmatpush.msra.mxu0 0.0
  %5520 = vmatpush.msra.mxu0 %v3314
  %5521 = vmatpush.msra.mxu0 %v3313
  %5522 = vmatmul.f32.gmra.mxu0 %v5504
  %v5523 = vpop.f32.mrf.mxu0
  %v5524 = vadd.f32 0.0, %v5523
  %5525 = vdwg.mxu0
  %v5527 = vrot.slane %v5524, 2
  %v5529 = vadd.f32 %v2784, %v5527
  %v5530 = vxor.u32 %v5529, 2147483648
  %v5531 = vmul.f32 %v5530, 1.442695
  %v5532 = vpow.pop %v5531
  %v5533 = vadd.f32 %v5532, 1.0
  %v5534 = vrcp.pop %v5533
  %v5535 = vmul.f32 %v5533, %v5534
  %v5536 = vsub.f32 1.0, %v5535
  %v5537 = vmul.f32 %v5534, %v5536
  %v5538 = vadd.f32 %v5534, %v5537
  %vm5539 = vweird.f32 %v5533
  %vm5540 = vweird.f32 %v5534
  %vm5541 = vmor %vm5539, %vm5540
  %v5542 = vsel %vm5541, %v5534, %v5538
  %v5543 = vand.u32 2147483647, %v5533
  %vm5544 = vcmp.eq.f32.partialorder %v5543, 8.507059e+37
  %v5545 = vand.u32 %v5533, 2147483648
  %v5546 = vor.u32 1.1754944e-38, %v5545
  %v5547 = vsel %vm5544, %v5546, %v5542
  %v5548 = vmul.f32 1.0, %v5547
  %v5549 = vtanh.pop %v5529
  %v5551 = vrot.slane %v5485, 2
  %v5553 = vmul.f32 %v5548, %v5551
  %5555 = vrot.lane.b32.xlu0 %v5549, 96
  %v5556 = vpop.permute.xlu0 %5555
  %v5558 = vmul.f32 %v5548, %v5556
  %5560 = vrot.lane.b32.xlu0 %v5558, 16
  %v5561 = vpop.permute.xlu0 %5560
  %v5563 = vadd.f32 %v5553, %v5561
  %v5564 = vtanh.pop %v5563
  %5566 = vrot.lane.b32.xlu0 %v5564, 32
  %v5567 = vpop.permute.xlu0 %5566
  %v5569 = vmul.f32 %v5548, %v5567
  %5571 = vst [vmem:[#allocation1] sm:$0xff] %v5569
  %s5572 = scalar_lea.vmem [#allocation1], 6
  %v5573 = vld [vmem:[%s5572] ss:$9 sm:$0xff]
  %s5574 = scalar_lea.vmem [#allocation1], 7
  %v5575 = vld [vmem:[%s5574] ss:$9 sm:$0xff]
  %v5576 = vperm.slane %v5573, 0
  %v5577 = vperm.slane %v5575, 0
  %v5580 = vsel %vm3368, %v5576, 0.0
  %v5581 = vsel %vm3368, %v5577, 0.0
  %v5582 = vadd.f32 %v5500, %v5580
  %v5583 = vadd.f32 %v5501, %v5581
  %v5584 = vrot.slane %v5569, 6
  %5585 = vrot.lane.b32.xlu0 %v5584, 80
  %v5586 = vpop.permute.xlu0 %5585
  %v5587 = vsel %vm2730, %v5586, 0
  %5589 = vmatpush.msra.mxu0 0.0
  %5590 = vmatpush.msra.mxu0 0.0
  %5591 = vmatpush.msra.mxu0 0.0
  %5592 = vmatpush.msra.mxu0 0.0
  %5593 = vmatpush.msra.mxu0 0.0
  %5594 = vmatpush.msra.mxu0 0.0
  %5595 = vmatpush.msra.mxu0 0.0
  %5596 = vmatpush.msra.mxu0 0.0
  %5597 = vmatpush.msra.mxu0 0.0
  %5598 = vmatpush.msra.mxu0 0.0
  %5599 = vmatpush.msra.mxu0 0.0
  %5600 = vmatpush.msra.mxu0 0.0
  %5601 = vmatpush.msra.mxu0 0.0
  %5602 = vmatpush.msra.mxu0 0.0
  %5603 = vmatpush.msra.mxu0 %v3314
  %5604 = vmatpush.msra.mxu0 %v3313
  %5605 = vmatmul.f32.gmra.mxu0 %v5587
  %v5606 = vpop.f32.mrf.mxu0
  %v5607 = vadd.f32 0.0, %v5606
  %5608 = vdwg.mxu0
  %v5610 = vrot.slane %v5607, 4
  %v5612 = vadd.f32 %v2784, %v5610
  %v5613 = vxor.u32 %v5612, 2147483648
  %v5614 = vmul.f32 %v5613, 1.442695
  %v5615 = vpow.pop %v5614
  %v5616 = vadd.f32 %v5615, 1.0
  %v5617 = vrcp.pop %v5616
  %v5618 = vmul.f32 %v5616, %v5617
  %v5619 = vsub.f32 1.0, %v5618
  %v5620 = vmul.f32 %v5617, %v5619
  %v5621 = vadd.f32 %v5617, %v5620
  %vm5622 = vweird.f32 %v5616
  %vm5623 = vweird.f32 %v5617
  %vm5624 = vmor %vm5622, %vm5623
  %v5625 = vsel %vm5624, %v5617, %v5621
  %v5626 = vand.u32 2147483647, %v5616
  %vm5627 = vcmp.eq.f32.partialorder %v5626, 8.507059e+37
  %v5628 = vand.u32 %v5616, 2147483648
  %v5629 = vor.u32 1.1754944e-38, %v5628
  %v5630 = vsel %vm5627, %v5629, %v5625
  %v5631 = vmul.f32 1.0, %v5630
  %v5632 = vtanh.pop %v5612
  %v5634 = vrot.slane %v5563, 2
  %v5636 = vmul.f32 %v5631, %v5634
  %5638 = vrot.lane.b32.xlu0 %v5632, 96
  %v5639 = vpop.permute.xlu0 %5638
  %v5641 = vmul.f32 %v5631, %v5639
  %5643 = vrot.lane.b32.xlu0 %v5641, 16
  %v5644 = vpop.permute.xlu0 %5643
  %v5646 = vadd.f32 %v5636, %v5644
  %v5647 = vtanh.pop %v5646
  %5649 = vrot.lane.b32.xlu0 %v5647, 32
  %v5650 = vpop.permute.xlu0 %5649
  %v5652 = vmul.f32 %v5631, %v5650
  %5654 = vst [vmem:[#allocation1] sm:$0xff] %v5652
  %s5655 = scalar_lea.vmem [#allocation1], 4
  %v5656 = vld [vmem:[%s5655] ss:$9 sm:$0xff]
  %s5657 = scalar_lea.vmem [#allocation1], 5
  %v5658 = vld [vmem:[%s5657] ss:$9 sm:$0xff]
  %v5659 = vperm.slane %v5656, 0
  %v5660 = vperm.slane %v5658, 0
  %v5663 = vsel %vm3352, %v5659, 0.0
  %v5664 = vsel %vm3352, %v5660, 0.0
  %v5665 = vadd.f32 %v5582, %v5663
  %v5666 = vadd.f32 %v5583, %v5664
  %v5667 = vrot.slane %v5652, 4
  %5668 = vrot.lane.b32.xlu0 %v5667, 80
  %v5669 = vpop.permute.xlu0 %5668
  %v5670 = vsel %vm2730, %v5669, 0
  %5672 = vmatpush.msra.mxu0 0.0
  %5673 = vmatpush.msra.mxu0 0.0
  %5674 = vmatpush.msra.mxu0 0.0
  %5675 = vmatpush.msra.mxu0 0.0
  %5676 = vmatpush.msra.mxu0 0.0
  %5677 = vmatpush.msra.mxu0 0.0
  %5678 = vmatpush.msra.mxu0 0.0
  %5679 = vmatpush.msra.mxu0 0.0
  %5680 = vmatpush.msra.mxu0 0.0
  %5681 = vmatpush.msra.mxu0 0.0
  %5682 = vmatpush.msra.mxu0 0.0
  %5683 = vmatpush.msra.mxu0 0.0
  %5684 = vmatpush.msra.mxu0 0.0
  %5685 = vmatpush.msra.mxu0 0.0
  %5686 = vmatpush.msra.mxu0 %v3314
  %5687 = vmatpush.msra.mxu0 %v3313
  %5688 = vmatmul.f32.gmra.mxu0 %v5670
  %v5689 = vpop.f32.mrf.mxu0
  %v5690 = vadd.f32 0.0, %v5689
  %5691 = vdwg.mxu0
  %v5693 = vrot.slane %v5690, 6
  %v5695 = vadd.f32 %v2784, %v5693
  %v5696 = vxor.u32 %v5695, 2147483648
  %v5697 = vmul.f32 %v5696, 1.442695
  %v5698 = vpow.pop %v5697
  %v5699 = vadd.f32 %v5698, 1.0
  %v5700 = vrcp.pop %v5699
  %v5701 = vmul.f32 %v5699, %v5700
  %v5702 = vsub.f32 1.0, %v5701
  %v5703 = vmul.f32 %v5700, %v5702
  %v5704 = vadd.f32 %v5700, %v5703
  %vm5705 = vweird.f32 %v5699
  %vm5706 = vweird.f32 %v5700
  %vm5707 = vmor %vm5705, %vm5706
  %v5708 = vsel %vm5707, %v5700, %v5704
  %v5709 = vand.u32 2147483647, %v5699
  %vm5710 = vcmp.eq.f32.partialorder %v5709, 8.507059e+37
  %v5711 = vand.u32 %v5699, 2147483648
  %v5712 = vor.u32 1.1754944e-38, %v5711
  %v5713 = vsel %vm5710, %v5712, %v5708
  %v5714 = vmul.f32 1.0, %v5713
  %v5715 = vtanh.pop %v5695
  %v5717 = vrot.slane %v5646, 2
  %v5719 = vmul.f32 %v5714, %v5717
  %5721 = vrot.lane.b32.xlu0 %v5715, 96
  %v5722 = vpop.permute.xlu0 %5721
  %v5724 = vmul.f32 %v5714, %v5722
  %5726 = vrot.lane.b32.xlu0 %v5724, 16
  %v5727 = vpop.permute.xlu0 %5726
  %v5729 = vadd.f32 %v5719, %v5727
  %v5730 = vtanh.pop %v5729
  %5732 = vrot.lane.b32.xlu0 %v5730, 32
  %v5733 = vpop.permute.xlu0 %5732
  %v5735 = vmul.f32 %v5714, %v5733
  %5737 = vst [vmem:[#allocation1] sm:$0xff] %v5735
  %s5738 = scalar_lea.vmem [#allocation1], 2
  %v5739 = vld [vmem:[%s5738] ss:$9 sm:$0xff]
  %s5740 = scalar_lea.vmem [#allocation1], 3
  %v5741 = vld [vmem:[%s5740] ss:$9 sm:$0xff]
  %v5742 = vperm.slane %v5739, 0
  %v5743 = vperm.slane %v5741, 0
  %v5746 = vsel %vm3336, %v5742, 0.0
  %v5747 = vsel %vm3336, %v5743, 0.0
  %v5748 = vadd.f32 %v5665, %v5746
  %v5749 = vadd.f32 %v5666, %v5747
  %v5750 = vrot.slane %v5735, 2
  %5751 = vrot.lane.b32.xlu0 %v5750, 80
  %v5752 = vpop.permute.xlu0 %5751
  %v5753 = vsel %vm2730, %v5752, 0
  %5755 = vmatpush.msra.mxu0 0.0
  %5756 = vmatpush.msra.mxu0 0.0
  %5757 = vmatpush.msra.mxu0 0.0
  %5758 = vmatpush.msra.mxu0 0.0
  %5759 = vmatpush.msra.mxu0 0.0
  %5760 = vmatpush.msra.mxu0 0.0
  %5761 = vmatpush.msra.mxu0 0.0
  %5762 = vmatpush.msra.mxu0 0.0
  %5763 = vmatpush.msra.mxu0 0.0
  %5764 = vmatpush.msra.mxu0 0.0
  %5765 = vmatpush.msra.mxu0 0.0
  %5766 = vmatpush.msra.mxu0 0.0
  %5767 = vmatpush.msra.mxu0 0.0
  %5768 = vmatpush.msra.mxu0 0.0
  %5769 = vmatpush.msra.mxu0 %v3314
  %5770 = vmatpush.msra.mxu0 %v3313
  %5771 = vmatmul.f32.gmra.mxu0 %v5753
  %v5772 = vpop.f32.mrf.mxu0
  %v5773 = vadd.f32 0.0, %v5772
  %5774 = vdwg.mxu0
  %v5775 = vadd.f32 %v2784, %v5773
  %v5776 = vxor.u32 %v5775, 2147483648
  %v5777 = vmul.f32 %v5776, 1.442695
  %v5778 = vpow.pop %v5777
  %v5779 = vadd.f32 %v5778, 1.0
  %v5780 = vrcp.pop %v5779
  %v5781 = vmul.f32 %v5779, %v5780
  %v5782 = vsub.f32 1.0, %v5781
  %v5783 = vmul.f32 %v5780, %v5782
  %v5784 = vadd.f32 %v5780, %v5783
  %vm5785 = vweird.f32 %v5779
  %vm5786 = vweird.f32 %v5780
  %vm5787 = vmor %vm5785, %vm5786
  %v5788 = vsel %vm5787, %v5780, %v5784
  %v5789 = vand.u32 2147483647, %v5779
  %vm5790 = vcmp.eq.f32.partialorder %v5789, 8.507059e+37
  %v5791 = vand.u32 %v5779, 2147483648
  %v5792 = vor.u32 1.1754944e-38, %v5791
  %v5793 = vsel %vm5790, %v5792, %v5788
  %v5794 = vmul.f32 1.0, %v5793
  %v5795 = vtanh.pop %v5775
  %v5797 = vrot.slane %v5729, 2
  %v5799 = vmul.f32 %v5794, %v5797
  %5801 = vrot.lane.b32.xlu0 %v5795, 96
  %v5802 = vpop.permute.xlu0 %5801
  %v5804 = vmul.f32 %v5794, %v5802
  %5806 = vrot.lane.b32.xlu0 %v5804, 16
  %v5807 = vpop.permute.xlu0 %5806
  %v5809 = vadd.f32 %v5799, %v5807
  %v5810 = vtanh.pop %v5809
  %5812 = vrot.lane.b32.xlu0 %v5810, 32
  %v5813 = vpop.permute.xlu0 %5812
  %v5815 = vmul.f32 %v5794, %v5813
  %v5817 = vrot.slane %v5815, 1
  %v5818 = vperm.slane %v5815, 0
  %v5819 = vperm.slane %v5817, 0
  %v5822 = vsel %vm3320, %v5818, 0.0
  %v5823 = vsel %vm3320, %v5819, 0.0
  %v5824 = vadd.f32 %v5748, %v5822
  %v5825 = vadd.f32 %v5749, %v5823
  %5828 = vrot.lane.b32.xlu0 %v5824, 96
  %v5829 = vpop.permute.xlu0 %5828
  %5830 = vrot.lane.b32.xlu0 %v5825, 96
  %v5831 = vpop.permute.xlu0 %5830
  %v5834 = vsel %vm2730, %v3629, %v5829
  %v5835 = vsel %vm2730, %v3631, %v5831
  %5837 = vrot.lane.b32.xlu0 %v5491, 96
  %v5838 = vpop.permute.xlu0 %5837
  %v5840 = vsel %vm2730, %v3106, %v5838
  %v5841 = vld [vmem:[%s43] sm:$0xff]
  %v5842 = vld [vmem:[%s43 + $0x8] sm:$0xff]
  %v5843 = vld [vmem:[%s43 + $0x10] sm:$0xff]
  %v5844 = vld [vmem:[%s43 + $0x18] sm:$0xff]
  %v5845 = vld [vmem:[%s45] sm:$0x1]
  %v5847 = vperm.slane %v5845, 0
  %v5850 = vsel %vm648, %v5840, 0
  %5852 = vmatpush.msra.mxu0 0.0
  %5853 = vmatpush.msra.mxu0 0.0
  %5854 = vmatpush.msra.mxu0 0.0
  %5855 = vmatpush.msra.mxu0 0.0
  %5856 = vmatpush.msra.mxu0 0.0
  %5857 = vmatpush.msra.mxu0 0.0
  %5858 = vmatpush.msra.mxu0 0.0
  %5859 = vmatpush.msra.mxu0 0.0
  %5860 = vmatpush.msra.mxu0 0.0
  %5861 = vmatpush.msra.mxu0 0.0
  %5862 = vmatpush.msra.mxu0 0.0
  %5863 = vmatpush.msra.mxu0 0.0
  %5864 = vmatpush.msra.mxu0 %v5844
  %5865 = vmatpush.msra.mxu0 %v5843
  %5866 = vmatpush.msra.mxu0 %v5842
  %5867 = vmatpush.msra.mxu0 %v5841
  %5868 = vmatmul.f32.gmra.mxu0 %v5850
  %v5869 = vpop.f32.mrf.mxu0
  %v5870 = vadd.f32 %v5847, %v5869
  %5871 = vdwg.mxu0
  %v5873 = vrot.slane %v5870, 1
  %v5874 = vperm.slane %v5870, 0
  %v5875 = vperm.slane %v5873, 0
  %v5878 = vmul.f32 %v5874, %v626
  %v5879 = vmul.f32 %v5875, %v628
  %v5880 = vsel %vm648, %v5878, 0.0
  %5881 = vadd.xlane.f32.xlu0 %v5880
  %v5882 = vpop.xlane.xlu0 %5881
  %v5883 = vsel %vm648, %v5879, 0.0
  %5884 = vadd.xlane.f32.xlu0 %v5883
  %v5885 = vpop.xlane.xlu0 %5884
  %v5886 = vrot.slane %v5882, 4
  %v5887 = vmax.f32 %v5882, %v5886
  %v5888 = vrot.slane %v5887, 2
  %v5889 = vmax.f32 %v5887, %v5888
  %v5890 = vrot.slane %v5889, 1
  %v5891 = vmax.f32 %v5889, %v5890
  %v5892 = vrot.slane %v5885, 4
  %v5893 = vmax.f32 %v5885, %v5892
  %v5894 = vrot.slane %v5893, 2
  %v5895 = vmax.f32 %v5893, %v5894
  %v5896 = vrot.slane %v5895, 1
  %v5897 = vmax.f32 %v5895, %v5896
  %v5898 = vsub.f32 %v5882, %v5891
  %v5899 = vsub.f32 %v5885, %v5897
  %v5900 = vmul.f32 %v5898, 1.442695
  %v5901 = vpow.pop %v5900
  %v5902 = vmul.f32 %v5899, 1.442695
  %v5903 = vpow.pop %v5902
  %v5904 = vrot.slane %v5901, 4
  %v5905 = vadd.f32 %v5901, %v5904
  %v5906 = vrot.slane %v5905, 2
  %v5907 = vadd.f32 %v5905, %v5906
  %v5908 = vrot.slane %v5907, 1
  %v5909 = vadd.f32 %v5907, %v5908
  %v5910 = vrot.slane %v5903, 4
  %v5911 = vadd.f32 %v5903, %v5910
  %v5912 = vrot.slane %v5911, 2
  %v5913 = vadd.f32 %v5911, %v5912
  %v5914 = vrot.slane %v5913, 1
  %v5915 = vadd.f32 %v5913, %v5914
  %v5916 = vrcp.pop %v5909
  %v5917 = vrcp.pop %v5915
  %v5918 = vmul.f32 %v5901, %v5916
  %v5919 = vmul.f32 %v5903, %v5917
  %v5920 = vmul.f32 %v5918, %v626
  %v5921 = vmul.f32 %v5919, %v628
  %v5922 = vsel %vm648, %v5920, 0.0
  %v5923 = vrot.slane %v5922, 4
  %v5924 = vadd.f32 %v5922, %v5923
  %v5925 = vrot.slane %v5924, 2
  %v5926 = vadd.f32 %v5924, %v5925
  %v5927 = vrot.slane %v5926, 1
  %v5928 = vadd.f32 %v5926, %v5927
  %v5929 = vsel %vm648, %v5921, 0.0
  %v5930 = vrot.slane %v5929, 4
  %v5931 = vadd.f32 %v5929, %v5930
  %v5932 = vrot.slane %v5931, 2
  %v5933 = vadd.f32 %v5931, %v5932
  %v5934 = vrot.slane %v5933, 1
  %v5935 = vadd.f32 %v5933, %v5934
  %v5938 = vsel %vm646, %v1376, %v1369
  %v5942 = vsel %vm646, %v5935, %v5928
  %5943 = vrot.lane.b32.xlu0 %v5942, 32
  %v5944 = vpop.permute.xlu0 %5943
  %v5946 = vsel %vm648, %v5938, %v5944
  %v5947 = vld [vmem:[%s47] sm:$0xff]
  %v5948 = vld [vmem:[%s47 + $0x8] sm:$0xff]
  %v5949 = vld [vmem:[%s47 + $0x10] sm:$0xff]
  %v5950 = vld [vmem:[%s47 + $0x18] sm:$0xff]
  %v5951 = vld [vmem:[%s47 + $0x20] sm:$0xff]
  %v5952 = vld [vmem:[%s47 + $0x28] sm:$0xff]
  %v5953 = vld [vmem:[%s47 + $0x30] sm:$0xff]
  %v5954 = vld [vmem:[%s47 + $0x38] sm:$0xff]
  %v5955 = vld [vmem:[%s49] sm:$0x1]
  %v5957 = vperm.slane %v5955, 0
  %v5960 = vsel %vm3461, %v5946, 0
  %5962 = vmatpush.msra.mxu0 0.0
  %5963 = vmatpush.msra.mxu0 0.0
  %5964 = vmatpush.msra.mxu0 0.0
  %5965 = vmatpush.msra.mxu0 0.0
  %5966 = vmatpush.msra.mxu0 0.0
  %5967 = vmatpush.msra.mxu0 0.0
  %5968 = vmatpush.msra.mxu0 0.0
  %5969 = vmatpush.msra.mxu0 0.0
  %5970 = vmatpush.msra.mxu0 %v5954
  %5971 = vmatpush.msra.mxu0 %v5953
  %5972 = vmatpush.msra.mxu0 %v5952
  %5973 = vmatpush.msra.mxu0 %v5951
  %5974 = vmatpush.msra.mxu0 %v5950
  %5975 = vmatpush.msra.mxu0 %v5949
  %5976 = vmatpush.msra.mxu0 %v5948
  %5977 = vmatpush.msra.mxu0 %v5947
  %5978 = vmatmul.f32.gmra.mxu0 %v5960
  %v5979 = vpop.f32.mrf.mxu0
  %v5980 = vadd.f32 %v5957, %v5979
  %5981 = vdwg.mxu0
  %v5983 = vrot.slane %v5980, 1
  %v5984 = vperm.slane %v5980, 0
  %v5985 = vperm.slane %v5983, 0
  %v5988 = vmul.f32 %v5984, %v5834
  %v5989 = vmul.f32 %v5985, %v5835
  %v5990 = vsel %vm648, %v5988, 0.0
  %5991 = vadd.xlane.f32.xlu0 %v5990
  %v5992 = vpop.xlane.xlu0 %5991
  %v5993 = vsel %vm648, %v5989, 0.0
  %5994 = vadd.xlane.f32.xlu0 %v5993
  %v5995 = vpop.xlane.xlu0 %5994
  %vm5996 = vcmp.lt.s32.totalorder %v3316, 5
  %v5997 = vsel %vm5996, 1, 0
  %vm5998 = vcmp.eq.s32.totalorder %v5997, 1
  %v5999 = vsel %vm5998, %v5992, -1e+30
  %v6000 = vsel %vm5998, %v5995, -1e+30
  %v6001 = vrot.slane %v5999, 4
  %v6002 = vmax.f32 %v5999, %v6001
  %v6003 = vrot.slane %v6002, 2
  %v6004 = vmax.f32 %v6002, %v6003
  %v6005 = vrot.slane %v6004, 1
  %v6006 = vmax.f32 %v6004, %v6005
  %v6007 = vrot.slane %v6000, 4
  %v6008 = vmax.f32 %v6000, %v6007
  %v6009 = vrot.slane %v6008, 2
  %v6010 = vmax.f32 %v6008, %v6009
  %v6011 = vrot.slane %v6010, 1
  %v6012 = vmax.f32 %v6010, %v6011
  %v6013 = vsub.f32 %v5999, %v6006
  %v6014 = vsub.f32 %v6000, %v6012
  %v6015 = vmul.f32 %v6013, 1.442695
  %v6016 = vpow.pop %v6015
  %v6017 = vmul.f32 %v6014, 1.442695
  %v6018 = vpow.pop %v6017
  %v6019 = vrot.slane %v6016, 4
  %v6020 = vadd.f32 %v6016, %v6019
  %v6021 = vrot.slane %v6020, 2
  %v6022 = vadd.f32 %v6020, %v6021
  %v6023 = vrot.slane %v6022, 1
  %v6024 = vadd.f32 %v6022, %v6023
  %v6025 = vrot.slane %v6018, 4
  %v6026 = vadd.f32 %v6018, %v6025
  %v6027 = vrot.slane %v6026, 2
  %v6028 = vadd.f32 %v6026, %v6027
  %v6029 = vrot.slane %v6028, 1
  %v6030 = vadd.f32 %v6028, %v6029
  %v6031 = vrcp.pop %v6024
  %v6032 = vrcp.pop %v6030
  %v6033 = vmul.f32 %v6016, %v6031
  %v6034 = vmul.f32 %v6018, %v6032
  %v6035 = vmul.f32 %v6033, %v5834
  %v6036 = vmul.f32 %v6034, %v5835
  %v6037 = vsel %vm648, %v6035, 0.0
  %v6038 = vrot.slane %v6037, 4
  %v6039 = vadd.f32 %v6037, %v6038
  %v6040 = vrot.slane %v6039, 2
  %v6041 = vadd.f32 %v6039, %v6040
  %v6042 = vrot.slane %v6041, 1
  %v6043 = vadd.f32 %v6041, %v6042
  %v6044 = vsel %vm648, %v6036, 0.0
  %v6045 = vrot.slane %v6044, 4
  %v6046 = vadd.f32 %v6044, %v6045
  %v6047 = vrot.slane %v6046, 2
  %v6048 = vadd.f32 %v6046, %v6047
  %v6049 = vrot.slane %v6048, 1
  %v6050 = vadd.f32 %v6048, %v6049
  %vm6051 = vcmask 1046534
  %v6052 = vsel %vm6051, %v671, %v626
  %v6054 = vsel %vm6051, %v1376, %v1369
  %6055 = vrot.lane.b32.xlu0 %v6054, 32
  %v6056 = vpop.permute.xlu0 %6055
  %v6059 = vrot.slane %v5454, 5
  %6060 = vrot.lane.b32.xlu0 %v6059, 64
  %v6061 = vpop.permute.xlu0 %6060
  %v6063 = vsel %vm6051, %v5935, %v5928
  %6064 = vrot.lane.b32.xlu0 %v6063, 80
  %v6065 = vpop.permute.xlu0 %6064
  %v6069 = vsel %vm6051, %v6050, %v6043
  %6070 = vrot.lane.b32.xlu0 %v6069, 112
  %v6071 = vpop.permute.xlu0 %6070
  %v6073 = vsel %vm648, %v6052, %v6056
  %v6074 = vsel %vm3461, %v6073, %v6061
  %v6075 = vsel %vm3883, %v6074, %v6065
  %v6076 = vsel %vm3504, %v6075, %v6071
  %v6077 = vld [vmem:[%s51] sm:$0xff]
  %v6078 = vld [vmem:[%s51 + $0x8] sm:$0xff]
  %v6079 = vld [vmem:[%s51 + $0x10] sm:$0xff]
  %v6080 = vld [vmem:[%s51 + $0x18] sm:$0xff]
  %v6081 = vld [vmem:[%s51 + $0x20] sm:$0xff]
  %v6082 = vld [vmem:[%s51 + $0x28] sm:$0xff]
  %v6083 = vld [vmem:[%s51 + $0x30] sm:$0xff]
  %v6084 = vld [vmem:[%s51 + $0x38] sm:$0xff]
  %v6085 = vld [vmem:[%s51 + $0x40] sm:$0xff]
  %v6086 = vld [vmem:[%s51 + $0x48] sm:$0xff]
  %v6087 = vld [vmem:[%s51 + $0x50] sm:$0xff]
  %v6088 = vld [vmem:[%s51 + $0x58] sm:$0xff]
  %v6089 = vld [vmem:[%s51 + $0x60] sm:$0xff]
  %v6090 = vld [vmem:[%s51 + $0x68] sm:$0xff]
  %v6091 = vld [vmem:[%s51 + $0x70] sm:$0xff]
  %v6092 = vld [vmem:[%s51 + $0x78] sm:$0xff]
  %v6093 = vld [vmem:[%s51 + $0x80] sm:$0xff]
  %v6094 = vld [vmem:[%s51 + $0x88] sm:$0xff]
  %v6095 = vld [vmem:[%s53] sm:$0x1]
  %v6097 = vperm.slane %v6095, 0
  %v6100 = vrot.slane %v6076, 5
  %v6101 = vrot.slane %v6071, 5
  %v6103 = vsel %vm2730, %v6101, 0
  %6105 = vmatpush.msra.mxu0 %v6092
  %6106 = vmatpush.msra.mxu0 %v6091
  %6107 = vmatpush.msra.mxu0 %v6090
  %6108 = vmatpush.msra.mxu0 %v6089
  %6109 = vmatpush.msra.mxu0 %v6088
  %6110 = vmatpush.msra.mxu0 %v6087
  %6111 = vmatpush.msra.mxu0 %v6086
  %6112 = vmatpush.msra.mxu0 %v6085
  %6113 = vmatpush.msra.mxu0 %v6084
  %6114 = vmatpush.msra.mxu0 %v6083
  %6115 = vmatpush.msra.mxu0 %v6082
  %6116 = vmatpush.msra.mxu0 %v6081
  %6117 = vmatpush.msra.mxu0 %v6080
  %6118 = vmatpush.msra.mxu0 %v6079
  %6119 = vmatpush.msra.mxu0 %v6078
  %6120 = vmatpush.msra.mxu0 %v6077
  %6121 = vmatmul.f32.gmra.mxu0 %v6100
  %v6122 = vpop.f32.mrf.mxu0
  %v6123 = vadd.f32 %v6097, %v6122
  %6124 = vdwg.mxu0
  %6125 = vmatpush.msra.mxu0 0.0
  %6126 = vmatpush.msra.mxu0 0.0
  %6127 = vmatpush.msra.mxu0 0.0
  %6128 = vmatpush.msra.mxu0 0.0
  %6129 = vmatpush.msra.mxu0 0.0
  %6130 = vmatpush.msra.mxu0 0.0
  %6131 = vmatpush.msra.mxu0 0.0
  %6132 = vmatpush.msra.mxu0 0.0
  %6133 = vmatpush.msra.mxu0 0.0
  %6134 = vmatpush.msra.mxu0 0.0
  %6135 = vmatpush.msra.mxu0 0.0
  %6136 = vmatpush.msra.mxu0 0.0
  %6137 = vmatpush.msra.mxu0 0.0
  %6138 = vmatpush.msra.mxu0 0.0
  %6139 = vmatpush.msra.mxu0 %v6094
  %6140 = vmatpush.msra.mxu0 %v6093
  %6141 = vmatmul.f32.gmra.mxu0 %v6103
  %v6142 = vpop.f32.mrf.mxu0
  %v6143 = vadd.f32 %v6123, %v6142
  %6144 = vdwg.mxu0
  %s6145 = scalar_lea.vmem %s59, 10
  %6146 = vst.msk [vmem:[%s6145] sm:$0x3] %vm3570, %v6143
  %6147 = vrot.lane.b32.xlu0 %v2130, 104
  %v6148 = vpop.permute.xlu0 %6147
  %6150 = vrot.lane.b32.xlu0 %v2308, 112
  %v6151 = vpop.permute.xlu0 %6150
  %v6153 = vsel %vm1620, %v6148, %v6151
  %6154 = vst [vmem:[#allocation1] sm:$0xff] %v5491
  %s6155 = scalar_lea.vmem [#allocation1], 2
  %v6156 = vld [vmem:[%s6155] ss:$9 sm:$0xff]
  %s6157 = scalar_lea.vmem [#allocation1], 3
  %v6158 = vld [vmem:[%s6157] ss:$9 sm:$0xff]
  %v6159 = vperm.slane %v6156, 0
  %v6160 = vperm.slane %v6158, 0
  %v6163 = vsel %vm3396, %v6159, 0.0
  %v6164 = vsel %vm3396, %v6160, 0.0
  %v6165 = vadd.f32 %v6163, 0.0
  %v6166 = vadd.f32 %v6164, 0.0
  %v6167 = vrot.slane %v5491, 2
  %6168 = vrot.lane.b32.xlu0 %v6167, 80
  %v6169 = vpop.permute.xlu0 %6168
  %v6170 = vsel %vm2730, %v6169, 0
  %6172 = vmatpush.msra.mxu0 0.0
  %6173 = vmatpush.msra.mxu0 0.0
  %6174 = vmatpush.msra.mxu0 0.0
  %6175 = vmatpush.msra.mxu0 0.0
  %6176 = vmatpush.msra.mxu0 0.0
  %6177 = vmatpush.msra.mxu0 0.0
  %6178 = vmatpush.msra.mxu0 0.0
  %6179 = vmatpush.msra.mxu0 0.0
  %6180 = vmatpush.msra.mxu0 0.0
  %6181 = vmatpush.msra.mxu0 0.0
  %6182 = vmatpush.msra.mxu0 0.0
  %6183 = vmatpush.msra.mxu0 0.0
  %6184 = vmatpush.msra.mxu0 0.0
  %6185 = vmatpush.msra.mxu0 0.0
  %6186 = vmatpush.msra.mxu0 %v3314
  %6187 = vmatpush.msra.mxu0 %v3313
  %6188 = vmatmul.f32.gmra.mxu0 %v6170
  %v6189 = vpop.f32.mrf.mxu0
  %v6190 = vadd.f32 0.0, %v6189
  %6191 = vdwg.mxu0
  %v6192 = vadd.f32 %v2787, %v6190
  %v6193 = vxor.u32 %v6192, 2147483648
  %v6194 = vmul.f32 %v6193, 1.442695
  %v6195 = vpow.pop %v6194
  %v6196 = vadd.f32 %v6195, 1.0
  %v6197 = vrcp.pop %v6196
  %v6198 = vmul.f32 %v6196, %v6197
  %v6199 = vsub.f32 1.0, %v6198
  %v6200 = vmul.f32 %v6197, %v6199
  %v6201 = vadd.f32 %v6197, %v6200
  %vm6202 = vweird.f32 %v6196
  %vm6203 = vweird.f32 %v6197
  %vm6204 = vmor %vm6202, %vm6203
  %v6205 = vsel %vm6204, %v6197, %v6201
  %v6206 = vand.u32 2147483647, %v6196
  %vm6207 = vcmp.eq.f32.partialorder %v6206, 8.507059e+37
  %v6208 = vand.u32 %v6196, 2147483648
  %v6209 = vor.u32 1.1754944e-38, %v6208
  %v6210 = vsel %vm6207, %v6209, %v6205
  %v6211 = vmul.f32 1.0, %v6210
  %v6212 = vtanh.pop %v6192
  %v6213 = vmul.f32 %v6211, %v5551
  %6215 = vrot.lane.b32.xlu0 %v6212, 96
  %v6216 = vpop.permute.xlu0 %6215
  %v6218 = vmul.f32 %v6211, %v6216
  %6220 = vrot.lane.b32.xlu0 %v6218, 16
  %v6221 = vpop.permute.xlu0 %6220
  %v6223 = vadd.f32 %v6213, %v6221
  %v6224 = vtanh.pop %v6223
  %6226 = vrot.lane.b32.xlu0 %v6224, 32
  %v6227 = vpop.permute.xlu0 %6226
  %v6229 = vmul.f32 %v6211, %v6227
  %v6231 = vrot.slane %v6229, 1
  %v6232 = vperm.slane %v6229, 0
  %v6233 = vperm.slane %v6231, 0
  %v6236 = vsel %vm3380, %v6232, 0.0
  %v6237 = vsel %vm3380, %v6233, 0.0
  %v6238 = vadd.f32 %v6165, %v6236
  %v6239 = vadd.f32 %v6166, %v6237
  %6240 = vrot.lane.b32.xlu0 %v6229, 80
  %v6241 = vpop.permute.xlu0 %6240
  %v6242 = vsel %vm2730, %v6241, 0
  %6244 = vmatpush.msra.mxu0 0.0
  %6245 = vmatpush.msra.mxu0 0.0
  %6246 = vmatpush.msra.mxu0 0.0
  %6247 = vmatpush.msra.mxu0 0.0
  %6248 = vmatpush.msra.mxu0 0.0
  %6249 = vmatpush.msra.mxu0 0.0
  %6250 = vmatpush.msra.mxu0 0.0
  %6251 = vmatpush.msra.mxu0 0.0
  %6252 = vmatpush.msra.mxu0 0.0
  %6253 = vmatpush.msra.mxu0 0.0
  %6254 = vmatpush.msra.mxu0 0.0
  %6255 = vmatpush.msra.mxu0 0.0
  %6256 = vmatpush.msra.mxu0 0.0
  %6257 = vmatpush.msra.mxu0 0.0
  %6258 = vmatpush.msra.mxu0 %v3314
  %6259 = vmatpush.msra.mxu0 %v3313
  %6260 = vmatmul.f32.gmra.mxu0 %v6242
  %v6261 = vpop.f32.mrf.mxu0
  %v6262 = vadd.f32 0.0, %v6261
  %6263 = vdwg.mxu0
  %v6265 = vrot.slane %v6262, 2
  %v6267 = vadd.f32 %v2784, %v6265
  %v6268 = vxor.u32 %v6267, 2147483648
  %v6269 = vmul.f32 %v6268, 1.442695
  %v6270 = vpow.pop %v6269
  %v6271 = vadd.f32 %v6270, 1.0
  %v6272 = vrcp.pop %v6271
  %v6273 = vmul.f32 %v6271, %v6272
  %v6274 = vsub.f32 1.0, %v6273
  %v6275 = vmul.f32 %v6272, %v6274
  %v6276 = vadd.f32 %v6272, %v6275
  %vm6277 = vweird.f32 %v6271
  %vm6278 = vweird.f32 %v6272
  %vm6279 = vmor %vm6277, %vm6278
  %v6280 = vsel %vm6279, %v6272, %v6276
  %v6281 = vand.u32 2147483647, %v6271
  %vm6282 = vcmp.eq.f32.partialorder %v6281, 8.507059e+37
  %v6283 = vand.u32 %v6271, 2147483648
  %v6284 = vor.u32 1.1754944e-38, %v6283
  %v6285 = vsel %vm6282, %v6284, %v6280
  %v6286 = vmul.f32 1.0, %v6285
  %v6287 = vtanh.pop %v6267
  %v6289 = vrot.slane %v6223, 2
  %v6291 = vmul.f32 %v6286, %v6289
  %6293 = vrot.lane.b32.xlu0 %v6287, 96
  %v6294 = vpop.permute.xlu0 %6293
  %v6296 = vmul.f32 %v6286, %v6294
  %6298 = vrot.lane.b32.xlu0 %v6296, 16
  %v6299 = vpop.permute.xlu0 %6298
  %v6301 = vadd.f32 %v6291, %v6299
  %v6302 = vtanh.pop %v6301
  %6304 = vrot.lane.b32.xlu0 %v6302, 32
  %v6305 = vpop.permute.xlu0 %6304
  %v6307 = vmul.f32 %v6286, %v6305
  %6309 = vst [vmem:[#allocation1] sm:$0xff] %v6307
  %s6310 = scalar_lea.vmem [#allocation1], 6
  %v6311 = vld [vmem:[%s6310] ss:$9 sm:$0xff]
  %s6312 = scalar_lea.vmem [#allocation1], 7
  %v6313 = vld [vmem:[%s6312] ss:$9 sm:$0xff]
  %v6314 = vperm.slane %v6311, 0
  %v6315 = vperm.slane %v6313, 0
  %v6318 = vsel %vm3368, %v6314, 0.0
  %v6319 = vsel %vm3368, %v6315, 0.0
  %v6320 = vadd.f32 %v6238, %v6318
  %v6321 = vadd.f32 %v6239, %v6319
  %v6322 = vrot.slane %v6307, 6
  %6323 = vrot.lane.b32.xlu0 %v6322, 80
  %v6324 = vpop.permute.xlu0 %6323
  %v6325 = vsel %vm2730, %v6324, 0
  %6327 = vmatpush.msra.mxu0 0.0
  %6328 = vmatpush.msra.mxu0 0.0
  %6329 = vmatpush.msra.mxu0 0.0
  %6330 = vmatpush.msra.mxu0 0.0
  %6331 = vmatpush.msra.mxu0 0.0
  %6332 = vmatpush.msra.mxu0 0.0
  %6333 = vmatpush.msra.mxu0 0.0
  %6334 = vmatpush.msra.mxu0 0.0
  %6335 = vmatpush.msra.mxu0 0.0
  %6336 = vmatpush.msra.mxu0 0.0
  %6337 = vmatpush.msra.mxu0 0.0
  %6338 = vmatpush.msra.mxu0 0.0
  %6339 = vmatpush.msra.mxu0 0.0
  %6340 = vmatpush.msra.mxu0 0.0
  %6341 = vmatpush.msra.mxu0 %v3314
  %6342 = vmatpush.msra.mxu0 %v3313
  %6343 = vmatmul.f32.gmra.mxu0 %v6325
  %v6344 = vpop.f32.mrf.mxu0
  %v6345 = vadd.f32 0.0, %v6344
  %6346 = vdwg.mxu0
  %v6348 = vrot.slane %v6345, 4
  %v6350 = vadd.f32 %v2784, %v6348
  %v6351 = vxor.u32 %v6350, 2147483648
  %v6352 = vmul.f32 %v6351, 1.442695
  %v6353 = vpow.pop %v6352
  %v6354 = vadd.f32 %v6353, 1.0
  %v6355 = vrcp.pop %v6354
  %v6356 = vmul.f32 %v6354, %v6355
  %v6357 = vsub.f32 1.0, %v6356
  %v6358 = vmul.f32 %v6355, %v6357
  %v6359 = vadd.f32 %v6355, %v6358
  %vm6360 = vweird.f32 %v6354
  %vm6361 = vweird.f32 %v6355
  %vm6362 = vmor %vm6360, %vm6361
  %v6363 = vsel %vm6362, %v6355, %v6359
  %v6364 = vand.u32 2147483647, %v6354
  %vm6365 = vcmp.eq.f32.partialorder %v6364, 8.507059e+37
  %v6366 = vand.u32 %v6354, 2147483648
  %v6367 = vor.u32 1.1754944e-38, %v6366
  %v6368 = vsel %vm6365, %v6367, %v6363
  %v6369 = vmul.f32 1.0, %v6368
  %v6370 = vtanh.pop %v6350
  %v6372 = vrot.slane %v6301, 2
  %v6374 = vmul.f32 %v6369, %v6372
  %6376 = vrot.lane.b32.xlu0 %v6370, 96
  %v6377 = vpop.permute.xlu0 %6376
  %v6379 = vmul.f32 %v6369, %v6377
  %6381 = vrot.lane.b32.xlu0 %v6379, 16
  %v6382 = vpop.permute.xlu0 %6381
  %v6384 = vadd.f32 %v6374, %v6382
  %v6385 = vtanh.pop %v6384
  %6387 = vrot.lane.b32.xlu0 %v6385, 32
  %v6388 = vpop.permute.xlu0 %6387
  %v6390 = vmul.f32 %v6369, %v6388
  %6392 = vst [vmem:[#allocation1] sm:$0xff] %v6390
  %s6393 = scalar_lea.vmem [#allocation1], 4
  %v6394 = vld [vmem:[%s6393] ss:$9 sm:$0xff]
  %s6395 = scalar_lea.vmem [#allocation1], 5
  %v6396 = vld [vmem:[%s6395] ss:$9 sm:$0xff]
  %v6397 = vperm.slane %v6394, 0
  %v6398 = vperm.slane %v6396, 0
  %v6401 = vsel %vm3352, %v6397, 0.0
  %v6402 = vsel %vm3352, %v6398, 0.0
  %v6403 = vadd.f32 %v6320, %v6401
  %v6404 = vadd.f32 %v6321, %v6402
  %v6405 = vrot.slane %v6390, 4
  %6406 = vrot.lane.b32.xlu0 %v6405, 80
  %v6407 = vpop.permute.xlu0 %6406
  %v6408 = vsel %vm2730, %v6407, 0
  %6410 = vmatpush.msra.mxu0 0.0
  %6411 = vmatpush.msra.mxu0 0.0
  %6412 = vmatpush.msra.mxu0 0.0
  %6413 = vmatpush.msra.mxu0 0.0
  %6414 = vmatpush.msra.mxu0 0.0
  %6415 = vmatpush.msra.mxu0 0.0
  %6416 = vmatpush.msra.mxu0 0.0
  %6417 = vmatpush.msra.mxu0 0.0
  %6418 = vmatpush.msra.mxu0 0.0
  %6419 = vmatpush.msra.mxu0 0.0
  %6420 = vmatpush.msra.mxu0 0.0
  %6421 = vmatpush.msra.mxu0 0.0
  %6422 = vmatpush.msra.mxu0 0.0
  %6423 = vmatpush.msra.mxu0 0.0
  %6424 = vmatpush.msra.mxu0 %v3314
  %6425 = vmatpush.msra.mxu0 %v3313
  %6426 = vmatmul.f32.gmra.mxu0 %v6408
  %v6427 = vpop.f32.mrf.mxu0
  %v6428 = vadd.f32 0.0, %v6427
  %6429 = vdwg.mxu0
  %v6431 = vrot.slane %v6428, 6
  %v6433 = vadd.f32 %v2784, %v6431
  %v6434 = vxor.u32 %v6433, 2147483648
  %v6435 = vmul.f32 %v6434, 1.442695
  %v6436 = vpow.pop %v6435
  %v6437 = vadd.f32 %v6436, 1.0
  %v6438 = vrcp.pop %v6437
  %v6439 = vmul.f32 %v6437, %v6438
  %v6440 = vsub.f32 1.0, %v6439
  %v6441 = vmul.f32 %v6438, %v6440
  %v6442 = vadd.f32 %v6438, %v6441
  %vm6443 = vweird.f32 %v6437
  %vm6444 = vweird.f32 %v6438
  %vm6445 = vmor %vm6443, %vm6444
  %v6446 = vsel %vm6445, %v6438, %v6442
  %v6447 = vand.u32 2147483647, %v6437
  %vm6448 = vcmp.eq.f32.partialorder %v6447, 8.507059e+37
  %v6449 = vand.u32 %v6437, 2147483648
  %v6450 = vor.u32 1.1754944e-38, %v6449
  %v6451 = vsel %vm6448, %v6450, %v6446
  %v6452 = vmul.f32 1.0, %v6451
  %v6453 = vtanh.pop %v6433
  %v6455 = vrot.slane %v6384, 2
  %v6457 = vmul.f32 %v6452, %v6455
  %6459 = vrot.lane.b32.xlu0 %v6453, 96
  %v6460 = vpop.permute.xlu0 %6459
  %v6462 = vmul.f32 %v6452, %v6460
  %6464 = vrot.lane.b32.xlu0 %v6462, 16
  %v6465 = vpop.permute.xlu0 %6464
  %v6467 = vadd.f32 %v6457, %v6465
  %v6468 = vtanh.pop %v6467
  %6470 = vrot.lane.b32.xlu0 %v6468, 32
  %v6471 = vpop.permute.xlu0 %6470
  %v6473 = vmul.f32 %v6452, %v6471
  %6475 = vst [vmem:[#allocation1] sm:$0xff] %v6473
  %s6476 = scalar_lea.vmem [#allocation1], 2
  %v6477 = vld [vmem:[%s6476] ss:$9 sm:$0xff]
  %s6478 = scalar_lea.vmem [#allocation1], 3
  %v6479 = vld [vmem:[%s6478] ss:$9 sm:$0xff]
  %v6480 = vperm.slane %v6477, 0
  %v6481 = vperm.slane %v6479, 0
  %v6484 = vsel %vm3336, %v6480, 0.0
  %v6485 = vsel %vm3336, %v6481, 0.0
  %v6486 = vadd.f32 %v6403, %v6484
  %v6487 = vadd.f32 %v6404, %v6485
  %v6488 = vrot.slane %v6473, 2
  %6489 = vrot.lane.b32.xlu0 %v6488, 80
  %v6490 = vpop.permute.xlu0 %6489
  %v6491 = vsel %vm2730, %v6490, 0
  %6493 = vmatpush.msra.mxu0 0.0
  %6494 = vmatpush.msra.mxu0 0.0
  %6495 = vmatpush.msra.mxu0 0.0
  %6496 = vmatpush.msra.mxu0 0.0
  %6497 = vmatpush.msra.mxu0 0.0
  %6498 = vmatpush.msra.mxu0 0.0
  %6499 = vmatpush.msra.mxu0 0.0
  %6500 = vmatpush.msra.mxu0 0.0
  %6501 = vmatpush.msra.mxu0 0.0
  %6502 = vmatpush.msra.mxu0 0.0
  %6503 = vmatpush.msra.mxu0 0.0
  %6504 = vmatpush.msra.mxu0 0.0
  %6505 = vmatpush.msra.mxu0 0.0
  %6506 = vmatpush.msra.mxu0 0.0
  %6507 = vmatpush.msra.mxu0 %v3314
  %6508 = vmatpush.msra.mxu0 %v3313
  %6509 = vmatmul.f32.gmra.mxu0 %v6491
  %v6510 = vpop.f32.mrf.mxu0
  %v6511 = vadd.f32 0.0, %v6510
  %6512 = vdwg.mxu0
  %v6513 = vadd.f32 %v2784, %v6511
  %v6514 = vxor.u32 %v6513, 2147483648
  %v6515 = vmul.f32 %v6514, 1.442695
  %v6516 = vpow.pop %v6515
  %v6517 = vadd.f32 %v6516, 1.0
  %v6518 = vrcp.pop %v6517
  %v6519 = vmul.f32 %v6517, %v6518
  %v6520 = vsub.f32 1.0, %v6519
  %v6521 = vmul.f32 %v6518, %v6520
  %v6522 = vadd.f32 %v6518, %v6521
  %vm6523 = vweird.f32 %v6517
  %vm6524 = vweird.f32 %v6518
  %vm6525 = vmor %vm6523, %vm6524
  %v6526 = vsel %vm6525, %v6518, %v6522
  %v6527 = vand.u32 2147483647, %v6517
  %vm6528 = vcmp.eq.f32.partialorder %v6527, 8.507059e+37
  %v6529 = vand.u32 %v6517, 2147483648
  %v6530 = vor.u32 1.1754944e-38, %v6529
  %v6531 = vsel %vm6528, %v6530, %v6526
  %v6532 = vmul.f32 1.0, %v6531
  %v6533 = vtanh.pop %v6513
  %v6535 = vrot.slane %v6467, 2
  %v6537 = vmul.f32 %v6532, %v6535
  %6539 = vrot.lane.b32.xlu0 %v6533, 96
  %v6540 = vpop.permute.xlu0 %6539
  %v6542 = vmul.f32 %v6532, %v6540
  %6544 = vrot.lane.b32.xlu0 %v6542, 16
  %v6545 = vpop.permute.xlu0 %6544
  %v6547 = vadd.f32 %v6537, %v6545
  %v6548 = vtanh.pop %v6547
  %6550 = vrot.lane.b32.xlu0 %v6548, 32
  %v6551 = vpop.permute.xlu0 %6550
  %v6553 = vmul.f32 %v6532, %v6551
  %v6555 = vrot.slane %v6553, 1
  %v6556 = vperm.slane %v6553, 0
  %v6557 = vperm.slane %v6555, 0
  %v6560 = vsel %vm3320, %v6556, 0.0
  %v6561 = vsel %vm3320, %v6557, 0.0
  %v6562 = vadd.f32 %v6486, %v6560
  %v6563 = vadd.f32 %v6487, %v6561
  %6566 = vrot.lane.b32.xlu0 %v6562, 96
  %v6567 = vpop.permute.xlu0 %6566
  %6568 = vrot.lane.b32.xlu0 %v6563, 96
  %v6569 = vpop.permute.xlu0 %6568
  %v6572 = vsel %vm2730, %v3629, %v6567
  %v6573 = vsel %vm2730, %v3631, %v6569
  %6574 = vrot.lane.b32.xlu0 %v3172, 80
  %v6575 = vpop.permute.xlu0 %6574
  %v6577 = vsel %vm2730, %v6575, %v5838
  %v6578 = vld [vmem:[%s43] sm:$0xff]
  %v6579 = vld [vmem:[%s43 + $0x8] sm:$0xff]
  %v6580 = vld [vmem:[%s43 + $0x10] sm:$0xff]
  %v6581 = vld [vmem:[%s43 + $0x18] sm:$0xff]
  %v6582 = vld [vmem:[%s45] sm:$0x1]
  %v6584 = vperm.slane %v6582, 0
  %v6587 = vrot.slane %v6577, 2
  %v6588 = vsel %vm648, %v6587, 0
  %6590 = vmatpush.msra.mxu0 0.0
  %6591 = vmatpush.msra.mxu0 0.0
  %6592 = vmatpush.msra.mxu0 0.0
  %6593 = vmatpush.msra.mxu0 0.0
  %6594 = vmatpush.msra.mxu0 0.0
  %6595 = vmatpush.msra.mxu0 0.0
  %6596 = vmatpush.msra.mxu0 0.0
  %6597 = vmatpush.msra.mxu0 0.0
  %6598 = vmatpush.msra.mxu0 0.0
  %6599 = vmatpush.msra.mxu0 0.0
  %6600 = vmatpush.msra.mxu0 0.0
  %6601 = vmatpush.msra.mxu0 0.0
  %6602 = vmatpush.msra.mxu0 %v6581
  %6603 = vmatpush.msra.mxu0 %v6580
  %6604 = vmatpush.msra.mxu0 %v6579
  %6605 = vmatpush.msra.mxu0 %v6578
  %6606 = vmatmul.f32.gmra.mxu0 %v6588
  %v6607 = vpop.f32.mrf.mxu0
  %v6608 = vadd.f32 %v6584, %v6607
  %6609 = vdwg.mxu0
  %v6611 = vrot.slane %v6608, 1
  %v6612 = vperm.slane %v6608, 0
  %v6613 = vperm.slane %v6611, 0
  %v6616 = vmul.f32 %v6612, %v626
  %v6617 = vmul.f32 %v6613, %v628
  %v6618 = vsel %vm648, %v6616, 0.0
  %6619 = vadd.xlane.f32.xlu0 %v6618
  %v6620 = vpop.xlane.xlu0 %6619
  %v6621 = vsel %vm648, %v6617, 0.0
  %6622 = vadd.xlane.f32.xlu0 %v6621
  %v6623 = vpop.xlane.xlu0 %6622
  %v6624 = vrot.slane %v6620, 4
  %v6625 = vmax.f32 %v6620, %v6624
  %v6626 = vrot.slane %v6625, 2
  %v6627 = vmax.f32 %v6625, %v6626
  %v6628 = vrot.slane %v6627, 1
  %v6629 = vmax.f32 %v6627, %v6628
  %v6630 = vrot.slane %v6623, 4
  %v6631 = vmax.f32 %v6623, %v6630
  %v6632 = vrot.slane %v6631, 2
  %v6633 = vmax.f32 %v6631, %v6632
  %v6634 = vrot.slane %v6633, 1
  %v6635 = vmax.f32 %v6633, %v6634
  %v6636 = vsub.f32 %v6620, %v6629
  %v6637 = vsub.f32 %v6623, %v6635
  %v6638 = vmul.f32 %v6636, 1.442695
  %v6639 = vpow.pop %v6638
  %v6640 = vmul.f32 %v6637, 1.442695
  %v6641 = vpow.pop %v6640
  %v6642 = vrot.slane %v6639, 4
  %v6643 = vadd.f32 %v6639, %v6642
  %v6644 = vrot.slane %v6643, 2
  %v6645 = vadd.f32 %v6643, %v6644
  %v6646 = vrot.slane %v6645, 1
  %v6647 = vadd.f32 %v6645, %v6646
  %v6648 = vrot.slane %v6641, 4
  %v6649 = vadd.f32 %v6641, %v6648
  %v6650 = vrot.slane %v6649, 2
  %v6651 = vadd.f32 %v6649, %v6650
  %v6652 = vrot.slane %v6651, 1
  %v6653 = vadd.f32 %v6651, %v6652
  %v6654 = vrcp.pop %v6647
  %v6655 = vrcp.pop %v6653
  %v6656 = vmul.f32 %v6639, %v6654
  %v6657 = vmul.f32 %v6641, %v6655
  %v6658 = vmul.f32 %v6656, %v626
  %v6659 = vmul.f32 %v6657, %v628
  %v6660 = vsel %vm648, %v6658, 0.0
  %v6661 = vrot.slane %v6660, 4
  %v6662 = vadd.f32 %v6660, %v6661
  %v6663 = vrot.slane %v6662, 2
  %v6664 = vadd.f32 %v6662, %v6663
  %v6665 = vrot.slane %v6664, 1
  %v6666 = vadd.f32 %v6664, %v6665
  %v6667 = vsel %vm648, %v6659, 0.0
  %v6668 = vrot.slane %v6667, 4
  %v6669 = vadd.f32 %v6667, %v6668
  %v6670 = vrot.slane %v6669, 2
  %v6671 = vadd.f32 %v6669, %v6670
  %v6672 = vrot.slane %v6671, 1
  %v6673 = vadd.f32 %v6671, %v6672
  %v6676 = vsel %vm646, %v1507, %v1500
  %v6680 = vsel %vm646, %v6673, %v6666
  %6681 = vrot.lane.b32.xlu0 %v6680, 32
  %v6682 = vpop.permute.xlu0 %6681
  %v6684 = vsel %vm648, %v6676, %v6682
  %v6685 = vld [vmem:[%s47] sm:$0xff]
  %v6686 = vld [vmem:[%s47 + $0x8] sm:$0xff]
  %v6687 = vld [vmem:[%s47 + $0x10] sm:$0xff]
  %v6688 = vld [vmem:[%s47 + $0x18] sm:$0xff]
  %v6689 = vld [vmem:[%s47 + $0x20] sm:$0xff]
  %v6690 = vld [vmem:[%s47 + $0x28] sm:$0xff]
  %v6691 = vld [vmem:[%s47 + $0x30] sm:$0xff]
  %v6692 = vld [vmem:[%s47 + $0x38] sm:$0xff]
  %v6693 = vld [vmem:[%s49] sm:$0x1]
  %v6695 = vperm.slane %v6693, 0
  %v6698 = vsel %vm3461, %v6684, 0
  %6700 = vmatpush.msra.mxu0 0.0
  %6701 = vmatpush.msra.mxu0 0.0
  %6702 = vmatpush.msra.mxu0 0.0
  %6703 = vmatpush.msra.mxu0 0.0
  %6704 = vmatpush.msra.mxu0 0.0
  %6705 = vmatpush.msra.mxu0 0.0
  %6706 = vmatpush.msra.mxu0 0.0
  %6707 = vmatpush.msra.mxu0 0.0
  %6708 = vmatpush.msra.mxu0 %v6692
  %6709 = vmatpush.msra.mxu0 %v6691
  %6710 = vmatpush.msra.mxu0 %v6690
  %6711 = vmatpush.msra.mxu0 %v6689
  %6712 = vmatpush.msra.mxu0 %v6688
  %6713 = vmatpush.msra.mxu0 %v6687
  %6714 = vmatpush.msra.mxu0 %v6686
  %6715 = vmatpush.msra.mxu0 %v6685
  %6716 = vmatmul.f32.gmra.mxu0 %v6698
  %v6717 = vpop.f32.mrf.mxu0
  %v6718 = vadd.f32 %v6695, %v6717
  %6719 = vdwg.mxu0
  %v6721 = vrot.slane %v6718, 1
  %v6722 = vperm.slane %v6718, 0
  %v6723 = vperm.slane %v6721, 0
  %v6726 = vmul.f32 %v6722, %v6572
  %v6727 = vmul.f32 %v6723, %v6573
  %v6728 = vsel %vm648, %v6726, 0.0
  %6729 = vadd.xlane.f32.xlu0 %v6728
  %v6730 = vpop.xlane.xlu0 %6729
  %v6731 = vsel %vm648, %v6727, 0.0
  %6732 = vadd.xlane.f32.xlu0 %v6731
  %v6733 = vpop.xlane.xlu0 %6732
  %vm6734 = vcmp.lt.s32.totalorder %v3316, 6
  %v6735 = vsel %vm6734, 1, 0
  %vm6736 = vcmp.eq.s32.totalorder %v6735, 1
  %v6737 = vsel %vm6736, %v6730, -1e+30
  %v6738 = vsel %vm6736, %v6733, -1e+30
  %v6739 = vrot.slane %v6737, 4
  %v6740 = vmax.f32 %v6737, %v6739
  %v6741 = vrot.slane %v6740, 2
  %v6742 = vmax.f32 %v6740, %v6741
  %v6743 = vrot.slane %v6742, 1
  %v6744 = vmax.f32 %v6742, %v6743
  %v6745 = vrot.slane %v6738, 4
  %v6746 = vmax.f32 %v6738, %v6745
  %v6747 = vrot.slane %v6746, 2
  %v6748 = vmax.f32 %v6746, %v6747
  %v6749 = vrot.slane %v6748, 1
  %v6750 = vmax.f32 %v6748, %v6749
  %v6751 = vsub.f32 %v6737, %v6744
  %v6752 = vsub.f32 %v6738, %v6750
  %v6753 = vmul.f32 %v6751, 1.442695
  %v6754 = vpow.pop %v6753
  %v6755 = vmul.f32 %v6752, 1.442695
  %v6756 = vpow.pop %v6755
  %v6757 = vrot.slane %v6754, 4
  %v6758 = vadd.f32 %v6754, %v6757
  %v6759 = vrot.slane %v6758, 2
  %v6760 = vadd.f32 %v6758, %v6759
  %v6761 = vrot.slane %v6760, 1
  %v6762 = vadd.f32 %v6760, %v6761
  %v6763 = vrot.slane %v6756, 4
  %v6764 = vadd.f32 %v6756, %v6763
  %v6765 = vrot.slane %v6764, 2
  %v6766 = vadd.f32 %v6764, %v6765
  %v6767 = vrot.slane %v6766, 1
  %v6768 = vadd.f32 %v6766, %v6767
  %v6769 = vrcp.pop %v6762
  %v6770 = vrcp.pop %v6768
  %v6771 = vmul.f32 %v6754, %v6769
  %v6772 = vmul.f32 %v6756, %v6770
  %v6773 = vmul.f32 %v6771, %v6572
  %v6774 = vmul.f32 %v6772, %v6573
  %v6775 = vsel %vm648, %v6773, 0.0
  %v6776 = vrot.slane %v6775, 4
  %v6777 = vadd.f32 %v6775, %v6776
  %v6778 = vrot.slane %v6777, 2
  %v6779 = vadd.f32 %v6777, %v6778
  %v6780 = vrot.slane %v6779, 1
  %v6781 = vadd.f32 %v6779, %v6780
  %v6782 = vsel %vm648, %v6774, 0.0
  %v6783 = vrot.slane %v6782, 4
  %v6784 = vadd.f32 %v6782, %v6783
  %v6785 = vrot.slane %v6784, 2
  %v6786 = vadd.f32 %v6784, %v6785
  %v6787 = vrot.slane %v6786, 1
  %v6788 = vadd.f32 %v6786, %v6787
  %vm6789 = vcmask 1047559
  %v6790 = vsel %vm6789, %v671, %v626
  %v6792 = vsel %vm6789, %v1507, %v1500
  %6793 = vrot.lane.b32.xlu0 %v6792, 32
  %v6794 = vpop.permute.xlu0 %6793
  %v6797 = vrot.slane %v6153, 6
  %6798 = vrot.lane.b32.xlu0 %v6797, 64
  %v6799 = vpop.permute.xlu0 %6798
  %v6801 = vsel %vm6789, %v6673, %v6666
  %6802 = vrot.lane.b32.xlu0 %v6801, 80
  %v6803 = vpop.permute.xlu0 %6802
  %v6807 = vsel %vm6789, %v6788, %v6781
  %6808 = vrot.lane.b32.xlu0 %v6807, 112
  %v6809 = vpop.permute.xlu0 %6808
  %v6811 = vsel %vm648, %v6790, %v6794
  %v6812 = vsel %vm3461, %v6811, %v6799
  %v6813 = vsel %vm3883, %v6812, %v6803
  %v6814 = vsel %vm3504, %v6813, %v6809
  %v6815 = vld [vmem:[%s51] sm:$0xff]
  %v6816 = vld [vmem:[%s51 + $0x8] sm:$0xff]
  %v6817 = vld [vmem:[%s51 + $0x10] sm:$0xff]
  %v6818 = vld [vmem:[%s51 + $0x18] sm:$0xff]
  %v6819 = vld [vmem:[%s51 + $0x20] sm:$0xff]
  %v6820 = vld [vmem:[%s51 + $0x28] sm:$0xff]
  %v6821 = vld [vmem:[%s51 + $0x30] sm:$0xff]
  %v6822 = vld [vmem:[%s51 + $0x38] sm:$0xff]
  %v6823 = vld [vmem:[%s51 + $0x40] sm:$0xff]
  %v6824 = vld [vmem:[%s51 + $0x48] sm:$0xff]
  %v6825 = vld [vmem:[%s51 + $0x50] sm:$0xff]
  %v6826 = vld [vmem:[%s51 + $0x58] sm:$0xff]
  %v6827 = vld [vmem:[%s51 + $0x60] sm:$0xff]
  %v6828 = vld [vmem:[%s51 + $0x68] sm:$0xff]
  %v6829 = vld [vmem:[%s51 + $0x70] sm:$0xff]
  %v6830 = vld [vmem:[%s51 + $0x78] sm:$0xff]
  %v6831 = vld [vmem:[%s51 + $0x80] sm:$0xff]
  %v6832 = vld [vmem:[%s51 + $0x88] sm:$0xff]
  %v6833 = vld [vmem:[%s53] sm:$0x1]
  %v6835 = vperm.slane %v6833, 0
  %v6838 = vrot.slane %v6814, 6
  %v6839 = vrot.slane %v6809, 6
  %v6841 = vsel %vm2730, %v6839, 0
  %6843 = vmatpush.msra.mxu0 %v6830
  %6844 = vmatpush.msra.mxu0 %v6829
  %6845 = vmatpush.msra.mxu0 %v6828
  %6846 = vmatpush.msra.mxu0 %v6827
  %6847 = vmatpush.msra.mxu0 %v6826
  %6848 = vmatpush.msra.mxu0 %v6825
  %6849 = vmatpush.msra.mxu0 %v6824
  %6850 = vmatpush.msra.mxu0 %v6823
  %6851 = vmatpush.msra.mxu0 %v6822
  %6852 = vmatpush.msra.mxu0 %v6821
  %6853 = vmatpush.msra.mxu0 %v6820
  %6854 = vmatpush.msra.mxu0 %v6819
  %6855 = vmatpush.msra.mxu0 %v6818
  %6856 = vmatpush.msra.mxu0 %v6817
  %6857 = vmatpush.msra.mxu0 %v6816
  %6858 = vmatpush.msra.mxu0 %v6815
  %6859 = vmatmul.f32.gmra.mxu0 %v6838
  %v6860 = vpop.f32.mrf.mxu0
  %v6861 = vadd.f32 %v6835, %v6860
  %6862 = vdwg.mxu0
  %6863 = vmatpush.msra.mxu0 0.0
  %6864 = vmatpush.msra.mxu0 0.0
  %6865 = vmatpush.msra.mxu0 0.0
  %6866 = vmatpush.msra.mxu0 0.0
  %6867 = vmatpush.msra.mxu0 0.0
  %6868 = vmatpush.msra.mxu0 0.0
  %6869 = vmatpush.msra.mxu0 0.0
  %6870 = vmatpush.msra.mxu0 0.0
  %6871 = vmatpush.msra.mxu0 0.0
  %6872 = vmatpush.msra.mxu0 0.0
  %6873 = vmatpush.msra.mxu0 0.0
  %6874 = vmatpush.msra.mxu0 0.0
  %6875 = vmatpush.msra.mxu0 0.0
  %6876 = vmatpush.msra.mxu0 0.0
  %6877 = vmatpush.msra.mxu0 %v6832
  %6878 = vmatpush.msra.mxu0 %v6831
  %6879 = vmatmul.f32.gmra.mxu0 %v6841
  %v6880 = vpop.f32.mrf.mxu0
  %v6881 = vadd.f32 %v6861, %v6880
  %6882 = vdwg.mxu0
  %s6883 = scalar_lea.vmem %s59, 12
  %6884 = vst.msk [vmem:[%s6883] sm:$0x3] %vm3570, %v6881
  %6886 = vrot.lane.b32.xlu0 %v2200, 104
  %v6887 = vpop.permute.xlu0 %6886
  %6889 = vrot.lane.b32.xlu0 %v2238, 112
  %v6890 = vpop.permute.xlu0 %6889
  %v6892 = vsel %vm1620, %v6887, %v6890
  %6893 = vst [vmem:[#allocation1] sm:$0xff] %v5491
  %s6894 = scalar_lea.vmem [#allocation1], 4
  %v6895 = vld [vmem:[%s6894] ss:$9 sm:$0xff]
  %s6896 = scalar_lea.vmem [#allocation1], 5
  %v6897 = vld [vmem:[%s6896] ss:$9 sm:$0xff]
  %v6898 = vperm.slane %v6895, 0
  %v6899 = vperm.slane %v6897, 0
  %v6902 = vsel %vm3412, %v6898, 0.0
  %v6903 = vsel %vm3412, %v6899, 0.0
  %v6904 = vadd.f32 %v6902, 0.0
  %v6905 = vadd.f32 %v6903, 0.0
  %v6906 = vrot.slane %v5491, 4
  %6907 = vrot.lane.b32.xlu0 %v6906, 80
  %v6908 = vpop.permute.xlu0 %6907
  %v6909 = vsel %vm2730, %v6908, 0
  %6911 = vmatpush.msra.mxu0 0.0
  %6912 = vmatpush.msra.mxu0 0.0
  %6913 = vmatpush.msra.mxu0 0.0
  %6914 = vmatpush.msra.mxu0 0.0
  %6915 = vmatpush.msra.mxu0 0.0
  %6916 = vmatpush.msra.mxu0 0.0
  %6917 = vmatpush.msra.mxu0 0.0
  %6918 = vmatpush.msra.mxu0 0.0
  %6919 = vmatpush.msra.mxu0 0.0
  %6920 = vmatpush.msra.mxu0 0.0
  %6921 = vmatpush.msra.mxu0 0.0
  %6922 = vmatpush.msra.mxu0 0.0
  %6923 = vmatpush.msra.mxu0 0.0
  %6924 = vmatpush.msra.mxu0 0.0
  %6925 = vmatpush.msra.mxu0 %v3314
  %6926 = vmatpush.msra.mxu0 %v3313
  %6927 = vmatmul.f32.gmra.mxu0 %v6909
  %v6928 = vpop.f32.mrf.mxu0
  %v6929 = vadd.f32 0.0, %v6928
  %6930 = vdwg.mxu0
  %v6932 = vrot.slane %v6929, 6
  %v6934 = vadd.f32 %v2787, %v6932
  %v6935 = vxor.u32 %v6934, 2147483648
  %v6936 = vmul.f32 %v6935, 1.442695
  %v6937 = vpow.pop %v6936
  %v6938 = vadd.f32 %v6937, 1.0
  %v6939 = vrcp.pop %v6938
  %v6940 = vmul.f32 %v6938, %v6939
  %v6941 = vsub.f32 1.0, %v6940
  %v6942 = vmul.f32 %v6939, %v6941
  %v6943 = vadd.f32 %v6939, %v6942
  %vm6944 = vweird.f32 %v6938
  %vm6945 = vweird.f32 %v6939
  %vm6946 = vmor %vm6944, %vm6945
  %v6947 = vsel %vm6946, %v6939, %v6943
  %v6948 = vand.u32 2147483647, %v6938
  %vm6949 = vcmp.eq.f32.partialorder %v6948, 8.507059e+37
  %v6950 = vand.u32 %v6938, 2147483648
  %v6951 = vor.u32 1.1754944e-38, %v6950
  %v6952 = vsel %vm6949, %v6951, %v6947
  %v6953 = vmul.f32 1.0, %v6952
  %v6954 = vtanh.pop %v6934
  %v6955 = vmul.f32 %v6953, %v5551
  %6957 = vrot.lane.b32.xlu0 %v6954, 96
  %v6958 = vpop.permute.xlu0 %6957
  %v6960 = vmul.f32 %v6953, %v6958
  %6962 = vrot.lane.b32.xlu0 %v6960, 16
  %v6963 = vpop.permute.xlu0 %6962
  %v6965 = vadd.f32 %v6955, %v6963
  %v6966 = vtanh.pop %v6965
  %6968 = vrot.lane.b32.xlu0 %v6966, 32
  %v6969 = vpop.permute.xlu0 %6968
  %v6971 = vmul.f32 %v6953, %v6969
  %6973 = vst [vmem:[#allocation1] sm:$0xff] %v6971
  %s6974 = scalar_lea.vmem [#allocation1], 2
  %v6975 = vld [vmem:[%s6974] ss:$9 sm:$0xff]
  %s6976 = scalar_lea.vmem [#allocation1], 3
  %v6977 = vld [vmem:[%s6976] ss:$9 sm:$0xff]
  %v6978 = vperm.slane %v6975, 0
  %v6979 = vperm.slane %v6977, 0
  %v6982 = vsel %vm3396, %v6978, 0.0
  %v6983 = vsel %vm3396, %v6979, 0.0
  %v6984 = vadd.f32 %v6904, %v6982
  %v6985 = vadd.f32 %v6905, %v6983
  %v6986 = vrot.slane %v6971, 2
  %6987 = vrot.lane.b32.xlu0 %v6986, 80
  %v6988 = vpop.permute.xlu0 %6987
  %v6989 = vsel %vm2730, %v6988, 0
  %6991 = vmatpush.msra.mxu0 0.0
  %6992 = vmatpush.msra.mxu0 0.0
  %6993 = vmatpush.msra.mxu0 0.0
  %6994 = vmatpush.msra.mxu0 0.0
  %6995 = vmatpush.msra.mxu0 0.0
  %6996 = vmatpush.msra.mxu0 0.0
  %6997 = vmatpush.msra.mxu0 0.0
  %6998 = vmatpush.msra.mxu0 0.0
  %6999 = vmatpush.msra.mxu0 0.0
  %7000 = vmatpush.msra.mxu0 0.0
  %7001 = vmatpush.msra.mxu0 0.0
  %7002 = vmatpush.msra.mxu0 0.0
  %7003 = vmatpush.msra.mxu0 0.0
  %7004 = vmatpush.msra.mxu0 0.0
  %7005 = vmatpush.msra.mxu0 %v3314
  %7006 = vmatpush.msra.mxu0 %v3313
  %7007 = vmatmul.f32.gmra.mxu0 %v6989
  %v7008 = vpop.f32.mrf.mxu0
  %v7009 = vadd.f32 0.0, %v7008
  %7010 = vdwg.mxu0
  %v7011 = vadd.f32 %v2787, %v7009
  %v7012 = vxor.u32 %v7011, 2147483648
  %v7013 = vmul.f32 %v7012, 1.442695
  %v7014 = vpow.pop %v7013
  %v7015 = vadd.f32 %v7014, 1.0
  %v7016 = vrcp.pop %v7015
  %v7017 = vmul.f32 %v7015, %v7016
  %v7018 = vsub.f32 1.0, %v7017
  %v7019 = vmul.f32 %v7016, %v7018
  %v7020 = vadd.f32 %v7016, %v7019
  %vm7021 = vweird.f32 %v7015
  %vm7022 = vweird.f32 %v7016
  %vm7023 = vmor %vm7021, %vm7022
  %v7024 = vsel %vm7023, %v7016, %v7020
  %v7025 = vand.u32 2147483647, %v7015
  %vm7026 = vcmp.eq.f32.partialorder %v7025, 8.507059e+37
  %v7027 = vand.u32 %v7015, 2147483648
  %v7028 = vor.u32 1.1754944e-38, %v7027
  %v7029 = vsel %vm7026, %v7028, %v7024
  %v7030 = vmul.f32 1.0, %v7029
  %v7031 = vtanh.pop %v7011
  %v7033 = vrot.slane %v6965, 2
  %v7035 = vmul.f32 %v7030, %v7033
  %7037 = vrot.lane.b32.xlu0 %v7031, 96
  %v7038 = vpop.permute.xlu0 %7037
  %v7040 = vmul.f32 %v7030, %v7038
  %7042 = vrot.lane.b32.xlu0 %v7040, 16
  %v7043 = vpop.permute.xlu0 %7042
  %v7045 = vadd.f32 %v7035, %v7043
  %v7046 = vtanh.pop %v7045
  %7048 = vrot.lane.b32.xlu0 %v7046, 32
  %v7049 = vpop.permute.xlu0 %7048
  %v7051 = vmul.f32 %v7030, %v7049
  %v7053 = vrot.slane %v7051, 1
  %v7054 = vperm.slane %v7051, 0
  %v7055 = vperm.slane %v7053, 0
  %v7058 = vsel %vm3380, %v7054, 0.0
  %v7059 = vsel %vm3380, %v7055, 0.0
  %v7060 = vadd.f32 %v6984, %v7058
  %v7061 = vadd.f32 %v6985, %v7059
  %7062 = vrot.lane.b32.xlu0 %v7051, 80
  %v7063 = vpop.permute.xlu0 %7062
  %v7064 = vsel %vm2730, %v7063, 0
  %7066 = vmatpush.msra.mxu0 0.0
  %7067 = vmatpush.msra.mxu0 0.0
  %7068 = vmatpush.msra.mxu0 0.0
  %7069 = vmatpush.msra.mxu0 0.0
  %7070 = vmatpush.msra.mxu0 0.0
  %7071 = vmatpush.msra.mxu0 0.0
  %7072 = vmatpush.msra.mxu0 0.0
  %7073 = vmatpush.msra.mxu0 0.0
  %7074 = vmatpush.msra.mxu0 0.0
  %7075 = vmatpush.msra.mxu0 0.0
  %7076 = vmatpush.msra.mxu0 0.0
  %7077 = vmatpush.msra.mxu0 0.0
  %7078 = vmatpush.msra.mxu0 0.0
  %7079 = vmatpush.msra.mxu0 0.0
  %7080 = vmatpush.msra.mxu0 %v3314
  %7081 = vmatpush.msra.mxu0 %v3313
  %7082 = vmatmul.f32.gmra.mxu0 %v7064
  %v7083 = vpop.f32.mrf.mxu0
  %v7084 = vadd.f32 0.0, %v7083
  %7085 = vdwg.mxu0
  %v7087 = vrot.slane %v7084, 2
  %v7089 = vadd.f32 %v2784, %v7087
  %v7090 = vxor.u32 %v7089, 2147483648
  %v7091 = vmul.f32 %v7090, 1.442695
  %v7092 = vpow.pop %v7091
  %v7093 = vadd.f32 %v7092, 1.0
  %v7094 = vrcp.pop %v7093
  %v7095 = vmul.f32 %v7093, %v7094
  %v7096 = vsub.f32 1.0, %v7095
  %v7097 = vmul.f32 %v7094, %v7096
  %v7098 = vadd.f32 %v7094, %v7097
  %vm7099 = vweird.f32 %v7093
  %vm7100 = vweird.f32 %v7094
  %vm7101 = vmor %vm7099, %vm7100
  %v7102 = vsel %vm7101, %v7094, %v7098
  %v7103 = vand.u32 2147483647, %v7093
  %vm7104 = vcmp.eq.f32.partialorder %v7103, 8.507059e+37
  %v7105 = vand.u32 %v7093, 2147483648
  %v7106 = vor.u32 1.1754944e-38, %v7105
  %v7107 = vsel %vm7104, %v7106, %v7102
  %v7108 = vmul.f32 1.0, %v7107
  %v7109 = vtanh.pop %v7089
  %v7111 = vrot.slane %v7045, 2
  %v7113 = vmul.f32 %v7108, %v7111
  %7115 = vrot.lane.b32.xlu0 %v7109, 96
  %v7116 = vpop.permute.xlu0 %7115
  %v7118 = vmul.f32 %v7108, %v7116
  %7120 = vrot.lane.b32.xlu0 %v7118, 16
  %v7121 = vpop.permute.xlu0 %7120
  %v7123 = vadd.f32 %v7113, %v7121
  %v7124 = vtanh.pop %v7123
  %7126 = vrot.lane.b32.xlu0 %v7124, 32
  %v7127 = vpop.permute.xlu0 %7126
  %v7129 = vmul.f32 %v7108, %v7127
  %7131 = vst [vmem:[#allocation1] sm:$0xff] %v7129
  %s7132 = scalar_lea.vmem [#allocation1], 6
  %v7133 = vld [vmem:[%s7132] ss:$9 sm:$0xff]
  %s7134 = scalar_lea.vmem [#allocation1], 7
  %v7135 = vld [vmem:[%s7134] ss:$9 sm:$0xff]
  %v7136 = vperm.slane %v7133, 0
  %v7137 = vperm.slane %v7135, 0
  %v7140 = vsel %vm3368, %v7136, 0.0
  %v7141 = vsel %vm3368, %v7137, 0.0
  %v7142 = vadd.f32 %v7060, %v7140
  %v7143 = vadd.f32 %v7061, %v7141
  %v7144 = vrot.slane %v7129, 6
  %7145 = vrot.lane.b32.xlu0 %v7144, 80
  %v7146 = vpop.permute.xlu0 %7145
  %v7147 = vsel %vm2730, %v7146, 0
  %7149 = vmatpush.msra.mxu0 0.0
  %7150 = vmatpush.msra.mxu0 0.0
  %7151 = vmatpush.msra.mxu0 0.0
  %7152 = vmatpush.msra.mxu0 0.0
  %7153 = vmatpush.msra.mxu0 0.0
  %7154 = vmatpush.msra.mxu0 0.0
  %7155 = vmatpush.msra.mxu0 0.0
  %7156 = vmatpush.msra.mxu0 0.0
  %7157 = vmatpush.msra.mxu0 0.0
  %7158 = vmatpush.msra.mxu0 0.0
  %7159 = vmatpush.msra.mxu0 0.0
  %7160 = vmatpush.msra.mxu0 0.0
  %7161 = vmatpush.msra.mxu0 0.0
  %7162 = vmatpush.msra.mxu0 0.0
  %7163 = vmatpush.msra.mxu0 %v3314
  %7164 = vmatpush.msra.mxu0 %v3313
  %7165 = vmatmul.f32.gmra.mxu0 %v7147
  %v7166 = vpop.f32.mrf.mxu0
  %v7167 = vadd.f32 0.0, %v7166
  %7168 = vdwg.mxu0
  %v7170 = vrot.slane %v7167, 4
  %v7172 = vadd.f32 %v2784, %v7170
  %v7173 = vxor.u32 %v7172, 2147483648
  %v7174 = vmul.f32 %v7173, 1.442695
  %v7175 = vpow.pop %v7174
  %v7176 = vadd.f32 %v7175, 1.0
  %v7177 = vrcp.pop %v7176
  %v7178 = vmul.f32 %v7176, %v7177
  %v7179 = vsub.f32 1.0, %v7178
  %v7180 = vmul.f32 %v7177, %v7179
  %v7181 = vadd.f32 %v7177, %v7180
  %vm7182 = vweird.f32 %v7176
  %vm7183 = vweird.f32 %v7177
  %vm7184 = vmor %vm7182, %vm7183
  %v7185 = vsel %vm7184, %v7177, %v7181
  %v7186 = vand.u32 2147483647, %v7176
  %vm7187 = vcmp.eq.f32.partialorder %v7186, 8.507059e+37
  %v7188 = vand.u32 %v7176, 2147483648
  %v7189 = vor.u32 1.1754944e-38, %v7188
  %v7190 = vsel %vm7187, %v7189, %v7185
  %v7191 = vmul.f32 1.0, %v7190
  %v7192 = vtanh.pop %v7172
  %v7194 = vrot.slane %v7123, 2
  %v7196 = vmul.f32 %v7191, %v7194
  %7198 = vrot.lane.b32.xlu0 %v7192, 96
  %v7199 = vpop.permute.xlu0 %7198
  %v7201 = vmul.f32 %v7191, %v7199
  %7203 = vrot.lane.b32.xlu0 %v7201, 16
  %v7204 = vpop.permute.xlu0 %7203
  %v7206 = vadd.f32 %v7196, %v7204
  %v7207 = vtanh.pop %v7206
  %7209 = vrot.lane.b32.xlu0 %v7207, 32
  %v7210 = vpop.permute.xlu0 %7209
  %v7212 = vmul.f32 %v7191, %v7210
  %7214 = vst [vmem:[#allocation1] sm:$0xff] %v7212
  %s7215 = scalar_lea.vmem [#allocation1], 4
  %v7216 = vld [vmem:[%s7215] ss:$9 sm:$0xff]
  %s7217 = scalar_lea.vmem [#allocation1], 5
  %v7218 = vld [vmem:[%s7217] ss:$9 sm:$0xff]
  %v7219 = vperm.slane %v7216, 0
  %v7220 = vperm.slane %v7218, 0
  %v7223 = vsel %vm3352, %v7219, 0.0
  %v7224 = vsel %vm3352, %v7220, 0.0
  %v7225 = vadd.f32 %v7142, %v7223
  %v7226 = vadd.f32 %v7143, %v7224
  %v7227 = vrot.slane %v7212, 4
  %7228 = vrot.lane.b32.xlu0 %v7227, 80
  %v7229 = vpop.permute.xlu0 %7228
  %v7230 = vsel %vm2730, %v7229, 0
  %7232 = vmatpush.msra.mxu0 0.0
  %7233 = vmatpush.msra.mxu0 0.0
  %7234 = vmatpush.msra.mxu0 0.0
  %7235 = vmatpush.msra.mxu0 0.0
  %7236 = vmatpush.msra.mxu0 0.0
  %7237 = vmatpush.msra.mxu0 0.0
  %7238 = vmatpush.msra.mxu0 0.0
  %7239 = vmatpush.msra.mxu0 0.0
  %7240 = vmatpush.msra.mxu0 0.0
  %7241 = vmatpush.msra.mxu0 0.0
  %7242 = vmatpush.msra.mxu0 0.0
  %7243 = vmatpush.msra.mxu0 0.0
  %7244 = vmatpush.msra.mxu0 0.0
  %7245 = vmatpush.msra.mxu0 0.0
  %7246 = vmatpush.msra.mxu0 %v3314
  %7247 = vmatpush.msra.mxu0 %v3313
  %7248 = vmatmul.f32.gmra.mxu0 %v7230
  %v7249 = vpop.f32.mrf.mxu0
  %v7250 = vadd.f32 0.0, %v7249
  %7251 = vdwg.mxu0
  %v7253 = vrot.slane %v7250, 6
  %v7255 = vadd.f32 %v2784, %v7253
  %v7256 = vxor.u32 %v7255, 2147483648
  %v7257 = vmul.f32 %v7256, 1.442695
  %v7258 = vpow.pop %v7257
  %v7259 = vadd.f32 %v7258, 1.0
  %v7260 = vrcp.pop %v7259
  %v7261 = vmul.f32 %v7259, %v7260
  %v7262 = vsub.f32 1.0, %v7261
  %v7263 = vmul.f32 %v7260, %v7262
  %v7264 = vadd.f32 %v7260, %v7263
  %vm7265 = vweird.f32 %v7259
  %vm7266 = vweird.f32 %v7260
  %vm7267 = vmor %vm7265, %vm7266
  %v7268 = vsel %vm7267, %v7260, %v7264
  %v7269 = vand.u32 2147483647, %v7259
  %vm7270 = vcmp.eq.f32.partialorder %v7269, 8.507059e+37
  %v7271 = vand.u32 %v7259, 2147483648
  %v7272 = vor.u32 1.1754944e-38, %v7271
  %v7273 = vsel %vm7270, %v7272, %v7268
  %v7274 = vmul.f32 1.0, %v7273
  %v7275 = vtanh.pop %v7255
  %v7277 = vrot.slane %v7206, 2
  %v7279 = vmul.f32 %v7274, %v7277
  %7281 = vrot.lane.b32.xlu0 %v7275, 96
  %v7282 = vpop.permute.xlu0 %7281
  %v7284 = vmul.f32 %v7274, %v7282
  %7286 = vrot.lane.b32.xlu0 %v7284, 16
  %v7287 = vpop.permute.xlu0 %7286
  %v7289 = vadd.f32 %v7279, %v7287
  %v7290 = vtanh.pop %v7289
  %7292 = vrot.lane.b32.xlu0 %v7290, 32
  %v7293 = vpop.permute.xlu0 %7292
  %v7295 = vmul.f32 %v7274, %v7293
  %7297 = vst [vmem:[#allocation1] sm:$0xff] %v7295
  %s7298 = scalar_lea.vmem [#allocation1], 2
  %v7299 = vld [vmem:[%s7298] ss:$9 sm:$0xff]
  %s7300 = scalar_lea.vmem [#allocation1], 3
  %v7301 = vld [vmem:[%s7300] ss:$9 sm:$0xff]
  %v7302 = vperm.slane %v7299, 0
  %v7303 = vperm.slane %v7301, 0
  %v7306 = vsel %vm3336, %v7302, 0.0
  %v7307 = vsel %vm3336, %v7303, 0.0
  %v7308 = vadd.f32 %v7225, %v7306
  %v7309 = vadd.f32 %v7226, %v7307
  %v7310 = vrot.slane %v7295, 2
  %7311 = vrot.lane.b32.xlu0 %v7310, 80
  %v7312 = vpop.permute.xlu0 %7311
  %v7313 = vsel %vm2730, %v7312, 0
  %7315 = vmatpush.msra.mxu0 0.0
  %7316 = vmatpush.msra.mxu0 0.0
  %7317 = vmatpush.msra.mxu0 0.0
  %7318 = vmatpush.msra.mxu0 0.0
  %7319 = vmatpush.msra.mxu0 0.0
  %7320 = vmatpush.msra.mxu0 0.0
  %7321 = vmatpush.msra.mxu0 0.0
  %7322 = vmatpush.msra.mxu0 0.0
  %7323 = vmatpush.msra.mxu0 0.0
  %7324 = vmatpush.msra.mxu0 0.0
  %7325 = vmatpush.msra.mxu0 0.0
  %7326 = vmatpush.msra.mxu0 0.0
  %7327 = vmatpush.msra.mxu0 0.0
  %7328 = vmatpush.msra.mxu0 0.0
  %7329 = vmatpush.msra.mxu0 %v3314
  %7330 = vmatpush.msra.mxu0 %v3313
  %7331 = vmatmul.f32.gmra.mxu0 %v7313
  %v7332 = vpop.f32.mrf.mxu0
  %v7333 = vadd.f32 0.0, %v7332
  %7334 = vdwg.mxu0
  %v7335 = vadd.f32 %v2784, %v7333
  %v7336 = vxor.u32 %v7335, 2147483648
  %v7337 = vmul.f32 %v7336, 1.442695
  %v7338 = vpow.pop %v7337
  %v7339 = vadd.f32 %v7338, 1.0
  %v7340 = vrcp.pop %v7339
  %v7341 = vmul.f32 %v7339, %v7340
  %v7342 = vsub.f32 1.0, %v7341
  %v7343 = vmul.f32 %v7340, %v7342
  %v7344 = vadd.f32 %v7340, %v7343
  %vm7345 = vweird.f32 %v7339
  %vm7346 = vweird.f32 %v7340
  %vm7347 = vmor %vm7345, %vm7346
  %v7348 = vsel %vm7347, %v7340, %v7344
  %v7349 = vand.u32 2147483647, %v7339
  %vm7350 = vcmp.eq.f32.partialorder %v7349, 8.507059e+37
  %v7351 = vand.u32 %v7339, 2147483648
  %v7352 = vor.u32 1.1754944e-38, %v7351
  %v7353 = vsel %vm7350, %v7352, %v7348
  %v7354 = vmul.f32 1.0, %v7353
  %v7355 = vtanh.pop %v7335
  %v7357 = vrot.slane %v7289, 2
  %v7359 = vmul.f32 %v7354, %v7357
  %7361 = vrot.lane.b32.xlu0 %v7355, 96
  %v7362 = vpop.permute.xlu0 %7361
  %v7364 = vmul.f32 %v7354, %v7362
  %7366 = vrot.lane.b32.xlu0 %v7364, 16
  %v7367 = vpop.permute.xlu0 %7366
  %v7369 = vadd.f32 %v7359, %v7367
  %v7370 = vtanh.pop %v7369
  %7372 = vrot.lane.b32.xlu0 %v7370, 32
  %v7373 = vpop.permute.xlu0 %7372
  %v7375 = vmul.f32 %v7354, %v7373
  %v7377 = vrot.slane %v7375, 1
  %v7378 = vperm.slane %v7375, 0
  %v7379 = vperm.slane %v7377, 0
  %v7382 = vsel %vm3320, %v7378, 0.0
  %v7383 = vsel %vm3320, %v7379, 0.0
  %v7384 = vadd.f32 %v7308, %v7382
  %v7385 = vadd.f32 %v7309, %v7383
  %7388 = vrot.lane.b32.xlu0 %v7384, 96
  %v7389 = vpop.permute.xlu0 %7388
  %7390 = vrot.lane.b32.xlu0 %v7385, 96
  %v7391 = vpop.permute.xlu0 %7390
  %v7394 = vsel %vm2730, %v3629, %v7389
  %v7395 = vsel %vm2730, %v3631, %v7391
  %7396 = vrot.lane.b32.xlu0 %v3242, 80
  %v7397 = vpop.permute.xlu0 %7396
  %v7399 = vsel %vm2730, %v7397, %v5838
  %v7400 = vld [vmem:[%s43] sm:$0xff]
  %v7401 = vld [vmem:[%s43 + $0x8] sm:$0xff]
  %v7402 = vld [vmem:[%s43 + $0x10] sm:$0xff]
  %v7403 = vld [vmem:[%s43 + $0x18] sm:$0xff]
  %v7404 = vld [vmem:[%s45] sm:$0x1]
  %v7406 = vperm.slane %v7404, 0
  %v7409 = vrot.slane %v7399, 4
  %v7410 = vsel %vm648, %v7409, 0
  %7412 = vmatpush.msra.mxu0 0.0
  %7413 = vmatpush.msra.mxu0 0.0
  %7414 = vmatpush.msra.mxu0 0.0
  %7415 = vmatpush.msra.mxu0 0.0
  %7416 = vmatpush.msra.mxu0 0.0
  %7417 = vmatpush.msra.mxu0 0.0
  %7418 = vmatpush.msra.mxu0 0.0
  %7419 = vmatpush.msra.mxu0 0.0
  %7420 = vmatpush.msra.mxu0 0.0
  %7421 = vmatpush.msra.mxu0 0.0
  %7422 = vmatpush.msra.mxu0 0.0
  %7423 = vmatpush.msra.mxu0 0.0
  %7424 = vmatpush.msra.mxu0 %v7403
  %7425 = vmatpush.msra.mxu0 %v7402
  %7426 = vmatpush.msra.mxu0 %v7401
  %7427 = vmatpush.msra.mxu0 %v7400
  %7428 = vmatmul.f32.gmra.mxu0 %v7410
  %v7429 = vpop.f32.mrf.mxu0
  %v7430 = vadd.f32 %v7406, %v7429
  %7431 = vdwg.mxu0
  %v7433 = vrot.slane %v7430, 1
  %v7434 = vperm.slane %v7430, 0
  %v7435 = vperm.slane %v7433, 0
  %v7438 = vmul.f32 %v7434, %v626
  %v7439 = vmul.f32 %v7435, %v628
  %v7440 = vsel %vm648, %v7438, 0.0
  %7441 = vadd.xlane.f32.xlu0 %v7440
  %v7442 = vpop.xlane.xlu0 %7441
  %v7443 = vsel %vm648, %v7439, 0.0
  %7444 = vadd.xlane.f32.xlu0 %v7443
  %v7445 = vpop.xlane.xlu0 %7444
  %v7446 = vrot.slane %v7442, 4
  %v7447 = vmax.f32 %v7442, %v7446
  %v7448 = vrot.slane %v7447, 2
  %v7449 = vmax.f32 %v7447, %v7448
  %v7450 = vrot.slane %v7449, 1
  %v7451 = vmax.f32 %v7449, %v7450
  %v7452 = vrot.slane %v7445, 4
  %v7453 = vmax.f32 %v7445, %v7452
  %v7454 = vrot.slane %v7453, 2
  %v7455 = vmax.f32 %v7453, %v7454
  %v7456 = vrot.slane %v7455, 1
  %v7457 = vmax.f32 %v7455, %v7456
  %v7458 = vsub.f32 %v7442, %v7451
  %v7459 = vsub.f32 %v7445, %v7457
  %v7460 = vmul.f32 %v7458, 1.442695
  %v7461 = vpow.pop %v7460
  %v7462 = vmul.f32 %v7459, 1.442695
  %v7463 = vpow.pop %v7462
  %v7464 = vrot.slane %v7461, 4
  %v7465 = vadd.f32 %v7461, %v7464
  %v7466 = vrot.slane %v7465, 2
  %v7467 = vadd.f32 %v7465, %v7466
  %v7468 = vrot.slane %v7467, 1
  %v7469 = vadd.f32 %v7467, %v7468
  %v7470 = vrot.slane %v7463, 4
  %v7471 = vadd.f32 %v7463, %v7470
  %v7472 = vrot.slane %v7471, 2
  %v7473 = vadd.f32 %v7471, %v7472
  %v7474 = vrot.slane %v7473, 1
  %v7475 = vadd.f32 %v7473, %v7474
  %v7476 = vrcp.pop %v7469
  %v7477 = vrcp.pop %v7475
  %v7478 = vmul.f32 %v7461, %v7476
  %v7479 = vmul.f32 %v7463, %v7477
  %v7480 = vmul.f32 %v7478, %v626
  %v7481 = vmul.f32 %v7479, %v628
  %v7482 = vsel %vm648, %v7480, 0.0
  %v7483 = vrot.slane %v7482, 4
  %v7484 = vadd.f32 %v7482, %v7483
  %v7485 = vrot.slane %v7484, 2
  %v7486 = vadd.f32 %v7484, %v7485
  %v7487 = vrot.slane %v7486, 1
  %v7488 = vadd.f32 %v7486, %v7487
  %v7489 = vsel %vm648, %v7481, 0.0
  %v7490 = vrot.slane %v7489, 4
  %v7491 = vadd.f32 %v7489, %v7490
  %v7492 = vrot.slane %v7491, 2
  %v7493 = vadd.f32 %v7491, %v7492
  %v7494 = vrot.slane %v7493, 1
  %v7495 = vadd.f32 %v7493, %v7494
  %v7498 = vsel %vm646, %v1612, %v1605
  %v7502 = vsel %vm646, %v7495, %v7488
  %7503 = vrot.lane.b32.xlu0 %v7502, 32
  %v7504 = vpop.permute.xlu0 %7503
  %v7506 = vsel %vm648, %v7498, %v7504
  %v7507 = vld [vmem:[%s47] sm:$0xff]
  %v7508 = vld [vmem:[%s47 + $0x8] sm:$0xff]
  %v7509 = vld [vmem:[%s47 + $0x10] sm:$0xff]
  %v7510 = vld [vmem:[%s47 + $0x18] sm:$0xff]
  %v7511 = vld [vmem:[%s47 + $0x20] sm:$0xff]
  %v7512 = vld [vmem:[%s47 + $0x28] sm:$0xff]
  %v7513 = vld [vmem:[%s47 + $0x30] sm:$0xff]
  %v7514 = vld [vmem:[%s47 + $0x38] sm:$0xff]
  %v7515 = vld [vmem:[%s49] sm:$0x1]
  %v7517 = vperm.slane %v7515, 0
  %v7520 = vsel %vm3461, %v7506, 0
  %7522 = vmatpush.msra.mxu0 0.0
  %7523 = vmatpush.msra.mxu0 0.0
  %7524 = vmatpush.msra.mxu0 0.0
  %7525 = vmatpush.msra.mxu0 0.0
  %7526 = vmatpush.msra.mxu0 0.0
  %7527 = vmatpush.msra.mxu0 0.0
  %7528 = vmatpush.msra.mxu0 0.0
  %7529 = vmatpush.msra.mxu0 0.0
  %7530 = vmatpush.msra.mxu0 %v7514
  %7531 = vmatpush.msra.mxu0 %v7513
  %7532 = vmatpush.msra.mxu0 %v7512
  %7533 = vmatpush.msra.mxu0 %v7511
  %7534 = vmatpush.msra.mxu0 %v7510
  %7535 = vmatpush.msra.mxu0 %v7509
  %7536 = vmatpush.msra.mxu0 %v7508
  %7537 = vmatpush.msra.mxu0 %v7507
  %7538 = vmatmul.f32.gmra.mxu0 %v7520
  %v7539 = vpop.f32.mrf.mxu0
  %v7540 = vadd.f32 %v7517, %v7539
  %7541 = vdwg.mxu0
  %v7543 = vrot.slane %v7540, 1
  %v7544 = vperm.slane %v7540, 0
  %v7545 = vperm.slane %v7543, 0
  %v7548 = vmul.f32 %v7544, %v7394
  %v7549 = vmul.f32 %v7545, %v7395
  %v7550 = vsel %vm648, %v7548, 0.0
  %7551 = vadd.xlane.f32.xlu0 %v7550
  %v7552 = vpop.xlane.xlu0 %7551
  %v7553 = vsel %vm648, %v7549, 0.0
  %7554 = vadd.xlane.f32.xlu0 %v7553
  %v7555 = vpop.xlane.xlu0 %7554
  %vm7556 = vcmp.lt.s32.totalorder %v3316, 7
  %v7557 = vsel %vm7556, 1, 0
  %vm7558 = vcmp.eq.s32.totalorder %v7557, 1
  %v7559 = vsel %vm7558, %v7552, -1e+30
  %v7560 = vsel %vm7558, %v7555, -1e+30
  %v7561 = vrot.slane %v7559, 4
  %v7562 = vmax.f32 %v7559, %v7561
  %v7563 = vrot.slane %v7562, 2
  %v7564 = vmax.f32 %v7562, %v7563
  %v7565 = vrot.slane %v7564, 1
  %v7566 = vmax.f32 %v7564, %v7565
  %v7567 = vrot.slane %v7560, 4
  %v7568 = vmax.f32 %v7560, %v7567
  %v7569 = vrot.slane %v7568, 2
  %v7570 = vmax.f32 %v7568, %v7569
  %v7571 = vrot.slane %v7570, 1
  %v7572 = vmax.f32 %v7570, %v7571
  %v7573 = vsub.f32 %v7559, %v7566
  %v7574 = vsub.f32 %v7560, %v7572
  %v7575 = vmul.f32 %v7573, 1.442695
  %v7576 = vpow.pop %v7575
  %v7577 = vmul.f32 %v7574, 1.442695
  %v7578 = vpow.pop %v7577
  %v7579 = vrot.slane %v7576, 4
  %v7580 = vadd.f32 %v7576, %v7579
  %v7581 = vrot.slane %v7580, 2
  %v7582 = vadd.f32 %v7580, %v7581
  %v7583 = vrot.slane %v7582, 1
  %v7584 = vadd.f32 %v7582, %v7583
  %v7585 = vrot.slane %v7578, 4
  %v7586 = vadd.f32 %v7578, %v7585
  %v7587 = vrot.slane %v7586, 2
  %v7588 = vadd.f32 %v7586, %v7587
  %v7589 = vrot.slane %v7588, 1
  %v7590 = vadd.f32 %v7588, %v7589
  %v7591 = vrcp.pop %v7584
  %v7592 = vrcp.pop %v7590
  %v7593 = vmul.f32 %v7576, %v7591
  %v7594 = vmul.f32 %v7578, %v7592
  %v7595 = vmul.f32 %v7593, %v7394
  %v7596 = vmul.f32 %v7594, %v7395
  %v7597 = vsel %vm648, %v7595, 0.0
  %v7598 = vrot.slane %v7597, 4
  %v7599 = vadd.f32 %v7597, %v7598
  %v7600 = vrot.slane %v7599, 2
  %v7601 = vadd.f32 %v7599, %v7600
  %v7602 = vrot.slane %v7601, 1
  %v7603 = vadd.f32 %v7601, %v7602
  %v7604 = vsel %vm648, %v7596, 0.0
  %v7605 = vrot.slane %v7604, 4
  %v7606 = vadd.f32 %v7604, %v7605
  %v7607 = vrot.slane %v7606, 2
  %v7608 = vadd.f32 %v7606, %v7607
  %v7609 = vrot.slane %v7608, 1
  %v7610 = vadd.f32 %v7608, %v7609
  %7613 = vrot.lane.b32.xlu0 %v1605, 32
  %v7614 = vpop.permute.xlu0 %7613
  %7615 = vrot.lane.b32.xlu0 %v1612, 32
  %v7616 = vpop.permute.xlu0 %7615
  %v7620 = vrot.slane %v6892, 7
  %7621 = vrot.lane.b32.xlu0 %v7620, 64
  %v7622 = vpop.permute.xlu0 %7621
  %7624 = vrot.lane.b32.xlu0 %v7488, 80
  %v7625 = vpop.permute.xlu0 %7624
  %7626 = vrot.lane.b32.xlu0 %v7495, 80
  %v7627 = vpop.permute.xlu0 %7626
  %7632 = vrot.lane.b32.xlu0 %v7603, 112
  %v7633 = vpop.permute.xlu0 %7632
  %7634 = vrot.lane.b32.xlu0 %v7610, 112
  %v7635 = vpop.permute.xlu0 %7634
  %v7638 = vsel %vm648, %v626, %v7614
  %v7639 = vsel %vm648, %v671, %v7616
  %v7640 = vsel %vm3461, %v7638, %v7622
  %v7641 = vsel %vm3461, %v7639, %v7622
  %v7642 = vsel %vm3883, %v7640, %v7625
  %v7643 = vsel %vm3883, %v7641, %v7627
  %v7644 = vsel %vm3504, %v7642, %v7633
  %v7645 = vsel %vm3504, %v7643, %v7635
  %v7646 = vld [vmem:[%s51] sm:$0xff]
  %v7647 = vld [vmem:[%s51 + $0x8] sm:$0xff]
  %v7648 = vld [vmem:[%s51 + $0x10] sm:$0xff]
  %v7649 = vld [vmem:[%s51 + $0x18] sm:$0xff]
  %v7650 = vld [vmem:[%s51 + $0x20] sm:$0xff]
  %v7651 = vld [vmem:[%s51 + $0x28] sm:$0xff]
  %v7652 = vld [vmem:[%s51 + $0x30] sm:$0xff]
  %v7653 = vld [vmem:[%s51 + $0x38] sm:$0xff]
  %v7654 = vld [vmem:[%s51 + $0x40] sm:$0xff]
  %v7655 = vld [vmem:[%s51 + $0x48] sm:$0xff]
  %v7656 = vld [vmem:[%s51 + $0x50] sm:$0xff]
  %v7657 = vld [vmem:[%s51 + $0x58] sm:$0xff]
  %v7658 = vld [vmem:[%s51 + $0x60] sm:$0xff]
  %v7659 = vld [vmem:[%s51 + $0x68] sm:$0xff]
  %v7660 = vld [vmem:[%s51 + $0x70] sm:$0xff]
  %v7661 = vld [vmem:[%s51 + $0x78] sm:$0xff]
  %v7662 = vld [vmem:[%s51 + $0x80] sm:$0xff]
  %v7663 = vld [vmem:[%s51 + $0x88] sm:$0xff]
  %v7664 = vld [vmem:[%s53] sm:$0x1]
  %v7666 = vperm.slane %v7664, 0
  %vm7670 = vcmask 1040384
  %v7671 = vrot.slane %v7644, 7
  %v7672 = vrot.slane %v7645, 7
  %v7673 = vsel %vm7670, %v7671, %v7672
  %v7674 = vrot.slane %v7633, 7
  %v7675 = vrot.slane %v7635, 7
  %v7676 = vsel %vm7670, %v7674, %v7675
  %v7678 = vsel %vm2730, %v7676, 0
  %7680 = vmatpush.msra.mxu0 %v7661
  %7681 = vmatpush.msra.mxu0 %v7660
  %7682 = vmatpush.msra.mxu0 %v7659
  %7683 = vmatpush.msra.mxu0 %v7658
  %7684 = vmatpush.msra.mxu0 %v7657
  %7685 = vmatpush.msra.mxu0 %v7656
  %7686 = vmatpush.msra.mxu0 %v7655
  %7687 = vmatpush.msra.mxu0 %v7654
  %7688 = vmatpush.msra.mxu0 %v7653
  %7689 = vmatpush.msra.mxu0 %v7652
  %7690 = vmatpush.msra.mxu0 %v7651
  %7691 = vmatpush.msra.mxu0 %v7650
  %7692 = vmatpush.msra.mxu0 %v7649
  %7693 = vmatpush.msra.mxu0 %v7648
  %7694 = vmatpush.msra.mxu0 %v7647
  %7695 = vmatpush.msra.mxu0 %v7646
  %7696 = vmatmul.f32.gmra.mxu0 %v7673
  %v7697 = vpop.f32.mrf.mxu0
  %v7698 = vadd.f32 %v7666, %v7697
  %7699 = vdwg.mxu0
  %7700 = vmatpush.msra.mxu0 0.0
  %7701 = vmatpush.msra.mxu0 0.0
  %7702 = vmatpush.msra.mxu0 0.0
  %7703 = vmatpush.msra.mxu0 0.0
  %7704 = vmatpush.msra.mxu0 0.0
  %7705 = vmatpush.msra.mxu0 0.0
  %7706 = vmatpush.msra.mxu0 0.0
  %7707 = vmatpush.msra.mxu0 0.0
  %7708 = vmatpush.msra.mxu0 0.0
  %7709 = vmatpush.msra.mxu0 0.0
  %7710 = vmatpush.msra.mxu0 0.0
  %7711 = vmatpush.msra.mxu0 0.0
  %7712 = vmatpush.msra.mxu0 0.0
  %7713 = vmatpush.msra.mxu0 0.0
  %7714 = vmatpush.msra.mxu0 %v7663
  %7715 = vmatpush.msra.mxu0 %v7662
  %7716 = vmatmul.f32.gmra.mxu0 %v7678
  %v7717 = vpop.f32.mrf.mxu0
  %v7718 = vadd.f32 %v7698, %v7717
  %7719 = vdwg.mxu0
  %s7720 = scalar_lea.vmem %s59, 14
  %7721 = vst.msk [vmem:[%s7720] sm:$0x3] %vm3570, %v7718
  // Predicated region
  $region118: #{alsap_forward.1} parent=0 // pred_check
    _
  $region119: #{alsap_forward.1} parent=0 // pred_check_branch
    %7723 = sbr.rel (0) target = $region121
  $region120: #{alsap_forward.1} parent=0 // pred_region
    _
  $region121: #{alsap_forward.1} parent=0 // pred_fallthru
    _
  // Predicated region
  $region122: #{alsap_forward.1} parent=0 // pred_check
    _
  $region123: #{alsap_forward.1} parent=0 // pred_check_branch
    %7725 = sbr.rel (0) target = $region125
  $region124: #{alsap_forward.1} parent=0 // pred_region
    _
  $region125: #{alsap_forward.1} parent=0 // pred_fallthru
    _

</llo_original>
